<compile_context>
chip_gen: v6e
topology: v6e:2x2x1
jax: 0.10.0
libtpu: 0.0.40
codegen_flags: <defaults>
</compile_context>

<pallas_src>
import functools
import math

import jax
import jax.numpy as jnp
from jax import lax
from jax.experimental import pallas as pl
from jax.experimental.pallas import tpu as pltpu  # noqa: F401  (TPU backend)

# -------------------- configuration (small demo shapes) --------------------
B = 4            # "batch" of x -> sequence length for attention, LSTM batch
T = 8            # LSTM sequence length (len of x2)
INPUT_DIM = 16   # input_dim
HIDDEN = 32      # hidden_dim
N_HEADS = 4      # n_heads
ATTN_FC = 100    # attnFCdim (hard-coded 100 in the module)
ATTN_PAD = 128   # lane-dense padding of the 100-wide MLP hidden dim (value-exact)
VOCAB = 64       # embedding.weight.shape[0]
EMB_DIM = 16     # embedding.weight.shape[1]
LM1 = 2000       # hard-coded in LM_FC
LM2 = 6000       # hard-coded in LM_FC
VOCAB_PAD = 128  # lane-dense padding of the folded LM-head output (sliced off)


# ============================ the fused kernel ===============================
def _fused_forward_kernel(n_layers, n_heads, t_steps, batch, hdim, vocab,
                          x_ref, x2_ref, tbl_ref,
                          w1_ref, b1_ref, w2_ref, b2_ref, w3_ref, b3_ref,
                          wq_ref, bq_ref, wk_ref, bk_ref, wv_ref, bv_ref,
                          wo_ref, bo_ref,
                          wih_ref, whh_ref, lb_ref,
                          wlm_ref, blm_ref,
                          o_ref):
    """3x AttentionBlock -> LSTM init state -> embedding one-hot lookup ->
    unrolled LSTM -> folded LM head, all in one kernel invocation."""

    def mlp3(inp, idx, softmax_out):
        h = jnp.maximum(
            jnp.dot(inp, w1_ref[idx], preferred_element_type=jnp.float32)
            + b1_ref[idx], 0.0)
        h = jnp.maximum(
            jnp.dot(h, w2_ref[idx], preferred_element_type=jnp.float32)
            + b2_ref[idx], 0.0)
        y = jnp.dot(h, w3_ref[idx], preferred_element_type=jnp.float32) + b3_ref[idx]
        if softmax_out:
            y = y - jnp.max(y, axis=-1, keepdims=True)
            e = jnp.exp(y)
            return e / jnp.sum(e, axis=-1, keepdims=True)
        return jnp.maximum(y, 0.0)

    hd = hdim // n_heads
    scale = 1.0 / math.sqrt(hd)

    # ------------------------- attention blocks -----------------------------
    cur = x_ref[...]
    for l in range(n_layers):                          # static, fully unrolled
        base = 3 * l
        key = mlp3(cur, base + 0, False)
        val = mlp3(cur, base + 1, False)
        qry = mlp3(cur, base + 2, True)
        q = jnp.dot(qry, wq_ref[l], preferred_element_type=jnp.float32) + bq_ref[l]
        k = jnp.dot(key, wk_ref[l], preferred_element_type=jnp.float32) + bk_ref[l]
        v = jnp.dot(val, wv_ref[l], preferred_element_type=jnp.float32) + bv_ref[l]
        kt = k.T                                       # single transpose per layer
        wo_l = wo_ref[l]
        attn = jnp.zeros_like(cur)
        for h_idx in range(n_heads):                   # static head loop
            sl = slice(h_idx * hd, (h_idx + 1) * hd)
            s = jnp.dot(q[:, sl] * scale, kt[sl, :],
                        preferred_element_type=jnp.float32)
            s = s - jnp.max(s, axis=-1, keepdims=True)
            p = jnp.exp(s)
            p = p / jnp.sum(p, axis=-1, keepdims=True)
            ctx = jnp.dot(p, v[:, sl], preferred_element_type=jnp.float32)
            # per-head output projection accumulated -> no concat slab / masked stores
            attn = attn + jnp.dot(ctx, wo_l[sl, :],
                                  preferred_element_type=jnp.float32)
        attn = attn + bo_ref[l]
        cur = attn if l == 0 else attn + cur           # residual adds (lay2/lay3)

    # -------------- LSTM (fully unrolled) + folded LM head ------------------
    wih = wih_ref[...]
    whh = whh_ref[...]
    lb = lb_ref[...]
    tbl = tbl_ref[...]                                 # (VOCAB, EMB_DIM) in VMEM
    wlm = wlm_ref[...]                                 # folded (HIDDEN, VOCAB_PAD)
    blm = blm_ref[...]
    h = cur                                            # h0 = c0 = attention output
    c = cur
    lane_iota = lax.broadcasted_iota(jnp.int32, (batch, vocab), 1)
    for t in range(t_steps):                           # static unroll
        ids = x2_ref[t]                                # (batch, 1) int32
        onehot = (ids == lane_iota).astype(jnp.float32)
        x_t = jnp.dot(onehot, tbl, preferred_element_type=jnp.float32)  # exact gather
        gates = (jnp.dot(x_t, wih, preferred_element_type=jnp.float32)
                 + jnp.dot(h, whh, preferred_element_type=jnp.float32) + lb)
        i = jax.nn.sigmoid(gates[:, 0:hdim])
        f = jax.nn.sigmoid(gates[:, hdim:2 * hdim])
        g = jnp.tanh(gates[:, 2 * hdim:3 * hdim])
        o = jax.nn.sigmoid(gates[:, 3 * hdim:4 * hdim])
        c = f * c + i * g
        h = o * jnp.tanh(c)
        # folded LM head: logits_t = h @ (w1@w2@w3) + ((b1@w2+b2)@w3 + b3)
        o_ref[t] = jnp.dot(h, wlm, preferred_element_type=jnp.float32) + blm


def forward(params, x, x2):
    pk = params["packed"]
    b_ = x.shape[0]
    t_ = x2.shape[1]
    # pad input_dim 16 -> 32 (zero input cols x zero weight rows -> value-exact)
    x_pad = jnp.zeros((b_, HIDDEN), jnp.float32).at[:, :x.shape[1]].set(x)
    x2_tb = jnp.transpose(x2).astype(jnp.int32)[:, :, None]     # (T, B, 1)
    out_pad = pl.pallas_call(
        functools.partial(_fused_forward_kernel, 3, N_HEADS, t_, b_, HIDDEN, VOCAB),
        out_shape=jax.ShapeDtypeStruct((t_, b_, VOCAB_PAD), jnp.float32),
    )(x_pad, x2_tb, params["embedding"],
      pk["W1"], pk["B1"], pk["W2"], pk["B2"], pk["W3"], pk["B3"],
      pk["WQ"], pk["BQ"], pk["WK"], pk["BK"], pk["WV"], pk["BV"],
      pk["WO"], pk["BO"],
      params["lstm_wih"], params["lstm_whh"], params["lstm_b"],
      pk["lm_w"], pk["lm_b"])
    # (T, B, VOCAB_PAD) -> (B, T, VOCAB)
    return jnp.transpose(out_pad[:, :, :VOCAB], (1, 0, 2))


# ============================ pure-JAX reference ============================
def ref_mlp3(x, params, final_softmax):
    (w1, b1), (w2, b2), (w3, b3) = params
    h = jax.nn.relu(x @ w1 + b1)
    h = jax.nn.relu(h @ w2 + b2)
    y = h @ w3 + b3
    return jax.nn.softmax(y, -1) if final_softmax else jax.nn.relu(y)


def ref_mha(q, k, v, p):
    q = q @ p["wq"] + p["bq"]
    k = k @ p["wk"] + p["bk"]
    v = v @ p["wv"] + p["bv"]
    L, E = q.shape
    hd = E // N_HEADS
    qh = q.reshape(L, N_HEADS, hd).transpose(1, 0, 2) / math.sqrt(hd)
    kh = k.reshape(L, N_HEADS, hd).transpose(1, 0, 2)
    vh = v.reshape(L, N_HEADS, hd).transpose(1, 0, 2)
    attn = jax.nn.softmax(jnp.einsum("hqd,hkd->hqk", qh, kh), -1)
    o = jnp.einsum("hqk,hkd->hqd", attn, vh).transpose(1, 0, 2).reshape(L, E)
    return o @ p["wo"] + p["bo"]


def ref_attn_block(p, x):
    return ref_mha(ref_mlp3(x, p["query_gen"], True),
                   ref_mlp3(x, p["key_gen"], False),
                   ref_mlp3(x, p["val_gen"], False), p["mha"])


def ref_forward(params, x, x2):
    o1 = ref_attn_block(params["lay1"], x)
    o2 = ref_attn_block(params["lay2"], o1) + o1
    hidden = ref_attn_block(params["lay3"], o2) + o2
    emb = params["embedding"][x2]
    wih, whh, b = params["lstm_wih"], params["lstm_whh"], params["lstm_b"]

    def step(carry, x_t):
        h, c = carry
        gates = x_t @ wih + h @ whh + b[0]
        i = jax.nn.sigmoid(gates[:, :HIDDEN])
        f = jax.nn.sigmoid(gates[:, HIDDEN:2 * HIDDEN])
        g = jnp.tanh(gates[:, 2 * HIDDEN:3 * HIDDEN])
        o = jax.nn.sigmoid(gates[:, 3 * HIDDEN:4 * HIDDEN])
        c = f * c + i * g
        h = o * jnp.tanh(c)
        return (h, c), h

    _, hs = lax.scan(step, (hidden, hidden), jnp.transpose(emb, (1, 0, 2)))
    out = jnp.transpose(hs, (1, 0, 2)).reshape(B * T, HIDDEN)
    w1, b1, w2, b2, w3, b3 = params["lmfc"]
    logits = ((out @ w1 + b1) @ w2 + b2) @ w3 + b3
    return logits.reshape(B, T, VOCAB)


# ============================ parameter init ================================
def linear_params(key, d_in, d_out):
    kw, kb = jax.random.split(key)
    lim = math.sqrt(6.0 / (d_in + d_out))
    w = jax.random.uniform(kw, (d_in, d_out), jnp.float32, -lim, lim)
    b = jax.random.uniform(kb, (1, d_out), jnp.float32, -0.05, 0.05)
    return w, b


def make_mlp3_params(key, d_in, d_mid, d_out):
    k1, k2, k3 = jax.random.split(key, 3)
    return [linear_params(k1, d_in, d_mid),
            linear_params(k2, d_mid, d_mid),
            linear_params(k3, d_mid, d_out)]


def make_mha_params(key, e):
    ks = jax.random.split(key, 4)
    p = {}
    for name, k in zip(["q", "k", "v", "o"], ks):
        w, b = linear_params(k, e, e)
        p["w" + name] = w
        p["b" + name] = b
    return p


def make_attn_block_params(key, in_dim, hidden, attn_fc):
    k1, k2, k3, k4 = jax.random.split(key, 4)
    return {
        "key_gen": make_mlp3_params(k1, in_dim, attn_fc, hidden),
        "val_gen": make_mlp3_params(k2, in_dim, attn_fc, hidden),
        "query_gen": make_mlp3_params(k3, in_dim, attn_fc, hidden),
        "mha": make_mha_params(k4, hidden),
    }


def init_params(key):
    ks = jax.random.split(key, 10)
    params = {
        "lay1": make_attn_block_params(ks[0], INPUT_DIM, HIDDEN, ATTN_FC),
        "lay2": make_attn_block_params(ks[1], HIDDEN, HIDDEN, ATTN_FC),
        "lay3": make_attn_block_params(ks[2], HIDDEN, HIDDEN, ATTN_FC),
        "embedding": jax.random.normal(ks[3], (VOCAB, EMB_DIM), jnp.float32) * 0.1,
        "lstm_wih": jax.random.uniform(ks[4], (EMB_DIM, 4 * HIDDEN), jnp.float32,
                                       -0.1, 0.1),
        "lstm_whh": jax.random.uniform(ks[5], (HIDDEN, 4 * HIDDEN), jnp.float32,
                                       -0.1, 0.1),
        "lstm_b": jax.random.uniform(ks[6], (1, 4 * HIDDEN), jnp.float32, -0.1, 0.1),
    }
    kl1, kl2, kl3 = jax.random.split(ks[7], 3)
    w1, b1 = linear_params(kl1, HIDDEN, LM1)
    w2, b2 = linear_params(kl2, LM1, LM2)
    w3, b3 = linear_params(kl3, LM2, VOCAB)
    params["lmfc"] = (w1, b1, w2, b2, w3, b3)
    return params
    # TODO(synk): nn.LSTM(dropout=0.2) is a no-op for a single-layer LSTM (inference) -> omitted.


def pack_params(params):
    """Stack + zero-pad attention weights ONCE at init (lane-dense, value-exact)
    and fold the activation-free LM_FC chain into one (HIDDEN x VOCAB) linear."""

    def pad_mlp(mlp):
        (w1, b1), (w2, b2), (w3, b3) = mlp
        d_in = w1.shape[0]
        w1p = jnp.zeros((HIDDEN, ATTN_PAD), jnp.float32).at[:d_in, :ATTN_FC].set(w1)
        b1p = jnp.zeros((1, ATTN_PAD), jnp.float32).at[:, :ATTN_FC].set(b1)
        w2p = jnp.zeros((ATTN_PAD, ATTN_PAD), jnp.float32).at[:ATTN_FC, :ATTN_FC].set(w2)
        b2p = jnp.zeros((1, ATTN_PAD), jnp.float32).at[:, :ATTN_FC].set(b2)
        w3p = jnp.zeros((ATTN_PAD, HIDDEN), jnp.float32).at[:ATTN_FC, :].set(w3)
        return w1p, b1p, w2p, b2p, w3p, b3

    W1, B1, W2, B2, W3, B3 = [], [], [], [], [], []
    WQ, BQ, WK, BK, WV, BV, WO, BO = ([] for _ in range(8))
    for lname in ("lay1", "lay2", "lay3"):
        lay = params[lname]
        for mname in ("key_gen", "val_gen", "query_gen"):
            w1p, b1p, w2p, b2p, w3p, b3 = pad_mlp(lay[mname])
            W1.append(w1p); B1.append(b1p); W2.append(w2p)
            B2.append(b2p); W3.append(w3p); B3.append(b3)
        mha = lay["mha"]
        WQ.append(mha["wq"]); BQ.append(mha["bq"])
        WK.append(mha["wk"]); BK.append(mha["bk"])
        WV.append(mha["wv"]); BV.append(mha["bv"])
        WO.append(mha["wo"]); BO.append(mha["bo"])

    # Fold LM_FC (no nonlinearity between its linears):
    #   logits = h @ (w1@w2@w3) + ((b1@w2 + b2)@w3 + b3)
    # Done once at pack time in HIGHEST precision; removes ~52 MB/forward of
    # weight streaming that dominated wall time.
    w1, b1, w2, b2, w3, b3 = params["lmfc"]
    hi = lax.Precision.HIGHEST
    w_lm = jnp.dot(jnp.dot(w1, w2, precision=hi), w3, precision=hi)          # (H, V)
    b_lm = jnp.dot(jnp.dot(b1, w2, precision=hi) + b2, w3, precision=hi) + b3  # (1, V)

    packed = {
        "W1": jnp.stack(W1), "B1": jnp.stack(B1), "W2": jnp.stack(W2),
        "B2": jnp.stack(B2), "W3": jnp.stack(W3), "B3": jnp.stack(B3),
        "WQ": jnp.stack(WQ), "BQ": jnp.stack(BQ), "WK": jnp.stack(WK),
        "BK": jnp.stack(BK), "WV": jnp.stack(WV), "BV": jnp.stack(BV),
        "WO": jnp.stack(WO), "BO": jnp.stack(BO),
        # pad folded head to 128 lanes (dense stores); extra cols are zero, sliced off
        "lm_w": jnp.zeros((HIDDEN, VOCAB_PAD), jnp.float32).at[:, :VOCAB].set(w_lm),
        "lm_b": jnp.zeros((1, VOCAB_PAD), jnp.float32).at[:, :VOCAB].set(b_lm),
    }
    return packed


# ============================ main ==========================================
if __name__ == "__main__":
    root = jax.random.PRNGKey(0)
    kparams, kx, kx2 = jax.random.split(root, 3)
    params = init_params(kparams)
    params["packed"] = pack_params(params)

    x = jax.random.normal(kx, (B, INPUT_DIM), jnp.float32)
    x2 = jax.random.randint(kx2, (B, T), 0, VOCAB)

    out = jax.jit(forward)(params, x, x2)
    out = jax.block_until_ready(out)

    ref = ref_forward(params, x, x2)
    assert out.shape == (B, T, VOCAB), out.shape
    max_err = float(jnp.max(jnp.abs(out - ref)))
    assert max_err < 2e-3, f"mismatch vs reference: {max_err}"
    print("KERNEL_OK")
</pallas_src>

<mosaic_0001>
module attributes {stable_mosaic.version = 11 : i64} {
  func.func @_fused_forward_kernel(%arg0: memref<4x32xf32, #tpu.memory_space<vmem>>, %arg1: memref<8x4x1xi32, #tpu.memory_space<vmem>>, %arg2: memref<64x16xf32, #tpu.memory_space<vmem>>, %arg3: memref<9x32x128xf32, #tpu.memory_space<vmem>>, %arg4: memref<9x1x128xf32, #tpu.memory_space<vmem>>, %arg5: memref<9x128x128xf32, #tpu.memory_space<vmem>>, %arg6: memref<9x1x128xf32, #tpu.memory_space<vmem>>, %arg7: memref<9x128x32xf32, #tpu.memory_space<vmem>>, %arg8: memref<9x1x32xf32, #tpu.memory_space<vmem>>, %arg9: memref<3x32x32xf32, #tpu.memory_space<vmem>>, %arg10: memref<3x1x32xf32, #tpu.memory_space<vmem>>, %arg11: memref<3x32x32xf32, #tpu.memory_space<vmem>>, %arg12: memref<3x1x32xf32, #tpu.memory_space<vmem>>, %arg13: memref<3x32x32xf32, #tpu.memory_space<vmem>>, %arg14: memref<3x1x32xf32, #tpu.memory_space<vmem>>, %arg15: memref<3x32x32xf32, #tpu.memory_space<vmem>>, %arg16: memref<3x1x32xf32, #tpu.memory_space<vmem>>, %arg17: memref<16x128xf32, #tpu.memory_space<vmem>>, %arg18: memref<32x128xf32, #tpu.memory_space<vmem>>, %arg19: memref<1x128xf32, #tpu.memory_space<vmem>>, %arg20: memref<32x128xf32, #tpu.memory_space<vmem>>, %arg21: memref<1x128xf32, #tpu.memory_space<vmem>>, %arg22: memref<8x4x128xf32, #tpu.memory_space<vmem>>) attributes {dimension_semantics = [], scalar_prefetch = 0 : i64, scratch_operands = 0 : i64, tpu.core_type = #tpu.core_type<tc>} {
    %c0 = arith.constant 0 : index
    %c0_0 = arith.constant 0 : index
    %0 = vector.load %arg0[%c0, %c0_0] : memref<4x32xf32, #tpu.memory_space<vmem>>, vector<4x32xf32>
    %c0_1 = arith.constant 0 : index
    %c0_2 = arith.constant 0 : index
    %c0_3 = arith.constant 0 : index
    %1 = vector.load %arg3[%c0_1, %c0_2, %c0_3] : memref<9x32x128xf32, #tpu.memory_space<vmem>>, vector<1x32x128xf32>
    %2 = vector.shape_cast %1 : vector<1x32x128xf32> to vector<32x128xf32>
    %cst = arith.constant dense<0.000000e+00> : vector<4x128xf32>
    %3 = tpu.matmul %0, %2, %cst {dimension_numbers = #tpu.dot_dimension_numbers<[1], [0], [0], [1], [0, 0, 1, 1], [], []>} : vector<4x32xf32>, vector<32x128xf32>, vector<4x128xf32> -> vector<4x128xf32>
    %c0_4 = arith.constant 0 : index
    %c0_5 = arith.constant 0 : index
    %c0_6 = arith.constant 0 : index
    %4 = vector.load %arg4[%c0_4, %c0_5, %c0_6] : memref<9x1x128xf32, #tpu.memory_space<vmem>>, vector<1x1x128xf32>
    %5 = vector.shape_cast %4 : vector<1x1x128xf32> to vector<1x128xf32>
    %6 = vector.broadcast %5 : vector<1x128xf32> to vector<4x128xf32>
    %7 = arith.addf %3, %6 : vector<4x128xf32>
    %cst_7 = arith.constant 0.000000e+00 : f32
    %8 = vector.broadcast %cst_7 : f32 to vector<4x128xf32>
    %9 = arith.maximumf %7, %8 : vector<4x128xf32>
    %c0_8 = arith.constant 0 : index
    %c0_9 = arith.constant 0 : index
    %c0_10 = arith.constant 0 : index
    %10 = vector.load %arg5[%c0_8, %c0_9, %c0_10] : memref<9x128x128xf32, #tpu.memory_space<vmem>>, vector<1x128x128xf32>
    %11 = vector.shape_cast %10 : vector<1x128x128xf32> to vector<128x128xf32>
    %cst_11 = arith.constant dense<0.000000e+00> : vector<4x128xf32>
    %12 = tpu.matmul %9, %11, %cst_11 {dimension_numbers = #tpu.dot_dimension_numbers<[1], [0], [0], [1], [0, 0, 1, 1], [], []>} : vector<4x128xf32>, vector<128x128xf32>, vector<4x128xf32> -> vector<4x128xf32>
    %c0_12 = arith.constant 0 : index
    %c0_13 = arith.constant 0 : index
    %c0_14 = arith.constant 0 : index
    %13 = vector.load %arg6[%c0_12, %c0_13, %c0_14] : memref<9x1x128xf32, #tpu.memory_space<vmem>>, vector<1x1x128xf32>
    %14 = vector.shape_cast %13 : vector<1x1x128xf32> to vector<1x128xf32>
    %15 = vector.broadcast %14 : vector<1x128xf32> to vector<4x128xf32>
    %16 = arith.addf %12, %15 : vector<4x128xf32>
    %cst_15 = arith.constant 0.000000e+00 : f32
    %17 = vector.broadcast %cst_15 : f32 to vector<4x128xf32>
    %18 = arith.maximumf %16, %17 : vector<4x128xf32>
    %c0_16 = arith.constant 0 : index
    %c0_17 = arith.constant 0 : index
    %c0_18 = arith.constant 0 : index
    %19 = vector.load %arg7[%c0_16, %c0_17, %c0_18] : memref<9x128x32xf32, #tpu.memory_space<vmem>>, vector<1x128x32xf32>
    %20 = vector.shape_cast %19 : vector<1x128x32xf32> to vector<128x32xf32>
    %cst_19 = arith.constant dense<0.000000e+00> : vector<4x32xf32>
    %21 = tpu.matmul %18, %20, %cst_19 {dimension_numbers = #tpu.dot_dimension_numbers<[1], [0], [0], [1], [0, 0, 1, 1], [], []>} : vector<4x128xf32>, vector<128x32xf32>, vector<4x32xf32> -> vector<4x32xf32>
    %c0_20 = arith.constant 0 : index
    %c0_21 = arith.constant 0 : index
    %c0_22 = arith.constant 0 : index
    %22 = vector.load %arg8[%c0_20, %c0_21, %c0_22] : memref<9x1x32xf32, #tpu.memory_space<vmem>>, vector<1x1x32xf32>
    %23 = vector.shape_cast %22 : vector<1x1x32xf32> to vector<1x32xf32>
    %24 = vector.broadcast %23 : vector<1x32xf32> to vector<4x32xf32>
    %25 = arith.addf %21, %24 : vector<4x32xf32>
    %cst_23 = arith.constant 0.000000e+00 : f32
    %26 = vector.broadcast %cst_23 : f32 to vector<4x32xf32>
    %27 = arith.maximumf %25, %26 : vector<4x32xf32>
    %c1 = arith.constant 1 : index
    %c0_24 = arith.constant 0 : index
    %c0_25 = arith.constant 0 : index
    %28 = vector.load %arg3[%c1, %c0_24, %c0_25] : memref<9x32x128xf32, #tpu.memory_space<vmem>>, vector<1x32x128xf32>
    %29 = vector.shape_cast %28 : vector<1x32x128xf32> to vector<32x128xf32>
    %cst_26 = arith.constant dense<0.000000e+00> : vector<4x128xf32>
    %30 = tpu.matmul %0, %29, %cst_26 {dimension_numbers = #tpu.dot_dimension_numbers<[1], [0], [0], [1], [0, 0, 1, 1], [], []>} : vector<4x32xf32>, vector<32x128xf32>, vector<4x128xf32> -> vector<4x128xf32>
    %c1_27 = arith.constant 1 : index
    %c0_28 = arith.constant 0 : index
    %c0_29 = arith.constant 0 : index
    %31 = vector.load %arg4[%c1_27, %c0_28, %c0_29] : memref<9x1x128xf32, #tpu.memory_space<vmem>>, vector<1x1x128xf32>
    %32 = vector.shape_cast %31 : vector<1x1x128xf32> to vector<1x128xf32>
    %33 = vector.broadcast %32 : vector<1x128xf32> to vector<4x128xf32>
    %34 = arith.addf %30, %33 : vector<4x128xf32>
    %cst_30 = arith.constant 0.000000e+00 : f32
    %35 = vector.broadcast %cst_30 : f32 to vector<4x128xf32>
    %36 = arith.maximumf %34, %35 : vector<4x128xf32>
    %c1_31 = arith.constant 1 : index
    %c0_32 = arith.constant 0 : index
    %c0_33 = arith.constant 0 : index
    %37 = vector.load %arg5[%c1_31, %c0_32, %c0_33] : memref<9x128x128xf32, #tpu.memory_space<vmem>>, vector<1x128x128xf32>
    %38 = vector.shape_cast %37 : vector<1x128x128xf32> to vector<128x128xf32>
    %cst_34 = arith.constant dense<0.000000e+00> : vector<4x128xf32>
    %39 = tpu.matmul %36, %38, %cst_34 {dimension_numbers = #tpu.dot_dimension_numbers<[1], [0], [0], [1], [0, 0, 1, 1], [], []>} : vector<4x128xf32>, vector<128x128xf32>, vector<4x128xf32> -> vector<4x128xf32>
    %c1_35 = arith.constant 1 : index
    %c0_36 = arith.constant 0 : index
    %c0_37 = arith.constant 0 : index
    %40 = vector.load %arg6[%c1_35, %c0_36, %c0_37] : memref<9x1x128xf32, #tpu.memory_space<vmem>>, vector<1x1x128xf32>
    %41 = vector.shape_cast %40 : vector<1x1x128xf32> to vector<1x128xf32>
    %42 = vector.broadcast %41 : vector<1x128xf32> to vector<4x128xf32>
    %43 = arith.addf %39, %42 : vector<4x128xf32>
    %cst_38 = arith.constant 0.000000e+00 : f32
    %44 = vector.broadcast %cst_38 : f32 to vector<4x128xf32>
    %45 = arith.maximumf %43, %44 : vector<4x128xf32>
    %c1_39 = arith.constant 1 : index
    %c0_40 = arith.constant 0 : index
    %c0_41 = arith.constant 0 : index
    %46 = vector.load %arg7[%c1_39, %c0_40, %c0_41] : memref<9x128x32xf32, #tpu.memory_space<vmem>>, vector<1x128x32xf32>
    %47 = vector.shape_cast %46 : vector<1x128x32xf32> to vector<128x32xf32>
    %cst_42 = arith.constant dense<0.000000e+00> : vector<4x32xf32>
    %48 = tpu.matmul %45, %47, %cst_42 {dimension_numbers = #tpu.dot_dimension_numbers<[1], [0], [0], [1], [0, 0, 1, 1], [], []>} : vector<4x128xf32>, vector<128x32xf32>, vector<4x32xf32> -> vector<4x32xf32>
    %c1_43 = arith.constant 1 : index
    %c0_44 = arith.constant 0 : index
    %c0_45 = arith.constant 0 : index
    %49 = vector.load %arg8[%c1_43, %c0_44, %c0_45] : memref<9x1x32xf32, #tpu.memory_space<vmem>>, vector<1x1x32xf32>
    %50 = vector.shape_cast %49 : vector<1x1x32xf32> to vector<1x32xf32>
    %51 = vector.broadcast %50 : vector<1x32xf32> to vector<4x32xf32>
    %52 = arith.addf %48, %51 : vector<4x32xf32>
    %cst_46 = arith.constant 0.000000e+00 : f32
    %53 = vector.broadcast %cst_46 : f32 to vector<4x32xf32>
    %54 = arith.maximumf %52, %53 : vector<4x32xf32>
    %c2 = arith.constant 2 : index
    %c0_47 = arith.constant 0 : index
    %c0_48 = arith.constant 0 : index
    %55 = vector.load %arg3[%c2, %c0_47, %c0_48] : memref<9x32x128xf32, #tpu.memory_space<vmem>>, vector<1x32x128xf32>
    %56 = vector.shape_cast %55 : vector<1x32x128xf32> to vector<32x128xf32>
    %cst_49 = arith.constant dense<0.000000e+00> : vector<4x128xf32>
    %57 = tpu.matmul %0, %56, %cst_49 {dimension_numbers = #tpu.dot_dimension_numbers<[1], [0], [0], [1], [0, 0, 1, 1], [], []>} : vector<4x32xf32>, vector<32x128xf32>, vector<4x128xf32> -> vector<4x128xf32>
    %c2_50 = arith.constant 2 : index
    %c0_51 = arith.constant 0 : index
    %c0_52 = arith.constant 0 : index
    %58 = vector.load %arg4[%c2_50, %c0_51, %c0_52] : memref<9x1x128xf32, #tpu.memory_space<vmem>>, vector<1x1x128xf32>
    %59 = vector.shape_cast %58 : vector<1x1x128xf32> to vector<1x128xf32>
    %60 = vector.broadcast %59 : vector<1x128xf32> to vector<4x128xf32>
    %61 = arith.addf %57, %60 : vector<4x128xf32>
    %cst_53 = arith.constant 0.000000e+00 : f32
    %62 = vector.broadcast %cst_53 : f32 to vector<4x128xf32>
    %63 = arith.maximumf %61, %62 : vector<4x128xf32>
    %c2_54 = arith.constant 2 : index
    %c0_55 = arith.constant 0 : index
    %c0_56 = arith.constant 0 : index
    %64 = vector.load %arg5[%c2_54, %c0_55, %c0_56] : memref<9x128x128xf32, #tpu.memory_space<vmem>>, vector<1x128x128xf32>
    %65 = vector.shape_cast %64 : vector<1x128x128xf32> to vector<128x128xf32>
    %cst_57 = arith.constant dense<0.000000e+00> : vector<4x128xf32>
    %66 = tpu.matmul %63, %65, %cst_57 {dimension_numbers = #tpu.dot_dimension_numbers<[1], [0], [0], [1], [0, 0, 1, 1], [], []>} : vector<4x128xf32>, vector<128x128xf32>, vector<4x128xf32> -> vector<4x128xf32>
    %c2_58 = arith.constant 2 : index
    %c0_59 = arith.constant 0 : index
    %c0_60 = arith.constant 0 : index
    %67 = vector.load %arg6[%c2_58, %c0_59, %c0_60] : memref<9x1x128xf32, #tpu.memory_space<vmem>>, vector<1x1x128xf32>
    %68 = vector.shape_cast %67 : vector<1x1x128xf32> to vector<1x128xf32>
    %69 = vector.broadcast %68 : vector<1x128xf32> to vector<4x128xf32>
    %70 = arith.addf %66, %69 : vector<4x128xf32>
    %cst_61 = arith.constant 0.000000e+00 : f32
    %71 = vector.broadcast %cst_61 : f32 to vector<4x128xf32>
    %72 = arith.maximumf %70, %71 : vector<4x128xf32>
    %c2_62 = arith.constant 2 : index
    %c0_63 = arith.constant 0 : index
    %c0_64 = arith.constant 0 : index
    %73 = vector.load %arg7[%c2_62, %c0_63, %c0_64] : memref<9x128x32xf32, #tpu.memory_space<vmem>>, vector<1x128x32xf32>
    %74 = vector.shape_cast %73 : vector<1x128x32xf32> to vector<128x32xf32>
    %cst_65 = arith.constant dense<0.000000e+00> : vector<4x32xf32>
    %75 = tpu.matmul %72, %74, %cst_65 {dimension_numbers = #tpu.dot_dimension_numbers<[1], [0], [0], [1], [0, 0, 1, 1], [], []>} : vector<4x128xf32>, vector<128x32xf32>, vector<4x32xf32> -> vector<4x32xf32>
    %c2_66 = arith.constant 2 : index
    %c0_67 = arith.constant 0 : index
    %c0_68 = arith.constant 0 : index
    %76 = vector.load %arg8[%c2_66, %c0_67, %c0_68] : memref<9x1x32xf32, #tpu.memory_space<vmem>>, vector<1x1x32xf32>
    %77 = vector.shape_cast %76 : vector<1x1x32xf32> to vector<1x32xf32>
    %78 = vector.broadcast %77 : vector<1x32xf32> to vector<4x32xf32>
    %79 = arith.addf %75, %78 : vector<4x32xf32>
    %cst_69 = arith.constant dense<0xFF800000> : vector<4xf32>
    %80 = vector.multi_reduction <maximumf>, %79, %cst_69 [1] : vector<4x32xf32> to vector<4xf32>
    %81 = vector.shape_cast %80 : vector<4xf32> to vector<4x1xf32>
    %82 = vector.broadcast %81 : vector<4x1xf32> to vector<4x32xf32>
    %83 = arith.subf %79, %82 : vector<4x32xf32>
    %84 = math.exp %83 : vector<4x32xf32>
    %cst_70 = arith.constant dense<0.000000e+00> : vector<4xf32>
    %85 = vector.multi_reduction <add>, %84, %cst_70 [1] : vector<4x32xf32> to vector<4xf32>
    %86 = vector.shape_cast %85 : vector<4xf32> to vector<4x1xf32>
    %87 = vector.broadcast %86 : vector<4x1xf32> to vector<4x32xf32>
    %88 = arith.divf %84, %87 : vector<4x32xf32>
    %c0_71 = arith.constant 0 : index
    %c0_72 = arith.constant 0 : index
    %c0_73 = arith.constant 0 : index
    %89 = vector.load %arg9[%c0_71, %c0_72, %c0_73] : memref<3x32x32xf32, #tpu.memory_space<vmem>>, vector<1x32x32xf32>
    %90 = vector.shape_cast %89 : vector<1x32x32xf32> to vector<32x32xf32>
    %cst_74 = arith.constant dense<0.000000e+00> : vector<4x32xf32>
    %91 = tpu.matmul %88, %90, %cst_74 {dimension_numbers = #tpu.dot_dimension_numbers<[1], [0], [0], [1], [0, 0, 1, 1], [], []>} : vector<4x32xf32>, vector<32x32xf32>, vector<4x32xf32> -> vector<4x32xf32>
    %c0_75 = arith.constant 0 : index
    %c0_76 = arith.constant 0 : index
    %c0_77 = arith.constant 0 : index
    %92 = vector.load %arg10[%c0_75, %c0_76, %c0_77] : memref<3x1x32xf32, #tpu.memory_space<vmem>>, vector<1x1x32xf32>
    %93 = vector.shape_cast %92 : vector<1x1x32xf32> to vector<1x32xf32>
    %94 = vector.broadcast %93 : vector<1x32xf32> to vector<4x32xf32>
    %95 = arith.addf %91, %94 : vector<4x32xf32>
    %c0_78 = arith.constant 0 : index
    %c0_79 = arith.constant 0 : index
    %c0_80 = arith.constant 0 : index
    %96 = vector.load %arg11[%c0_78, %c0_79, %c0_80] : memref<3x32x32xf32, #tpu.memory_space<vmem>>, vector<1x32x32xf32>
    %97 = vector.shape_cast %96 : vector<1x32x32xf32> to vector<32x32xf32>
    %cst_81 = arith.constant dense<0.000000e+00> : vector<4x32xf32>
    %98 = tpu.matmul %27, %97, %cst_81 {dimension_numbers = #tpu.dot_dimension_numbers<[1], [0], [0], [1], [0, 0, 1, 1], [], []>} : vector<4x32xf32>, vector<32x32xf32>, vector<4x32xf32> -> vector<4x32xf32>
    %c0_82 = arith.constant 0 : index
    %c0_83 = arith.constant 0 : index
    %c0_84 = arith.constant 0 : index
    %99 = vector.load %arg12[%c0_82, %c0_83, %c0_84] : memref<3x1x32xf32, #tpu.memory_space<vmem>>, vector<1x1x32xf32>
    %100 = vector.shape_cast %99 : vector<1x1x32xf32> to vector<1x32xf32>
    %101 = vector.broadcast %100 : vector<1x32xf32> to vector<4x32xf32>
    %102 = arith.addf %98, %101 : vector<4x32xf32>
    %c0_85 = arith.constant 0 : index
    %c0_86 = arith.constant 0 : index
    %c0_87 = arith.constant 0 : index
    %103 = vector.load %arg13[%c0_85, %c0_86, %c0_87] : memref<3x32x32xf32, #tpu.memory_space<vmem>>, vector<1x32x32xf32>
    %104 = vector.shape_cast %103 : vector<1x32x32xf32> to vector<32x32xf32>
    %cst_88 = arith.constant dense<0.000000e+00> : vector<4x32xf32>
    %105 = tpu.matmul %54, %104, %cst_88 {dimension_numbers = #tpu.dot_dimension_numbers<[1], [0], [0], [1], [0, 0, 1, 1], [], []>} : vector<4x32xf32>, vector<32x32xf32>, vector<4x32xf32> -> vector<4x32xf32>
    %c0_89 = arith.constant 0 : index
    %c0_90 = arith.constant 0 : index
    %c0_91 = arith.constant 0 : index
    %106 = vector.load %arg14[%c0_89, %c0_90, %c0_91] : memref<3x1x32xf32, #tpu.memory_space<vmem>>, vector<1x1x32xf32>
    %107 = vector.shape_cast %106 : vector<1x1x32xf32> to vector<1x32xf32>
    %108 = vector.broadcast %107 : vector<1x32xf32> to vector<4x32xf32>
    %109 = arith.addf %105, %108 : vector<4x32xf32>
    %110 = tpu.transpose %102, [1, 0] : vector<4x32xf32> -> vector<32x4xf32>
    %c0_92 = arith.constant 0 : index
    %c0_93 = arith.constant 0 : index
    %c0_94 = arith.constant 0 : index
    %111 = vector.load %arg15[%c0_92, %c0_93, %c0_94] : memref<3x32x32xf32, #tpu.memory_space<vmem>>, vector<1x32x32xf32>
    %112 = vector.shape_cast %111 : vector<1x32x32xf32> to vector<32x32xf32>
    %cst_95 = arith.constant 0.000000e+00 : f32
    %113 = vector.broadcast %cst_95 : f32 to vector<4x32xf32>
    %114 = vector.extract_strided_slice %95 {offsets = [0, 0], sizes = [4, 8], strides = [1, 1]} : vector<4x32xf32> to vector<4x8xf32>
    %cst_96 = arith.constant 0.353553385 : f32
    %115 = vector.broadcast %cst_96 : f32 to vector<4x8xf32>
    %116 = arith.mulf %114, %115 : vector<4x8xf32>
    %117 = vector.extract_strided_slice %110 {offsets = [0, 0], sizes = [8, 4], strides = [1, 1]} : vector<32x4xf32> to vector<8x4xf32>
    %cst_97 = arith.constant dense<0.000000e+00> : vector<4x4xf32>
    %118 = tpu.matmul %116, %117, %cst_97 {dimension_numbers = #tpu.dot_dimension_numbers<[1], [0], [0], [1], [0, 0, 1, 1], [], []>} : vector<4x8xf32>, vector<8x4xf32>, vector<4x4xf32> -> vector<4x4xf32>
    %cst_98 = arith.constant dense<0xFF800000> : vector<4xf32>
    %119 = vector.multi_reduction <maximumf>, %118, %cst_98 [1] : vector<4x4xf32> to vector<4xf32>
    %120 = vector.shape_cast %119 : vector<4xf32> to vector<4x1xf32>
    %121 = vector.broadcast %120 : vector<4x1xf32> to vector<4x4xf32>
    %122 = arith.subf %118, %121 : vector<4x4xf32>
    %123 = math.exp %122 : vector<4x4xf32>
    %cst_99 = arith.constant dense<0.000000e+00> : vector<4xf32>
    %124 = vector.multi_reduction <add>, %123, %cst_99 [1] : vector<4x4xf32> to vector<4xf32>
    %125 = vector.shape_cast %124 : vector<4xf32> to vector<4x1xf32>
    %126 = vector.broadcast %125 : vector<4x1xf32> to vector<4x4xf32>
    %127 = arith.divf %123, %126 : vector<4x4xf32>
    %128 = vector.extract_strided_slice %109 {offsets = [0, 0], sizes = [4, 8], strides = [1, 1]} : vector<4x32xf32> to vector<4x8xf32>
    %cst_100 = arith.constant dense<0.000000e+00> : vector<4x8xf32>
    %129 = tpu.matmul %127, %128, %cst_100 {dimension_numbers = #tpu.dot_dimension_numbers<[1], [0], [0], [1], [0, 0, 1, 1], [], []>} : vector<4x4xf32>, vector<4x8xf32>, vector<4x8xf32> -> vector<4x8xf32>
    %130 = vector.extract_strided_slice %112 {offsets = [0, 0], sizes = [8, 32], strides = [1, 1]} : vector<32x32xf32> to vector<8x32xf32>
    %cst_101 = arith.constant dense<0.000000e+00> : vector<4x32xf32>
    %131 = tpu.matmul %129, %130, %cst_101 {dimension_numbers = #tpu.dot_dimension_numbers<[1], [0], [0], [1], [0, 0, 1, 1], [], []>} : vector<4x8xf32>, vector<8x32xf32>, vector<4x32xf32> -> vector<4x32xf32>
    %132 = arith.addf %113, %131 : vector<4x32xf32>
    %133 = vector.extract_strided_slice %95 {offsets = [0, 8], sizes = [4, 8], strides = [1, 1]} : vector<4x32xf32> to vector<4x8xf32>
    %cst_102 = arith.constant 0.353553385 : f32
    %134 = vector.broadcast %cst_102 : f32 to vector<4x8xf32>
    %135 = arith.mulf %133, %134 : vector<4x8xf32>
    %136 = vector.extract_strided_slice %110 {offsets = [8, 0], sizes = [8, 4], strides = [1, 1]} : vector<32x4xf32> to vector<8x4xf32>
    %cst_103 = arith.constant dense<0.000000e+00> : vector<4x4xf32>
    %137 = tpu.matmul %135, %136, %cst_103 {dimension_numbers = #tpu.dot_dimension_numbers<[1], [0], [0], [1], [0, 0, 1, 1], [], []>} : vector<4x8xf32>, vector<8x4xf32>, vector<4x4xf32> -> vector<4x4xf32>
    %cst_104 = arith.constant dense<0xFF800000> : vector<4xf32>
    %138 = vector.multi_reduction <maximumf>, %137, %cst_104 [1] : vector<4x4xf32> to vector<4xf32>
    %139 = vector.shape_cast %138 : vector<4xf32> to vector<4x1xf32>
    %140 = vector.broadcast %139 : vector<4x1xf32> to vector<4x4xf32>
    %141 = arith.subf %137, %140 : vector<4x4xf32>
    %142 = math.exp %141 : vector<4x4xf32>
    %cst_105 = arith.constant dense<0.000000e+00> : vector<4xf32>
    %143 = vector.multi_reduction <add>, %142, %cst_105 [1] : vector<4x4xf32> to vector<4xf32>
    %144 = vector.shape_cast %143 : vector<4xf32> to vector<4x1xf32>
    %145 = vector.broadcast %144 : vector<4x1xf32> to vector<4x4xf32>
    %146 = arith.divf %142, %145 : vector<4x4xf32>
    %147 = vector.extract_strided_slice %109 {offsets = [0, 8], sizes = [4, 8], strides = [1, 1]} : vector<4x32xf32> to vector<4x8xf32>
    %cst_106 = arith.constant dense<0.000000e+00> : vector<4x8xf32>
    %148 = tpu.matmul %146, %147, %cst_106 {dimension_numbers = #tpu.dot_dimension_numbers<[1], [0], [0], [1], [0, 0, 1, 1], [], []>} : vector<4x4xf32>, vector<4x8xf32>, vector<4x8xf32> -> vector<4x8xf32>
    %149 = vector.extract_strided_slice %112 {offsets = [8, 0], sizes = [8, 32], strides = [1, 1]} : vector<32x32xf32> to vector<8x32xf32>
    %cst_107 = arith.constant dense<0.000000e+00> : vector<4x32xf32>
    %150 = tpu.matmul %148, %149, %cst_107 {dimension_numbers = #tpu.dot_dimension_numbers<[1], [0], [0], [1], [0, 0, 1, 1], [], []>} : vector<4x8xf32>, vector<8x32xf32>, vector<4x32xf32> -> vector<4x32xf32>
    %151 = arith.addf %132, %150 : vector<4x32xf32>
    %152 = vector.extract_strided_slice %95 {offsets = [0, 16], sizes = [4, 8], strides = [1, 1]} : vector<4x32xf32> to vector<4x8xf32>
    %cst_108 = arith.constant 0.353553385 : f32
    %153 = vector.broadcast %cst_108 : f32 to vector<4x8xf32>
    %154 = arith.mulf %152, %153 : vector<4x8xf32>
    %155 = vector.extract_strided_slice %110 {offsets = [16, 0], sizes = [8, 4], strides = [1, 1]} : vector<32x4xf32> to vector<8x4xf32>
    %cst_109 = arith.constant dense<0.000000e+00> : vector<4x4xf32>
    %156 = tpu.matmul %154, %155, %cst_109 {dimension_numbers = #tpu.dot_dimension_numbers<[1], [0], [0], [1], [0, 0, 1, 1], [], []>} : vector<4x8xf32>, vector<8x4xf32>, vector<4x4xf32> -> vector<4x4xf32>
    %cst_110 = arith.constant dense<0xFF800000> : vector<4xf32>
    %157 = vector.multi_reduction <maximumf>, %156, %cst_110 [1] : vector<4x4xf32> to vector<4xf32>
    %158 = vector.shape_cast %157 : vector<4xf32> to vector<4x1xf32>
    %159 = vector.broadcast %158 : vector<4x1xf32> to vector<4x4xf32>
    %160 = arith.subf %156, %159 : vector<4x4xf32>
    %161 = math.exp %160 : vector<4x4xf32>
    %cst_111 = arith.constant dense<0.000000e+00> : vector<4xf32>
    %162 = vector.multi_reduction <add>, %161, %cst_111 [1] : vector<4x4xf32> to vector<4xf32>
    %163 = vector.shape_cast %162 : vector<4xf32> to vector<4x1xf32>
    %164 = vector.broadcast %163 : vector<4x1xf32> to vector<4x4xf32>
    %165 = arith.divf %161, %164 : vector<4x4xf32>
    %166 = vector.extract_strided_slice %109 {offsets = [0, 16], sizes = [4, 8], strides = [1, 1]} : vector<4x32xf32> to vector<4x8xf32>
    %cst_112 = arith.constant dense<0.000000e+00> : vector<4x8xf32>
    %167 = tpu.matmul %165, %166, %cst_112 {dimension_numbers = #tpu.dot_dimension_numbers<[1], [0], [0], [1], [0, 0, 1, 1], [], []>} : vector<4x4xf32>, vector<4x8xf32>, vector<4x8xf32> -> vector<4x8xf32>
    %168 = vector.extract_strided_slice %112 {offsets = [16, 0], sizes = [8, 32], strides = [1, 1]} : vector<32x32xf32> to vector<8x32xf32>
    %cst_113 = arith.constant dense<0.000000e+00> : vector<4x32xf32>
    %169 = tpu.matmul %167, %168, %cst_113 {dimension_numbers = #tpu.dot_dimension_numbers<[1], [0], [0], [1], [0, 0, 1, 1], [], []>} : vector<4x8xf32>, vector<8x32xf32>, vector<4x32xf32> -> vector<4x32xf32>
    %170 = arith.addf %151, %169 : vector<4x32xf32>
    %171 = vector.extract_strided_slice %95 {offsets = [0, 24], sizes = [4, 8], strides = [1, 1]} : vector<4x32xf32> to vector<4x8xf32>
    %cst_114 = arith.constant 0.353553385 : f32
    %172 = vector.broadcast %cst_114 : f32 to vector<4x8xf32>
    %173 = arith.mulf %171, %172 : vector<4x8xf32>
    %174 = vector.extract_strided_slice %110 {offsets = [24, 0], sizes = [8, 4], strides = [1, 1]} : vector<32x4xf32> to vector<8x4xf32>
    %cst_115 = arith.constant dense<0.000000e+00> : vector<4x4xf32>
    %175 = tpu.matmul %173, %174, %cst_115 {dimension_numbers = #tpu.dot_dimension_numbers<[1], [0], [0], [1], [0, 0, 1, 1], [], []>} : vector<4x8xf32>, vector<8x4xf32>, vector<4x4xf32> -> vector<4x4xf32>
    %cst_116 = arith.constant dense<0xFF800000> : vector<4xf32>
    %176 = vector.multi_reduction <maximumf>, %175, %cst_116 [1] : vector<4x4xf32> to vector<4xf32>
    %177 = vector.shape_cast %176 : vector<4xf32> to vector<4x1xf32>
    %178 = vector.broadcast %177 : vector<4x1xf32> to vector<4x4xf32>
    %179 = arith.subf %175, %178 : vector<4x4xf32>
    %180 = math.exp %179 : vector<4x4xf32>
    %cst_117 = arith.constant dense<0.000000e+00> : vector<4xf32>
    %181 = vector.multi_reduction <add>, %180, %cst_117 [1] : vector<4x4xf32> to vector<4xf32>
    %182 = vector.shape_cast %181 : vector<4xf32> to vector<4x1xf32>
    %183 = vector.broadcast %182 : vector<4x1xf32> to vector<4x4xf32>
    %184 = arith.divf %180, %183 : vector<4x4xf32>
    %185 = vector.extract_strided_slice %109 {offsets = [0, 24], sizes = [4, 8], strides = [1, 1]} : vector<4x32xf32> to vector<4x8xf32>
    %cst_118 = arith.constant dense<0.000000e+00> : vector<4x8xf32>
    %186 = tpu.matmul %184, %185, %cst_118 {dimension_numbers = #tpu.dot_dimension_numbers<[1], [0], [0], [1], [0, 0, 1, 1], [], []>} : vector<4x4xf32>, vector<4x8xf32>, vector<4x8xf32> -> vector<4x8xf32>
    %187 = vector.extract_strided_slice %112 {offsets = [24, 0], sizes = [8, 32], strides = [1, 1]} : vector<32x32xf32> to vector<8x32xf32>
    %cst_119 = arith.constant dense<0.000000e+00> : vector<4x32xf32>
    %188 = tpu.matmul %186, %187, %cst_119 {dimension_numbers = #tpu.dot_dimension_numbers<[1], [0], [0], [1], [0, 0, 1, 1], [], []>} : vector<4x8xf32>, vector<8x32xf32>, vector<4x32xf32> -> vector<4x32xf32>
    %189 = arith.addf %170, %188 : vector<4x32xf32>
    %c0_120 = arith.constant 0 : index
    %c0_121 = arith.constant 0 : index
    %c0_122 = arith.constant 0 : index
    %190 = vector.load %arg16[%c0_120, %c0_121, %c0_122] : memref<3x1x32xf32, #tpu.memory_space<vmem>>, vector<1x1x32xf32>
    %191 = vector.shape_cast %190 : vector<1x1x32xf32> to vector<1x32xf32>
    %192 = vector.broadcast %191 : vector<1x32xf32> to vector<4x32xf32>
    %193 = arith.addf %189, %192 : vector<4x32xf32>
    %c3 = arith.constant 3 : index
    %c0_123 = arith.constant 0 : index
    %c0_124 = arith.constant 0 : index
    %194 = vector.load %arg3[%c3, %c0_123, %c0_124] : memref<9x32x128xf32, #tpu.memory_space<vmem>>, vector<1x32x128xf32>
    %195 = vector.shape_cast %194 : vector<1x32x128xf32> to vector<32x128xf32>
    %cst_125 = arith.constant dense<0.000000e+00> : vector<4x128xf32>
    %196 = tpu.matmul %193, %195, %cst_125 {dimension_numbers = #tpu.dot_dimension_numbers<[1], [0], [0], [1], [0, 0, 1, 1], [], []>} : vector<4x32xf32>, vector<32x128xf32>, vector<4x128xf32> -> vector<4x128xf32>
    %c3_126 = arith.constant 3 : index
    %c0_127 = arith.constant 0 : index
    %c0_128 = arith.constant 0 : index
    %197 = vector.load %arg4[%c3_126, %c0_127, %c0_128] : memref<9x1x128xf32, #tpu.memory_space<vmem>>, vector<1x1x128xf32>
    %198 = vector.shape_cast %197 : vector<1x1x128xf32> to vector<1x128xf32>
    %199 = vector.broadcast %198 : vector<1x128xf32> to vector<4x128xf32>
    %200 = arith.addf %196, %199 : vector<4x128xf32>
    %cst_129 = arith.constant 0.000000e+00 : f32
    %201 = vector.broadcast %cst_129 : f32 to vector<4x128xf32>
    %202 = arith.maximumf %200, %201 : vector<4x128xf32>
    %c3_130 = arith.constant 3 : index
    %c0_131 = arith.constant 0 : index
    %c0_132 = arith.constant 0 : index
    %203 = vector.load %arg5[%c3_130, %c0_131, %c0_132] : memref<9x128x128xf32, #tpu.memory_space<vmem>>, vector<1x128x128xf32>
    %204 = vector.shape_cast %203 : vector<1x128x128xf32> to vector<128x128xf32>
    %cst_133 = arith.constant dense<0.000000e+00> : vector<4x128xf32>
    %205 = tpu.matmul %202, %204, %cst_133 {dimension_numbers = #tpu.dot_dimension_numbers<[1], [0], [0], [1], [0, 0, 1, 1], [], []>} : vector<4x128xf32>, vector<128x128xf32>, vector<4x128xf32> -> vector<4x128xf32>
    %c3_134 = arith.constant 3 : index
    %c0_135 = arith.constant 0 : index
    %c0_136 = arith.constant 0 : index
    %206 = vector.load %arg6[%c3_134, %c0_135, %c0_136] : memref<9x1x128xf32, #tpu.memory_space<vmem>>, vector<1x1x128xf32>
    %207 = vector.shape_cast %206 : vector<1x1x128xf32> to vector<1x128xf32>
    %208 = vector.broadcast %207 : vector<1x128xf32> to vector<4x128xf32>
    %209 = arith.addf %205, %208 : vector<4x128xf32>
    %cst_137 = arith.constant 0.000000e+00 : f32
    %210 = vector.broadcast %cst_137 : f32 to vector<4x128xf32>
    %211 = arith.maximumf %209, %210 : vector<4x128xf32>
    %c3_138 = arith.constant 3 : index
    %c0_139 = arith.constant 0 : index
    %c0_140 = arith.constant 0 : index
    %212 = vector.load %arg7[%c3_138, %c0_139, %c0_140] : memref<9x128x32xf32, #tpu.memory_space<vmem>>, vector<1x128x32xf32>
    %213 = vector.shape_cast %212 : vector<1x128x32xf32> to vector<128x32xf32>
    %cst_141 = arith.constant dense<0.000000e+00> : vector<4x32xf32>
    %214 = tpu.matmul %211, %213, %cst_141 {dimension_numbers = #tpu.dot_dimension_numbers<[1], [0], [0], [1], [0, 0, 1, 1], [], []>} : vector<4x128xf32>, vector<128x32xf32>, vector<4x32xf32> -> vector<4x32xf32>
    %c3_142 = arith.constant 3 : index
    %c0_143 = arith.constant 0 : index
    %c0_144 = arith.constant 0 : index
    %215 = vector.load %arg8[%c3_142, %c0_143, %c0_144] : memref<9x1x32xf32, #tpu.memory_space<vmem>>, vector<1x1x32xf32>
    %216 = vector.shape_cast %215 : vector<1x1x32xf32> to vector<1x32xf32>
    %217 = vector.broadcast %216 : vector<1x32xf32> to vector<4x32xf32>
    %218 = arith.addf %214, %217 : vector<4x32xf32>
    %cst_145 = arith.constant 0.000000e+00 : f32
    %219 = vector.broadcast %cst_145 : f32 to vector<4x32xf32>
    %220 = arith.maximumf %218, %219 : vector<4x32xf32>
    %c4 = arith.constant 4 : index
    %c0_146 = arith.constant 0 : index
    %c0_147 = arith.constant 0 : index
    %221 = vector.load %arg3[%c4, %c0_146, %c0_147] : memref<9x32x128xf32, #tpu.memory_space<vmem>>, vector<1x32x128xf32>
    %222 = vector.shape_cast %221 : vector<1x32x128xf32> to vector<32x128xf32>
    %cst_148 = arith.constant dense<0.000000e+00> : vector<4x128xf32>
    %223 = tpu.matmul %193, %222, %cst_148 {dimension_numbers = #tpu.dot_dimension_numbers<[1], [0], [0], [1], [0, 0, 1, 1], [], []>} : vector<4x32xf32>, vector<32x128xf32>, vector<4x128xf32> -> vector<4x128xf32>
    %c4_149 = arith.constant 4 : index
    %c0_150 = arith.constant 0 : index
    %c0_151 = arith.constant 0 : index
    %224 = vector.load %arg4[%c4_149, %c0_150, %c0_151] : memref<9x1x128xf32, #tpu.memory_space<vmem>>, vector<1x1x128xf32>
    %225 = vector.shape_cast %224 : vector<1x1x128xf32> to vector<1x128xf32>
    %226 = vector.broadcast %225 : vector<1x128xf32> to vector<4x128xf32>
    %227 = arith.addf %223, %226 : vector<4x128xf32>
    %cst_152 = arith.constant 0.000000e+00 : f32
    %228 = vector.broadcast %cst_152 : f32 to vector<4x128xf32>
    %229 = arith.maximumf %227, %228 : vector<4x128xf32>
    %c4_153 = arith.constant 4 : index
    %c0_154 = arith.constant 0 : index
    %c0_155 = arith.constant 0 : index
    %230 = vector.load %arg5[%c4_153, %c0_154, %c0_155] : memref<9x128x128xf32, #tpu.memory_space<vmem>>, vector<1x128x128xf32>
    %231 = vector.shape_cast %230 : vector<1x128x128xf32> to vector<128x128xf32>
    %cst_156 = arith.constant dense<0.000000e+00> : vector<4x128xf32>
    %232 = tpu.matmul %229, %231, %cst_156 {dimension_numbers = #tpu.dot_dimension_numbers<[1], [0], [0], [1], [0, 0, 1, 1], [], []>} : vector<4x128xf32>, vector<128x128xf32>, vector<4x128xf32> -> vector<4x128xf32>
    %c4_157 = arith.constant 4 : index
    %c0_158 = arith.constant 0 : index
    %c0_159 = arith.constant 0 : index
    %233 = vector.load %arg6[%c4_157, %c0_158, %c0_159] : memref<9x1x128xf32, #tpu.memory_space<vmem>>, vector<1x1x128xf32>
    %234 = vector.shape_cast %233 : vector<1x1x128xf32> to vector<1x128xf32>
    %235 = vector.broadcast %234 : vector<1x128xf32> to vector<4x128xf32>
    %236 = arith.addf %232, %235 : vector<4x128xf32>
    %cst_160 = arith.constant 0.000000e+00 : f32
    %237 = vector.broadcast %cst_160 : f32 to vector<4x128xf32>
    %238 = arith.maximumf %236, %237 : vector<4x128xf32>
    %c4_161 = arith.constant 4 : index
    %c0_162 = arith.constant 0 : index
    %c0_163 = arith.constant 0 : index
    %239 = vector.load %arg7[%c4_161, %c0_162, %c0_163] : memref<9x128x32xf32, #tpu.memory_space<vmem>>, vector<1x128x32xf32>
    %240 = vector.shape_cast %239 : vector<1x128x32xf32> to vector<128x32xf32>
    %cst_164 = arith.constant dense<0.000000e+00> : vector<4x32xf32>
    %241 = tpu.matmul %238, %240, %cst_164 {dimension_numbers = #tpu.dot_dimension_numbers<[1], [0], [0], [1], [0, 0, 1, 1], [], []>} : vector<4x128xf32>, vector<128x32xf32>, vector<4x32xf32> -> vector<4x32xf32>
    %c4_165 = arith.constant 4 : index
    %c0_166 = arith.constant 0 : index
    %c0_167 = arith.constant 0 : index
    %242 = vector.load %arg8[%c4_165, %c0_166, %c0_167] : memref<9x1x32xf32, #tpu.memory_space<vmem>>, vector<1x1x32xf32>
    %243 = vector.shape_cast %242 : vector<1x1x32xf32> to vector<1x32xf32>
    %244 = vector.broadcast %243 : vector<1x32xf32> to vector<4x32xf32>
    %245 = arith.addf %241, %244 : vector<4x32xf32>
    %cst_168 = arith.constant 0.000000e+00 : f32
    %246 = vector.broadcast %cst_168 : f32 to vector<4x32xf32>
    %247 = arith.maximumf %245, %246 : vector<4x32xf32>
    %c5 = arith.constant 5 : index
    %c0_169 = arith.constant 0 : index
    %c0_170 = arith.constant 0 : index
    %248 = vector.load %arg3[%c5, %c0_169, %c0_170] : memref<9x32x128xf32, #tpu.memory_space<vmem>>, vector<1x32x128xf32>
    %249 = vector.shape_cast %248 : vector<1x32x128xf32> to vector<32x128xf32>
    %cst_171 = arith.constant dense<0.000000e+00> : vector<4x128xf32>
    %250 = tpu.matmul %193, %249, %cst_171 {dimension_numbers = #tpu.dot_dimension_numbers<[1], [0], [0], [1], [0, 0, 1, 1], [], []>} : vector<4x32xf32>, vector<32x128xf32>, vector<4x128xf32> -> vector<4x128xf32>
    %c5_172 = arith.constant 5 : index
    %c0_173 = arith.constant 0 : index
    %c0_174 = arith.constant 0 : index
    %251 = vector.load %arg4[%c5_172, %c0_173, %c0_174] : memref<9x1x128xf32, #tpu.memory_space<vmem>>, vector<1x1x128xf32>
    %252 = vector.shape_cast %251 : vector<1x1x128xf32> to vector<1x128xf32>
    %253 = vector.broadcast %252 : vector<1x128xf32> to vector<4x128xf32>
    %254 = arith.addf %250, %253 : vector<4x128xf32>
    %cst_175 = arith.constant 0.000000e+00 : f32
    %255 = vector.broadcast %cst_175 : f32 to vector<4x128xf32>
    %256 = arith.maximumf %254, %255 : vector<4x128xf32>
    %c5_176 = arith.constant 5 : index
    %c0_177 = arith.constant 0 : index
    %c0_178 = arith.constant 0 : index
    %257 = vector.load %arg5[%c5_176, %c0_177, %c0_178] : memref<9x128x128xf32, #tpu.memory_space<vmem>>, vector<1x128x128xf32>
    %258 = vector.shape_cast %257 : vector<1x128x128xf32> to vector<128x128xf32>
    %cst_179 = arith.constant dense<0.000000e+00> : vector<4x128xf32>
    %259 = tpu.matmul %256, %258, %cst_179 {dimension_numbers = #tpu.dot_dimension_numbers<[1], [0], [0], [1], [0, 0, 1, 1], [], []>} : vector<4x128xf32>, vector<128x128xf32>, vector<4x128xf32> -> vector<4x128xf32>
    %c5_180 = arith.constant 5 : index
    %c0_181 = arith.constant 0 : index
    %c0_182 = arith.constant 0 : index
    %260 = vector.load %arg6[%c5_180, %c0_181, %c0_182] : memref<9x1x128xf32, #tpu.memory_space<vmem>>, vector<1x1x128xf32>
    %261 = vector.shape_cast %260 : vector<1x1x128xf32> to vector<1x128xf32>
    %262 = vector.broadcast %261 : vector<1x128xf32> to vector<4x128xf32>
    %263 = arith.addf %259, %262 : vector<4x128xf32>
    %cst_183 = arith.constant 0.000000e+00 : f32
    %264 = vector.broadcast %cst_183 : f32 to vector<4x128xf32>
    %265 = arith.maximumf %263, %264 : vector<4x128xf32>
    %c5_184 = arith.constant 5 : index
    %c0_185 = arith.constant 0 : index
    %c0_186 = arith.constant 0 : index
    %266 = vector.load %arg7[%c5_184, %c0_185, %c0_186] : memref<9x128x32xf32, #tpu.memory_space<vmem>>, vector<1x128x32xf32>
    %267 = vector.shape_cast %266 : vector<1x128x32xf32> to vector<128x32xf32>
    %cst_187 = arith.constant dense<0.000000e+00> : vector<4x32xf32>
    %268 = tpu.matmul %265, %267, %cst_187 {dimension_numbers = #tpu.dot_dimension_numbers<[1], [0], [0], [1], [0, 0, 1, 1], [], []>} : vector<4x128xf32>, vector<128x32xf32>, vector<4x32xf32> -> vector<4x32xf32>
    %c5_188 = arith.constant 5 : index
    %c0_189 = arith.constant 0 : index
    %c0_190 = arith.constant 0 : index
    %269 = vector.load %arg8[%c5_188, %c0_189, %c0_190] : memref<9x1x32xf32, #tpu.memory_space<vmem>>, vector<1x1x32xf32>
    %270 = vector.shape_cast %269 : vector<1x1x32xf32> to vector<1x32xf32>
    %271 = vector.broadcast %270 : vector<1x32xf32> to vector<4x32xf32>
    %272 = arith.addf %268, %271 : vector<4x32xf32>
    %cst_191 = arith.constant dense<0xFF800000> : vector<4xf32>
    %273 = vector.multi_reduction <maximumf>, %272, %cst_191 [1] : vector<4x32xf32> to vector<4xf32>
    %274 = vector.shape_cast %273 : vector<4xf32> to vector<4x1xf32>
    %275 = vector.broadcast %274 : vector<4x1xf32> to vector<4x32xf32>
    %276 = arith.subf %272, %275 : vector<4x32xf32>
    %277 = math.exp %276 : vector<4x32xf32>
    %cst_192 = arith.constant dense<0.000000e+00> : vector<4xf32>
    %278 = vector.multi_reduction <add>, %277, %cst_192 [1] : vector<4x32xf32> to vector<4xf32>
    %279 = vector.shape_cast %278 : vector<4xf32> to vector<4x1xf32>
    %280 = vector.broadcast %279 : vector<4x1xf32> to vector<4x32xf32>
    %281 = arith.divf %277, %280 : vector<4x32xf32>
    %c1_193 = arith.constant 1 : index
    %c0_194 = arith.constant 0 : index
    %c0_195 = arith.constant 0 : index
    %282 = vector.load %arg9[%c1_193, %c0_194, %c0_195] : memref<3x32x32xf32, #tpu.memory_space<vmem>>, vector<1x32x32xf32>
    %283 = vector.shape_cast %282 : vector<1x32x32xf32> to vector<32x32xf32>
    %cst_196 = arith.constant dense<0.000000e+00> : vector<4x32xf32>
    %284 = tpu.matmul %281, %283, %cst_196 {dimension_numbers = #tpu.dot_dimension_numbers<[1], [0], [0], [1], [0, 0, 1, 1], [], []>} : vector<4x32xf32>, vector<32x32xf32>, vector<4x32xf32> -> vector<4x32xf32>
    %c1_197 = arith.constant 1 : index
    %c0_198 = arith.constant 0 : index
    %c0_199 = arith.constant 0 : index
    %285 = vector.load %arg10[%c1_197, %c0_198, %c0_199] : memref<3x1x32xf32, #tpu.memory_space<vmem>>, vector<1x1x32xf32>
    %286 = vector.shape_cast %285 : vector<1x1x32xf32> to vector<1x32xf32>
    %287 = vector.broadcast %286 : vector<1x32xf32> to vector<4x32xf32>
    %288 = arith.addf %284, %287 : vector<4x32xf32>
    %c1_200 = arith.constant 1 : index
    %c0_201 = arith.constant 0 : index
    %c0_202 = arith.constant 0 : index
    %289 = vector.load %arg11[%c1_200, %c0_201, %c0_202] : memref<3x32x32xf32, #tpu.memory_space<vmem>>, vector<1x32x32xf32>
    %290 = vector.shape_cast %289 : vector<1x32x32xf32> to vector<32x32xf32>
    %cst_203 = arith.constant dense<0.000000e+00> : vector<4x32xf32>
    %291 = tpu.matmul %220, %290, %cst_203 {dimension_numbers = #tpu.dot_dimension_numbers<[1], [0], [0], [1], [0, 0, 1, 1], [], []>} : vector<4x32xf32>, vector<32x32xf32>, vector<4x32xf32> -> vector<4x32xf32>
    %c1_204 = arith.constant 1 : index
    %c0_205 = arith.constant 0 : index
    %c0_206 = arith.constant 0 : index
    %292 = vector.load %arg12[%c1_204, %c0_205, %c0_206] : memref<3x1x32xf32, #tpu.memory_space<vmem>>, vector<1x1x32xf32>
    %293 = vector.shape_cast %292 : vector<1x1x32xf32> to vector<1x32xf32>
    %294 = vector.broadcast %293 : vector<1x32xf32> to vector<4x32xf32>
    %295 = arith.addf %291, %294 : vector<4x32xf32>
    %c1_207 = arith.constant 1 : index
    %c0_208 = arith.constant 0 : index
    %c0_209 = arith.constant 0 : index
    %296 = vector.load %arg13[%c1_207, %c0_208, %c0_209] : memref<3x32x32xf32, #tpu.memory_space<vmem>>, vector<1x32x32xf32>
    %297 = vector.shape_cast %296 : vector<1x32x32xf32> to vector<32x32xf32>
    %cst_210 = arith.constant dense<0.000000e+00> : vector<4x32xf32>
    %298 = tpu.matmul %247, %297, %cst_210 {dimension_numbers = #tpu.dot_dimension_numbers<[1], [0], [0], [1], [0, 0, 1, 1], [], []>} : vector<4x32xf32>, vector<32x32xf32>, vector<4x32xf32> -> vector<4x32xf32>
    %c1_211 = arith.constant 1 : index
    %c0_212 = arith.constant 0 : index
    %c0_213 = arith.constant 0 : index
    %299 = vector.load %arg14[%c1_211, %c0_212, %c0_213] : memref<3x1x32xf32, #tpu.memory_space<vmem>>, vector<1x1x32xf32>
    %300 = vector.shape_cast %299 : vector<1x1x32xf32> to vector<1x32xf32>
    %301 = vector.broadcast %300 : vector<1x32xf32> to vector<4x32xf32>
    %302 = arith.addf %298, %301 : vector<4x32xf32>
    %303 = tpu.transpose %295, [1, 0] : vector<4x32xf32> -> vector<32x4xf32>
    %c1_214 = arith.constant 1 : index
    %c0_215 = arith.constant 0 : index
    %c0_216 = arith.constant 0 : index
    %304 = vector.load %arg15[%c1_214, %c0_215, %c0_216] : memref<3x32x32xf32, #tpu.memory_space<vmem>>, vector<1x32x32xf32>
    %305 = vector.shape_cast %304 : vector<1x32x32xf32> to vector<32x32xf32>
    %cst_217 = arith.constant 0.000000e+00 : f32
    %306 = vector.broadcast %cst_217 : f32 to vector<4x32xf32>
    %307 = vector.extract_strided_slice %288 {offsets = [0, 0], sizes = [4, 8], strides = [1, 1]} : vector<4x32xf32> to vector<4x8xf32>
    %cst_218 = arith.constant 0.353553385 : f32
    %308 = vector.broadcast %cst_218 : f32 to vector<4x8xf32>
    %309 = arith.mulf %307, %308 : vector<4x8xf32>
    %310 = vector.extract_strided_slice %303 {offsets = [0, 0], sizes = [8, 4], strides = [1, 1]} : vector<32x4xf32> to vector<8x4xf32>
    %cst_219 = arith.constant dense<0.000000e+00> : vector<4x4xf32>
    %311 = tpu.matmul %309, %310, %cst_219 {dimension_numbers = #tpu.dot_dimension_numbers<[1], [0], [0], [1], [0, 0, 1, 1], [], []>} : vector<4x8xf32>, vector<8x4xf32>, vector<4x4xf32> -> vector<4x4xf32>
    %cst_220 = arith.constant dense<0xFF800000> : vector<4xf32>
    %312 = vector.multi_reduction <maximumf>, %311, %cst_220 [1] : vector<4x4xf32> to vector<4xf32>
    %313 = vector.shape_cast %312 : vector<4xf32> to vector<4x1xf32>
    %314 = vector.broadcast %313 : vector<4x1xf32> to vector<4x4xf32>
    %315 = arith.subf %311, %314 : vector<4x4xf32>
    %316 = math.exp %315 : vector<4x4xf32>
    %cst_221 = arith.constant dense<0.000000e+00> : vector<4xf32>
    %317 = vector.multi_reduction <add>, %316, %cst_221 [1] : vector<4x4xf32> to vector<4xf32>
    %318 = vector.shape_cast %317 : vector<4xf32> to vector<4x1xf32>
    %319 = vector.broadcast %318 : vector<4x1xf32> to vector<4x4xf32>
    %320 = arith.divf %316, %319 : vector<4x4xf32>
    %321 = vector.extract_strided_slice %302 {offsets = [0, 0], sizes = [4, 8], strides = [1, 1]} : vector<4x32xf32> to vector<4x8xf32>
    %cst_222 = arith.constant dense<0.000000e+00> : vector<4x8xf32>
    %322 = tpu.matmul %320, %321, %cst_222 {dimension_numbers = #tpu.dot_dimension_numbers<[1], [0], [0], [1], [0, 0, 1, 1], [], []>} : vector<4x4xf32>, vector<4x8xf32>, vector<4x8xf32> -> vector<4x8xf32>
    %323 = vector.extract_strided_slice %305 {offsets = [0, 0], sizes = [8, 32], strides = [1, 1]} : vector<32x32xf32> to vector<8x32xf32>
    %cst_223 = arith.constant dense<0.000000e+00> : vector<4x32xf32>
    %324 = tpu.matmul %322, %323, %cst_223 {dimension_numbers = #tpu.dot_dimension_numbers<[1], [0], [0], [1], [0, 0, 1, 1], [], []>} : vector<4x8xf32>, vector<8x32xf32>, vector<4x32xf32> -> vector<4x32xf32>
    %325 = arith.addf %306, %324 : vector<4x32xf32>
    %326 = vector.extract_strided_slice %288 {offsets = [0, 8], sizes = [4, 8], strides = [1, 1]} : vector<4x32xf32> to vector<4x8xf32>
    %cst_224 = arith.constant 0.353553385 : f32
    %327 = vector.broadcast %cst_224 : f32 to vector<4x8xf32>
    %328 = arith.mulf %326, %327 : vector<4x8xf32>
    %329 = vector.extract_strided_slice %303 {offsets = [8, 0], sizes = [8, 4], strides = [1, 1]} : vector<32x4xf32> to vector<8x4xf32>
    %cst_225 = arith.constant dense<0.000000e+00> : vector<4x4xf32>
    %330 = tpu.matmul %328, %329, %cst_225 {dimension_numbers = #tpu.dot_dimension_numbers<[1], [0], [0], [1], [0, 0, 1, 1], [], []>} : vector<4x8xf32>, vector<8x4xf32>, vector<4x4xf32> -> vector<4x4xf32>
    %cst_226 = arith.constant dense<0xFF800000> : vector<4xf32>
    %331 = vector.multi_reduction <maximumf>, %330, %cst_226 [1] : vector<4x4xf32> to vector<4xf32>
    %332 = vector.shape_cast %331 : vector<4xf32> to vector<4x1xf32>
    %333 = vector.broadcast %332 : vector<4x1xf32> to vector<4x4xf32>
    %334 = arith.subf %330, %333 : vector<4x4xf32>
    %335 = math.exp %334 : vector<4x4xf32>
    %cst_227 = arith.constant dense<0.000000e+00> : vector<4xf32>
    %336 = vector.multi_reduction <add>, %335, %cst_227 [1] : vector<4x4xf32> to vector<4xf32>
    %337 = vector.shape_cast %336 : vector<4xf32> to vector<4x1xf32>
    %338 = vector.broadcast %337 : vector<4x1xf32> to vector<4x4xf32>
    %339 = arith.divf %335, %338 : vector<4x4xf32>
    %340 = vector.extract_strided_slice %302 {offsets = [0, 8], sizes = [4, 8], strides = [1, 1]} : vector<4x32xf32> to vector<4x8xf32>
    %cst_228 = arith.constant dense<0.000000e+00> : vector<4x8xf32>
    %341 = tpu.matmul %339, %340, %cst_228 {dimension_numbers = #tpu.dot_dimension_numbers<[1], [0], [0], [1], [0, 0, 1, 1], [], []>} : vector<4x4xf32>, vector<4x8xf32>, vector<4x8xf32> -> vector<4x8xf32>
    %342 = vector.extract_strided_slice %305 {offsets = [8, 0], sizes = [8, 32], strides = [1, 1]} : vector<32x32xf32> to vector<8x32xf32>
    %cst_229 = arith.constant dense<0.000000e+00> : vector<4x32xf32>
    %343 = tpu.matmul %341, %342, %cst_229 {dimension_numbers = #tpu.dot_dimension_numbers<[1], [0], [0], [1], [0, 0, 1, 1], [], []>} : vector<4x8xf32>, vector<8x32xf32>, vector<4x32xf32> -> vector<4x32xf32>
    %344 = arith.addf %325, %343 : vector<4x32xf32>
    %345 = vector.extract_strided_slice %288 {offsets = [0, 16], sizes = [4, 8], strides = [1, 1]} : vector<4x32xf32> to vector<4x8xf32>
    %cst_230 = arith.constant 0.353553385 : f32
    %346 = vector.broadcast %cst_230 : f32 to vector<4x8xf32>
    %347 = arith.mulf %345, %346 : vector<4x8xf32>
    %348 = vector.extract_strided_slice %303 {offsets = [16, 0], sizes = [8, 4], strides = [1, 1]} : vector<32x4xf32> to vector<8x4xf32>
    %cst_231 = arith.constant dense<0.000000e+00> : vector<4x4xf32>
    %349 = tpu.matmul %347, %348, %cst_231 {dimension_numbers = #tpu.dot_dimension_numbers<[1], [0], [0], [1], [0, 0, 1, 1], [], []>} : vector<4x8xf32>, vector<8x4xf32>, vector<4x4xf32> -> vector<4x4xf32>
    %cst_232 = arith.constant dense<0xFF800000> : vector<4xf32>
    %350 = vector.multi_reduction <maximumf>, %349, %cst_232 [1] : vector<4x4xf32> to vector<4xf32>
    %351 = vector.shape_cast %350 : vector<4xf32> to vector<4x1xf32>
    %352 = vector.broadcast %351 : vector<4x1xf32> to vector<4x4xf32>
    %353 = arith.subf %349, %352 : vector<4x4xf32>
    %354 = math.exp %353 : vector<4x4xf32>
    %cst_233 = arith.constant dense<0.000000e+00> : vector<4xf32>
    %355 = vector.multi_reduction <add>, %354, %cst_233 [1] : vector<4x4xf32> to vector<4xf32>
    %356 = vector.shape_cast %355 : vector<4xf32> to vector<4x1xf32>
    %357 = vector.broadcast %356 : vector<4x1xf32> to vector<4x4xf32>
    %358 = arith.divf %354, %357 : vector<4x4xf32>
    %359 = vector.extract_strided_slice %302 {offsets = [0, 16], sizes = [4, 8], strides = [1, 1]} : vector<4x32xf32> to vector<4x8xf32>
    %cst_234 = arith.constant dense<0.000000e+00> : vector<4x8xf32>
    %360 = tpu.matmul %358, %359, %cst_234 {dimension_numbers = #tpu.dot_dimension_numbers<[1], [0], [0], [1], [0, 0, 1, 1], [], []>} : vector<4x4xf32>, vector<4x8xf32>, vector<4x8xf32> -> vector<4x8xf32>
    %361 = vector.extract_strided_slice %305 {offsets = [16, 0], sizes = [8, 32], strides = [1, 1]} : vector<32x32xf32> to vector<8x32xf32>
    %cst_235 = arith.constant dense<0.000000e+00> : vector<4x32xf32>
    %362 = tpu.matmul %360, %361, %cst_235 {dimension_numbers = #tpu.dot_dimension_numbers<[1], [0], [0], [1], [0, 0, 1, 1], [], []>} : vector<4x8xf32>, vector<8x32xf32>, vector<4x32xf32> -> vector<4x32xf32>
    %363 = arith.addf %344, %362 : vector<4x32xf32>
    %364 = vector.extract_strided_slice %288 {offsets = [0, 24], sizes = [4, 8], strides = [1, 1]} : vector<4x32xf32> to vector<4x8xf32>
    %cst_236 = arith.constant 0.353553385 : f32
    %365 = vector.broadcast %cst_236 : f32 to vector<4x8xf32>
    %366 = arith.mulf %364, %365 : vector<4x8xf32>
    %367 = vector.extract_strided_slice %303 {offsets = [24, 0], sizes = [8, 4], strides = [1, 1]} : vector<32x4xf32> to vector<8x4xf32>
    %cst_237 = arith.constant dense<0.000000e+00> : vector<4x4xf32>
    %368 = tpu.matmul %366, %367, %cst_237 {dimension_numbers = #tpu.dot_dimension_numbers<[1], [0], [0], [1], [0, 0, 1, 1], [], []>} : vector<4x8xf32>, vector<8x4xf32>, vector<4x4xf32> -> vector<4x4xf32>
    %cst_238 = arith.constant dense<0xFF800000> : vector<4xf32>
    %369 = vector.multi_reduction <maximumf>, %368, %cst_238 [1] : vector<4x4xf32> to vector<4xf32>
    %370 = vector.shape_cast %369 : vector<4xf32> to vector<4x1xf32>
    %371 = vector.broadcast %370 : vector<4x1xf32> to vector<4x4xf32>
    %372 = arith.subf %368, %371 : vector<4x4xf32>
    %373 = math.exp %372 : vector<4x4xf32>
    %cst_239 = arith.constant dense<0.000000e+00> : vector<4xf32>
    %374 = vector.multi_reduction <add>, %373, %cst_239 [1] : vector<4x4xf32> to vector<4xf32>
    %375 = vector.shape_cast %374 : vector<4xf32> to vector<4x1xf32>
    %376 = vector.broadcast %375 : vector<4x1xf32> to vector<4x4xf32>
    %377 = arith.divf %373, %376 : vector<4x4xf32>
    %378 = vector.extract_strided_slice %302 {offsets = [0, 24], sizes = [4, 8], strides = [1, 1]} : vector<4x32xf32> to vector<4x8xf32>
    %cst_240 = arith.constant dense<0.000000e+00> : vector<4x8xf32>
    %379 = tpu.matmul %377, %378, %cst_240 {dimension_numbers = #tpu.dot_dimension_numbers<[1], [0], [0], [1], [0, 0, 1, 1], [], []>} : vector<4x4xf32>, vector<4x8xf32>, vector<4x8xf32> -> vector<4x8xf32>
    %380 = vector.extract_strided_slice %305 {offsets = [24, 0], sizes = [8, 32], strides = [1, 1]} : vector<32x32xf32> to vector<8x32xf32>
    %cst_241 = arith.constant dense<0.000000e+00> : vector<4x32xf32>
    %381 = tpu.matmul %379, %380, %cst_241 {dimension_numbers = #tpu.dot_dimension_numbers<[1], [0], [0], [1], [0, 0, 1, 1], [], []>} : vector<4x8xf32>, vector<8x32xf32>, vector<4x32xf32> -> vector<4x32xf32>
    %382 = arith.addf %363, %381 : vector<4x32xf32>
    %c1_242 = arith.constant 1 : index
    %c0_243 = arith.constant 0 : index
    %c0_244 = arith.constant 0 : index
    %383 = vector.load %arg16[%c1_242, %c0_243, %c0_244] : memref<3x1x32xf32, #tpu.memory_space<vmem>>, vector<1x1x32xf32>
    %384 = vector.shape_cast %383 : vector<1x1x32xf32> to vector<1x32xf32>
    %385 = vector.broadcast %384 : vector<1x32xf32> to vector<4x32xf32>
    %386 = arith.addf %382, %385 : vector<4x32xf32>
    %387 = arith.addf %386, %193 : vector<4x32xf32>
    %c6 = arith.constant 6 : index
    %c0_245 = arith.constant 0 : index
    %c0_246 = arith.constant 0 : index
    %388 = vector.load %arg3[%c6, %c0_245, %c0_246] : memref<9x32x128xf32, #tpu.memory_space<vmem>>, vector<1x32x128xf32>
    %389 = vector.shape_cast %388 : vector<1x32x128xf32> to vector<32x128xf32>
    %cst_247 = arith.constant dense<0.000000e+00> : vector<4x128xf32>
    %390 = tpu.matmul %387, %389, %cst_247 {dimension_numbers = #tpu.dot_dimension_numbers<[1], [0], [0], [1], [0, 0, 1, 1], [], []>} : vector<4x32xf32>, vector<32x128xf32>, vector<4x128xf32> -> vector<4x128xf32>
    %c6_248 = arith.constant 6 : index
    %c0_249 = arith.constant 0 : index
    %c0_250 = arith.constant 0 : index
    %391 = vector.load %arg4[%c6_248, %c0_249, %c0_250] : memref<9x1x128xf32, #tpu.memory_space<vmem>>, vector<1x1x128xf32>
    %392 = vector.shape_cast %391 : vector<1x1x128xf32> to vector<1x128xf32>
    %393 = vector.broadcast %392 : vector<1x128xf32> to vector<4x128xf32>
    %394 = arith.addf %390, %393 : vector<4x128xf32>
    %cst_251 = arith.constant 0.000000e+00 : f32
    %395 = vector.broadcast %cst_251 : f32 to vector<4x128xf32>
    %396 = arith.maximumf %394, %395 : vector<4x128xf32>
    %c6_252 = arith.constant 6 : index
    %c0_253 = arith.constant 0 : index
    %c0_254 = arith.constant 0 : index
    %397 = vector.load %arg5[%c6_252, %c0_253, %c0_254] : memref<9x128x128xf32, #tpu.memory_space<vmem>>, vector<1x128x128xf32>
    %398 = vector.shape_cast %397 : vector<1x128x128xf32> to vector<128x128xf32>
    %cst_255 = arith.constant dense<0.000000e+00> : vector<4x128xf32>
    %399 = tpu.matmul %396, %398, %cst_255 {dimension_numbers = #tpu.dot_dimension_numbers<[1], [0], [0], [1], [0, 0, 1, 1], [], []>} : vector<4x128xf32>, vector<128x128xf32>, vector<4x128xf32> -> vector<4x128xf32>
    %c6_256 = arith.constant 6 : index
    %c0_257 = arith.constant 0 : index
    %c0_258 = arith.constant 0 : index
    %400 = vector.load %arg6[%c6_256, %c0_257, %c0_258] : memref<9x1x128xf32, #tpu.memory_space<vmem>>, vector<1x1x128xf32>
    %401 = vector.shape_cast %400 : vector<1x1x128xf32> to vector<1x128xf32>
    %402 = vector.broadcast %401 : vector<1x128xf32> to vector<4x128xf32>
    %403 = arith.addf %399, %402 : vector<4x128xf32>
    %cst_259 = arith.constant 0.000000e+00 : f32
    %404 = vector.broadcast %cst_259 : f32 to vector<4x128xf32>
    %405 = arith.maximumf %403, %404 : vector<4x128xf32>
    %c6_260 = arith.constant 6 : index
    %c0_261 = arith.constant 0 : index
    %c0_262 = arith.constant 0 : index
    %406 = vector.load %arg7[%c6_260, %c0_261, %c0_262] : memref<9x128x32xf32, #tpu.memory_space<vmem>>, vector<1x128x32xf32>
    %407 = vector.shape_cast %406 : vector<1x128x32xf32> to vector<128x32xf32>
    %cst_263 = arith.constant dense<0.000000e+00> : vector<4x32xf32>
    %408 = tpu.matmul %405, %407, %cst_263 {dimension_numbers = #tpu.dot_dimension_numbers<[1], [0], [0], [1], [0, 0, 1, 1], [], []>} : vector<4x128xf32>, vector<128x32xf32>, vector<4x32xf32> -> vector<4x32xf32>
    %c6_264 = arith.constant 6 : index
    %c0_265 = arith.constant 0 : index
    %c0_266 = arith.constant 0 : index
    %409 = vector.load %arg8[%c6_264, %c0_265, %c0_266] : memref<9x1x32xf32, #tpu.memory_space<vmem>>, vector<1x1x32xf32>
    %410 = vector.shape_cast %409 : vector<1x1x32xf32> to vector<1x32xf32>
    %411 = vector.broadcast %410 : vector<1x32xf32> to vector<4x32xf32>
    %412 = arith.addf %408, %411 : vector<4x32xf32>
    %cst_267 = arith.constant 0.000000e+00 : f32
    %413 = vector.broadcast %cst_267 : f32 to vector<4x32xf32>
    %414 = arith.maximumf %412, %413 : vector<4x32xf32>
    %c7 = arith.constant 7 : index
    %c0_268 = arith.constant 0 : index
    %c0_269 = arith.constant 0 : index
    %415 = vector.load %arg3[%c7, %c0_268, %c0_269] : memref<9x32x128xf32, #tpu.memory_space<vmem>>, vector<1x32x128xf32>
    %416 = vector.shape_cast %415 : vector<1x32x128xf32> to vector<32x128xf32>
    %cst_270 = arith.constant dense<0.000000e+00> : vector<4x128xf32>
    %417 = tpu.matmul %387, %416, %cst_270 {dimension_numbers = #tpu.dot_dimension_numbers<[1], [0], [0], [1], [0, 0, 1, 1], [], []>} : vector<4x32xf32>, vector<32x128xf32>, vector<4x128xf32> -> vector<4x128xf32>
    %c7_271 = arith.constant 7 : index
    %c0_272 = arith.constant 0 : index
    %c0_273 = arith.constant 0 : index
    %418 = vector.load %arg4[%c7_271, %c0_272, %c0_273] : memref<9x1x128xf32, #tpu.memory_space<vmem>>, vector<1x1x128xf32>
    %419 = vector.shape_cast %418 : vector<1x1x128xf32> to vector<1x128xf32>
    %420 = vector.broadcast %419 : vector<1x128xf32> to vector<4x128xf32>
    %421 = arith.addf %417, %420 : vector<4x128xf32>
    %cst_274 = arith.constant 0.000000e+00 : f32
    %422 = vector.broadcast %cst_274 : f32 to vector<4x128xf32>
    %423 = arith.maximumf %421, %422 : vector<4x128xf32>
    %c7_275 = arith.constant 7 : index
    %c0_276 = arith.constant 0 : index
    %c0_277 = arith.constant 0 : index
    %424 = vector.load %arg5[%c7_275, %c0_276, %c0_277] : memref<9x128x128xf32, #tpu.memory_space<vmem>>, vector<1x128x128xf32>
    %425 = vector.shape_cast %424 : vector<1x128x128xf32> to vector<128x128xf32>
    %cst_278 = arith.constant dense<0.000000e+00> : vector<4x128xf32>
    %426 = tpu.matmul %423, %425, %cst_278 {dimension_numbers = #tpu.dot_dimension_numbers<[1], [0], [0], [1], [0, 0, 1, 1], [], []>} : vector<4x128xf32>, vector<128x128xf32>, vector<4x128xf32> -> vector<4x128xf32>
    %c7_279 = arith.constant 7 : index
    %c0_280 = arith.constant 0 : index
    %c0_281 = arith.constant 0 : index
    %427 = vector.load %arg6[%c7_279, %c0_280, %c0_281] : memref<9x1x128xf32, #tpu.memory_space<vmem>>, vector<1x1x128xf32>
    %428 = vector.shape_cast %427 : vector<1x1x128xf32> to vector<1x128xf32>
    %429 = vector.broadcast %428 : vector<1x128xf32> to vector<4x128xf32>
    %430 = arith.addf %426, %429 : vector<4x128xf32>
    %cst_282 = arith.constant 0.000000e+00 : f32
    %431 = vector.broadcast %cst_282 : f32 to vector<4x128xf32>
    %432 = arith.maximumf %430, %431 : vector<4x128xf32>
    %c7_283 = arith.constant 7 : index
    %c0_284 = arith.constant 0 : index
    %c0_285 = arith.constant 0 : index
    %433 = vector.load %arg7[%c7_283, %c0_284, %c0_285] : memref<9x128x32xf32, #tpu.memory_space<vmem>>, vector<1x128x32xf32>
    %434 = vector.shape_cast %433 : vector<1x128x32xf32> to vector<128x32xf32>
    %cst_286 = arith.constant dense<0.000000e+00> : vector<4x32xf32>
    %435 = tpu.matmul %432, %434, %cst_286 {dimension_numbers = #tpu.dot_dimension_numbers<[1], [0], [0], [1], [0, 0, 1, 1], [], []>} : vector<4x128xf32>, vector<128x32xf32>, vector<4x32xf32> -> vector<4x32xf32>
    %c7_287 = arith.constant 7 : index
    %c0_288 = arith.constant 0 : index
    %c0_289 = arith.constant 0 : index
    %436 = vector.load %arg8[%c7_287, %c0_288, %c0_289] : memref<9x1x32xf32, #tpu.memory_space<vmem>>, vector<1x1x32xf32>
    %437 = vector.shape_cast %436 : vector<1x1x32xf32> to vector<1x32xf32>
    %438 = vector.broadcast %437 : vector<1x32xf32> to vector<4x32xf32>
    %439 = arith.addf %435, %438 : vector<4x32xf32>
    %cst_290 = arith.constant 0.000000e+00 : f32
    %440 = vector.broadcast %cst_290 : f32 to vector<4x32xf32>
    %441 = arith.maximumf %439, %440 : vector<4x32xf32>
    %c8 = arith.constant 8 : index
    %c0_291 = arith.constant 0 : index
    %c0_292 = arith.constant 0 : index
    %442 = vector.load %arg3[%c8, %c0_291, %c0_292] : memref<9x32x128xf32, #tpu.memory_space<vmem>>, vector<1x32x128xf32>
    %443 = vector.shape_cast %442 : vector<1x32x128xf32> to vector<32x128xf32>
    %cst_293 = arith.constant dense<0.000000e+00> : vector<4x128xf32>
    %444 = tpu.matmul %387, %443, %cst_293 {dimension_numbers = #tpu.dot_dimension_numbers<[1], [0], [0], [1], [0, 0, 1, 1], [], []>} : vector<4x32xf32>, vector<32x128xf32>, vector<4x128xf32> -> vector<4x128xf32>
    %c8_294 = arith.constant 8 : index
    %c0_295 = arith.constant 0 : index
    %c0_296 = arith.constant 0 : index
    %445 = vector.load %arg4[%c8_294, %c0_295, %c0_296] : memref<9x1x128xf32, #tpu.memory_space<vmem>>, vector<1x1x128xf32>
    %446 = vector.shape_cast %445 : vector<1x1x128xf32> to vector<1x128xf32>
    %447 = vector.broadcast %446 : vector<1x128xf32> to vector<4x128xf32>
    %448 = arith.addf %444, %447 : vector<4x128xf32>
    %cst_297 = arith.constant 0.000000e+00 : f32
    %449 = vector.broadcast %cst_297 : f32 to vector<4x128xf32>
    %450 = arith.maximumf %448, %449 : vector<4x128xf32>
    %c8_298 = arith.constant 8 : index
    %c0_299 = arith.constant 0 : index
    %c0_300 = arith.constant 0 : index
    %451 = vector.load %arg5[%c8_298, %c0_299, %c0_300] : memref<9x128x128xf32, #tpu.memory_space<vmem>>, vector<1x128x128xf32>
    %452 = vector.shape_cast %451 : vector<1x128x128xf32> to vector<128x128xf32>
    %cst_301 = arith.constant dense<0.000000e+00> : vector<4x128xf32>
    %453 = tpu.matmul %450, %452, %cst_301 {dimension_numbers = #tpu.dot_dimension_numbers<[1], [0], [0], [1], [0, 0, 1, 1], [], []>} : vector<4x128xf32>, vector<128x128xf32>, vector<4x128xf32> -> vector<4x128xf32>
    %c8_302 = arith.constant 8 : index
    %c0_303 = arith.constant 0 : index
    %c0_304 = arith.constant 0 : index
    %454 = vector.load %arg6[%c8_302, %c0_303, %c0_304] : memref<9x1x128xf32, #tpu.memory_space<vmem>>, vector<1x1x128xf32>
    %455 = vector.shape_cast %454 : vector<1x1x128xf32> to vector<1x128xf32>
    %456 = vector.broadcast %455 : vector<1x128xf32> to vector<4x128xf32>
    %457 = arith.addf %453, %456 : vector<4x128xf32>
    %cst_305 = arith.constant 0.000000e+00 : f32
    %458 = vector.broadcast %cst_305 : f32 to vector<4x128xf32>
    %459 = arith.maximumf %457, %458 : vector<4x128xf32>
    %c8_306 = arith.constant 8 : index
    %c0_307 = arith.constant 0 : index
    %c0_308 = arith.constant 0 : index
    %460 = vector.load %arg7[%c8_306, %c0_307, %c0_308] : memref<9x128x32xf32, #tpu.memory_space<vmem>>, vector<1x128x32xf32>
    %461 = vector.shape_cast %460 : vector<1x128x32xf32> to vector<128x32xf32>
    %cst_309 = arith.constant dense<0.000000e+00> : vector<4x32xf32>
    %462 = tpu.matmul %459, %461, %cst_309 {dimension_numbers = #tpu.dot_dimension_numbers<[1], [0], [0], [1], [0, 0, 1, 1], [], []>} : vector<4x128xf32>, vector<128x32xf32>, vector<4x32xf32> -> vector<4x32xf32>
    %c8_310 = arith.constant 8 : index
    %c0_311 = arith.constant 0 : index
    %c0_312 = arith.constant 0 : index
    %463 = vector.load %arg8[%c8_310, %c0_311, %c0_312] : memref<9x1x32xf32, #tpu.memory_space<vmem>>, vector<1x1x32xf32>
    %464 = vector.shape_cast %463 : vector<1x1x32xf32> to vector<1x32xf32>
    %465 = vector.broadcast %464 : vector<1x32xf32> to vector<4x32xf32>
    %466 = arith.addf %462, %465 : vector<4x32xf32>
    %cst_313 = arith.constant dense<0xFF800000> : vector<4xf32>
    %467 = vector.multi_reduction <maximumf>, %466, %cst_313 [1] : vector<4x32xf32> to vector<4xf32>
    %468 = vector.shape_cast %467 : vector<4xf32> to vector<4x1xf32>
    %469 = vector.broadcast %468 : vector<4x1xf32> to vector<4x32xf32>
    %470 = arith.subf %466, %469 : vector<4x32xf32>
    %471 = math.exp %470 : vector<4x32xf32>
    %cst_314 = arith.constant dense<0.000000e+00> : vector<4xf32>
    %472 = vector.multi_reduction <add>, %471, %cst_314 [1] : vector<4x32xf32> to vector<4xf32>
    %473 = vector.shape_cast %472 : vector<4xf32> to vector<4x1xf32>
    %474 = vector.broadcast %473 : vector<4x1xf32> to vector<4x32xf32>
    %475 = arith.divf %471, %474 : vector<4x32xf32>
    %c2_315 = arith.constant 2 : index
    %c0_316 = arith.constant 0 : index
    %c0_317 = arith.constant 0 : index
    %476 = vector.load %arg9[%c2_315, %c0_316, %c0_317] : memref<3x32x32xf32, #tpu.memory_space<vmem>>, vector<1x32x32xf32>
    %477 = vector.shape_cast %476 : vector<1x32x32xf32> to vector<32x32xf32>
    %cst_318 = arith.constant dense<0.000000e+00> : vector<4x32xf32>
    %478 = tpu.matmul %475, %477, %cst_318 {dimension_numbers = #tpu.dot_dimension_numbers<[1], [0], [0], [1], [0, 0, 1, 1], [], []>} : vector<4x32xf32>, vector<32x32xf32>, vector<4x32xf32> -> vector<4x32xf32>
    %c2_319 = arith.constant 2 : index
    %c0_320 = arith.constant 0 : index
    %c0_321 = arith.constant 0 : index
    %479 = vector.load %arg10[%c2_319, %c0_320, %c0_321] : memref<3x1x32xf32, #tpu.memory_space<vmem>>, vector<1x1x32xf32>
    %480 = vector.shape_cast %479 : vector<1x1x32xf32> to vector<1x32xf32>
    %481 = vector.broadcast %480 : vector<1x32xf32> to vector<4x32xf32>
    %482 = arith.addf %478, %481 : vector<4x32xf32>
    %c2_322 = arith.constant 2 : index
    %c0_323 = arith.constant 0 : index
    %c0_324 = arith.constant 0 : index
    %483 = vector.load %arg11[%c2_322, %c0_323, %c0_324] : memref<3x32x32xf32, #tpu.memory_space<vmem>>, vector<1x32x32xf32>
    %484 = vector.shape_cast %483 : vector<1x32x32xf32> to vector<32x32xf32>
    %cst_325 = arith.constant dense<0.000000e+00> : vector<4x32xf32>
    %485 = tpu.matmul %414, %484, %cst_325 {dimension_numbers = #tpu.dot_dimension_numbers<[1], [0], [0], [1], [0, 0, 1, 1], [], []>} : vector<4x32xf32>, vector<32x32xf32>, vector<4x32xf32> -> vector<4x32xf32>
    %c2_326 = arith.constant 2 : index
    %c0_327 = arith.constant 0 : index
    %c0_328 = arith.constant 0 : index
    %486 = vector.load %arg12[%c2_326, %c0_327, %c0_328] : memref<3x1x32xf32, #tpu.memory_space<vmem>>, vector<1x1x32xf32>
    %487 = vector.shape_cast %486 : vector<1x1x32xf32> to vector<1x32xf32>
    %488 = vector.broadcast %487 : vector<1x32xf32> to vector<4x32xf32>
    %489 = arith.addf %485, %488 : vector<4x32xf32>
    %c2_329 = arith.constant 2 : index
    %c0_330 = arith.constant 0 : index
    %c0_331 = arith.constant 0 : index
    %490 = vector.load %arg13[%c2_329, %c0_330, %c0_331] : memref<3x32x32xf32, #tpu.memory_space<vmem>>, vector<1x32x32xf32>
    %491 = vector.shape_cast %490 : vector<1x32x32xf32> to vector<32x32xf32>
    %cst_332 = arith.constant dense<0.000000e+00> : vector<4x32xf32>
    %492 = tpu.matmul %441, %491, %cst_332 {dimension_numbers = #tpu.dot_dimension_numbers<[1], [0], [0], [1], [0, 0, 1, 1], [], []>} : vector<4x32xf32>, vector<32x32xf32>, vector<4x32xf32> -> vector<4x32xf32>
    %c2_333 = arith.constant 2 : index
    %c0_334 = arith.constant 0 : index
    %c0_335 = arith.constant 0 : index
    %493 = vector.load %arg14[%c2_333, %c0_334, %c0_335] : memref<3x1x32xf32, #tpu.memory_space<vmem>>, vector<1x1x32xf32>
    %494 = vector.shape_cast %493 : vector<1x1x32xf32> to vector<1x32xf32>
    %495 = vector.broadcast %494 : vector<1x32xf32> to vector<4x32xf32>
    %496 = arith.addf %492, %495 : vector<4x32xf32>
    %497 = tpu.transpose %489, [1, 0] : vector<4x32xf32> -> vector<32x4xf32>
    %c2_336 = arith.constant 2 : index
    %c0_337 = arith.constant 0 : index
    %c0_338 = arith.constant 0 : index
    %498 = vector.load %arg15[%c2_336, %c0_337, %c0_338] : memref<3x32x32xf32, #tpu.memory_space<vmem>>, vector<1x32x32xf32>
    %499 = vector.shape_cast %498 : vector<1x32x32xf32> to vector<32x32xf32>
    %cst_339 = arith.constant 0.000000e+00 : f32
    %500 = vector.broadcast %cst_339 : f32 to vector<4x32xf32>
    %501 = vector.extract_strided_slice %482 {offsets = [0, 0], sizes = [4, 8], strides = [1, 1]} : vector<4x32xf32> to vector<4x8xf32>
    %cst_340 = arith.constant 0.353553385 : f32
    %502 = vector.broadcast %cst_340 : f32 to vector<4x8xf32>
    %503 = arith.mulf %501, %502 : vector<4x8xf32>
    %504 = vector.extract_strided_slice %497 {offsets = [0, 0], sizes = [8, 4], strides = [1, 1]} : vector<32x4xf32> to vector<8x4xf32>
    %cst_341 = arith.constant dense<0.000000e+00> : vector<4x4xf32>
    %505 = tpu.matmul %503, %504, %cst_341 {dimension_numbers = #tpu.dot_dimension_numbers<[1], [0], [0], [1], [0, 0, 1, 1], [], []>} : vector<4x8xf32>, vector<8x4xf32>, vector<4x4xf32> -> vector<4x4xf32>
    %cst_342 = arith.constant dense<0xFF800000> : vector<4xf32>
    %506 = vector.multi_reduction <maximumf>, %505, %cst_342 [1] : vector<4x4xf32> to vector<4xf32>
    %507 = vector.shape_cast %506 : vector<4xf32> to vector<4x1xf32>
    %508 = vector.broadcast %507 : vector<4x1xf32> to vector<4x4xf32>
    %509 = arith.subf %505, %508 : vector<4x4xf32>
    %510 = math.exp %509 : vector<4x4xf32>
    %cst_343 = arith.constant dense<0.000000e+00> : vector<4xf32>
    %511 = vector.multi_reduction <add>, %510, %cst_343 [1] : vector<4x4xf32> to vector<4xf32>
    %512 = vector.shape_cast %511 : vector<4xf32> to vector<4x1xf32>
    %513 = vector.broadcast %512 : vector<4x1xf32> to vector<4x4xf32>
    %514 = arith.divf %510, %513 : vector<4x4xf32>
    %515 = vector.extract_strided_slice %496 {offsets = [0, 0], sizes = [4, 8], strides = [1, 1]} : vector<4x32xf32> to vector<4x8xf32>
    %cst_344 = arith.constant dense<0.000000e+00> : vector<4x8xf32>
    %516 = tpu.matmul %514, %515, %cst_344 {dimension_numbers = #tpu.dot_dimension_numbers<[1], [0], [0], [1], [0, 0, 1, 1], [], []>} : vector<4x4xf32>, vector<4x8xf32>, vector<4x8xf32> -> vector<4x8xf32>
    %517 = vector.extract_strided_slice %499 {offsets = [0, 0], sizes = [8, 32], strides = [1, 1]} : vector<32x32xf32> to vector<8x32xf32>
    %cst_345 = arith.constant dense<0.000000e+00> : vector<4x32xf32>
    %518 = tpu.matmul %516, %517, %cst_345 {dimension_numbers = #tpu.dot_dimension_numbers<[1], [0], [0], [1], [0, 0, 1, 1], [], []>} : vector<4x8xf32>, vector<8x32xf32>, vector<4x32xf32> -> vector<4x32xf32>
    %519 = arith.addf %500, %518 : vector<4x32xf32>
    %520 = vector.extract_strided_slice %482 {offsets = [0, 8], sizes = [4, 8], strides = [1, 1]} : vector<4x32xf32> to vector<4x8xf32>
    %cst_346 = arith.constant 0.353553385 : f32
    %521 = vector.broadcast %cst_346 : f32 to vector<4x8xf32>
    %522 = arith.mulf %520, %521 : vector<4x8xf32>
    %523 = vector.extract_strided_slice %497 {offsets = [8, 0], sizes = [8, 4], strides = [1, 1]} : vector<32x4xf32> to vector<8x4xf32>
    %cst_347 = arith.constant dense<0.000000e+00> : vector<4x4xf32>
    %524 = tpu.matmul %522, %523, %cst_347 {dimension_numbers = #tpu.dot_dimension_numbers<[1], [0], [0], [1], [0, 0, 1, 1], [], []>} : vector<4x8xf32>, vector<8x4xf32>, vector<4x4xf32> -> vector<4x4xf32>
    %cst_348 = arith.constant dense<0xFF800000> : vector<4xf32>
    %525 = vector.multi_reduction <maximumf>, %524, %cst_348 [1] : vector<4x4xf32> to vector<4xf32>
    %526 = vector.shape_cast %525 : vector<4xf32> to vector<4x1xf32>
    %527 = vector.broadcast %526 : vector<4x1xf32> to vector<4x4xf32>
    %528 = arith.subf %524, %527 : vector<4x4xf32>
    %529 = math.exp %528 : vector<4x4xf32>
    %cst_349 = arith.constant dense<0.000000e+00> : vector<4xf32>
    %530 = vector.multi_reduction <add>, %529, %cst_349 [1] : vector<4x4xf32> to vector<4xf32>
    %531 = vector.shape_cast %530 : vector<4xf32> to vector<4x1xf32>
    %532 = vector.broadcast %531 : vector<4x1xf32> to vector<4x4xf32>
    %533 = arith.divf %529, %532 : vector<4x4xf32>
    %534 = vector.extract_strided_slice %496 {offsets = [0, 8], sizes = [4, 8], strides = [1, 1]} : vector<4x32xf32> to vector<4x8xf32>
    %cst_350 = arith.constant dense<0.000000e+00> : vector<4x8xf32>
    %535 = tpu.matmul %533, %534, %cst_350 {dimension_numbers = #tpu.dot_dimension_numbers<[1], [0], [0], [1], [0, 0, 1, 1], [], []>} : vector<4x4xf32>, vector<4x8xf32>, vector<4x8xf32> -> vector<4x8xf32>
    %536 = vector.extract_strided_slice %499 {offsets = [8, 0], sizes = [8, 32], strides = [1, 1]} : vector<32x32xf32> to vector<8x32xf32>
    %cst_351 = arith.constant dense<0.000000e+00> : vector<4x32xf32>
    %537 = tpu.matmul %535, %536, %cst_351 {dimension_numbers = #tpu.dot_dimension_numbers<[1], [0], [0], [1], [0, 0, 1, 1], [], []>} : vector<4x8xf32>, vector<8x32xf32>, vector<4x32xf32> -> vector<4x32xf32>
    %538 = arith.addf %519, %537 : vector<4x32xf32>
    %539 = vector.extract_strided_slice %482 {offsets = [0, 16], sizes = [4, 8], strides = [1, 1]} : vector<4x32xf32> to vector<4x8xf32>
    %cst_352 = arith.constant 0.353553385 : f32
    %540 = vector.broadcast %cst_352 : f32 to vector<4x8xf32>
    %541 = arith.mulf %539, %540 : vector<4x8xf32>
    %542 = vector.extract_strided_slice %497 {offsets = [16, 0], sizes = [8, 4], strides = [1, 1]} : vector<32x4xf32> to vector<8x4xf32>
    %cst_353 = arith.constant dense<0.000000e+00> : vector<4x4xf32>
    %543 = tpu.matmul %541, %542, %cst_353 {dimension_numbers = #tpu.dot_dimension_numbers<[1], [0], [0], [1], [0, 0, 1, 1], [], []>} : vector<4x8xf32>, vector<8x4xf32>, vector<4x4xf32> -> vector<4x4xf32>
    %cst_354 = arith.constant dense<0xFF800000> : vector<4xf32>
    %544 = vector.multi_reduction <maximumf>, %543, %cst_354 [1] : vector<4x4xf32> to vector<4xf32>
    %545 = vector.shape_cast %544 : vector<4xf32> to vector<4x1xf32>
    %546 = vector.broadcast %545 : vector<4x1xf32> to vector<4x4xf32>
    %547 = arith.subf %543, %546 : vector<4x4xf32>
    %548 = math.exp %547 : vector<4x4xf32>
    %cst_355 = arith.constant dense<0.000000e+00> : vector<4xf32>
    %549 = vector.multi_reduction <add>, %548, %cst_355 [1] : vector<4x4xf32> to vector<4xf32>
    %550 = vector.shape_cast %549 : vector<4xf32> to vector<4x1xf32>
    %551 = vector.broadcast %550 : vector<4x1xf32> to vector<4x4xf32>
    %552 = arith.divf %548, %551 : vector<4x4xf32>
    %553 = vector.extract_strided_slice %496 {offsets = [0, 16], sizes = [4, 8], strides = [1, 1]} : vector<4x32xf32> to vector<4x8xf32>
    %cst_356 = arith.constant dense<0.000000e+00> : vector<4x8xf32>
    %554 = tpu.matmul %552, %553, %cst_356 {dimension_numbers = #tpu.dot_dimension_numbers<[1], [0], [0], [1], [0, 0, 1, 1], [], []>} : vector<4x4xf32>, vector<4x8xf32>, vector<4x8xf32> -> vector<4x8xf32>
    %555 = vector.extract_strided_slice %499 {offsets = [16, 0], sizes = [8, 32], strides = [1, 1]} : vector<32x32xf32> to vector<8x32xf32>
    %cst_357 = arith.constant dense<0.000000e+00> : vector<4x32xf32>
    %556 = tpu.matmul %554, %555, %cst_357 {dimension_numbers = #tpu.dot_dimension_numbers<[1], [0], [0], [1], [0, 0, 1, 1], [], []>} : vector<4x8xf32>, vector<8x32xf32>, vector<4x32xf32> -> vector<4x32xf32>
    %557 = arith.addf %538, %556 : vector<4x32xf32>
    %558 = vector.extract_strided_slice %482 {offsets = [0, 24], sizes = [4, 8], strides = [1, 1]} : vector<4x32xf32> to vector<4x8xf32>
    %cst_358 = arith.constant 0.353553385 : f32
    %559 = vector.broadcast %cst_358 : f32 to vector<4x8xf32>
    %560 = arith.mulf %558, %559 : vector<4x8xf32>
    %561 = vector.extract_strided_slice %497 {offsets = [24, 0], sizes = [8, 4], strides = [1, 1]} : vector<32x4xf32> to vector<8x4xf32>
    %cst_359 = arith.constant dense<0.000000e+00> : vector<4x4xf32>
    %562 = tpu.matmul %560, %561, %cst_359 {dimension_numbers = #tpu.dot_dimension_numbers<[1], [0], [0], [1], [0, 0, 1, 1], [], []>} : vector<4x8xf32>, vector<8x4xf32>, vector<4x4xf32> -> vector<4x4xf32>
    %cst_360 = arith.constant dense<0xFF800000> : vector<4xf32>
    %563 = vector.multi_reduction <maximumf>, %562, %cst_360 [1] : vector<4x4xf32> to vector<4xf32>
    %564 = vector.shape_cast %563 : vector<4xf32> to vector<4x1xf32>
    %565 = vector.broadcast %564 : vector<4x1xf32> to vector<4x4xf32>
    %566 = arith.subf %562, %565 : vector<4x4xf32>
    %567 = math.exp %566 : vector<4x4xf32>
    %cst_361 = arith.constant dense<0.000000e+00> : vector<4xf32>
    %568 = vector.multi_reduction <add>, %567, %cst_361 [1] : vector<4x4xf32> to vector<4xf32>
    %569 = vector.shape_cast %568 : vector<4xf32> to vector<4x1xf32>
    %570 = vector.broadcast %569 : vector<4x1xf32> to vector<4x4xf32>
    %571 = arith.divf %567, %570 : vector<4x4xf32>
    %572 = vector.extract_strided_slice %496 {offsets = [0, 24], sizes = [4, 8], strides = [1, 1]} : vector<4x32xf32> to vector<4x8xf32>
    %cst_362 = arith.constant dense<0.000000e+00> : vector<4x8xf32>
    %573 = tpu.matmul %571, %572, %cst_362 {dimension_numbers = #tpu.dot_dimension_numbers<[1], [0], [0], [1], [0, 0, 1, 1], [], []>} : vector<4x4xf32>, vector<4x8xf32>, vector<4x8xf32> -> vector<4x8xf32>
    %574 = vector.extract_strided_slice %499 {offsets = [24, 0], sizes = [8, 32], strides = [1, 1]} : vector<32x32xf32> to vector<8x32xf32>
    %cst_363 = arith.constant dense<0.000000e+00> : vector<4x32xf32>
    %575 = tpu.matmul %573, %574, %cst_363 {dimension_numbers = #tpu.dot_dimension_numbers<[1], [0], [0], [1], [0, 0, 1, 1], [], []>} : vector<4x8xf32>, vector<8x32xf32>, vector<4x32xf32> -> vector<4x32xf32>
    %576 = arith.addf %557, %575 : vector<4x32xf32>
    %c2_364 = arith.constant 2 : index
    %c0_365 = arith.constant 0 : index
    %c0_366 = arith.constant 0 : index
    %577 = vector.load %arg16[%c2_364, %c0_365, %c0_366] : memref<3x1x32xf32, #tpu.memory_space<vmem>>, vector<1x1x32xf32>
    %578 = vector.shape_cast %577 : vector<1x1x32xf32> to vector<1x32xf32>
    %579 = vector.broadcast %578 : vector<1x32xf32> to vector<4x32xf32>
    %580 = arith.addf %576, %579 : vector<4x32xf32>
    %581 = arith.addf %580, %387 : vector<4x32xf32>
    %c0_367 = arith.constant 0 : index
    %c0_368 = arith.constant 0 : index
    %582 = vector.load %arg17[%c0_367, %c0_368] : memref<16x128xf32, #tpu.memory_space<vmem>>, vector<16x128xf32>
    %c0_369 = arith.constant 0 : index
    %c0_370 = arith.constant 0 : index
    %583 = vector.load %arg18[%c0_369, %c0_370] : memref<32x128xf32, #tpu.memory_space<vmem>>, vector<32x128xf32>
    %c0_371 = arith.constant 0 : index
    %c0_372 = arith.constant 0 : index
    %584 = vector.load %arg19[%c0_371, %c0_372] : memref<1x128xf32, #tpu.memory_space<vmem>>, vector<1x128xf32>
    %c0_373 = arith.constant 0 : index
    %c0_374 = arith.constant 0 : index
    %585 = vector.load %arg2[%c0_373, %c0_374] : memref<64x16xf32, #tpu.memory_space<vmem>>, vector<64x16xf32>
    %c0_375 = arith.constant 0 : index
    %c0_376 = arith.constant 0 : index
    %586 = vector.load %arg20[%c0_375, %c0_376] : memref<32x128xf32, #tpu.memory_space<vmem>>, vector<32x128xf32>
    %c0_377 = arith.constant 0 : index
    %c0_378 = arith.constant 0 : index
    %587 = vector.load %arg21[%c0_377, %c0_378] : memref<1x128xf32, #tpu.memory_space<vmem>>, vector<1x128xf32>
    %588 = tpu.iota {dimensions = array<i32: 1>} : vector<4x64xi32>
    %c0_379 = arith.constant 0 : index
    %c0_380 = arith.constant 0 : index
    %c0_381 = arith.constant 0 : index
    %589 = vector.load %arg1[%c0_379, %c0_380, %c0_381] : memref<8x4x1xi32, #tpu.memory_space<vmem>>, vector<1x4x1xi32>
    %590 = vector.shape_cast %589 : vector<1x4x1xi32> to vector<4x1xi32>
    %591 = vector.broadcast %590 : vector<4x1xi32> to vector<4x64xi32>
    %592 = arith.cmpi eq, %591, %588 : vector<4x64xi32>
    %593 = arith.extui %592 : vector<4x64xi1> to vector<4x64xi32>
    %594 = arith.sitofp %593 : vector<4x64xi32> to vector<4x64xf32>
    %cst_382 = arith.constant dense<0.000000e+00> : vector<4x16xf32>
    %595 = tpu.matmul %594, %585, %cst_382 {dimension_numbers = #tpu.dot_dimension_numbers<[1], [0], [0], [1], [0, 0, 1, 1], [], []>} : vector<4x64xf32>, vector<64x16xf32>, vector<4x16xf32> -> vector<4x16xf32>
    %cst_383 = arith.constant dense<0.000000e+00> : vector<4x128xf32>
    %596 = tpu.matmul %595, %582, %cst_383 {dimension_numbers = #tpu.dot_dimension_numbers<[1], [0], [0], [1], [0, 0, 1, 1], [], []>} : vector<4x16xf32>, vector<16x128xf32>, vector<4x128xf32> -> vector<4x128xf32>
    %cst_384 = arith.constant dense<0.000000e+00> : vector<4x128xf32>
    %597 = tpu.matmul %581, %583, %cst_384 {dimension_numbers = #tpu.dot_dimension_numbers<[1], [0], [0], [1], [0, 0, 1, 1], [], []>} : vector<4x32xf32>, vector<32x128xf32>, vector<4x128xf32> -> vector<4x128xf32>
    %598 = arith.addf %596, %597 : vector<4x128xf32>
    %599 = vector.broadcast %584 : vector<1x128xf32> to vector<4x128xf32>
    %600 = arith.addf %598, %599 : vector<4x128xf32>
    %601 = vector.extract_strided_slice %600 {offsets = [0, 0], sizes = [4, 32], strides = [1, 1]} : vector<4x128xf32> to vector<4x32xf32>
    %602 = arith.negf %601 : vector<4x32xf32>
    %603 = math.exp %602 : vector<4x32xf32>
    %cst_385 = arith.constant 1.000000e+00 : f32
    %604 = vector.broadcast %cst_385 : f32 to vector<4x32xf32>
    %605 = arith.addf %604, %603 : vector<4x32xf32>
    %606 = arith.divf %604, %605 : vector<4x32xf32>
    %607 = vector.extract_strided_slice %600 {offsets = [0, 32], sizes = [4, 32], strides = [1, 1]} : vector<4x128xf32> to vector<4x32xf32>
    %608 = arith.negf %607 : vector<4x32xf32>
    %609 = math.exp %608 : vector<4x32xf32>
    %cst_386 = arith.constant 1.000000e+00 : f32
    %610 = vector.broadcast %cst_386 : f32 to vector<4x32xf32>
    %611 = arith.addf %610, %609 : vector<4x32xf32>
    %612 = arith.divf %610, %611 : vector<4x32xf32>
    %613 = vector.extract_strided_slice %600 {offsets = [0, 64], sizes = [4, 32], strides = [1, 1]} : vector<4x128xf32> to vector<4x32xf32>
    %614 = math.tanh %613 : vector<4x32xf32>
    %615 = vector.extract_strided_slice %600 {offsets = [0, 96], sizes = [4, 32], strides = [1, 1]} : vector<4x128xf32> to vector<4x32xf32>
    %616 = arith.negf %615 : vector<4x32xf32>
    %617 = math.exp %616 : vector<4x32xf32>
    %cst_387 = arith.constant 1.000000e+00 : f32
    %618 = vector.broadcast %cst_387 : f32 to vector<4x32xf32>
    %619 = arith.addf %618, %617 : vector<4x32xf32>
    %620 = arith.divf %618, %619 : vector<4x32xf32>
    %621 = arith.mulf %612, %581 : vector<4x32xf32>
    %622 = arith.mulf %606, %614 : vector<4x32xf32>
    %623 = arith.addf %621, %622 : vector<4x32xf32>
    %624 = math.tanh %623 : vector<4x32xf32>
    %625 = arith.mulf %620, %624 : vector<4x32xf32>
    %cst_388 = arith.constant dense<0.000000e+00> : vector<4x128xf32>
    %626 = tpu.matmul %625, %586, %cst_388 {dimension_numbers = #tpu.dot_dimension_numbers<[1], [0], [0], [1], [0, 0, 1, 1], [], []>} : vector<4x32xf32>, vector<32x128xf32>, vector<4x128xf32> -> vector<4x128xf32>
    %627 = vector.broadcast %587 : vector<1x128xf32> to vector<4x128xf32>
    %628 = arith.addf %626, %627 : vector<4x128xf32>
    %c0_389 = arith.constant 0 : index
    %c0_390 = arith.constant 0 : index
    %c0_391 = arith.constant 0 : index
    %629 = vector.load %arg22[%c0_389, %c0_390, %c0_391] : memref<8x4x128xf32, #tpu.memory_space<vmem>>, vector<1x4x128xf32>
    %630 = vector.shape_cast %629 : vector<1x4x128xf32> to vector<4x128xf32>
    %631 = vector.shape_cast %628 : vector<4x128xf32> to vector<1x4x128xf32>
    tpu.vector_store %arg22[%c0_389, %c0_390, %c0_391], %631 {strides = array<i32>} : memref<8x4x128xf32, #tpu.memory_space<vmem>>, vector<1x4x128xf32>,
    %c1_392 = arith.constant 1 : index
    %c0_393 = arith.constant 0 : index
    %c0_394 = arith.constant 0 : index
    %632 = vector.load %arg1[%c1_392, %c0_393, %c0_394] : memref<8x4x1xi32, #tpu.memory_space<vmem>>, vector<1x4x1xi32>
    %633 = vector.shape_cast %632 : vector<1x4x1xi32> to vector<4x1xi32>
    %634 = vector.broadcast %633 : vector<4x1xi32> to vector<4x64xi32>
    %635 = arith.cmpi eq, %634, %588 : vector<4x64xi32>
    %636 = arith.extui %635 : vector<4x64xi1> to vector<4x64xi32>
    %637 = arith.sitofp %636 : vector<4x64xi32> to vector<4x64xf32>
    %cst_395 = arith.constant dense<0.000000e+00> : vector<4x16xf32>
    %638 = tpu.matmul %637, %585, %cst_395 {dimension_numbers = #tpu.dot_dimension_numbers<[1], [0], [0], [1], [0, 0, 1, 1], [], []>} : vector<4x64xf32>, vector<64x16xf32>, vector<4x16xf32> -> vector<4x16xf32>
    %cst_396 = arith.constant dense<0.000000e+00> : vector<4x128xf32>
    %639 = tpu.matmul %638, %582, %cst_396 {dimension_numbers = #tpu.dot_dimension_numbers<[1], [0], [0], [1], [0, 0, 1, 1], [], []>} : vector<4x16xf32>, vector<16x128xf32>, vector<4x128xf32> -> vector<4x128xf32>
    %cst_397 = arith.constant dense<0.000000e+00> : vector<4x128xf32>
    %640 = tpu.matmul %625, %583, %cst_397 {dimension_numbers = #tpu.dot_dimension_numbers<[1], [0], [0], [1], [0, 0, 1, 1], [], []>} : vector<4x32xf32>, vector<32x128xf32>, vector<4x128xf32> -> vector<4x128xf32>
    %641 = arith.addf %639, %640 : vector<4x128xf32>
    %642 = vector.broadcast %584 : vector<1x128xf32> to vector<4x128xf32>
    %643 = arith.addf %641, %642 : vector<4x128xf32>
    %644 = vector.extract_strided_slice %643 {offsets = [0, 0], sizes = [4, 32], strides = [1, 1]} : vector<4x128xf32> to vector<4x32xf32>
    %645 = arith.negf %644 : vector<4x32xf32>
    %646 = math.exp %645 : vector<4x32xf32>
    %cst_398 = arith.constant 1.000000e+00 : f32
    %647 = vector.broadcast %cst_398 : f32 to vector<4x32xf32>
    %648 = arith.addf %647, %646 : vector<4x32xf32>
    %649 = arith.divf %647, %648 : vector<4x32xf32>
    %650 = vector.extract_strided_slice %643 {offsets = [0, 32], sizes = [4, 32], strides = [1, 1]} : vector<4x128xf32> to vector<4x32xf32>
    %651 = arith.negf %650 : vector<4x32xf32>
    %652 = math.exp %651 : vector<4x32xf32>
    %cst_399 = arith.constant 1.000000e+00 : f32
    %653 = vector.broadcast %cst_399 : f32 to vector<4x32xf32>
    %654 = arith.addf %653, %652 : vector<4x32xf32>
    %655 = arith.divf %653, %654 : vector<4x32xf32>
    %656 = vector.extract_strided_slice %643 {offsets = [0, 64], sizes = [4, 32], strides = [1, 1]} : vector<4x128xf32> to vector<4x32xf32>
    %657 = math.tanh %656 : vector<4x32xf32>
    %658 = vector.extract_strided_slice %643 {offsets = [0, 96], sizes = [4, 32], strides = [1, 1]} : vector<4x128xf32> to vector<4x32xf32>
    %659 = arith.negf %658 : vector<4x32xf32>
    %660 = math.exp %659 : vector<4x32xf32>
    %cst_400 = arith.constant 1.000000e+00 : f32
    %661 = vector.broadcast %cst_400 : f32 to vector<4x32xf32>
    %662 = arith.addf %661, %660 : vector<4x32xf32>
    %663 = arith.divf %661, %662 : vector<4x32xf32>
    %664 = arith.mulf %655, %623 : vector<4x32xf32>
    %665 = arith.mulf %649, %657 : vector<4x32xf32>
    %666 = arith.addf %664, %665 : vector<4x32xf32>
    %667 = math.tanh %666 : vector<4x32xf32>
    %668 = arith.mulf %663, %667 : vector<4x32xf32>
    %cst_401 = arith.constant dense<0.000000e+00> : vector<4x128xf32>
    %669 = tpu.matmul %668, %586, %cst_401 {dimension_numbers = #tpu.dot_dimension_numbers<[1], [0], [0], [1], [0, 0, 1, 1], [], []>} : vector<4x32xf32>, vector<32x128xf32>, vector<4x128xf32> -> vector<4x128xf32>
    %670 = vector.broadcast %587 : vector<1x128xf32> to vector<4x128xf32>
    %671 = arith.addf %669, %670 : vector<4x128xf32>
    %c1_402 = arith.constant 1 : index
    %c0_403 = arith.constant 0 : index
    %c0_404 = arith.constant 0 : index
    %672 = vector.load %arg22[%c1_402, %c0_403, %c0_404] : memref<8x4x128xf32, #tpu.memory_space<vmem>>, vector<1x4x128xf32>
    %673 = vector.shape_cast %672 : vector<1x4x128xf32> to vector<4x128xf32>
    %674 = vector.shape_cast %671 : vector<4x128xf32> to vector<1x4x128xf32>
    tpu.vector_store %arg22[%c1_402, %c0_403, %c0_404], %674 {strides = array<i32>} : memref<8x4x128xf32, #tpu.memory_space<vmem>>, vector<1x4x128xf32>,
    %c2_405 = arith.constant 2 : index
    %c0_406 = arith.constant 0 : index
    %c0_407 = arith.constant 0 : index
    %675 = vector.load %arg1[%c2_405, %c0_406, %c0_407] : memref<8x4x1xi32, #tpu.memory_space<vmem>>, vector<1x4x1xi32>
    %676 = vector.shape_cast %675 : vector<1x4x1xi32> to vector<4x1xi32>
    %677 = vector.broadcast %676 : vector<4x1xi32> to vector<4x64xi32>
    %678 = arith.cmpi eq, %677, %588 : vector<4x64xi32>
    %679 = arith.extui %678 : vector<4x64xi1> to vector<4x64xi32>
    %680 = arith.sitofp %679 : vector<4x64xi32> to vector<4x64xf32>
    %cst_408 = arith.constant dense<0.000000e+00> : vector<4x16xf32>
    %681 = tpu.matmul %680, %585, %cst_408 {dimension_numbers = #tpu.dot_dimension_numbers<[1], [0], [0], [1], [0, 0, 1, 1], [], []>} : vector<4x64xf32>, vector<64x16xf32>, vector<4x16xf32> -> vector<4x16xf32>
    %cst_409 = arith.constant dense<0.000000e+00> : vector<4x128xf32>
    %682 = tpu.matmul %681, %582, %cst_409 {dimension_numbers = #tpu.dot_dimension_numbers<[1], [0], [0], [1], [0, 0, 1, 1], [], []>} : vector<4x16xf32>, vector<16x128xf32>, vector<4x128xf32> -> vector<4x128xf32>
    %cst_410 = arith.constant dense<0.000000e+00> : vector<4x128xf32>
    %683 = tpu.matmul %668, %583, %cst_410 {dimension_numbers = #tpu.dot_dimension_numbers<[1], [0], [0], [1], [0, 0, 1, 1], [], []>} : vector<4x32xf32>, vector<32x128xf32>, vector<4x128xf32> -> vector<4x128xf32>
    %684 = arith.addf %682, %683 : vector<4x128xf32>
    %685 = vector.broadcast %584 : vector<1x128xf32> to vector<4x128xf32>
    %686 = arith.addf %684, %685 : vector<4x128xf32>
    %687 = vector.extract_strided_slice %686 {offsets = [0, 0], sizes = [4, 32], strides = [1, 1]} : vector<4x128xf32> to vector<4x32xf32>
    %688 = arith.negf %687 : vector<4x32xf32>
    %689 = math.exp %688 : vector<4x32xf32>
    %cst_411 = arith.constant 1.000000e+00 : f32
    %690 = vector.broadcast %cst_411 : f32 to vector<4x32xf32>
    %691 = arith.addf %690, %689 : vector<4x32xf32>
    %692 = arith.divf %690, %691 : vector<4x32xf32>
    %693 = vector.extract_strided_slice %686 {offsets = [0, 32], sizes = [4, 32], strides = [1, 1]} : vector<4x128xf32> to vector<4x32xf32>
    %694 = arith.negf %693 : vector<4x32xf32>
    %695 = math.exp %694 : vector<4x32xf32>
    %cst_412 = arith.constant 1.000000e+00 : f32
    %696 = vector.broadcast %cst_412 : f32 to vector<4x32xf32>
    %697 = arith.addf %696, %695 : vector<4x32xf32>
    %698 = arith.divf %696, %697 : vector<4x32xf32>
    %699 = vector.extract_strided_slice %686 {offsets = [0, 64], sizes = [4, 32], strides = [1, 1]} : vector<4x128xf32> to vector<4x32xf32>
    %700 = math.tanh %699 : vector<4x32xf32>
    %701 = vector.extract_strided_slice %686 {offsets = [0, 96], sizes = [4, 32], strides = [1, 1]} : vector<4x128xf32> to vector<4x32xf32>
    %702 = arith.negf %701 : vector<4x32xf32>
    %703 = math.exp %702 : vector<4x32xf32>
    %cst_413 = arith.constant 1.000000e+00 : f32
    %704 = vector.broadcast %cst_413 : f32 to vector<4x32xf32>
    %705 = arith.addf %704, %703 : vector<4x32xf32>
    %706 = arith.divf %704, %705 : vector<4x32xf32>
    %707 = arith.mulf %698, %666 : vector<4x32xf32>
    %708 = arith.mulf %692, %700 : vector<4x32xf32>
    %709 = arith.addf %707, %708 : vector<4x32xf32>
    %710 = math.tanh %709 : vector<4x32xf32>
    %711 = arith.mulf %706, %710 : vector<4x32xf32>
    %cst_414 = arith.constant dense<0.000000e+00> : vector<4x128xf32>
    %712 = tpu.matmul %711, %586, %cst_414 {dimension_numbers = #tpu.dot_dimension_numbers<[1], [0], [0], [1], [0, 0, 1, 1], [], []>} : vector<4x32xf32>, vector<32x128xf32>, vector<4x128xf32> -> vector<4x128xf32>
    %713 = vector.broadcast %587 : vector<1x128xf32> to vector<4x128xf32>
    %714 = arith.addf %712, %713 : vector<4x128xf32>
    %c2_415 = arith.constant 2 : index
    %c0_416 = arith.constant 0 : index
    %c0_417 = arith.constant 0 : index
    %715 = vector.load %arg22[%c2_415, %c0_416, %c0_417] : memref<8x4x128xf32, #tpu.memory_space<vmem>>, vector<1x4x128xf32>
    %716 = vector.shape_cast %715 : vector<1x4x128xf32> to vector<4x128xf32>
    %717 = vector.shape_cast %714 : vector<4x128xf32> to vector<1x4x128xf32>
    tpu.vector_store %arg22[%c2_415, %c0_416, %c0_417], %717 {strides = array<i32>} : memref<8x4x128xf32, #tpu.memory_space<vmem>>, vector<1x4x128xf32>,
    %c3_418 = arith.constant 3 : index
    %c0_419 = arith.constant 0 : index
    %c0_420 = arith.constant 0 : index
    %718 = vector.load %arg1[%c3_418, %c0_419, %c0_420] : memref<8x4x1xi32, #tpu.memory_space<vmem>>, vector<1x4x1xi32>
    %719 = vector.shape_cast %718 : vector<1x4x1xi32> to vector<4x1xi32>
    %720 = vector.broadcast %719 : vector<4x1xi32> to vector<4x64xi32>
    %721 = arith.cmpi eq, %720, %588 : vector<4x64xi32>
    %722 = arith.extui %721 : vector<4x64xi1> to vector<4x64xi32>
    %723 = arith.sitofp %722 : vector<4x64xi32> to vector<4x64xf32>
    %cst_421 = arith.constant dense<0.000000e+00> : vector<4x16xf32>
    %724 = tpu.matmul %723, %585, %cst_421 {dimension_numbers = #tpu.dot_dimension_numbers<[1], [0], [0], [1], [0, 0, 1, 1], [], []>} : vector<4x64xf32>, vector<64x16xf32>, vector<4x16xf32> -> vector<4x16xf32>
    %cst_422 = arith.constant dense<0.000000e+00> : vector<4x128xf32>
    %725 = tpu.matmul %724, %582, %cst_422 {dimension_numbers = #tpu.dot_dimension_numbers<[1], [0], [0], [1], [0, 0, 1, 1], [], []>} : vector<4x16xf32>, vector<16x128xf32>, vector<4x128xf32> -> vector<4x128xf32>
    %cst_423 = arith.constant dense<0.000000e+00> : vector<4x128xf32>
    %726 = tpu.matmul %711, %583, %cst_423 {dimension_numbers = #tpu.dot_dimension_numbers<[1], [0], [0], [1], [0, 0, 1, 1], [], []>} : vector<4x32xf32>, vector<32x128xf32>, vector<4x128xf32> -> vector<4x128xf32>
    %727 = arith.addf %725, %726 : vector<4x128xf32>
    %728 = vector.broadcast %584 : vector<1x128xf32> to vector<4x128xf32>
    %729 = arith.addf %727, %728 : vector<4x128xf32>
    %730 = vector.extract_strided_slice %729 {offsets = [0, 0], sizes = [4, 32], strides = [1, 1]} : vector<4x128xf32> to vector<4x32xf32>
    %731 = arith.negf %730 : vector<4x32xf32>
    %732 = math.exp %731 : vector<4x32xf32>
    %cst_424 = arith.constant 1.000000e+00 : f32
    %733 = vector.broadcast %cst_424 : f32 to vector<4x32xf32>
    %734 = arith.addf %733, %732 : vector<4x32xf32>
    %735 = arith.divf %733, %734 : vector<4x32xf32>
    %736 = vector.extract_strided_slice %729 {offsets = [0, 32], sizes = [4, 32], strides = [1, 1]} : vector<4x128xf32> to vector<4x32xf32>
    %737 = arith.negf %736 : vector<4x32xf32>
    %738 = math.exp %737 : vector<4x32xf32>
    %cst_425 = arith.constant 1.000000e+00 : f32
    %739 = vector.broadcast %cst_425 : f32 to vector<4x32xf32>
    %740 = arith.addf %739, %738 : vector<4x32xf32>
    %741 = arith.divf %739, %740 : vector<4x32xf32>
    %742 = vector.extract_strided_slice %729 {offsets = [0, 64], sizes = [4, 32], strides = [1, 1]} : vector<4x128xf32> to vector<4x32xf32>
    %743 = math.tanh %742 : vector<4x32xf32>
    %744 = vector.extract_strided_slice %729 {offsets = [0, 96], sizes = [4, 32], strides = [1, 1]} : vector<4x128xf32> to vector<4x32xf32>
    %745 = arith.negf %744 : vector<4x32xf32>
    %746 = math.exp %745 : vector<4x32xf32>
    %cst_426 = arith.constant 1.000000e+00 : f32
    %747 = vector.broadcast %cst_426 : f32 to vector<4x32xf32>
    %748 = arith.addf %747, %746 : vector<4x32xf32>
    %749 = arith.divf %747, %748 : vector<4x32xf32>
    %750 = arith.mulf %741, %709 : vector<4x32xf32>
    %751 = arith.mulf %735, %743 : vector<4x32xf32>
    %752 = arith.addf %750, %751 : vector<4x32xf32>
    %753 = math.tanh %752 : vector<4x32xf32>
    %754 = arith.mulf %749, %753 : vector<4x32xf32>
    %cst_427 = arith.constant dense<0.000000e+00> : vector<4x128xf32>
    %755 = tpu.matmul %754, %586, %cst_427 {dimension_numbers = #tpu.dot_dimension_numbers<[1], [0], [0], [1], [0, 0, 1, 1], [], []>} : vector<4x32xf32>, vector<32x128xf32>, vector<4x128xf32> -> vector<4x128xf32>
    %756 = vector.broadcast %587 : vector<1x128xf32> to vector<4x128xf32>
    %757 = arith.addf %755, %756 : vector<4x128xf32>
    %c3_428 = arith.constant 3 : index
    %c0_429 = arith.constant 0 : index
    %c0_430 = arith.constant 0 : index
    %758 = vector.load %arg22[%c3_428, %c0_429, %c0_430] : memref<8x4x128xf32, #tpu.memory_space<vmem>>, vector<1x4x128xf32>
    %759 = vector.shape_cast %758 : vector<1x4x128xf32> to vector<4x128xf32>
    %760 = vector.shape_cast %757 : vector<4x128xf32> to vector<1x4x128xf32>
    tpu.vector_store %arg22[%c3_428, %c0_429, %c0_430], %760 {strides = array<i32>} : memref<8x4x128xf32, #tpu.memory_space<vmem>>, vector<1x4x128xf32>,
    %c4_431 = arith.constant 4 : index
    %c0_432 = arith.constant 0 : index
    %c0_433 = arith.constant 0 : index
    %761 = vector.load %arg1[%c4_431, %c0_432, %c0_433] : memref<8x4x1xi32, #tpu.memory_space<vmem>>, vector<1x4x1xi32>
    %762 = vector.shape_cast %761 : vector<1x4x1xi32> to vector<4x1xi32>
    %763 = vector.broadcast %762 : vector<4x1xi32> to vector<4x64xi32>
    %764 = arith.cmpi eq, %763, %588 : vector<4x64xi32>
    %765 = arith.extui %764 : vector<4x64xi1> to vector<4x64xi32>
    %766 = arith.sitofp %765 : vector<4x64xi32> to vector<4x64xf32>
    %cst_434 = arith.constant dense<0.000000e+00> : vector<4x16xf32>
    %767 = tpu.matmul %766, %585, %cst_434 {dimension_numbers = #tpu.dot_dimension_numbers<[1], [0], [0], [1], [0, 0, 1, 1], [], []>} : vector<4x64xf32>, vector<64x16xf32>, vector<4x16xf32> -> vector<4x16xf32>
    %cst_435 = arith.constant dense<0.000000e+00> : vector<4x128xf32>
    %768 = tpu.matmul %767, %582, %cst_435 {dimension_numbers = #tpu.dot_dimension_numbers<[1], [0], [0], [1], [0, 0, 1, 1], [], []>} : vector<4x16xf32>, vector<16x128xf32>, vector<4x128xf32> -> vector<4x128xf32>
    %cst_436 = arith.constant dense<0.000000e+00> : vector<4x128xf32>
    %769 = tpu.matmul %754, %583, %cst_436 {dimension_numbers = #tpu.dot_dimension_numbers<[1], [0], [0], [1], [0, 0, 1, 1], [], []>} : vector<4x32xf32>, vector<32x128xf32>, vector<4x128xf32> -> vector<4x128xf32>
    %770 = arith.addf %768, %769 : vector<4x128xf32>
    %771 = vector.broadcast %584 : vector<1x128xf32> to vector<4x128xf32>
    %772 = arith.addf %770, %771 : vector<4x128xf32>
    %773 = vector.extract_strided_slice %772 {offsets = [0, 0], sizes = [4, 32], strides = [1, 1]} : vector<4x128xf32> to vector<4x32xf32>
    %774 = arith.negf %773 : vector<4x32xf32>
    %775 = math.exp %774 : vector<4x32xf32>
    %cst_437 = arith.constant 1.000000e+00 : f32
    %776 = vector.broadcast %cst_437 : f32 to vector<4x32xf32>
    %777 = arith.addf %776, %775 : vector<4x32xf32>
    %778 = arith.divf %776, %777 : vector<4x32xf32>
    %779 = vector.extract_strided_slice %772 {offsets = [0, 32], sizes = [4, 32], strides = [1, 1]} : vector<4x128xf32> to vector<4x32xf32>
    %780 = arith.negf %779 : vector<4x32xf32>
    %781 = math.exp %780 : vector<4x32xf32>
    %cst_438 = arith.constant 1.000000e+00 : f32
    %782 = vector.broadcast %cst_438 : f32 to vector<4x32xf32>
    %783 = arith.addf %782, %781 : vector<4x32xf32>
    %784 = arith.divf %782, %783 : vector<4x32xf32>
    %785 = vector.extract_strided_slice %772 {offsets = [0, 64], sizes = [4, 32], strides = [1, 1]} : vector<4x128xf32> to vector<4x32xf32>
    %786 = math.tanh %785 : vector<4x32xf32>
    %787 = vector.extract_strided_slice %772 {offsets = [0, 96], sizes = [4, 32], strides = [1, 1]} : vector<4x128xf32> to vector<4x32xf32>
    %788 = arith.negf %787 : vector<4x32xf32>
    %789 = math.exp %788 : vector<4x32xf32>
    %cst_439 = arith.constant 1.000000e+00 : f32
    %790 = vector.broadcast %cst_439 : f32 to vector<4x32xf32>
    %791 = arith.addf %790, %789 : vector<4x32xf32>
    %792 = arith.divf %790, %791 : vector<4x32xf32>
    %793 = arith.mulf %784, %752 : vector<4x32xf32>
    %794 = arith.mulf %778, %786 : vector<4x32xf32>
    %795 = arith.addf %793, %794 : vector<4x32xf32>
    %796 = math.tanh %795 : vector<4x32xf32>
    %797 = arith.mulf %792, %796 : vector<4x32xf32>
    %cst_440 = arith.constant dense<0.000000e+00> : vector<4x128xf32>
    %798 = tpu.matmul %797, %586, %cst_440 {dimension_numbers = #tpu.dot_dimension_numbers<[1], [0], [0], [1], [0, 0, 1, 1], [], []>} : vector<4x32xf32>, vector<32x128xf32>, vector<4x128xf32> -> vector<4x128xf32>
    %799 = vector.broadcast %587 : vector<1x128xf32> to vector<4x128xf32>
    %800 = arith.addf %798, %799 : vector<4x128xf32>
    %c4_441 = arith.constant 4 : index
    %c0_442 = arith.constant 0 : index
    %c0_443 = arith.constant 0 : index
    %801 = vector.load %arg22[%c4_441, %c0_442, %c0_443] : memref<8x4x128xf32, #tpu.memory_space<vmem>>, vector<1x4x128xf32>
    %802 = vector.shape_cast %801 : vector<1x4x128xf32> to vector<4x128xf32>
    %803 = vector.shape_cast %800 : vector<4x128xf32> to vector<1x4x128xf32>
    tpu.vector_store %arg22[%c4_441, %c0_442, %c0_443], %803 {strides = array<i32>} : memref<8x4x128xf32, #tpu.memory_space<vmem>>, vector<1x4x128xf32>,
    %c5_444 = arith.constant 5 : index
    %c0_445 = arith.constant 0 : index
    %c0_446 = arith.constant 0 : index
    %804 = vector.load %arg1[%c5_444, %c0_445, %c0_446] : memref<8x4x1xi32, #tpu.memory_space<vmem>>, vector<1x4x1xi32>
    %805 = vector.shape_cast %804 : vector<1x4x1xi32> to vector<4x1xi32>
    %806 = vector.broadcast %805 : vector<4x1xi32> to vector<4x64xi32>
    %807 = arith.cmpi eq, %806, %588 : vector<4x64xi32>
    %808 = arith.extui %807 : vector<4x64xi1> to vector<4x64xi32>
    %809 = arith.sitofp %808 : vector<4x64xi32> to vector<4x64xf32>
    %cst_447 = arith.constant dense<0.000000e+00> : vector<4x16xf32>
    %810 = tpu.matmul %809, %585, %cst_447 {dimension_numbers = #tpu.dot_dimension_numbers<[1], [0], [0], [1], [0, 0, 1, 1], [], []>} : vector<4x64xf32>, vector<64x16xf32>, vector<4x16xf32> -> vector<4x16xf32>
    %cst_448 = arith.constant dense<0.000000e+00> : vector<4x128xf32>
    %811 = tpu.matmul %810, %582, %cst_448 {dimension_numbers = #tpu.dot_dimension_numbers<[1], [0], [0], [1], [0, 0, 1, 1], [], []>} : vector<4x16xf32>, vector<16x128xf32>, vector<4x128xf32> -> vector<4x128xf32>
    %cst_449 = arith.constant dense<0.000000e+00> : vector<4x128xf32>
    %812 = tpu.matmul %797, %583, %cst_449 {dimension_numbers = #tpu.dot_dimension_numbers<[1], [0], [0], [1], [0, 0, 1, 1], [], []>} : vector<4x32xf32>, vector<32x128xf32>, vector<4x128xf32> -> vector<4x128xf32>
    %813 = arith.addf %811, %812 : vector<4x128xf32>
    %814 = vector.broadcast %584 : vector<1x128xf32> to vector<4x128xf32>
    %815 = arith.addf %813, %814 : vector<4x128xf32>
    %816 = vector.extract_strided_slice %815 {offsets = [0, 0], sizes = [4, 32], strides = [1, 1]} : vector<4x128xf32> to vector<4x32xf32>
    %817 = arith.negf %816 : vector<4x32xf32>
    %818 = math.exp %817 : vector<4x32xf32>
    %cst_450 = arith.constant 1.000000e+00 : f32
    %819 = vector.broadcast %cst_450 : f32 to vector<4x32xf32>
    %820 = arith.addf %819, %818 : vector<4x32xf32>
    %821 = arith.divf %819, %820 : vector<4x32xf32>
    %822 = vector.extract_strided_slice %815 {offsets = [0, 32], sizes = [4, 32], strides = [1, 1]} : vector<4x128xf32> to vector<4x32xf32>
    %823 = arith.negf %822 : vector<4x32xf32>
    %824 = math.exp %823 : vector<4x32xf32>
    %cst_451 = arith.constant 1.000000e+00 : f32
    %825 = vector.broadcast %cst_451 : f32 to vector<4x32xf32>
    %826 = arith.addf %825, %824 : vector<4x32xf32>
    %827 = arith.divf %825, %826 : vector<4x32xf32>
    %828 = vector.extract_strided_slice %815 {offsets = [0, 64], sizes = [4, 32], strides = [1, 1]} : vector<4x128xf32> to vector<4x32xf32>
    %829 = math.tanh %828 : vector<4x32xf32>
    %830 = vector.extract_strided_slice %815 {offsets = [0, 96], sizes = [4, 32], strides = [1, 1]} : vector<4x128xf32> to vector<4x32xf32>
    %831 = arith.negf %830 : vector<4x32xf32>
    %832 = math.exp %831 : vector<4x32xf32>
    %cst_452 = arith.constant 1.000000e+00 : f32
    %833 = vector.broadcast %cst_452 : f32 to vector<4x32xf32>
    %834 = arith.addf %833, %832 : vector<4x32xf32>
    %835 = arith.divf %833, %834 : vector<4x32xf32>
    %836 = arith.mulf %827, %795 : vector<4x32xf32>
    %837 = arith.mulf %821, %829 : vector<4x32xf32>
    %838 = arith.addf %836, %837 : vector<4x32xf32>
    %839 = math.tanh %838 : vector<4x32xf32>
    %840 = arith.mulf %835, %839 : vector<4x32xf32>
    %cst_453 = arith.constant dense<0.000000e+00> : vector<4x128xf32>
    %841 = tpu.matmul %840, %586, %cst_453 {dimension_numbers = #tpu.dot_dimension_numbers<[1], [0], [0], [1], [0, 0, 1, 1], [], []>} : vector<4x32xf32>, vector<32x128xf32>, vector<4x128xf32> -> vector<4x128xf32>
    %842 = vector.broadcast %587 : vector<1x128xf32> to vector<4x128xf32>
    %843 = arith.addf %841, %842 : vector<4x128xf32>
    %c5_454 = arith.constant 5 : index
    %c0_455 = arith.constant 0 : index
    %c0_456 = arith.constant 0 : index
    %844 = vector.load %arg22[%c5_454, %c0_455, %c0_456] : memref<8x4x128xf32, #tpu.memory_space<vmem>>, vector<1x4x128xf32>
    %845 = vector.shape_cast %844 : vector<1x4x128xf32> to vector<4x128xf32>
    %846 = vector.shape_cast %843 : vector<4x128xf32> to vector<1x4x128xf32>
    tpu.vector_store %arg22[%c5_454, %c0_455, %c0_456], %846 {strides = array<i32>} : memref<8x4x128xf32, #tpu.memory_space<vmem>>, vector<1x4x128xf32>,
    %c6_457 = arith.constant 6 : index
    %c0_458 = arith.constant 0 : index
    %c0_459 = arith.constant 0 : index
    %847 = vector.load %arg1[%c6_457, %c0_458, %c0_459] : memref<8x4x1xi32, #tpu.memory_space<vmem>>, vector<1x4x1xi32>
    %848 = vector.shape_cast %847 : vector<1x4x1xi32> to vector<4x1xi32>
    %849 = vector.broadcast %848 : vector<4x1xi32> to vector<4x64xi32>
    %850 = arith.cmpi eq, %849, %588 : vector<4x64xi32>
    %851 = arith.extui %850 : vector<4x64xi1> to vector<4x64xi32>
    %852 = arith.sitofp %851 : vector<4x64xi32> to vector<4x64xf32>
    %cst_460 = arith.constant dense<0.000000e+00> : vector<4x16xf32>
    %853 = tpu.matmul %852, %585, %cst_460 {dimension_numbers = #tpu.dot_dimension_numbers<[1], [0], [0], [1], [0, 0, 1, 1], [], []>} : vector<4x64xf32>, vector<64x16xf32>, vector<4x16xf32> -> vector<4x16xf32>
    %cst_461 = arith.constant dense<0.000000e+00> : vector<4x128xf32>
    %854 = tpu.matmul %853, %582, %cst_461 {dimension_numbers = #tpu.dot_dimension_numbers<[1], [0], [0], [1], [0, 0, 1, 1], [], []>} : vector<4x16xf32>, vector<16x128xf32>, vector<4x128xf32> -> vector<4x128xf32>
    %cst_462 = arith.constant dense<0.000000e+00> : vector<4x128xf32>
    %855 = tpu.matmul %840, %583, %cst_462 {dimension_numbers = #tpu.dot_dimension_numbers<[1], [0], [0], [1], [0, 0, 1, 1], [], []>} : vector<4x32xf32>, vector<32x128xf32>, vector<4x128xf32> -> vector<4x128xf32>
    %856 = arith.addf %854, %855 : vector<4x128xf32>
    %857 = vector.broadcast %584 : vector<1x128xf32> to vector<4x128xf32>
    %858 = arith.addf %856, %857 : vector<4x128xf32>
    %859 = vector.extract_strided_slice %858 {offsets = [0, 0], sizes = [4, 32], strides = [1, 1]} : vector<4x128xf32> to vector<4x32xf32>
    %860 = arith.negf %859 : vector<4x32xf32>
    %861 = math.exp %860 : vector<4x32xf32>
    %cst_463 = arith.constant 1.000000e+00 : f32
    %862 = vector.broadcast %cst_463 : f32 to vector<4x32xf32>
    %863 = arith.addf %862, %861 : vector<4x32xf32>
    %864 = arith.divf %862, %863 : vector<4x32xf32>
    %865 = vector.extract_strided_slice %858 {offsets = [0, 32], sizes = [4, 32], strides = [1, 1]} : vector<4x128xf32> to vector<4x32xf32>
    %866 = arith.negf %865 : vector<4x32xf32>
    %867 = math.exp %866 : vector<4x32xf32>
    %cst_464 = arith.constant 1.000000e+00 : f32
    %868 = vector.broadcast %cst_464 : f32 to vector<4x32xf32>
    %869 = arith.addf %868, %867 : vector<4x32xf32>
    %870 = arith.divf %868, %869 : vector<4x32xf32>
    %871 = vector.extract_strided_slice %858 {offsets = [0, 64], sizes = [4, 32], strides = [1, 1]} : vector<4x128xf32> to vector<4x32xf32>
    %872 = math.tanh %871 : vector<4x32xf32>
    %873 = vector.extract_strided_slice %858 {offsets = [0, 96], sizes = [4, 32], strides = [1, 1]} : vector<4x128xf32> to vector<4x32xf32>
    %874 = arith.negf %873 : vector<4x32xf32>
    %875 = math.exp %874 : vector<4x32xf32>
    %cst_465 = arith.constant 1.000000e+00 : f32
    %876 = vector.broadcast %cst_465 : f32 to vector<4x32xf32>
    %877 = arith.addf %876, %875 : vector<4x32xf32>
    %878 = arith.divf %876, %877 : vector<4x32xf32>
    %879 = arith.mulf %870, %838 : vector<4x32xf32>
    %880 = arith.mulf %864, %872 : vector<4x32xf32>
    %881 = arith.addf %879, %880 : vector<4x32xf32>
    %882 = math.tanh %881 : vector<4x32xf32>
    %883 = arith.mulf %878, %882 : vector<4x32xf32>
    %cst_466 = arith.constant dense<0.000000e+00> : vector<4x128xf32>
    %884 = tpu.matmul %883, %586, %cst_466 {dimension_numbers = #tpu.dot_dimension_numbers<[1], [0], [0], [1], [0, 0, 1, 1], [], []>} : vector<4x32xf32>, vector<32x128xf32>, vector<4x128xf32> -> vector<4x128xf32>
    %885 = vector.broadcast %587 : vector<1x128xf32> to vector<4x128xf32>
    %886 = arith.addf %884, %885 : vector<4x128xf32>
    %c6_467 = arith.constant 6 : index
    %c0_468 = arith.constant 0 : index
    %c0_469 = arith.constant 0 : index
    %887 = vector.load %arg22[%c6_467, %c0_468, %c0_469] : memref<8x4x128xf32, #tpu.memory_space<vmem>>, vector<1x4x128xf32>
    %888 = vector.shape_cast %887 : vector<1x4x128xf32> to vector<4x128xf32>
    %889 = vector.shape_cast %886 : vector<4x128xf32> to vector<1x4x128xf32>
    tpu.vector_store %arg22[%c6_467, %c0_468, %c0_469], %889 {strides = array<i32>} : memref<8x4x128xf32, #tpu.memory_space<vmem>>, vector<1x4x128xf32>,
    %c7_470 = arith.constant 7 : index
    %c0_471 = arith.constant 0 : index
    %c0_472 = arith.constant 0 : index
    %890 = vector.load %arg1[%c7_470, %c0_471, %c0_472] : memref<8x4x1xi32, #tpu.memory_space<vmem>>, vector<1x4x1xi32>
    %891 = vector.shape_cast %890 : vector<1x4x1xi32> to vector<4x1xi32>
    %892 = vector.broadcast %891 : vector<4x1xi32> to vector<4x64xi32>
    %893 = arith.cmpi eq, %892, %588 : vector<4x64xi32>
    %894 = arith.extui %893 : vector<4x64xi1> to vector<4x64xi32>
    %895 = arith.sitofp %894 : vector<4x64xi32> to vector<4x64xf32>
    %cst_473 = arith.constant dense<0.000000e+00> : vector<4x16xf32>
    %896 = tpu.matmul %895, %585, %cst_473 {dimension_numbers = #tpu.dot_dimension_numbers<[1], [0], [0], [1], [0, 0, 1, 1], [], []>} : vector<4x64xf32>, vector<64x16xf32>, vector<4x16xf32> -> vector<4x16xf32>
    %cst_474 = arith.constant dense<0.000000e+00> : vector<4x128xf32>
    %897 = tpu.matmul %896, %582, %cst_474 {dimension_numbers = #tpu.dot_dimension_numbers<[1], [0], [0], [1], [0, 0, 1, 1], [], []>} : vector<4x16xf32>, vector<16x128xf32>, vector<4x128xf32> -> vector<4x128xf32>
    %cst_475 = arith.constant dense<0.000000e+00> : vector<4x128xf32>
    %898 = tpu.matmul %883, %583, %cst_475 {dimension_numbers = #tpu.dot_dimension_numbers<[1], [0], [0], [1], [0, 0, 1, 1], [], []>} : vector<4x32xf32>, vector<32x128xf32>, vector<4x128xf32> -> vector<4x128xf32>
    %899 = arith.addf %897, %898 : vector<4x128xf32>
    %900 = vector.broadcast %584 : vector<1x128xf32> to vector<4x128xf32>
    %901 = arith.addf %899, %900 : vector<4x128xf32>
    %902 = vector.extract_strided_slice %901 {offsets = [0, 0], sizes = [4, 32], strides = [1, 1]} : vector<4x128xf32> to vector<4x32xf32>
    %903 = arith.negf %902 : vector<4x32xf32>
    %904 = math.exp %903 : vector<4x32xf32>
    %cst_476 = arith.constant 1.000000e+00 : f32
    %905 = vector.broadcast %cst_476 : f32 to vector<4x32xf32>
    %906 = arith.addf %905, %904 : vector<4x32xf32>
    %907 = arith.divf %905, %906 : vector<4x32xf32>
    %908 = vector.extract_strided_slice %901 {offsets = [0, 32], sizes = [4, 32], strides = [1, 1]} : vector<4x128xf32> to vector<4x32xf32>
    %909 = arith.negf %908 : vector<4x32xf32>
    %910 = math.exp %909 : vector<4x32xf32>
    %cst_477 = arith.constant 1.000000e+00 : f32
    %911 = vector.broadcast %cst_477 : f32 to vector<4x32xf32>
    %912 = arith.addf %911, %910 : vector<4x32xf32>
    %913 = arith.divf %911, %912 : vector<4x32xf32>
    %914 = vector.extract_strided_slice %901 {offsets = [0, 64], sizes = [4, 32], strides = [1, 1]} : vector<4x128xf32> to vector<4x32xf32>
    %915 = math.tanh %914 : vector<4x32xf32>
    %916 = vector.extract_strided_slice %901 {offsets = [0, 96], sizes = [4, 32], strides = [1, 1]} : vector<4x128xf32> to vector<4x32xf32>
    %917 = arith.negf %916 : vector<4x32xf32>
    %918 = math.exp %917 : vector<4x32xf32>
    %cst_478 = arith.constant 1.000000e+00 : f32
    %919 = vector.broadcast %cst_478 : f32 to vector<4x32xf32>
    %920 = arith.addf %919, %918 : vector<4x32xf32>
    %921 = arith.divf %919, %920 : vector<4x32xf32>
    %922 = arith.mulf %913, %881 : vector<4x32xf32>
    %923 = arith.mulf %907, %915 : vector<4x32xf32>
    %924 = arith.addf %922, %923 : vector<4x32xf32>
    %925 = math.tanh %924 : vector<4x32xf32>
    %926 = arith.mulf %921, %925 : vector<4x32xf32>
    %cst_479 = arith.constant dense<0.000000e+00> : vector<4x128xf32>
    %927 = tpu.matmul %926, %586, %cst_479 {dimension_numbers = #tpu.dot_dimension_numbers<[1], [0], [0], [1], [0, 0, 1, 1], [], []>} : vector<4x32xf32>, vector<32x128xf32>, vector<4x128xf32> -> vector<4x128xf32>
    %928 = vector.broadcast %587 : vector<1x128xf32> to vector<4x128xf32>
    %929 = arith.addf %927, %928 : vector<4x128xf32>
    %c7_480 = arith.constant 7 : index
    %c0_481 = arith.constant 0 : index
    %c0_482 = arith.constant 0 : index
    %930 = vector.load %arg22[%c7_480, %c0_481, %c0_482] : memref<8x4x128xf32, #tpu.memory_space<vmem>>, vector<1x4x128xf32>
    %931 = vector.shape_cast %930 : vector<1x4x128xf32> to vector<4x128xf32>
    %932 = vector.shape_cast %929 : vector<4x128xf32> to vector<1x4x128xf32>
    tpu.vector_store %arg22[%c7_480, %c0_481, %c0_482], %932 {strides = array<i32>} : memref<8x4x128xf32, #tpu.memory_space<vmem>>, vector<1x4x128xf32>,
    return
  }
}

</mosaic_0001>

<llo_original>
// kernel: forward.1
$region0: #{forward.1}
  #allocation0 [shape = 'u32[]', space=smem, size = 0x4, offset = 0x4, fixed_abs, tag = 'smem constant byte address 0x4 - core index']
  #allocation1 [shape = 'u32[144,128]{1,0:T(1,128)}', space=vmem, size = 0x12000, scoped, tag = 'internal scratch']
  %s0 = inlined_call_operand.vmem [shape: f32[4,32], index: 0, kind: input, shape index: {}]
  %s1 = inlined_call_operand.vmem [shape: s32[8,4,1], index: 1, kind: input, shape index: {}]
  %s2 = inlined_call_operand.vmem [shape: f32[64,16], index: 2, kind: input, shape index: {}]
  %s3 = inlined_call_operand.vmem [shape: f32[9,32,128], index: 3, kind: input, shape index: {}]
  %s4 = inlined_call_operand.hbm [shape: f32[9,1,128], index: 4, kind: input, shape index: {}]
  %s5 = inlined_call_operand.vmem [shape: f32[9,128,128], index: 5, kind: input, shape index: {}]
  %s6 = inlined_call_operand.hbm [shape: f32[9,1,128], index: 6, kind: input, shape index: {}]
  %s7 = inlined_call_operand.vmem [shape: f32[9,128,32], index: 7, kind: input, shape index: {}]
  %s8 = inlined_call_operand.hbm [shape: f32[9,1,32], index: 8, kind: input, shape index: {}]
  %s9 = inlined_call_operand.vmem [shape: f32[3,32,32], index: 9, kind: input, shape index: {}]
  %s10 = inlined_call_operand.hbm [shape: f32[3,1,32], index: 10, kind: input, shape index: {}]
  %s11 = inlined_call_operand.hbm [shape: f32[3,32,32], index: 11, kind: input, shape index: {}]
  %s12 = inlined_call_operand.hbm [shape: f32[3,1,32], index: 12, kind: input, shape index: {}]
  %s13 = inlined_call_operand.hbm [shape: f32[3,32,32], index: 13, kind: input, shape index: {}]
  %s14 = inlined_call_operand.hbm [shape: f32[3,1,32], index: 14, kind: input, shape index: {}]
  %s15 = inlined_call_operand.hbm [shape: f32[3,32,32], index: 15, kind: input, shape index: {}]
  %s16 = inlined_call_operand.hbm [shape: f32[3,1,32], index: 16, kind: input, shape index: {}]
  %s17 = inlined_call_operand.hbm [shape: f32[16,128], index: 17, kind: input, shape index: {}]
  %s18 = inlined_call_operand.vmem [shape: f32[32,128], index: 18, kind: input, shape index: {}]
  %s19 = inlined_call_operand.hbm [shape: f32[1,128], index: 19, kind: input, shape index: {}]
  %s20 = inlined_call_operand.vmem [shape: f32[32,128], index: 20, kind: input, shape index: {}]
  %s21 = inlined_call_operand.hbm [shape: f32[1,128], index: 21, kind: input, shape index: {}]
  %s22 = inlined_call_operand.vmem [shape: f32[8,4,128], index: 22, kind: output, shape index: {}]
  %s23 = sld [smem:[#allocation0]]
  $region150: #{forward.1} parent=0
    _
  %s25 = ssub.s32 1, %s23
  %s26 = scalar_select 0, %s25, %s23
  $region1: #{forward.1} parent=0
    #allocation2 [shape = 'u8[4608]{0}', space=vmem, size = 0x1400, scoped, tag = 'input window, operand 4, single buffered']
    #allocation3 [shape = 's32[1]{0}', space=sflag, size = 0x4, scoped, tag = 'scoped memory for forward.1']
    #allocation4 [shape = 'u8[4608]{0}', space=vmem, size = 0x1400, scoped, tag = 'input window, operand 6, single buffered']
    #allocation5 [shape = 's32[1]{0}', space=sflag, size = 0x4, scoped, tag = 'scoped memory for forward.1']
    #allocation6 [shape = 'u8[4608]{0}', space=vmem, size = 0x1400, scoped, tag = 'input window, operand 8, single buffered']
    #allocation7 [shape = 'u8[1536]{0}', space=vmem, size = 0x800, scoped, tag = 'input window, operand 10, single buffered']
    #allocation8 [shape = 's32[1]{0}', space=sflag, size = 0x4, scoped, tag = 'scoped memory for forward.1']
    #allocation9 [shape = 'u8[49152]{0}', space=vmem, size = 0xc000, scoped, tag = 'input window, operand 11, single buffered']
    #allocation10 [shape = 'u8[1536]{0}', space=vmem, size = 0x800, scoped, tag = 'input window, operand 12, single buffered']
    #allocation11 [shape = 's32[1]{0}', space=sflag, size = 0x4, scoped, tag = 'scoped memory for forward.1']
    #allocation12 [shape = 'u8[49152]{0}', space=vmem, size = 0xc000, scoped, tag = 'input window, operand 13, single buffered']
    #allocation13 [shape = 'u8[1536]{0}', space=vmem, size = 0x800, scoped, tag = 'input window, operand 14, single buffered']
    #allocation14 [shape = 's32[1]{0}', space=sflag, size = 0x4, scoped, tag = 'scoped memory for forward.1']
    #allocation15 [shape = 'u8[49152]{0}', space=vmem, size = 0xc000, scoped, tag = 'input window, operand 15, single buffered']
    #allocation16 [shape = 'u8[1536]{0}', space=vmem, size = 0x800, scoped, tag = 'input window, operand 16, single buffered']
    #allocation17 [shape = 's32[1]{0}', space=sflag, size = 0x4, scoped, tag = 'scoped memory for forward.1']
    #allocation18 [shape = 'u8[8192]{0}', space=vmem, size = 0x2000, scoped, tag = 'input window, operand 17, single buffered']
    #allocation19 [shape = 'u8[512]{0}', space=vmem, size = 0x400, scoped, tag = 'input window, operand 19, single buffered']
    #allocation20 [shape = 's32[1]{0}', space=sflag, size = 0x4, scoped, tag = 'scoped memory for forward.1']
    #allocation21 [shape = 'u8[512]{0}', space=vmem, size = 0x400, scoped, tag = 'input window, operand 21, single buffered']
    %27 = vsyncpa [#allocation3], 0
    %28 = vsyncpa [#allocation5], 0
    %29 = vsyncpa [#allocation8], 0
    %30 = vsyncpa [#allocation11], 0
    %31 = vsyncpa [#allocation14], 0
    %32 = vsyncpa [#allocation17], 0
    %33 = vsyncpa [#allocation20], 0
    // Predicated region
    $region2: #{forward.1} parent=1 // pred_check
      _
    $region3: #{forward.1} parent=1 // pred_check_branch
      %35 = sbr.rel (0) target = $region5
    $region4: #{forward.1} parent=1 // pred_region
      _
    $region5: #{forward.1} parent=1 // pred_fallthru
      _
    // Predicated region
    $region6: #{forward.1} parent=1 // pred_check
      _
    $region7: #{forward.1} parent=1 // pred_check_branch
      %37 = sbr.rel (0) target = $region9
    $region8: #{forward.1} parent=1 // pred_region
      _
    $region9: #{forward.1} parent=1 // pred_fallthru
      _
    // Predicated region
    $region10: #{forward.1} parent=1 // pred_check
      _
    $region11: #{forward.1} parent=1 // pred_check_branch
      %39 = sbr.rel (0) target = $region13
    $region12: #{forward.1} parent=1 // pred_region
      _
    $region13: #{forward.1} parent=1 // pred_fallthru
      _
    // Predicated region
    $region14: #{forward.1} parent=1 // pred_check
      _
    $region15: #{forward.1} parent=1 // pred_check_branch
      %41 = sbr.rel (0) target = $region17
    $region16: #{forward.1} parent=1 // pred_region
      _
    $region17: #{forward.1} parent=1 // pred_fallthru
      _
    // Predicated region
    $region18: #{forward.1} parent=1 // pred_check
      _
    $region19: #{forward.1} parent=1 // pred_check_branch
      %43 = sbr.rel (0) target = $region21
    $region20: #{forward.1} parent=1 // pred_region
      %s45 = ssub.s32 144, 144
      %46 = vsyncadd [#allocation3], %s45
      %s47 = sshll.u32 [#allocation2], 4
      %s48 = int_to_ptr.vmem [resolvable:$true] %s47
      %53 = dma.hbm_to_vmem [thread:$0]  %s4, 144, %s48, [#allocation3], 16, 16, 1
    $region21: #{forward.1} parent=1 // pred_fallthru
      _
    // Predicated region
    $region22: #{forward.1} parent=1 // pred_check
      _
    $region23: #{forward.1} parent=1 // pred_check_branch
      %55 = sbr.rel (0) target = $region25
    $region24: #{forward.1} parent=1 // pred_region
      _
    $region25: #{forward.1} parent=1 // pred_fallthru
      _
    // Predicated region
    $region26: #{forward.1} parent=1 // pred_check
      _
    $region27: #{forward.1} parent=1 // pred_check_branch
      %57 = sbr.rel (0) target = $region29
    $region28: #{forward.1} parent=1 // pred_region
      %s59 = ssub.s32 144, 144
      %60 = vsyncadd [#allocation5], %s59
      %s61 = sshll.u32 [#allocation4], 4
      %s62 = int_to_ptr.vmem [resolvable:$true] %s61
      %67 = dma.hbm_to_vmem [thread:$0]  %s6, 144, %s62, [#allocation5], 16, 16, 1
    $region29: #{forward.1} parent=1 // pred_fallthru
      _
    // Predicated region
    $region30: #{forward.1} parent=1 // pred_check
      _
    $region31: #{forward.1} parent=1 // pred_check_branch
      %69 = sbr.rel (0) target = $region33
    $region32: #{forward.1} parent=1 // pred_region
      _
    $region33: #{forward.1} parent=1 // pred_fallthru
      _
    // Predicated region
    $region34: #{forward.1} parent=1 // pred_check
      _
    $region35: #{forward.1} parent=1 // pred_check_branch
      %71 = sbr.rel (0) target = $region37
    $region36: #{forward.1} parent=1 // pred_region
      %s73 = ssub.s32 144, 144
      %74 = vsyncadd [#allocation5], %s73
      %s75 = sshll.u32 [#allocation6], 4
      %s76 = int_to_ptr.vmem [resolvable:$true] %s75
      %81 = dma.hbm_to_vmem [thread:$0]  %s8, 144, %s76, [#allocation5], 16, 16, 1
    $region37: #{forward.1} parent=1 // pred_fallthru
      _
    // Predicated region
    $region38: #{forward.1} parent=1 // pred_check
      _
    $region39: #{forward.1} parent=1 // pred_check_branch
      %83 = sbr.rel (0) target = $region41
    $region40: #{forward.1} parent=1 // pred_region
      _
    $region41: #{forward.1} parent=1 // pred_fallthru
      _
    // Predicated region
    $region42: #{forward.1} parent=1 // pred_check
      _
    $region43: #{forward.1} parent=1 // pred_check_branch
      %85 = sbr.rel (0) target = $region45
    $region44: #{forward.1} parent=1 // pred_region
      %s87 = ssub.s32 48, 48
      %88 = vsyncadd [#allocation8], %s87
      %s89 = sshll.u32 [#allocation7], 4
      %s90 = int_to_ptr.vmem [resolvable:$true] %s89
      %95 = dma.hbm_to_vmem [thread:$0]  %s10, 48, %s90, [#allocation8], 16, 16, 1
    $region45: #{forward.1} parent=1 // pred_fallthru
      _
    // Predicated region
    $region46: #{forward.1} parent=1 // pred_check
      _
    $region47: #{forward.1} parent=1 // pred_check_branch
      %97 = sbr.rel (0) target = $region49
    $region48: #{forward.1} parent=1 // pred_region
      %s99 = ssub.s32 1536, 1536
      %100 = vsyncadd [#allocation8], %s99
      %s101 = sshll.u32 [#allocation9], 4
      %s102 = int_to_ptr.vmem [resolvable:$true] %s101
      %107 = dma.hbm_to_vmem [thread:$0]  %s11, 1536, %s102, [#allocation8], 128, 128, 8
    $region49: #{forward.1} parent=1 // pred_fallthru
      _
    // Predicated region
    $region50: #{forward.1} parent=1 // pred_check
      _
    $region51: #{forward.1} parent=1 // pred_check_branch
      %109 = sbr.rel (0) target = $region53
    $region52: #{forward.1} parent=1 // pred_region
      %s111 = ssub.s32 48, 48
      %112 = vsyncadd [#allocation11], %s111
      %s113 = sshll.u32 [#allocation10], 4
      %s114 = int_to_ptr.vmem [resolvable:$true] %s113
      %119 = dma.hbm_to_vmem [thread:$0]  %s12, 48, %s114, [#allocation11], 16, 16, 1
    $region53: #{forward.1} parent=1 // pred_fallthru
      _
    // Predicated region
    $region54: #{forward.1} parent=1 // pred_check
      _
    $region55: #{forward.1} parent=1 // pred_check_branch
      %121 = sbr.rel (0) target = $region57
    $region56: #{forward.1} parent=1 // pred_region
      %s123 = ssub.s32 1536, 1536
      %124 = vsyncadd [#allocation11], %s123
      %s125 = sshll.u32 [#allocation12], 4
      %s126 = int_to_ptr.vmem [resolvable:$true] %s125
      %131 = dma.hbm_to_vmem [thread:$0]  %s13, 1536, %s126, [#allocation11], 128, 128, 8
    $region57: #{forward.1} parent=1 // pred_fallthru
      _
    // Predicated region
    $region58: #{forward.1} parent=1 // pred_check
      _
    $region59: #{forward.1} parent=1 // pred_check_branch
      %133 = sbr.rel (0) target = $region61
    $region60: #{forward.1} parent=1 // pred_region
      %s135 = ssub.s32 48, 48
      %136 = vsyncadd [#allocation14], %s135
      %s137 = sshll.u32 [#allocation13], 4
      %s138 = int_to_ptr.vmem [resolvable:$true] %s137
      %143 = dma.hbm_to_vmem [thread:$0]  %s14, 48, %s138, [#allocation14], 16, 16, 1
    $region61: #{forward.1} parent=1 // pred_fallthru
      _
    // Predicated region
    $region62: #{forward.1} parent=1 // pred_check
      _
    $region63: #{forward.1} parent=1 // pred_check_branch
      %145 = sbr.rel (0) target = $region65
    $region64: #{forward.1} parent=1 // pred_region
      %s147 = ssub.s32 1536, 1536
      %148 = vsyncadd [#allocation14], %s147
      %s149 = sshll.u32 [#allocation15], 4
      %s150 = int_to_ptr.vmem [resolvable:$true] %s149
      %155 = dma.hbm_to_vmem [thread:$0]  %s15, 1536, %s150, [#allocation14], 128, 128, 8
    $region65: #{forward.1} parent=1 // pred_fallthru
      _
    // Predicated region
    $region66: #{forward.1} parent=1 // pred_check
      _
    $region67: #{forward.1} parent=1 // pred_check_branch
      %157 = sbr.rel (0) target = $region69
    $region68: #{forward.1} parent=1 // pred_region
      %s159 = ssub.s32 48, 48
      %160 = vsyncadd [#allocation17], %s159
      %s161 = sshll.u32 [#allocation16], 4
      %s162 = int_to_ptr.vmem [resolvable:$true] %s161
      %167 = dma.hbm_to_vmem [thread:$0]  %s16, 48, %s162, [#allocation17], 16, 16, 1
    $region69: #{forward.1} parent=1 // pred_fallthru
      _
    // Predicated region
    $region70: #{forward.1} parent=1 // pred_check
      _
    $region71: #{forward.1} parent=1 // pred_check_branch
      %169 = sbr.rel (0) target = $region73
    $region72: #{forward.1} parent=1 // pred_region
      %s171 = ssub.s32 256, 256
      %172 = vsyncadd [#allocation17], %s171
      %s173 = sshll.u32 [#allocation18], 4
      %s174 = int_to_ptr.vmem [resolvable:$true] %s173
      %179 = dma.hbm_to_vmem [thread:$0]  %s17, 256, %s174, [#allocation17], 128, 128, 8
    $region73: #{forward.1} parent=1 // pred_fallthru
      _
    // Predicated region
    $region74: #{forward.1} parent=1 // pred_check
      _
    $region75: #{forward.1} parent=1 // pred_check_branch
      %181 = sbr.rel (0) target = $region77
    $region76: #{forward.1} parent=1 // pred_region
      _
    $region77: #{forward.1} parent=1 // pred_fallthru
      _
    // Predicated region
    $region78: #{forward.1} parent=1 // pred_check
      _
    $region79: #{forward.1} parent=1 // pred_check_branch
      %183 = sbr.rel (0) target = $region81
    $region80: #{forward.1} parent=1 // pred_region
      %s185 = ssub.s32 16, 16
      %186 = vsyncadd [#allocation20], %s185
      %s188 = sshll.u32 [#allocation19], 4
      %s189 = int_to_ptr.vmem [resolvable:$true] %s188
      %191 = dma.hbm_to_vmem [thread:$0]  %s19, 16, %s189, [#allocation20]
    $region81: #{forward.1} parent=1 // pred_fallthru
      _
    // Predicated region
    $region82: #{forward.1} parent=1 // pred_check
      _
    $region83: #{forward.1} parent=1 // pred_check_branch
      %193 = sbr.rel (0) target = $region85
    $region84: #{forward.1} parent=1 // pred_region
      _
    $region85: #{forward.1} parent=1 // pred_fallthru
      _
    // Predicated region
    $region86: #{forward.1} parent=1 // pred_check
      _
    $region87: #{forward.1} parent=1 // pred_check_branch
      %195 = sbr.rel (0) target = $region89
    $region88: #{forward.1} parent=1 // pred_region
      %s197 = ssub.s32 16, 16
      %198 = vsyncadd [#allocation20], %s197
      %s200 = sshll.u32 [#allocation21], 4
      %s201 = int_to_ptr.vmem [resolvable:$true] %s200
      %203 = dma.hbm_to_vmem [thread:$0]  %s21, 16, %s201, [#allocation20]
    $region89: #{forward.1} parent=1 // pred_fallthru
      _
    // Predicated region
    $region90: #{forward.1} parent=1 // pred_check
      _
    $region91: #{forward.1} parent=1 // pred_check_branch
      %205 = sbr.rel (0) target = $region93
    $region92: #{forward.1} parent=1 // pred_region
      %206 = dma.done [#allocation3], 144
    $region93: #{forward.1} parent=1 // pred_fallthru
      _
    // Predicated region
    $region94: #{forward.1} parent=1 // pred_check
      _
    $region95: #{forward.1} parent=1 // pred_check_branch
      %208 = sbr.rel (0) target = $region97
    $region96: #{forward.1} parent=1 // pred_region
      %209 = dma.done [#allocation5], 144
    $region97: #{forward.1} parent=1 // pred_fallthru
      _
    // Predicated region
    $region98: #{forward.1} parent=1 // pred_check
      _
    $region99: #{forward.1} parent=1 // pred_check_branch
      %211 = sbr.rel (0) target = $region101
    $region100: #{forward.1} parent=1 // pred_region
      %212 = dma.done [#allocation5], 144
    $region101: #{forward.1} parent=1 // pred_fallthru
      _
    // Predicated region
    $region102: #{forward.1} parent=1 // pred_check
      _
    $region103: #{forward.1} parent=1 // pred_check_branch
      %214 = sbr.rel (0) target = $region105
    $region104: #{forward.1} parent=1 // pred_region
      %215 = dma.done [#allocation8], 48
    $region105: #{forward.1} parent=1 // pred_fallthru
      _
    // Predicated region
    $region106: #{forward.1} parent=1 // pred_check
      _
    $region107: #{forward.1} parent=1 // pred_check_branch
      %217 = sbr.rel (0) target = $region109
    $region108: #{forward.1} parent=1 // pred_region
      %218 = dma.done [#allocation8], 1536
    $region109: #{forward.1} parent=1 // pred_fallthru
      _
    // Predicated region
    $region110: #{forward.1} parent=1 // pred_check
      _
    $region111: #{forward.1} parent=1 // pred_check_branch
      %220 = sbr.rel (0) target = $region113
    $region112: #{forward.1} parent=1 // pred_region
      %221 = dma.done [#allocation11], 48
    $region113: #{forward.1} parent=1 // pred_fallthru
      _
    // Predicated region
    $region114: #{forward.1} parent=1 // pred_check
      _
    $region115: #{forward.1} parent=1 // pred_check_branch
      %223 = sbr.rel (0) target = $region117
    $region116: #{forward.1} parent=1 // pred_region
      %224 = dma.done [#allocation11], 1536
    $region117: #{forward.1} parent=1 // pred_fallthru
      _
    // Predicated region
    $region118: #{forward.1} parent=1 // pred_check
      _
    $region119: #{forward.1} parent=1 // pred_check_branch
      %226 = sbr.rel (0) target = $region121
    $region120: #{forward.1} parent=1 // pred_region
      %227 = dma.done [#allocation14], 48
    $region121: #{forward.1} parent=1 // pred_fallthru
      _
    // Predicated region
    $region122: #{forward.1} parent=1 // pred_check
      _
    $region123: #{forward.1} parent=1 // pred_check_branch
      %229 = sbr.rel (0) target = $region125
    $region124: #{forward.1} parent=1 // pred_region
      %230 = dma.done [#allocation14], 1536
    $region125: #{forward.1} parent=1 // pred_fallthru
      _
    // Predicated region
    $region126: #{forward.1} parent=1 // pred_check
      _
    $region127: #{forward.1} parent=1 // pred_check_branch
      %232 = sbr.rel (0) target = $region129
    $region128: #{forward.1} parent=1 // pred_region
      %233 = dma.done [#allocation17], 48
    $region129: #{forward.1} parent=1 // pred_fallthru
      _
    // Predicated region
    $region130: #{forward.1} parent=1 // pred_check
      _
    $region131: #{forward.1} parent=1 // pred_check_branch
      %235 = sbr.rel (0) target = $region133
    $region132: #{forward.1} parent=1 // pred_region
      %236 = dma.done [#allocation17], 256
    $region133: #{forward.1} parent=1 // pred_fallthru
      _
    // Predicated region
    $region134: #{forward.1} parent=1 // pred_check
      _
    $region135: #{forward.1} parent=1 // pred_check_branch
      %238 = sbr.rel (0) target = $region137
    $region136: #{forward.1} parent=1 // pred_region
      %239 = dma.done [#allocation20], 16
    $region137: #{forward.1} parent=1 // pred_fallthru
      _
    // Predicated region
    $region138: #{forward.1} parent=1 // pred_check
      _
    $region139: #{forward.1} parent=1 // pred_check_branch
      %241 = sbr.rel (0) target = $region141
    $region140: #{forward.1} parent=1 // pred_region
      %242 = dma.done [#allocation20], 16
    $region141: #{forward.1} parent=1 // pred_fallthru
      _
    %v243 = vld [vmem:[%s0] sm:$0xf]
    %v244 = vld [vmem:[%s3] sm:$0xff]
    %v245 = vld [vmem:[%s3 + $0x8] sm:$0xff]
    %v246 = vld [vmem:[%s3 + $0x10] sm:$0xff]
    %v247 = vld [vmem:[%s3 + $0x18] sm:$0xff]
    %v248 = vld [vmem:[#allocation2] sm:$0x1]
    %v250 = vlaneseq
    %v251 = vshrl.u32 %v250, 7
    %v252 = vsub.s32 0, %v251
    %v253 = vrot.slane %v248, %v252
    %vm255 = vcmask 261120
    %v257 = vsel %vm255, %v243, 0
    %259 = vmatprep.subr.mxu0 0.0
    %260 = vmatpush1.msra.mxu0 0.0
    %261 = vmatprep.subr.mxu0 0.0
    %262 = vmatpush1.msra.mxu0 0.0
    %263 = vmatprep.subr.mxu0 0.0
    %264 = vmatpush1.msra.mxu0 0.0
    %265 = vmatprep.subr.mxu0 0.0
    %266 = vmatpush1.msra.mxu0 0.0
    %267 = vmatprep.subr.mxu0 0.0
    %268 = vmatpush1.msra.mxu0 0.0
    %269 = vmatprep.subr.mxu0 0.0
    %270 = vmatpush1.msra.mxu0 0.0
    %271 = vmatprep.subr.mxu0 0.0
    %272 = vmatpush1.msra.mxu0 0.0
    %273 = vmatprep.subr.mxu0 0.0
    %274 = vmatpush1.msra.mxu0 0.0
    %275 = vmatprep.subr.mxu0 0.0
    %276 = vmatpush1.msra.mxu0 0.0
    %277 = vmatprep.subr.mxu0 0.0
    %278 = vmatpush1.msra.mxu0 0.0
    %279 = vmatprep.subr.mxu0 0.0
    %280 = vmatpush1.msra.mxu0 0.0
    %281 = vmatprep.subr.mxu0 0.0
    %282 = vmatpush1.msra.mxu0 0.0
    %283 = vmatprep.subr.mxu0 0.0
    %284 = vmatpush1.msra.mxu0 %v247
    %285 = vmatprep.subr.mxu0 0.0
    %286 = vmatpush1.msra.mxu0 %v246
    %287 = vmatprep.subr.mxu0 0.0
    %288 = vmatpush1.msra.mxu0 %v245
    %289 = vmatprep.subr.mxu0 0.0
    %290 = vmatpush1.msra.mxu0 %v244
    %291 = vmatprep.subr.mxu0 0.0
    %292 = vmatpush2.msra.mxu0 0.0
    %293 = vmatprep.subr.mxu0 0.0
    %294 = vmatpush2.msra.mxu0 0.0
    %295 = vmatprep.subr.mxu0 0.0
    %296 = vmatpush2.msra.mxu0 0.0
    %297 = vmatprep.subr.mxu0 0.0
    %298 = vmatpush2.msra.mxu0 0.0
    %299 = vmatprep.subr.mxu0 0.0
    %300 = vmatpush2.msra.mxu0 0.0
    %301 = vmatprep.subr.mxu0 0.0
    %302 = vmatpush2.msra.mxu0 0.0
    %303 = vmatprep.subr.mxu0 0.0
    %304 = vmatpush2.msra.mxu0 0.0
    %305 = vmatprep.subr.mxu0 0.0
    %306 = vmatpush2.msra.mxu0 0.0
    %307 = vmatprep.subr.mxu0 0.0
    %308 = vmatpush2.msra.mxu0 0.0
    %309 = vmatprep.subr.mxu0 0.0
    %310 = vmatpush2.msra.mxu0 0.0
    %311 = vmatprep.subr.mxu0 0.0
    %312 = vmatpush2.msra.mxu0 0.0
    %313 = vmatprep.subr.mxu0 0.0
    %314 = vmatpush2.msra.mxu0 0.0
    %315 = vmatprep.subr.mxu0 0.0
    %316 = vmatpush2.msra.mxu0 0.0
    %317 = vmatprep.subr.mxu0 0.0
    %318 = vmatpush2.msra.mxu0 0.0
    %319 = vmatprep.subr.mxu0 0.0
    %320 = vmatpush2.msra.mxu0 0.0
    %321 = vmatprep.subr.mxu0 0.0
    %322 = vmatpush2.msra.mxu0 0.0
    %323 = vmatprep.mubr.f32.mxu0 0.0
    %324 = vmatmul.mubr.f32.gmra.mxu0 %v257
    %v325 = vpop.f32.mrf.mxu0
    %v326 = vadd.f32 %v253, %v325
    %v327 = vpop.f32.mrf.mxu0
    %328 = vdwg.mxu0
    %v329 = vmax.f32 %v326, 0.0
    %v330 = vld [vmem:[%s5] sm:$0xff]
    %v331 = vld [vmem:[%s5 + $0x8] sm:$0xff]
    %v332 = vld [vmem:[%s5 + $0x10] sm:$0xff]
    %v333 = vld [vmem:[%s5 + $0x18] sm:$0xff]
    %v334 = vld [vmem:[%s5 + $0x20] sm:$0xff]
    %v335 = vld [vmem:[%s5 + $0x28] sm:$0xff]
    %v336 = vld [vmem:[%s5 + $0x30] sm:$0xff]
    %v337 = vld [vmem:[%s5 + $0x38] sm:$0xff]
    %v338 = vld [vmem:[%s5 + $0x40] sm:$0xff]
    %v339 = vld [vmem:[%s5 + $0x48] sm:$0xff]
    %v340 = vld [vmem:[%s5 + $0x50] sm:$0xff]
    %v341 = vld [vmem:[%s5 + $0x58] sm:$0xff]
    %v342 = vld [vmem:[%s5 + $0x60] sm:$0xff]
    %v343 = vld [vmem:[%s5 + $0x68] sm:$0xff]
    %v344 = vld [vmem:[%s5 + $0x70] sm:$0xff]
    %v345 = vld [vmem:[%s5 + $0x78] sm:$0xff]
    %v346 = vld [vmem:[#allocation4] sm:$0x1]
    %v348 = vlaneseq
    %v349 = vshrl.u32 %v348, 7
    %v350 = vsub.s32 0, %v349
    %v351 = vrot.slane %v346, %v350
    %353 = vmatprep.subr.mxu0 0.0
    %354 = vmatpush1.msra.mxu0 %v345
    %355 = vmatprep.subr.mxu0 0.0
    %356 = vmatpush1.msra.mxu0 %v344
    %357 = vmatprep.subr.mxu0 0.0
    %358 = vmatpush1.msra.mxu0 %v343
    %359 = vmatprep.subr.mxu0 0.0
    %360 = vmatpush1.msra.mxu0 %v342
    %361 = vmatprep.subr.mxu0 0.0
    %362 = vmatpush1.msra.mxu0 %v341
    %363 = vmatprep.subr.mxu0 0.0
    %364 = vmatpush1.msra.mxu0 %v340
    %365 = vmatprep.subr.mxu0 0.0
    %366 = vmatpush1.msra.mxu0 %v339
    %367 = vmatprep.subr.mxu0 0.0
    %368 = vmatpush1.msra.mxu0 %v338
    %369 = vmatprep.subr.mxu0 0.0
    %370 = vmatpush1.msra.mxu0 %v337
    %371 = vmatprep.subr.mxu0 0.0
    %372 = vmatpush1.msra.mxu0 %v336
    %373 = vmatprep.subr.mxu0 0.0
    %374 = vmatpush1.msra.mxu0 %v335
    %375 = vmatprep.subr.mxu0 0.0
    %376 = vmatpush1.msra.mxu0 %v334
    %377 = vmatprep.subr.mxu0 0.0
    %378 = vmatpush1.msra.mxu0 %v333
    %379 = vmatprep.subr.mxu0 0.0
    %380 = vmatpush1.msra.mxu0 %v332
    %381 = vmatprep.subr.mxu0 0.0
    %382 = vmatpush1.msra.mxu0 %v331
    %383 = vmatprep.subr.mxu0 0.0
    %384 = vmatpush1.msra.mxu0 %v330
    %385 = vmatprep.subr.mxu0 0.0
    %386 = vmatpush2.msra.mxu0 0.0
    %387 = vmatprep.subr.mxu0 0.0
    %388 = vmatpush2.msra.mxu0 0.0
    %389 = vmatprep.subr.mxu0 0.0
    %390 = vmatpush2.msra.mxu0 0.0
    %391 = vmatprep.subr.mxu0 0.0
    %392 = vmatpush2.msra.mxu0 0.0
    %393 = vmatprep.subr.mxu0 0.0
    %394 = vmatpush2.msra.mxu0 0.0
    %395 = vmatprep.subr.mxu0 0.0
    %396 = vmatpush2.msra.mxu0 0.0
    %397 = vmatprep.subr.mxu0 0.0
    %398 = vmatpush2.msra.mxu0 0.0
    %399 = vmatprep.subr.mxu0 0.0
    %400 = vmatpush2.msra.mxu0 0.0
    %401 = vmatprep.subr.mxu0 0.0
    %402 = vmatpush2.msra.mxu0 0.0
    %403 = vmatprep.subr.mxu0 0.0
    %404 = vmatpush2.msra.mxu0 0.0
    %405 = vmatprep.subr.mxu0 0.0
    %406 = vmatpush2.msra.mxu0 0.0
    %407 = vmatprep.subr.mxu0 0.0
    %408 = vmatpush2.msra.mxu0 0.0
    %409 = vmatprep.subr.mxu0 0.0
    %410 = vmatpush2.msra.mxu0 0.0
    %411 = vmatprep.subr.mxu0 0.0
    %412 = vmatpush2.msra.mxu0 0.0
    %413 = vmatprep.subr.mxu0 0.0
    %414 = vmatpush2.msra.mxu0 0.0
    %415 = vmatprep.subr.mxu0 0.0
    %416 = vmatpush2.msra.mxu0 0.0
    %417 = vmatprep.mubr.f32.mxu0 0.0
    %418 = vmatmul.mubr.f32.gmra.mxu0 %v329
    %v419 = vpop.f32.mrf.mxu0
    %v420 = vadd.f32 %v351, %v419
    %v421 = vpop.f32.mrf.mxu0
    %422 = vdwg.mxu0
    %v423 = vmax.f32 %v420, 0.0
    %v424 = vld [vmem:[%s7] sm:$0xff]
    %v425 = vld [vmem:[%s7 + $0x8] sm:$0xff]
    %v426 = vld [vmem:[%s7 + $0x10] sm:$0xff]
    %v427 = vld [vmem:[%s7 + $0x18] sm:$0xff]
    %v428 = vld [vmem:[%s7 + $0x20] sm:$0xff]
    %v429 = vld [vmem:[%s7 + $0x28] sm:$0xff]
    %v430 = vld [vmem:[%s7 + $0x30] sm:$0xff]
    %v431 = vld [vmem:[%s7 + $0x38] sm:$0xff]
    %v432 = vld [vmem:[%s7 + $0x40] sm:$0xff]
    %v433 = vld [vmem:[%s7 + $0x48] sm:$0xff]
    %v434 = vld [vmem:[%s7 + $0x50] sm:$0xff]
    %v435 = vld [vmem:[%s7 + $0x58] sm:$0xff]
    %v436 = vld [vmem:[%s7 + $0x60] sm:$0xff]
    %v437 = vld [vmem:[%s7 + $0x68] sm:$0xff]
    %v438 = vld [vmem:[%s7 + $0x70] sm:$0xff]
    %v439 = vld [vmem:[%s7 + $0x78] sm:$0xff]
    %v440 = vld [vmem:[#allocation6] sm:$0x1]
    %v442 = vlaneseq
    %v443 = vshrl.u32 %v442, 7
    %v444 = vsub.s32 0, %v443
    %v445 = vrot.slane %v440, %v444
    %447 = vmatprep.subr.mxu0 0.0
    %448 = vmatpush1.msra.mxu0 %v439
    %449 = vmatprep.subr.mxu0 0.0
    %450 = vmatpush1.msra.mxu0 %v438
    %451 = vmatprep.subr.mxu0 0.0
    %452 = vmatpush1.msra.mxu0 %v437
    %453 = vmatprep.subr.mxu0 0.0
    %454 = vmatpush1.msra.mxu0 %v436
    %455 = vmatprep.subr.mxu0 0.0
    %456 = vmatpush1.msra.mxu0 %v435
    %457 = vmatprep.subr.mxu0 0.0
    %458 = vmatpush1.msra.mxu0 %v434
    %459 = vmatprep.subr.mxu0 0.0
    %460 = vmatpush1.msra.mxu0 %v433
    %461 = vmatprep.subr.mxu0 0.0
    %462 = vmatpush1.msra.mxu0 %v432
    %463 = vmatprep.subr.mxu0 0.0
    %464 = vmatpush1.msra.mxu0 %v431
    %465 = vmatprep.subr.mxu0 0.0
    %466 = vmatpush1.msra.mxu0 %v430
    %467 = vmatprep.subr.mxu0 0.0
    %468 = vmatpush1.msra.mxu0 %v429
    %469 = vmatprep.subr.mxu0 0.0
    %470 = vmatpush1.msra.mxu0 %v428
    %471 = vmatprep.subr.mxu0 0.0
    %472 = vmatpush1.msra.mxu0 %v427
    %473 = vmatprep.subr.mxu0 0.0
    %474 = vmatpush1.msra.mxu0 %v426
    %475 = vmatprep.subr.mxu0 0.0
    %476 = vmatpush1.msra.mxu0 %v425
    %477 = vmatprep.subr.mxu0 0.0
    %478 = vmatpush1.msra.mxu0 %v424
    %479 = vmatprep.subr.mxu0 0.0
    %480 = vmatpush2.msra.mxu0 0.0
    %481 = vmatprep.subr.mxu0 0.0
    %482 = vmatpush2.msra.mxu0 0.0
    %483 = vmatprep.subr.mxu0 0.0
    %484 = vmatpush2.msra.mxu0 0.0
    %485 = vmatprep.subr.mxu0 0.0
    %486 = vmatpush2.msra.mxu0 0.0
    %487 = vmatprep.subr.mxu0 0.0
    %488 = vmatpush2.msra.mxu0 0.0
    %489 = vmatprep.subr.mxu0 0.0
    %490 = vmatpush2.msra.mxu0 0.0
    %491 = vmatprep.subr.mxu0 0.0
    %492 = vmatpush2.msra.mxu0 0.0
    %493 = vmatprep.subr.mxu0 0.0
    %494 = vmatpush2.msra.mxu0 0.0
    %495 = vmatprep.subr.mxu0 0.0
    %496 = vmatpush2.msra.mxu0 0.0
    %497 = vmatprep.subr.mxu0 0.0
    %498 = vmatpush2.msra.mxu0 0.0
    %499 = vmatprep.subr.mxu0 0.0
    %500 = vmatpush2.msra.mxu0 0.0
    %501 = vmatprep.subr.mxu0 0.0
    %502 = vmatpush2.msra.mxu0 0.0
    %503 = vmatprep.subr.mxu0 0.0
    %504 = vmatpush2.msra.mxu0 0.0
    %505 = vmatprep.subr.mxu0 0.0
    %506 = vmatpush2.msra.mxu0 0.0
    %507 = vmatprep.subr.mxu0 0.0
    %508 = vmatpush2.msra.mxu0 0.0
    %509 = vmatprep.subr.mxu0 0.0
    %510 = vmatpush2.msra.mxu0 0.0
    %511 = vmatprep.mubr.f32.mxu0 0.0
    %512 = vmatmul.mubr.f32.gmra.mxu0 %v423
    %v513 = vpop.f32.mrf.mxu0
    %v514 = vadd.f32 %v445, %v513
    %v515 = vpop.f32.mrf.mxu0
    %516 = vdwg.mxu0
    %v517 = vmax.f32 %v514, 0.0
    %s518 = scalar_lea.vmem %s3, 32
    %v519 = vld [vmem:[%s518] sm:$0xff]
    %v520 = vld [vmem:[%s518 + $0x8] sm:$0xff]
    %v521 = vld [vmem:[%s518 + $0x10] sm:$0xff]
    %v522 = vld [vmem:[%s518 + $0x18] sm:$0xff]
    %s523 = scalar_lea.vmem [#allocation2], 1
    %v524 = vld [vmem:[%s523] sm:$0x1]
    %v526 = vlaneseq
    %v527 = vshrl.u32 %v526, 7
    %v528 = vsub.s32 0, %v527
    %v529 = vrot.slane %v524, %v528
    %531 = vmatprep.subr.mxu0 0.0
    %532 = vmatpush1.msra.mxu0 0.0
    %533 = vmatprep.subr.mxu0 0.0
    %534 = vmatpush1.msra.mxu0 0.0
    %535 = vmatprep.subr.mxu0 0.0
    %536 = vmatpush1.msra.mxu0 0.0
    %537 = vmatprep.subr.mxu0 0.0
    %538 = vmatpush1.msra.mxu0 0.0
    %539 = vmatprep.subr.mxu0 0.0
    %540 = vmatpush1.msra.mxu0 0.0
    %541 = vmatprep.subr.mxu0 0.0
    %542 = vmatpush1.msra.mxu0 0.0
    %543 = vmatprep.subr.mxu0 0.0
    %544 = vmatpush1.msra.mxu0 0.0
    %545 = vmatprep.subr.mxu0 0.0
    %546 = vmatpush1.msra.mxu0 0.0
    %547 = vmatprep.subr.mxu0 0.0
    %548 = vmatpush1.msra.mxu0 0.0
    %549 = vmatprep.subr.mxu0 0.0
    %550 = vmatpush1.msra.mxu0 0.0
    %551 = vmatprep.subr.mxu0 0.0
    %552 = vmatpush1.msra.mxu0 0.0
    %553 = vmatprep.subr.mxu0 0.0
    %554 = vmatpush1.msra.mxu0 0.0
    %555 = vmatprep.subr.mxu0 0.0
    %556 = vmatpush1.msra.mxu0 %v522
    %557 = vmatprep.subr.mxu0 0.0
    %558 = vmatpush1.msra.mxu0 %v521
    %559 = vmatprep.subr.mxu0 0.0
    %560 = vmatpush1.msra.mxu0 %v520
    %561 = vmatprep.subr.mxu0 0.0
    %562 = vmatpush1.msra.mxu0 %v519
    %563 = vmatprep.subr.mxu0 0.0
    %564 = vmatpush2.msra.mxu0 0.0
    %565 = vmatprep.subr.mxu0 0.0
    %566 = vmatpush2.msra.mxu0 0.0
    %567 = vmatprep.subr.mxu0 0.0
    %568 = vmatpush2.msra.mxu0 0.0
    %569 = vmatprep.subr.mxu0 0.0
    %570 = vmatpush2.msra.mxu0 0.0
    %571 = vmatprep.subr.mxu0 0.0
    %572 = vmatpush2.msra.mxu0 0.0
    %573 = vmatprep.subr.mxu0 0.0
    %574 = vmatpush2.msra.mxu0 0.0
    %575 = vmatprep.subr.mxu0 0.0
    %576 = vmatpush2.msra.mxu0 0.0
    %577 = vmatprep.subr.mxu0 0.0
    %578 = vmatpush2.msra.mxu0 0.0
    %579 = vmatprep.subr.mxu0 0.0
    %580 = vmatpush2.msra.mxu0 0.0
    %581 = vmatprep.subr.mxu0 0.0
    %582 = vmatpush2.msra.mxu0 0.0
    %583 = vmatprep.subr.mxu0 0.0
    %584 = vmatpush2.msra.mxu0 0.0
    %585 = vmatprep.subr.mxu0 0.0
    %586 = vmatpush2.msra.mxu0 0.0
    %587 = vmatprep.subr.mxu0 0.0
    %588 = vmatpush2.msra.mxu0 0.0
    %589 = vmatprep.subr.mxu0 0.0
    %590 = vmatpush2.msra.mxu0 0.0
    %591 = vmatprep.subr.mxu0 0.0
    %592 = vmatpush2.msra.mxu0 0.0
    %593 = vmatprep.subr.mxu0 0.0
    %594 = vmatpush2.msra.mxu0 0.0
    %595 = vmatprep.mubr.f32.mxu0 0.0
    %596 = vmatmul.mubr.f32.gmra.mxu0 %v257
    %v597 = vpop.f32.mrf.mxu0
    %v598 = vadd.f32 %v529, %v597
    %v599 = vpop.f32.mrf.mxu0
    %600 = vdwg.mxu0
    %v601 = vmax.f32 %v598, 0.0
    %s602 = scalar_lea.vmem %s5, 128
    %v603 = vld [vmem:[%s602] sm:$0xff]
    %v604 = vld [vmem:[%s602 + $0x8] sm:$0xff]
    %v605 = vld [vmem:[%s602 + $0x10] sm:$0xff]
    %v606 = vld [vmem:[%s602 + $0x18] sm:$0xff]
    %v607 = vld [vmem:[%s602 + $0x20] sm:$0xff]
    %v608 = vld [vmem:[%s602 + $0x28] sm:$0xff]
    %v609 = vld [vmem:[%s602 + $0x30] sm:$0xff]
    %v610 = vld [vmem:[%s602 + $0x38] sm:$0xff]
    %v611 = vld [vmem:[%s602 + $0x40] sm:$0xff]
    %v612 = vld [vmem:[%s602 + $0x48] sm:$0xff]
    %v613 = vld [vmem:[%s602 + $0x50] sm:$0xff]
    %v614 = vld [vmem:[%s602 + $0x58] sm:$0xff]
    %v615 = vld [vmem:[%s602 + $0x60] sm:$0xff]
    %v616 = vld [vmem:[%s602 + $0x68] sm:$0xff]
    %v617 = vld [vmem:[%s602 + $0x70] sm:$0xff]
    %v618 = vld [vmem:[%s602 + $0x78] sm:$0xff]
    %s619 = scalar_lea.vmem [#allocation4], 1
    %v620 = vld [vmem:[%s619] sm:$0x1]
    %v622 = vlaneseq
    %v623 = vshrl.u32 %v622, 7
    %v624 = vsub.s32 0, %v623
    %v625 = vrot.slane %v620, %v624
    %627 = vmatprep.subr.mxu0 0.0
    %628 = vmatpush1.msra.mxu0 %v618
    %629 = vmatprep.subr.mxu0 0.0
    %630 = vmatpush1.msra.mxu0 %v617
    %631 = vmatprep.subr.mxu0 0.0
    %632 = vmatpush1.msra.mxu0 %v616
    %633 = vmatprep.subr.mxu0 0.0
    %634 = vmatpush1.msra.mxu0 %v615
    %635 = vmatprep.subr.mxu0 0.0
    %636 = vmatpush1.msra.mxu0 %v614
    %637 = vmatprep.subr.mxu0 0.0
    %638 = vmatpush1.msra.mxu0 %v613
    %639 = vmatprep.subr.mxu0 0.0
    %640 = vmatpush1.msra.mxu0 %v612
    %641 = vmatprep.subr.mxu0 0.0
    %642 = vmatpush1.msra.mxu0 %v611
    %643 = vmatprep.subr.mxu0 0.0
    %644 = vmatpush1.msra.mxu0 %v610
    %645 = vmatprep.subr.mxu0 0.0
    %646 = vmatpush1.msra.mxu0 %v609
    %647 = vmatprep.subr.mxu0 0.0
    %648 = vmatpush1.msra.mxu0 %v608
    %649 = vmatprep.subr.mxu0 0.0
    %650 = vmatpush1.msra.mxu0 %v607
    %651 = vmatprep.subr.mxu0 0.0
    %652 = vmatpush1.msra.mxu0 %v606
    %653 = vmatprep.subr.mxu0 0.0
    %654 = vmatpush1.msra.mxu0 %v605
    %655 = vmatprep.subr.mxu0 0.0
    %656 = vmatpush1.msra.mxu0 %v604
    %657 = vmatprep.subr.mxu0 0.0
    %658 = vmatpush1.msra.mxu0 %v603
    %659 = vmatprep.subr.mxu0 0.0
    %660 = vmatpush2.msra.mxu0 0.0
    %661 = vmatprep.subr.mxu0 0.0
    %662 = vmatpush2.msra.mxu0 0.0
    %663 = vmatprep.subr.mxu0 0.0
    %664 = vmatpush2.msra.mxu0 0.0
    %665 = vmatprep.subr.mxu0 0.0
    %666 = vmatpush2.msra.mxu0 0.0
    %667 = vmatprep.subr.mxu0 0.0
    %668 = vmatpush2.msra.mxu0 0.0
    %669 = vmatprep.subr.mxu0 0.0
    %670 = vmatpush2.msra.mxu0 0.0
    %671 = vmatprep.subr.mxu0 0.0
    %672 = vmatpush2.msra.mxu0 0.0
    %673 = vmatprep.subr.mxu0 0.0
    %674 = vmatpush2.msra.mxu0 0.0
    %675 = vmatprep.subr.mxu0 0.0
    %676 = vmatpush2.msra.mxu0 0.0
    %677 = vmatprep.subr.mxu0 0.0
    %678 = vmatpush2.msra.mxu0 0.0
    %679 = vmatprep.subr.mxu0 0.0
    %680 = vmatpush2.msra.mxu0 0.0
    %681 = vmatprep.subr.mxu0 0.0
    %682 = vmatpush2.msra.mxu0 0.0
    %683 = vmatprep.subr.mxu0 0.0
    %684 = vmatpush2.msra.mxu0 0.0
    %685 = vmatprep.subr.mxu0 0.0
    %686 = vmatpush2.msra.mxu0 0.0
    %687 = vmatprep.subr.mxu0 0.0
    %688 = vmatpush2.msra.mxu0 0.0
    %689 = vmatprep.subr.mxu0 0.0
    %690 = vmatpush2.msra.mxu0 0.0
    %691 = vmatprep.mubr.f32.mxu0 0.0
    %692 = vmatmul.mubr.f32.gmra.mxu0 %v601
    %v693 = vpop.f32.mrf.mxu0
    %v694 = vadd.f32 %v625, %v693
    %v695 = vpop.f32.mrf.mxu0
    %696 = vdwg.mxu0
    %v697 = vmax.f32 %v694, 0.0
    %s698 = scalar_lea.vmem %s7, 128
    %v699 = vld [vmem:[%s698] sm:$0xff]
    %v700 = vld [vmem:[%s698 + $0x8] sm:$0xff]
    %v701 = vld [vmem:[%s698 + $0x10] sm:$0xff]
    %v702 = vld [vmem:[%s698 + $0x18] sm:$0xff]
    %v703 = vld [vmem:[%s698 + $0x20] sm:$0xff]
    %v704 = vld [vmem:[%s698 + $0x28] sm:$0xff]
    %v705 = vld [vmem:[%s698 + $0x30] sm:$0xff]
    %v706 = vld [vmem:[%s698 + $0x38] sm:$0xff]
    %v707 = vld [vmem:[%s698 + $0x40] sm:$0xff]
    %v708 = vld [vmem:[%s698 + $0x48] sm:$0xff]
    %v709 = vld [vmem:[%s698 + $0x50] sm:$0xff]
    %v710 = vld [vmem:[%s698 + $0x58] sm:$0xff]
    %v711 = vld [vmem:[%s698 + $0x60] sm:$0xff]
    %v712 = vld [vmem:[%s698 + $0x68] sm:$0xff]
    %v713 = vld [vmem:[%s698 + $0x70] sm:$0xff]
    %v714 = vld [vmem:[%s698 + $0x78] sm:$0xff]
    %s715 = scalar_lea.vmem [#allocation6], 1
    %v716 = vld [vmem:[%s715] sm:$0x1]
    %v718 = vlaneseq
    %v719 = vshrl.u32 %v718, 7
    %v720 = vsub.s32 0, %v719
    %v721 = vrot.slane %v716, %v720
    %723 = vmatprep.subr.mxu0 0.0
    %724 = vmatpush1.msra.mxu0 %v714
    %725 = vmatprep.subr.mxu0 0.0
    %726 = vmatpush1.msra.mxu0 %v713
    %727 = vmatprep.subr.mxu0 0.0
    %728 = vmatpush1.msra.mxu0 %v712
    %729 = vmatprep.subr.mxu0 0.0
    %730 = vmatpush1.msra.mxu0 %v711
    %731 = vmatprep.subr.mxu0 0.0
    %732 = vmatpush1.msra.mxu0 %v710
    %733 = vmatprep.subr.mxu0 0.0
    %734 = vmatpush1.msra.mxu0 %v709
    %735 = vmatprep.subr.mxu0 0.0
    %736 = vmatpush1.msra.mxu0 %v708
    %737 = vmatprep.subr.mxu0 0.0
    %738 = vmatpush1.msra.mxu0 %v707
    %739 = vmatprep.subr.mxu0 0.0
    %740 = vmatpush1.msra.mxu0 %v706
    %741 = vmatprep.subr.mxu0 0.0
    %742 = vmatpush1.msra.mxu0 %v705
    %743 = vmatprep.subr.mxu0 0.0
    %744 = vmatpush1.msra.mxu0 %v704
    %745 = vmatprep.subr.mxu0 0.0
    %746 = vmatpush1.msra.mxu0 %v703
    %747 = vmatprep.subr.mxu0 0.0
    %748 = vmatpush1.msra.mxu0 %v702
    %749 = vmatprep.subr.mxu0 0.0
    %750 = vmatpush1.msra.mxu0 %v701
    %751 = vmatprep.subr.mxu0 0.0
    %752 = vmatpush1.msra.mxu0 %v700
    %753 = vmatprep.subr.mxu0 0.0
    %754 = vmatpush1.msra.mxu0 %v699
    %755 = vmatprep.subr.mxu0 0.0
    %756 = vmatpush2.msra.mxu0 0.0
    %757 = vmatprep.subr.mxu0 0.0
    %758 = vmatpush2.msra.mxu0 0.0
    %759 = vmatprep.subr.mxu0 0.0
    %760 = vmatpush2.msra.mxu0 0.0
    %761 = vmatprep.subr.mxu0 0.0
    %762 = vmatpush2.msra.mxu0 0.0
    %763 = vmatprep.subr.mxu0 0.0
    %764 = vmatpush2.msra.mxu0 0.0
    %765 = vmatprep.subr.mxu0 0.0
    %766 = vmatpush2.msra.mxu0 0.0
    %767 = vmatprep.subr.mxu0 0.0
    %768 = vmatpush2.msra.mxu0 0.0
    %769 = vmatprep.subr.mxu0 0.0
    %770 = vmatpush2.msra.mxu0 0.0
    %771 = vmatprep.subr.mxu0 0.0
    %772 = vmatpush2.msra.mxu0 0.0
    %773 = vmatprep.subr.mxu0 0.0
    %774 = vmatpush2.msra.mxu0 0.0
    %775 = vmatprep.subr.mxu0 0.0
    %776 = vmatpush2.msra.mxu0 0.0
    %777 = vmatprep.subr.mxu0 0.0
    %778 = vmatpush2.msra.mxu0 0.0
    %779 = vmatprep.subr.mxu0 0.0
    %780 = vmatpush2.msra.mxu0 0.0
    %781 = vmatprep.subr.mxu0 0.0
    %782 = vmatpush2.msra.mxu0 0.0
    %783 = vmatprep.subr.mxu0 0.0
    %784 = vmatpush2.msra.mxu0 0.0
    %785 = vmatprep.subr.mxu0 0.0
    %786 = vmatpush2.msra.mxu0 0.0
    %787 = vmatprep.mubr.f32.mxu0 0.0
    %788 = vmatmul.mubr.f32.gmra.mxu0 %v697
    %v789 = vpop.f32.mrf.mxu0
    %v790 = vadd.f32 %v721, %v789
    %v791 = vpop.f32.mrf.mxu0
    %792 = vdwg.mxu0
    %v793 = vmax.f32 %v790, 0.0
    %s794 = scalar_lea.vmem %s3, 64
    %v795 = vld [vmem:[%s794] sm:$0xff]
    %v796 = vld [vmem:[%s794 + $0x8] sm:$0xff]
    %v797 = vld [vmem:[%s794 + $0x10] sm:$0xff]
    %v798 = vld [vmem:[%s794 + $0x18] sm:$0xff]
    %s799 = scalar_lea.vmem [#allocation2], 2
    %v800 = vld [vmem:[%s799] sm:$0x1]
    %v802 = vlaneseq
    %v803 = vshrl.u32 %v802, 7
    %v804 = vsub.s32 0, %v803
    %v805 = vrot.slane %v800, %v804
    %807 = vmatprep.subr.mxu0 0.0
    %808 = vmatpush1.msra.mxu0 0.0
    %809 = vmatprep.subr.mxu0 0.0
    %810 = vmatpush1.msra.mxu0 0.0
    %811 = vmatprep.subr.mxu0 0.0
    %812 = vmatpush1.msra.mxu0 0.0
    %813 = vmatprep.subr.mxu0 0.0
    %814 = vmatpush1.msra.mxu0 0.0
    %815 = vmatprep.subr.mxu0 0.0
    %816 = vmatpush1.msra.mxu0 0.0
    %817 = vmatprep.subr.mxu0 0.0
    %818 = vmatpush1.msra.mxu0 0.0
    %819 = vmatprep.subr.mxu0 0.0
    %820 = vmatpush1.msra.mxu0 0.0
    %821 = vmatprep.subr.mxu0 0.0
    %822 = vmatpush1.msra.mxu0 0.0
    %823 = vmatprep.subr.mxu0 0.0
    %824 = vmatpush1.msra.mxu0 0.0
    %825 = vmatprep.subr.mxu0 0.0
    %826 = vmatpush1.msra.mxu0 0.0
    %827 = vmatprep.subr.mxu0 0.0
    %828 = vmatpush1.msra.mxu0 0.0
    %829 = vmatprep.subr.mxu0 0.0
    %830 = vmatpush1.msra.mxu0 0.0
    %831 = vmatprep.subr.mxu0 0.0
    %832 = vmatpush1.msra.mxu0 %v798
    %833 = vmatprep.subr.mxu0 0.0
    %834 = vmatpush1.msra.mxu0 %v797
    %835 = vmatprep.subr.mxu0 0.0
    %836 = vmatpush1.msra.mxu0 %v796
    %837 = vmatprep.subr.mxu0 0.0
    %838 = vmatpush1.msra.mxu0 %v795
    %839 = vmatprep.subr.mxu0 0.0
    %840 = vmatpush2.msra.mxu0 0.0
    %841 = vmatprep.subr.mxu0 0.0
    %842 = vmatpush2.msra.mxu0 0.0
    %843 = vmatprep.subr.mxu0 0.0
    %844 = vmatpush2.msra.mxu0 0.0
    %845 = vmatprep.subr.mxu0 0.0
    %846 = vmatpush2.msra.mxu0 0.0
    %847 = vmatprep.subr.mxu0 0.0
    %848 = vmatpush2.msra.mxu0 0.0
    %849 = vmatprep.subr.mxu0 0.0
    %850 = vmatpush2.msra.mxu0 0.0
    %851 = vmatprep.subr.mxu0 0.0
    %852 = vmatpush2.msra.mxu0 0.0
    %853 = vmatprep.subr.mxu0 0.0
    %854 = vmatpush2.msra.mxu0 0.0
    %855 = vmatprep.subr.mxu0 0.0
    %856 = vmatpush2.msra.mxu0 0.0
    %857 = vmatprep.subr.mxu0 0.0
    %858 = vmatpush2.msra.mxu0 0.0
    %859 = vmatprep.subr.mxu0 0.0
    %860 = vmatpush2.msra.mxu0 0.0
    %861 = vmatprep.subr.mxu0 0.0
    %862 = vmatpush2.msra.mxu0 0.0
    %863 = vmatprep.subr.mxu0 0.0
    %864 = vmatpush2.msra.mxu0 0.0
    %865 = vmatprep.subr.mxu0 0.0
    %866 = vmatpush2.msra.mxu0 0.0
    %867 = vmatprep.subr.mxu0 0.0
    %868 = vmatpush2.msra.mxu0 0.0
    %869 = vmatprep.subr.mxu0 0.0
    %870 = vmatpush2.msra.mxu0 0.0
    %871 = vmatprep.mubr.f32.mxu0 0.0
    %872 = vmatmul.mubr.f32.gmra.mxu0 %v257
    %v873 = vpop.f32.mrf.mxu0
    %v874 = vadd.f32 %v805, %v873
    %v875 = vpop.f32.mrf.mxu0
    %876 = vdwg.mxu0
    %v877 = vmax.f32 %v874, 0.0
    %s878 = scalar_lea.vmem %s5, 256
    %v879 = vld [vmem:[%s878] sm:$0xff]
    %v880 = vld [vmem:[%s878 + $0x8] sm:$0xff]
    %v881 = vld [vmem:[%s878 + $0x10] sm:$0xff]
    %v882 = vld [vmem:[%s878 + $0x18] sm:$0xff]
    %v883 = vld [vmem:[%s878 + $0x20] sm:$0xff]
    %v884 = vld [vmem:[%s878 + $0x28] sm:$0xff]
    %v885 = vld [vmem:[%s878 + $0x30] sm:$0xff]
    %v886 = vld [vmem:[%s878 + $0x38] sm:$0xff]
    %v887 = vld [vmem:[%s878 + $0x40] sm:$0xff]
    %v888 = vld [vmem:[%s878 + $0x48] sm:$0xff]
    %v889 = vld [vmem:[%s878 + $0x50] sm:$0xff]
    %v890 = vld [vmem:[%s878 + $0x58] sm:$0xff]
    %v891 = vld [vmem:[%s878 + $0x60] sm:$0xff]
    %v892 = vld [vmem:[%s878 + $0x68] sm:$0xff]
    %v893 = vld [vmem:[%s878 + $0x70] sm:$0xff]
    %v894 = vld [vmem:[%s878 + $0x78] sm:$0xff]
    %s895 = scalar_lea.vmem [#allocation4], 2
    %v896 = vld [vmem:[%s895] sm:$0x1]
    %v898 = vlaneseq
    %v899 = vshrl.u32 %v898, 7
    %v900 = vsub.s32 0, %v899
    %v901 = vrot.slane %v896, %v900
    %903 = vmatprep.subr.mxu0 0.0
    %904 = vmatpush1.msra.mxu0 %v894
    %905 = vmatprep.subr.mxu0 0.0
    %906 = vmatpush1.msra.mxu0 %v893
    %907 = vmatprep.subr.mxu0 0.0
    %908 = vmatpush1.msra.mxu0 %v892
    %909 = vmatprep.subr.mxu0 0.0
    %910 = vmatpush1.msra.mxu0 %v891
    %911 = vmatprep.subr.mxu0 0.0
    %912 = vmatpush1.msra.mxu0 %v890
    %913 = vmatprep.subr.mxu0 0.0
    %914 = vmatpush1.msra.mxu0 %v889
    %915 = vmatprep.subr.mxu0 0.0
    %916 = vmatpush1.msra.mxu0 %v888
    %917 = vmatprep.subr.mxu0 0.0
    %918 = vmatpush1.msra.mxu0 %v887
    %919 = vmatprep.subr.mxu0 0.0
    %920 = vmatpush1.msra.mxu0 %v886
    %921 = vmatprep.subr.mxu0 0.0
    %922 = vmatpush1.msra.mxu0 %v885
    %923 = vmatprep.subr.mxu0 0.0
    %924 = vmatpush1.msra.mxu0 %v884
    %925 = vmatprep.subr.mxu0 0.0
    %926 = vmatpush1.msra.mxu0 %v883
    %927 = vmatprep.subr.mxu0 0.0
    %928 = vmatpush1.msra.mxu0 %v882
    %929 = vmatprep.subr.mxu0 0.0
    %930 = vmatpush1.msra.mxu0 %v881
    %931 = vmatprep.subr.mxu0 0.0
    %932 = vmatpush1.msra.mxu0 %v880
    %933 = vmatprep.subr.mxu0 0.0
    %934 = vmatpush1.msra.mxu0 %v879
    %935 = vmatprep.subr.mxu0 0.0
    %936 = vmatpush2.msra.mxu0 0.0
    %937 = vmatprep.subr.mxu0 0.0
    %938 = vmatpush2.msra.mxu0 0.0
    %939 = vmatprep.subr.mxu0 0.0
    %940 = vmatpush2.msra.mxu0 0.0
    %941 = vmatprep.subr.mxu0 0.0
    %942 = vmatpush2.msra.mxu0 0.0
    %943 = vmatprep.subr.mxu0 0.0
    %944 = vmatpush2.msra.mxu0 0.0
    %945 = vmatprep.subr.mxu0 0.0
    %946 = vmatpush2.msra.mxu0 0.0
    %947 = vmatprep.subr.mxu0 0.0
    %948 = vmatpush2.msra.mxu0 0.0
    %949 = vmatprep.subr.mxu0 0.0
    %950 = vmatpush2.msra.mxu0 0.0
    %951 = vmatprep.subr.mxu0 0.0
    %952 = vmatpush2.msra.mxu0 0.0
    %953 = vmatprep.subr.mxu0 0.0
    %954 = vmatpush2.msra.mxu0 0.0
    %955 = vmatprep.subr.mxu0 0.0
    %956 = vmatpush2.msra.mxu0 0.0
    %957 = vmatprep.subr.mxu0 0.0
    %958 = vmatpush2.msra.mxu0 0.0
    %959 = vmatprep.subr.mxu0 0.0
    %960 = vmatpush2.msra.mxu0 0.0
    %961 = vmatprep.subr.mxu0 0.0
    %962 = vmatpush2.msra.mxu0 0.0
    %963 = vmatprep.subr.mxu0 0.0
    %964 = vmatpush2.msra.mxu0 0.0
    %965 = vmatprep.subr.mxu0 0.0
    %966 = vmatpush2.msra.mxu0 0.0
    %967 = vmatprep.mubr.f32.mxu0 0.0
    %968 = vmatmul.mubr.f32.gmra.mxu0 %v877
    %v969 = vpop.f32.mrf.mxu0
    %v970 = vadd.f32 %v901, %v969
    %v971 = vpop.f32.mrf.mxu0
    %972 = vdwg.mxu0
    %v973 = vmax.f32 %v970, 0.0
    %s974 = scalar_lea.vmem %s7, 256
    %v975 = vld [vmem:[%s974] sm:$0xff]
    %v976 = vld [vmem:[%s974 + $0x8] sm:$0xff]
    %v977 = vld [vmem:[%s974 + $0x10] sm:$0xff]
    %v978 = vld [vmem:[%s974 + $0x18] sm:$0xff]
    %v979 = vld [vmem:[%s974 + $0x20] sm:$0xff]
    %v980 = vld [vmem:[%s974 + $0x28] sm:$0xff]
    %v981 = vld [vmem:[%s974 + $0x30] sm:$0xff]
    %v982 = vld [vmem:[%s974 + $0x38] sm:$0xff]
    %v983 = vld [vmem:[%s974 + $0x40] sm:$0xff]
    %v984 = vld [vmem:[%s974 + $0x48] sm:$0xff]
    %v985 = vld [vmem:[%s974 + $0x50] sm:$0xff]
    %v986 = vld [vmem:[%s974 + $0x58] sm:$0xff]
    %v987 = vld [vmem:[%s974 + $0x60] sm:$0xff]
    %v988 = vld [vmem:[%s974 + $0x68] sm:$0xff]
    %v989 = vld [vmem:[%s974 + $0x70] sm:$0xff]
    %v990 = vld [vmem:[%s974 + $0x78] sm:$0xff]
    %s991 = scalar_lea.vmem [#allocation6], 2
    %v992 = vld [vmem:[%s991] sm:$0x1]
    %v994 = vlaneseq
    %v995 = vshrl.u32 %v994, 7
    %v996 = vsub.s32 0, %v995
    %v997 = vrot.slane %v992, %v996
    %999 = vmatprep.subr.mxu0 0.0
    %1000 = vmatpush1.msra.mxu0 %v990
    %1001 = vmatprep.subr.mxu0 0.0
    %1002 = vmatpush1.msra.mxu0 %v989
    %1003 = vmatprep.subr.mxu0 0.0
    %1004 = vmatpush1.msra.mxu0 %v988
    %1005 = vmatprep.subr.mxu0 0.0
    %1006 = vmatpush1.msra.mxu0 %v987
    %1007 = vmatprep.subr.mxu0 0.0
    %1008 = vmatpush1.msra.mxu0 %v986
    %1009 = vmatprep.subr.mxu0 0.0
    %1010 = vmatpush1.msra.mxu0 %v985
    %1011 = vmatprep.subr.mxu0 0.0
    %1012 = vmatpush1.msra.mxu0 %v984
    %1013 = vmatprep.subr.mxu0 0.0
    %1014 = vmatpush1.msra.mxu0 %v983
    %1015 = vmatprep.subr.mxu0 0.0
    %1016 = vmatpush1.msra.mxu0 %v982
    %1017 = vmatprep.subr.mxu0 0.0
    %1018 = vmatpush1.msra.mxu0 %v981
    %1019 = vmatprep.subr.mxu0 0.0
    %1020 = vmatpush1.msra.mxu0 %v980
    %1021 = vmatprep.subr.mxu0 0.0
    %1022 = vmatpush1.msra.mxu0 %v979
    %1023 = vmatprep.subr.mxu0 0.0
    %1024 = vmatpush1.msra.mxu0 %v978
    %1025 = vmatprep.subr.mxu0 0.0
    %1026 = vmatpush1.msra.mxu0 %v977
    %1027 = vmatprep.subr.mxu0 0.0
    %1028 = vmatpush1.msra.mxu0 %v976
    %1029 = vmatprep.subr.mxu0 0.0
    %1030 = vmatpush1.msra.mxu0 %v975
    %1031 = vmatprep.subr.mxu0 0.0
    %1032 = vmatpush2.msra.mxu0 0.0
    %1033 = vmatprep.subr.mxu0 0.0
    %1034 = vmatpush2.msra.mxu0 0.0
    %1035 = vmatprep.subr.mxu0 0.0
    %1036 = vmatpush2.msra.mxu0 0.0
    %1037 = vmatprep.subr.mxu0 0.0
    %1038 = vmatpush2.msra.mxu0 0.0
    %1039 = vmatprep.subr.mxu0 0.0
    %1040 = vmatpush2.msra.mxu0 0.0
    %1041 = vmatprep.subr.mxu0 0.0
    %1042 = vmatpush2.msra.mxu0 0.0
    %1043 = vmatprep.subr.mxu0 0.0
    %1044 = vmatpush2.msra.mxu0 0.0
    %1045 = vmatprep.subr.mxu0 0.0
    %1046 = vmatpush2.msra.mxu0 0.0
    %1047 = vmatprep.subr.mxu0 0.0
    %1048 = vmatpush2.msra.mxu0 0.0
    %1049 = vmatprep.subr.mxu0 0.0
    %1050 = vmatpush2.msra.mxu0 0.0
    %1051 = vmatprep.subr.mxu0 0.0
    %1052 = vmatpush2.msra.mxu0 0.0
    %1053 = vmatprep.subr.mxu0 0.0
    %1054 = vmatpush2.msra.mxu0 0.0
    %1055 = vmatprep.subr.mxu0 0.0
    %1056 = vmatpush2.msra.mxu0 0.0
    %1057 = vmatprep.subr.mxu0 0.0
    %1058 = vmatpush2.msra.mxu0 0.0
    %1059 = vmatprep.subr.mxu0 0.0
    %1060 = vmatpush2.msra.mxu0 0.0
    %1061 = vmatprep.subr.mxu0 0.0
    %1062 = vmatpush2.msra.mxu0 0.0
    %1063 = vmatprep.mubr.f32.mxu0 0.0
    %1064 = vmatmul.mubr.f32.gmra.mxu0 %v973
    %v1065 = vpop.f32.mrf.mxu0
    %v1066 = vadd.f32 %v997, %v1065
    %v1067 = vpop.f32.mrf.mxu0
    %1068 = vdwg.mxu0
    %vm1069 = vcmask 257024
    %v1070 = vsel %vm1069, %v1066, -inf
    %1071 = vmax.xlane.f32.xlu0 %v1070
    %v1072 = vpop.xlane.xlu0 %1071
    %v1073 = vsub.f32 %v1066, %v1072
    %v1074 = vmul.f32 %v1073, 1.442695
    %v1075 = vpow.pop %v1074
    %v1076 = vsel %vm1069, %v1075, 0.0
    %1077 = vadd.xlane.f32.xlu0 %v1076
    %v1078 = vpop.xlane.xlu0 %1077
    %v1079 = vrcp.pop %v1078
    %v1080 = vmul.f32 %v1075, %v1079
    %v1081 = vld [vmem:[%s9] sm:$0xff]
    %v1082 = vld [vmem:[%s9 + $0x8] sm:$0xff]
    %v1083 = vld [vmem:[%s9 + $0x10] sm:$0xff]
    %v1084 = vld [vmem:[%s9 + $0x18] sm:$0xff]
    %v1085 = vld [vmem:[#allocation7] sm:$0x1]
    %v1087 = vlaneseq
    %v1088 = vshrl.u32 %v1087, 7
    %v1089 = vsub.s32 0, %v1088
    %v1090 = vrot.slane %v1085, %v1089
    %v1093 = vsel %vm255, %v1080, 0
    %1095 = vmatprep.subr.mxu0 0.0
    %1096 = vmatpush1.msra.mxu0 0.0
    %1097 = vmatprep.subr.mxu0 0.0
    %1098 = vmatpush1.msra.mxu0 0.0
    %1099 = vmatprep.subr.mxu0 0.0
    %1100 = vmatpush1.msra.mxu0 0.0
    %1101 = vmatprep.subr.mxu0 0.0
    %1102 = vmatpush1.msra.mxu0 0.0
    %1103 = vmatprep.subr.mxu0 0.0
    %1104 = vmatpush1.msra.mxu0 0.0
    %1105 = vmatprep.subr.mxu0 0.0
    %1106 = vmatpush1.msra.mxu0 0.0
    %1107 = vmatprep.subr.mxu0 0.0
    %1108 = vmatpush1.msra.mxu0 0.0
    %1109 = vmatprep.subr.mxu0 0.0
    %1110 = vmatpush1.msra.mxu0 0.0
    %1111 = vmatprep.subr.mxu0 0.0
    %1112 = vmatpush1.msra.mxu0 0.0
    %1113 = vmatprep.subr.mxu0 0.0
    %1114 = vmatpush1.msra.mxu0 0.0
    %1115 = vmatprep.subr.mxu0 0.0
    %1116 = vmatpush1.msra.mxu0 0.0
    %1117 = vmatprep.subr.mxu0 0.0
    %1118 = vmatpush1.msra.mxu0 0.0
    %1119 = vmatprep.subr.mxu0 0.0
    %1120 = vmatpush1.msra.mxu0 %v1084
    %1121 = vmatprep.subr.mxu0 0.0
    %1122 = vmatpush1.msra.mxu0 %v1083
    %1123 = vmatprep.subr.mxu0 0.0
    %1124 = vmatpush1.msra.mxu0 %v1082
    %1125 = vmatprep.subr.mxu0 0.0
    %1126 = vmatpush1.msra.mxu0 %v1081
    %1127 = vmatprep.subr.mxu0 0.0
    %1128 = vmatpush2.msra.mxu0 0.0
    %1129 = vmatprep.subr.mxu0 0.0
    %1130 = vmatpush2.msra.mxu0 0.0
    %1131 = vmatprep.subr.mxu0 0.0
    %1132 = vmatpush2.msra.mxu0 0.0
    %1133 = vmatprep.subr.mxu0 0.0
    %1134 = vmatpush2.msra.mxu0 0.0
    %1135 = vmatprep.subr.mxu0 0.0
    %1136 = vmatpush2.msra.mxu0 0.0
    %1137 = vmatprep.subr.mxu0 0.0
    %1138 = vmatpush2.msra.mxu0 0.0
    %1139 = vmatprep.subr.mxu0 0.0
    %1140 = vmatpush2.msra.mxu0 0.0
    %1141 = vmatprep.subr.mxu0 0.0
    %1142 = vmatpush2.msra.mxu0 0.0
    %1143 = vmatprep.subr.mxu0 0.0
    %1144 = vmatpush2.msra.mxu0 0.0
    %1145 = vmatprep.subr.mxu0 0.0
    %1146 = vmatpush2.msra.mxu0 0.0
    %1147 = vmatprep.subr.mxu0 0.0
    %1148 = vmatpush2.msra.mxu0 0.0
    %1149 = vmatprep.subr.mxu0 0.0
    %1150 = vmatpush2.msra.mxu0 0.0
    %1151 = vmatprep.subr.mxu0 0.0
    %1152 = vmatpush2.msra.mxu0 0.0
    %1153 = vmatprep.subr.mxu0 0.0
    %1154 = vmatpush2.msra.mxu0 0.0
    %1155 = vmatprep.subr.mxu0 0.0
    %1156 = vmatpush2.msra.mxu0 0.0
    %1157 = vmatprep.subr.mxu0 0.0
    %1158 = vmatpush2.msra.mxu0 0.0
    %1159 = vmatprep.mubr.f32.mxu0 0.0
    %1160 = vmatmul.mubr.f32.gmra.mxu0 %v1093
    %v1161 = vpop.f32.mrf.mxu0
    %v1162 = vadd.f32 %v1090, %v1161
    %v1163 = vpop.f32.mrf.mxu0
    %1164 = vdwg.mxu0
    %v1165 = vld [vmem:[#allocation9] sm:$0xff]
    %v1166 = vld [vmem:[#allocation9 + $0x8] sm:$0xff]
    %v1167 = vld [vmem:[#allocation9 + $0x10] sm:$0xff]
    %v1168 = vld [vmem:[#allocation9 + $0x18] sm:$0xff]
    %v1169 = vld [vmem:[#allocation10] sm:$0x1]
    %v1171 = vlaneseq
    %v1172 = vshrl.u32 %v1171, 7
    %v1173 = vsub.s32 0, %v1172
    %v1174 = vrot.slane %v1169, %v1173
    %v1177 = vsel %vm255, %v517, 0
    %1179 = vmatprep.subr.mxu0 0.0
    %1180 = vmatpush1.msra.mxu0 0.0
    %1181 = vmatprep.subr.mxu0 0.0
    %1182 = vmatpush1.msra.mxu0 0.0
    %1183 = vmatprep.subr.mxu0 0.0
    %1184 = vmatpush1.msra.mxu0 0.0
    %1185 = vmatprep.subr.mxu0 0.0
    %1186 = vmatpush1.msra.mxu0 0.0
    %1187 = vmatprep.subr.mxu0 0.0
    %1188 = vmatpush1.msra.mxu0 0.0
    %1189 = vmatprep.subr.mxu0 0.0
    %1190 = vmatpush1.msra.mxu0 0.0
    %1191 = vmatprep.subr.mxu0 0.0
    %1192 = vmatpush1.msra.mxu0 0.0
    %1193 = vmatprep.subr.mxu0 0.0
    %1194 = vmatpush1.msra.mxu0 0.0
    %1195 = vmatprep.subr.mxu0 0.0
    %1196 = vmatpush1.msra.mxu0 0.0
    %1197 = vmatprep.subr.mxu0 0.0
    %1198 = vmatpush1.msra.mxu0 0.0
    %1199 = vmatprep.subr.mxu0 0.0
    %1200 = vmatpush1.msra.mxu0 0.0
    %1201 = vmatprep.subr.mxu0 0.0
    %1202 = vmatpush1.msra.mxu0 0.0
    %1203 = vmatprep.subr.mxu0 0.0
    %1204 = vmatpush1.msra.mxu0 %v1168
    %1205 = vmatprep.subr.mxu0 0.0
    %1206 = vmatpush1.msra.mxu0 %v1167
    %1207 = vmatprep.subr.mxu0 0.0
    %1208 = vmatpush1.msra.mxu0 %v1166
    %1209 = vmatprep.subr.mxu0 0.0
    %1210 = vmatpush1.msra.mxu0 %v1165
    %1211 = vmatprep.subr.mxu0 0.0
    %1212 = vmatpush2.msra.mxu0 0.0
    %1213 = vmatprep.subr.mxu0 0.0
    %1214 = vmatpush2.msra.mxu0 0.0
    %1215 = vmatprep.subr.mxu0 0.0
    %1216 = vmatpush2.msra.mxu0 0.0
    %1217 = vmatprep.subr.mxu0 0.0
    %1218 = vmatpush2.msra.mxu0 0.0
    %1219 = vmatprep.subr.mxu0 0.0
    %1220 = vmatpush2.msra.mxu0 0.0
    %1221 = vmatprep.subr.mxu0 0.0
    %1222 = vmatpush2.msra.mxu0 0.0
    %1223 = vmatprep.subr.mxu0 0.0
    %1224 = vmatpush2.msra.mxu0 0.0
    %1225 = vmatprep.subr.mxu0 0.0
    %1226 = vmatpush2.msra.mxu0 0.0
    %1227 = vmatprep.subr.mxu0 0.0
    %1228 = vmatpush2.msra.mxu0 0.0
    %1229 = vmatprep.subr.mxu0 0.0
    %1230 = vmatpush2.msra.mxu0 0.0
    %1231 = vmatprep.subr.mxu0 0.0
    %1232 = vmatpush2.msra.mxu0 0.0
    %1233 = vmatprep.subr.mxu0 0.0
    %1234 = vmatpush2.msra.mxu0 0.0
    %1235 = vmatprep.subr.mxu0 0.0
    %1236 = vmatpush2.msra.mxu0 0.0
    %1237 = vmatprep.subr.mxu0 0.0
    %1238 = vmatpush2.msra.mxu0 0.0
    %1239 = vmatprep.subr.mxu0 0.0
    %1240 = vmatpush2.msra.mxu0 0.0
    %1241 = vmatprep.subr.mxu0 0.0
    %1242 = vmatpush2.msra.mxu0 0.0
    %1243 = vmatprep.mubr.f32.mxu0 0.0
    %1244 = vmatmul.mubr.f32.gmra.mxu0 %v1177
    %v1245 = vpop.f32.mrf.mxu0
    %v1246 = vadd.f32 %v1174, %v1245
    %v1247 = vpop.f32.mrf.mxu0
    %1248 = vdwg.mxu0
    %v1249 = vld [vmem:[#allocation12] sm:$0xff]
    %v1250 = vld [vmem:[#allocation12 + $0x8] sm:$0xff]
    %v1251 = vld [vmem:[#allocation12 + $0x10] sm:$0xff]
    %v1252 = vld [vmem:[#allocation12 + $0x18] sm:$0xff]
    %v1253 = vld [vmem:[#allocation13] sm:$0x1]
    %v1255 = vlaneseq
    %v1256 = vshrl.u32 %v1255, 7
    %v1257 = vsub.s32 0, %v1256
    %v1258 = vrot.slane %v1253, %v1257
    %v1261 = vsel %vm255, %v793, 0
    %1263 = vmatprep.subr.mxu0 0.0
    %1264 = vmatpush1.msra.mxu0 0.0
    %1265 = vmatprep.subr.mxu0 0.0
    %1266 = vmatpush1.msra.mxu0 0.0
    %1267 = vmatprep.subr.mxu0 0.0
    %1268 = vmatpush1.msra.mxu0 0.0
    %1269 = vmatprep.subr.mxu0 0.0
    %1270 = vmatpush1.msra.mxu0 0.0
    %1271 = vmatprep.subr.mxu0 0.0
    %1272 = vmatpush1.msra.mxu0 0.0
    %1273 = vmatprep.subr.mxu0 0.0
    %1274 = vmatpush1.msra.mxu0 0.0
    %1275 = vmatprep.subr.mxu0 0.0
    %1276 = vmatpush1.msra.mxu0 0.0
    %1277 = vmatprep.subr.mxu0 0.0
    %1278 = vmatpush1.msra.mxu0 0.0
    %1279 = vmatprep.subr.mxu0 0.0
    %1280 = vmatpush1.msra.mxu0 0.0
    %1281 = vmatprep.subr.mxu0 0.0
    %1282 = vmatpush1.msra.mxu0 0.0
    %1283 = vmatprep.subr.mxu0 0.0
    %1284 = vmatpush1.msra.mxu0 0.0
    %1285 = vmatprep.subr.mxu0 0.0
    %1286 = vmatpush1.msra.mxu0 0.0
    %1287 = vmatprep.subr.mxu0 0.0
    %1288 = vmatpush1.msra.mxu0 %v1252
    %1289 = vmatprep.subr.mxu0 0.0
    %1290 = vmatpush1.msra.mxu0 %v1251
    %1291 = vmatprep.subr.mxu0 0.0
    %1292 = vmatpush1.msra.mxu0 %v1250
    %1293 = vmatprep.subr.mxu0 0.0
    %1294 = vmatpush1.msra.mxu0 %v1249
    %1295 = vmatprep.subr.mxu0 0.0
    %1296 = vmatpush2.msra.mxu0 0.0
    %1297 = vmatprep.subr.mxu0 0.0
    %1298 = vmatpush2.msra.mxu0 0.0
    %1299 = vmatprep.subr.mxu0 0.0
    %1300 = vmatpush2.msra.mxu0 0.0
    %1301 = vmatprep.subr.mxu0 0.0
    %1302 = vmatpush2.msra.mxu0 0.0
    %1303 = vmatprep.subr.mxu0 0.0
    %1304 = vmatpush2.msra.mxu0 0.0
    %1305 = vmatprep.subr.mxu0 0.0
    %1306 = vmatpush2.msra.mxu0 0.0
    %1307 = vmatprep.subr.mxu0 0.0
    %1308 = vmatpush2.msra.mxu0 0.0
    %1309 = vmatprep.subr.mxu0 0.0
    %1310 = vmatpush2.msra.mxu0 0.0
    %1311 = vmatprep.subr.mxu0 0.0
    %1312 = vmatpush2.msra.mxu0 0.0
    %1313 = vmatprep.subr.mxu0 0.0
    %1314 = vmatpush2.msra.mxu0 0.0
    %1315 = vmatprep.subr.mxu0 0.0
    %1316 = vmatpush2.msra.mxu0 0.0
    %1317 = vmatprep.subr.mxu0 0.0
    %1318 = vmatpush2.msra.mxu0 0.0
    %1319 = vmatprep.subr.mxu0 0.0
    %1320 = vmatpush2.msra.mxu0 0.0
    %1321 = vmatprep.subr.mxu0 0.0
    %1322 = vmatpush2.msra.mxu0 0.0
    %1323 = vmatprep.subr.mxu0 0.0
    %1324 = vmatpush2.msra.mxu0 0.0
    %1325 = vmatprep.subr.mxu0 0.0
    %1326 = vmatpush2.msra.mxu0 0.0
    %1327 = vmatprep.mubr.f32.mxu0 0.0
    %1328 = vmatmul.mubr.f32.gmra.mxu0 %v1261
    %v1329 = vpop.f32.mrf.mxu0
    %v1330 = vadd.f32 %v1258, %v1329
    %v1331 = vpop.f32.mrf.mxu0
    %1332 = vdwg.mxu0
    %v1333 = vld [vmem:[#allocation15] sm:$0xff]
    %v1334 = vld [vmem:[#allocation15 + $0x8] sm:$0xff]
    %v1335 = vld [vmem:[#allocation15 + $0x10] sm:$0xff]
    %v1336 = vld [vmem:[#allocation15 + $0x18] sm:$0xff]
    %v1337 = vmul.f32 %v1162, 0.35355338
    %vm1338 = vcmask 64512
    %v1340 = vsel %vm1338, %v1337, 0
    %v1343 = vsel %vm1338, %v1246, 0
    %1345 = vmatprep.subr.mxu0 0.0
    %1346 = vmatpush1.xpose.msra.mxu0 0.0
    %1347 = vmatprep.subr.mxu0 0.0
    %1348 = vmatpush1.xpose.msra.mxu0 0.0
    %1349 = vmatprep.subr.mxu0 0.0
    %1350 = vmatpush1.xpose.msra.mxu0 0.0
    %1351 = vmatprep.subr.mxu0 0.0
    %1352 = vmatpush1.xpose.msra.mxu0 0.0
    %1353 = vmatprep.subr.mxu0 0.0
    %1354 = vmatpush1.xpose.msra.mxu0 0.0
    %1355 = vmatprep.subr.mxu0 0.0
    %1356 = vmatpush1.xpose.msra.mxu0 0.0
    %1357 = vmatprep.subr.mxu0 0.0
    %1358 = vmatpush1.xpose.msra.mxu0 0.0
    %1359 = vmatprep.subr.mxu0 0.0
    %1360 = vmatpush1.xpose.msra.mxu0 0.0
    %1361 = vmatprep.subr.mxu0 0.0
    %1362 = vmatpush1.xpose.msra.mxu0 0.0
    %1363 = vmatprep.subr.mxu0 0.0
    %1364 = vmatpush1.xpose.msra.mxu0 0.0
    %1365 = vmatprep.subr.mxu0 0.0
    %1366 = vmatpush1.xpose.msra.mxu0 0.0
    %1367 = vmatprep.subr.mxu0 0.0
    %1368 = vmatpush1.xpose.msra.mxu0 0.0
    %1369 = vmatprep.subr.mxu0 0.0
    %1370 = vmatpush1.xpose.msra.mxu0 0.0
    %1371 = vmatprep.subr.mxu0 0.0
    %1372 = vmatpush1.xpose.msra.mxu0 0.0
    %1373 = vmatprep.subr.mxu0 0.0
    %1374 = vmatpush1.xpose.msra.mxu0 0.0
    %1375 = vmatprep.subr.mxu0 0.0
    %1376 = vmatpush1.xpose.msra.mxu0 %v1343
    %1377 = vmatprep.subr.mxu0 0.0
    %1378 = vmatpush2.xpose.msra.mxu0 0.0
    %1379 = vmatprep.subr.mxu0 0.0
    %1380 = vmatpush2.xpose.msra.mxu0 0.0
    %1381 = vmatprep.subr.mxu0 0.0
    %1382 = vmatpush2.xpose.msra.mxu0 0.0
    %1383 = vmatprep.subr.mxu0 0.0
    %1384 = vmatpush2.xpose.msra.mxu0 0.0
    %1385 = vmatprep.subr.mxu0 0.0
    %1386 = vmatpush2.xpose.msra.mxu0 0.0
    %1387 = vmatprep.subr.mxu0 0.0
    %1388 = vmatpush2.xpose.msra.mxu0 0.0
    %1389 = vmatprep.subr.mxu0 0.0
    %1390 = vmatpush2.xpose.msra.mxu0 0.0
    %1391 = vmatprep.subr.mxu0 0.0
    %1392 = vmatpush2.xpose.msra.mxu0 0.0
    %1393 = vmatprep.subr.mxu0 0.0
    %1394 = vmatpush2.xpose.msra.mxu0 0.0
    %1395 = vmatprep.subr.mxu0 0.0
    %1396 = vmatpush2.xpose.msra.mxu0 0.0
    %1397 = vmatprep.subr.mxu0 0.0
    %1398 = vmatpush2.xpose.msra.mxu0 0.0
    %1399 = vmatprep.subr.mxu0 0.0
    %1400 = vmatpush2.xpose.msra.mxu0 0.0
    %1401 = vmatprep.subr.mxu0 0.0
    %1402 = vmatpush2.xpose.msra.mxu0 0.0
    %1403 = vmatprep.subr.mxu0 0.0
    %1404 = vmatpush2.xpose.msra.mxu0 0.0
    %1405 = vmatprep.subr.mxu0 0.0
    %1406 = vmatpush2.xpose.msra.mxu0 0.0
    %1407 = vmatprep.subr.mxu0 0.0
    %1408 = vmatpush2.xpose.msra.mxu0 0.0
    %1409 = vmatprep.mubr.f32.mxu0 0.0
    %1410 = vmatmul.mubr.f32.gmra.mxu0 %v1340
    %v1411 = vpop.f32.mrf.mxu0
    %v1412 = vadd.f32 0.0, %v1411
    %v1413 = vpop.f32.mrf.mxu0
    %1414 = vdwg.mxu0
    %vm1415 = vcmask 27648
    %v1416 = vsel %vm1415, %v1412, -inf
    %1417 = vmax.xlane.f32.xlu0 %v1416
    %v1418 = vpop.xlane.xlu0 %1417
    %v1419 = vsub.f32 %v1412, %v1418
    %v1420 = vmul.f32 %v1419, 1.442695
    %v1421 = vpow.pop %v1420
    %v1422 = vsel %vm1415, %v1421, 0.0
    %1423 = vadd.xlane.f32.xlu0 %v1422
    %v1424 = vpop.xlane.xlu0 %1423
    %v1425 = vrcp.pop %v1424
    %v1426 = vmul.f32 %v1421, %v1425
    %vm1427 = vcmask 31744
    %v1429 = vsel %vm1427, %v1426, 0
    %vm1431 = vcmask 1043456
    %v1433 = vsel %vm1431, %v1330, 0
    %1435 = vmatprep.subr.mxu0 0.0
    %1436 = vmatpush1.msra.mxu0 0.0
    %1437 = vmatprep.subr.mxu0 0.0
    %1438 = vmatpush1.msra.mxu0 0.0
    %1439 = vmatprep.subr.mxu0 0.0
    %1440 = vmatpush1.msra.mxu0 0.0
    %1441 = vmatprep.subr.mxu0 0.0
    %1442 = vmatpush1.msra.mxu0 0.0
    %1443 = vmatprep.subr.mxu0 0.0
    %1444 = vmatpush1.msra.mxu0 0.0
    %1445 = vmatprep.subr.mxu0 0.0
    %1446 = vmatpush1.msra.mxu0 0.0
    %1447 = vmatprep.subr.mxu0 0.0
    %1448 = vmatpush1.msra.mxu0 0.0
    %1449 = vmatprep.subr.mxu0 0.0
    %1450 = vmatpush1.msra.mxu0 0.0
    %1451 = vmatprep.subr.mxu0 0.0
    %1452 = vmatpush1.msra.mxu0 0.0
    %1453 = vmatprep.subr.mxu0 0.0
    %1454 = vmatpush1.msra.mxu0 0.0
    %1455 = vmatprep.subr.mxu0 0.0
    %1456 = vmatpush1.msra.mxu0 0.0
    %1457 = vmatprep.subr.mxu0 0.0
    %1458 = vmatpush1.msra.mxu0 0.0
    %1459 = vmatprep.subr.mxu0 0.0
    %1460 = vmatpush1.msra.mxu0 0.0
    %1461 = vmatprep.subr.mxu0 0.0
    %1462 = vmatpush1.msra.mxu0 0.0
    %1463 = vmatprep.subr.mxu0 0.0
    %1464 = vmatpush1.msra.mxu0 0.0
    %1465 = vmatprep.subr.mxu0 0.0
    %1466 = vmatpush1.msra.mxu0 %v1433
    %1467 = vmatprep.subr.mxu0 0.0
    %1468 = vmatpush2.msra.mxu0 0.0
    %1469 = vmatprep.subr.mxu0 0.0
    %1470 = vmatpush2.msra.mxu0 0.0
    %1471 = vmatprep.subr.mxu0 0.0
    %1472 = vmatpush2.msra.mxu0 0.0
    %1473 = vmatprep.subr.mxu0 0.0
    %1474 = vmatpush2.msra.mxu0 0.0
    %1475 = vmatprep.subr.mxu0 0.0
    %1476 = vmatpush2.msra.mxu0 0.0
    %1477 = vmatprep.subr.mxu0 0.0
    %1478 = vmatpush2.msra.mxu0 0.0
    %1479 = vmatprep.subr.mxu0 0.0
    %1480 = vmatpush2.msra.mxu0 0.0
    %1481 = vmatprep.subr.mxu0 0.0
    %1482 = vmatpush2.msra.mxu0 0.0
    %1483 = vmatprep.subr.mxu0 0.0
    %1484 = vmatpush2.msra.mxu0 0.0
    %1485 = vmatprep.subr.mxu0 0.0
    %1486 = vmatpush2.msra.mxu0 0.0
    %1487 = vmatprep.subr.mxu0 0.0
    %1488 = vmatpush2.msra.mxu0 0.0
    %1489 = vmatprep.subr.mxu0 0.0
    %1490 = vmatpush2.msra.mxu0 0.0
    %1491 = vmatprep.subr.mxu0 0.0
    %1492 = vmatpush2.msra.mxu0 0.0
    %1493 = vmatprep.subr.mxu0 0.0
    %1494 = vmatpush2.msra.mxu0 0.0
    %1495 = vmatprep.subr.mxu0 0.0
    %1496 = vmatpush2.msra.mxu0 0.0
    %1497 = vmatprep.subr.mxu0 0.0
    %1498 = vmatpush2.msra.mxu0 0.0
    %1499 = vmatprep.mubr.f32.mxu0 0.0
    %1500 = vmatmul.mubr.f32.gmra.mxu0 %v1429
    %v1501 = vpop.f32.mrf.mxu0
    %v1502 = vadd.f32 0.0, %v1501
    %v1503 = vpop.f32.mrf.mxu0
    %1504 = vdwg.mxu0
    %1505 = vrot.lane.b32.xlu0 %v1337, 120
    %v1506 = vpop.permute.xlu0 %1505
    %1507 = vrot.lane.b32.xlu0 %v1246, 120
    %v1508 = vpop.permute.xlu0 %1507
    %v1509 = vsel %vm1338, %v1506, 0
    %v1511 = vsel %vm1338, %v1508, 0
    %1513 = vmatprep.subr.mxu0 0.0
    %1514 = vmatpush1.xpose.msra.mxu0 0.0
    %1515 = vmatprep.subr.mxu0 0.0
    %1516 = vmatpush1.xpose.msra.mxu0 0.0
    %1517 = vmatprep.subr.mxu0 0.0
    %1518 = vmatpush1.xpose.msra.mxu0 0.0
    %1519 = vmatprep.subr.mxu0 0.0
    %1520 = vmatpush1.xpose.msra.mxu0 0.0
    %1521 = vmatprep.subr.mxu0 0.0
    %1522 = vmatpush1.xpose.msra.mxu0 0.0
    %1523 = vmatprep.subr.mxu0 0.0
    %1524 = vmatpush1.xpose.msra.mxu0 0.0
    %1525 = vmatprep.subr.mxu0 0.0
    %1526 = vmatpush1.xpose.msra.mxu0 0.0
    %1527 = vmatprep.subr.mxu0 0.0
    %1528 = vmatpush1.xpose.msra.mxu0 0.0
    %1529 = vmatprep.subr.mxu0 0.0
    %1530 = vmatpush1.xpose.msra.mxu0 0.0
    %1531 = vmatprep.subr.mxu0 0.0
    %1532 = vmatpush1.xpose.msra.mxu0 0.0
    %1533 = vmatprep.subr.mxu0 0.0
    %1534 = vmatpush1.xpose.msra.mxu0 0.0
    %1535 = vmatprep.subr.mxu0 0.0
    %1536 = vmatpush1.xpose.msra.mxu0 0.0
    %1537 = vmatprep.subr.mxu0 0.0
    %1538 = vmatpush1.xpose.msra.mxu0 0.0
    %1539 = vmatprep.subr.mxu0 0.0
    %1540 = vmatpush1.xpose.msra.mxu0 0.0
    %1541 = vmatprep.subr.mxu0 0.0
    %1542 = vmatpush1.xpose.msra.mxu0 0.0
    %1543 = vmatprep.subr.mxu0 0.0
    %1544 = vmatpush1.xpose.msra.mxu0 %v1511
    %1545 = vmatprep.subr.mxu0 0.0
    %1546 = vmatpush2.xpose.msra.mxu0 0.0
    %1547 = vmatprep.subr.mxu0 0.0
    %1548 = vmatpush2.xpose.msra.mxu0 0.0
    %1549 = vmatprep.subr.mxu0 0.0
    %1550 = vmatpush2.xpose.msra.mxu0 0.0
    %1551 = vmatprep.subr.mxu0 0.0
    %1552 = vmatpush2.xpose.msra.mxu0 0.0
    %1553 = vmatprep.subr.mxu0 0.0
    %1554 = vmatpush2.xpose.msra.mxu0 0.0
    %1555 = vmatprep.subr.mxu0 0.0
    %1556 = vmatpush2.xpose.msra.mxu0 0.0
    %1557 = vmatprep.subr.mxu0 0.0
    %1558 = vmatpush2.xpose.msra.mxu0 0.0
    %1559 = vmatprep.subr.mxu0 0.0
    %1560 = vmatpush2.xpose.msra.mxu0 0.0
    %1561 = vmatprep.subr.mxu0 0.0
    %1562 = vmatpush2.xpose.msra.mxu0 0.0
    %1563 = vmatprep.subr.mxu0 0.0
    %1564 = vmatpush2.xpose.msra.mxu0 0.0
    %1565 = vmatprep.subr.mxu0 0.0
    %1566 = vmatpush2.xpose.msra.mxu0 0.0
    %1567 = vmatprep.subr.mxu0 0.0
    %1568 = vmatpush2.xpose.msra.mxu0 0.0
    %1569 = vmatprep.subr.mxu0 0.0
    %1570 = vmatpush2.xpose.msra.mxu0 0.0
    %1571 = vmatprep.subr.mxu0 0.0
    %1572 = vmatpush2.xpose.msra.mxu0 0.0
    %1573 = vmatprep.subr.mxu0 0.0
    %1574 = vmatpush2.xpose.msra.mxu0 0.0
    %1575 = vmatprep.subr.mxu0 0.0
    %1576 = vmatpush2.xpose.msra.mxu0 0.0
    %1577 = vmatprep.mubr.f32.mxu0 0.0
    %1578 = vmatmul.mubr.f32.gmra.mxu0 %v1509
    %v1579 = vpop.f32.mrf.mxu0
    %v1580 = vadd.f32 0.0, %v1579
    %v1581 = vpop.f32.mrf.mxu0
    %1582 = vdwg.mxu0
    %v1583 = vsel %vm1415, %v1580, -inf
    %1584 = vmax.xlane.f32.xlu0 %v1583
    %v1585 = vpop.xlane.xlu0 %1584
    %v1586 = vsub.f32 %v1580, %v1585
    %v1587 = vmul.f32 %v1586, 1.442695
    %v1588 = vpow.pop %v1587
    %v1589 = vsel %vm1415, %v1588, 0.0
    %1590 = vadd.xlane.f32.xlu0 %v1589
    %v1591 = vpop.xlane.xlu0 %1590
    %v1592 = vrcp.pop %v1591
    %v1593 = vmul.f32 %v1588, %v1592
    %1594 = vrot.lane.b32.xlu0 %v1330, 120
    %v1595 = vpop.permute.xlu0 %1594
    %v1597 = vsel %vm1427, %v1593, 0
    %v1599 = vsel %vm1431, %v1595, 0
    %1601 = vmatprep.subr.mxu0 0.0
    %1602 = vmatpush1.msra.mxu0 0.0
    %1603 = vmatprep.subr.mxu0 0.0
    %1604 = vmatpush1.msra.mxu0 0.0
    %1605 = vmatprep.subr.mxu0 0.0
    %1606 = vmatpush1.msra.mxu0 0.0
    %1607 = vmatprep.subr.mxu0 0.0
    %1608 = vmatpush1.msra.mxu0 0.0
    %1609 = vmatprep.subr.mxu0 0.0
    %1610 = vmatpush1.msra.mxu0 0.0
    %1611 = vmatprep.subr.mxu0 0.0
    %1612 = vmatpush1.msra.mxu0 0.0
    %1613 = vmatprep.subr.mxu0 0.0
    %1614 = vmatpush1.msra.mxu0 0.0
    %1615 = vmatprep.subr.mxu0 0.0
    %1616 = vmatpush1.msra.mxu0 0.0
    %1617 = vmatprep.subr.mxu0 0.0
    %1618 = vmatpush1.msra.mxu0 0.0
    %1619 = vmatprep.subr.mxu0 0.0
    %1620 = vmatpush1.msra.mxu0 0.0
    %1621 = vmatprep.subr.mxu0 0.0
    %1622 = vmatpush1.msra.mxu0 0.0
    %1623 = vmatprep.subr.mxu0 0.0
    %1624 = vmatpush1.msra.mxu0 0.0
    %1625 = vmatprep.subr.mxu0 0.0
    %1626 = vmatpush1.msra.mxu0 0.0
    %1627 = vmatprep.subr.mxu0 0.0
    %1628 = vmatpush1.msra.mxu0 0.0
    %1629 = vmatprep.subr.mxu0 0.0
    %1630 = vmatpush1.msra.mxu0 0.0
    %1631 = vmatprep.subr.mxu0 0.0
    %1632 = vmatpush1.msra.mxu0 %v1599
    %1633 = vmatprep.subr.mxu0 0.0
    %1634 = vmatpush2.msra.mxu0 0.0
    %1635 = vmatprep.subr.mxu0 0.0
    %1636 = vmatpush2.msra.mxu0 0.0
    %1637 = vmatprep.subr.mxu0 0.0
    %1638 = vmatpush2.msra.mxu0 0.0
    %1639 = vmatprep.subr.mxu0 0.0
    %1640 = vmatpush2.msra.mxu0 0.0
    %1641 = vmatprep.subr.mxu0 0.0
    %1642 = vmatpush2.msra.mxu0 0.0
    %1643 = vmatprep.subr.mxu0 0.0
    %1644 = vmatpush2.msra.mxu0 0.0
    %1645 = vmatprep.subr.mxu0 0.0
    %1646 = vmatpush2.msra.mxu0 0.0
    %1647 = vmatprep.subr.mxu0 0.0
    %1648 = vmatpush2.msra.mxu0 0.0
    %1649 = vmatprep.subr.mxu0 0.0
    %1650 = vmatpush2.msra.mxu0 0.0
    %1651 = vmatprep.subr.mxu0 0.0
    %1652 = vmatpush2.msra.mxu0 0.0
    %1653 = vmatprep.subr.mxu0 0.0
    %1654 = vmatpush2.msra.mxu0 0.0
    %1655 = vmatprep.subr.mxu0 0.0
    %1656 = vmatpush2.msra.mxu0 0.0
    %1657 = vmatprep.subr.mxu0 0.0
    %1658 = vmatpush2.msra.mxu0 0.0
    %1659 = vmatprep.subr.mxu0 0.0
    %1660 = vmatpush2.msra.mxu0 0.0
    %1661 = vmatprep.subr.mxu0 0.0
    %1662 = vmatpush2.msra.mxu0 0.0
    %1663 = vmatprep.subr.mxu0 0.0
    %1664 = vmatpush2.msra.mxu0 0.0
    %1665 = vmatprep.mubr.f32.mxu0 0.0
    %1666 = vmatmul.mubr.f32.gmra.mxu0 %v1597
    %v1667 = vpop.f32.mrf.mxu0
    %v1668 = vadd.f32 0.0, %v1667
    %v1669 = vpop.f32.mrf.mxu0
    %1670 = vdwg.mxu0
    %v1672 = vsel %vm1338, %v1668, 0
    %1674 = vmatprep.subr.mxu0 0.0
    %1675 = vmatpush1.msra.mxu0 0.0
    %1676 = vmatprep.subr.mxu0 0.0
    %1677 = vmatpush1.msra.mxu0 0.0
    %1678 = vmatprep.subr.mxu0 0.0
    %1679 = vmatpush1.msra.mxu0 0.0
    %1680 = vmatprep.subr.mxu0 0.0
    %1681 = vmatpush1.msra.mxu0 0.0
    %1682 = vmatprep.subr.mxu0 0.0
    %1683 = vmatpush1.msra.mxu0 0.0
    %1684 = vmatprep.subr.mxu0 0.0
    %1685 = vmatpush1.msra.mxu0 0.0
    %1686 = vmatprep.subr.mxu0 0.0
    %1687 = vmatpush1.msra.mxu0 0.0
    %1688 = vmatprep.subr.mxu0 0.0
    %1689 = vmatpush1.msra.mxu0 0.0
    %1690 = vmatprep.subr.mxu0 0.0
    %1691 = vmatpush1.msra.mxu0 0.0
    %1692 = vmatprep.subr.mxu0 0.0
    %1693 = vmatpush1.msra.mxu0 0.0
    %1694 = vmatprep.subr.mxu0 0.0
    %1695 = vmatpush1.msra.mxu0 0.0
    %1696 = vmatprep.subr.mxu0 0.0
    %1697 = vmatpush1.msra.mxu0 0.0
    %1698 = vmatprep.subr.mxu0 0.0
    %1699 = vmatpush1.msra.mxu0 0.0
    %1700 = vmatprep.subr.mxu0 0.0
    %1701 = vmatpush1.msra.mxu0 0.0
    %1702 = vmatprep.subr.mxu0 0.0
    %1703 = vmatpush1.msra.mxu0 0.0
    %1704 = vmatprep.subr.mxu0 0.0
    %1705 = vmatpush1.msra.mxu0 %v1334
    %1706 = vmatprep.subr.mxu0 0.0
    %1707 = vmatpush2.msra.mxu0 0.0
    %1708 = vmatprep.subr.mxu0 0.0
    %1709 = vmatpush2.msra.mxu0 0.0
    %1710 = vmatprep.subr.mxu0 0.0
    %1711 = vmatpush2.msra.mxu0 0.0
    %1712 = vmatprep.subr.mxu0 0.0
    %1713 = vmatpush2.msra.mxu0 0.0
    %1714 = vmatprep.subr.mxu0 0.0
    %1715 = vmatpush2.msra.mxu0 0.0
    %1716 = vmatprep.subr.mxu0 0.0
    %1717 = vmatpush2.msra.mxu0 0.0
    %1718 = vmatprep.subr.mxu0 0.0
    %1719 = vmatpush2.msra.mxu0 0.0
    %1720 = vmatprep.subr.mxu0 0.0
    %1721 = vmatpush2.msra.mxu0 0.0
    %1722 = vmatprep.subr.mxu0 0.0
    %1723 = vmatpush2.msra.mxu0 0.0
    %1724 = vmatprep.subr.mxu0 0.0
    %1725 = vmatpush2.msra.mxu0 0.0
    %1726 = vmatprep.subr.mxu0 0.0
    %1727 = vmatpush2.msra.mxu0 0.0
    %1728 = vmatprep.subr.mxu0 0.0
    %1729 = vmatpush2.msra.mxu0 0.0
    %1730 = vmatprep.subr.mxu0 0.0
    %1731 = vmatpush2.msra.mxu0 0.0
    %1732 = vmatprep.subr.mxu0 0.0
    %1733 = vmatpush2.msra.mxu0 0.0
    %1734 = vmatprep.subr.mxu0 0.0
    %1735 = vmatpush2.msra.mxu0 0.0
    %1736 = vmatprep.subr.mxu0 0.0
    %1737 = vmatpush2.msra.mxu0 0.0
    %1738 = vmatprep.mubr.f32.mxu0 0.0
    %1739 = vmatmul.mubr.f32.gmra.mxu0 %v1672
    %v1740 = vpop.f32.mrf.mxu0
    %v1741 = vadd.f32 0.0, %v1740
    %v1742 = vpop.f32.mrf.mxu0
    %1743 = vdwg.mxu0
    %v1745 = vsel %vm1338, %v1502, 0
    %1747 = vmatprep.subr.mxu0 0.0
    %1748 = vmatpush1.msra.mxu0 0.0
    %1749 = vmatprep.subr.mxu0 0.0
    %1750 = vmatpush1.msra.mxu0 0.0
    %1751 = vmatprep.subr.mxu0 0.0
    %1752 = vmatpush1.msra.mxu0 0.0
    %1753 = vmatprep.subr.mxu0 0.0
    %1754 = vmatpush1.msra.mxu0 0.0
    %1755 = vmatprep.subr.mxu0 0.0
    %1756 = vmatpush1.msra.mxu0 0.0
    %1757 = vmatprep.subr.mxu0 0.0
    %1758 = vmatpush1.msra.mxu0 0.0
    %1759 = vmatprep.subr.mxu0 0.0
    %1760 = vmatpush1.msra.mxu0 0.0
    %1761 = vmatprep.subr.mxu0 0.0
    %1762 = vmatpush1.msra.mxu0 0.0
    %1763 = vmatprep.subr.mxu0 0.0
    %1764 = vmatpush1.msra.mxu0 0.0
    %1765 = vmatprep.subr.mxu0 0.0
    %1766 = vmatpush1.msra.mxu0 0.0
    %1767 = vmatprep.subr.mxu0 0.0
    %1768 = vmatpush1.msra.mxu0 0.0
    %1769 = vmatprep.subr.mxu0 0.0
    %1770 = vmatpush1.msra.mxu0 0.0
    %1771 = vmatprep.subr.mxu0 0.0
    %1772 = vmatpush1.msra.mxu0 0.0
    %1773 = vmatprep.subr.mxu0 0.0
    %1774 = vmatpush1.msra.mxu0 0.0
    %1775 = vmatprep.subr.mxu0 0.0
    %1776 = vmatpush1.msra.mxu0 0.0
    %1777 = vmatprep.subr.mxu0 0.0
    %1778 = vmatpush1.msra.mxu0 %v1333
    %1779 = vmatprep.subr.mxu0 0.0
    %1780 = vmatpush2.msra.mxu0 0.0
    %1781 = vmatprep.subr.mxu0 0.0
    %1782 = vmatpush2.msra.mxu0 0.0
    %1783 = vmatprep.subr.mxu0 0.0
    %1784 = vmatpush2.msra.mxu0 0.0
    %1785 = vmatprep.subr.mxu0 0.0
    %1786 = vmatpush2.msra.mxu0 0.0
    %1787 = vmatprep.subr.mxu0 0.0
    %1788 = vmatpush2.msra.mxu0 0.0
    %1789 = vmatprep.subr.mxu0 0.0
    %1790 = vmatpush2.msra.mxu0 0.0
    %1791 = vmatprep.subr.mxu0 0.0
    %1792 = vmatpush2.msra.mxu0 0.0
    %1793 = vmatprep.subr.mxu0 0.0
    %1794 = vmatpush2.msra.mxu0 0.0
    %1795 = vmatprep.subr.mxu0 0.0
    %1796 = vmatpush2.msra.mxu0 0.0
    %1797 = vmatprep.subr.mxu0 0.0
    %1798 = vmatpush2.msra.mxu0 0.0
    %1799 = vmatprep.subr.mxu0 0.0
    %1800 = vmatpush2.msra.mxu0 0.0
    %1801 = vmatprep.subr.mxu0 0.0
    %1802 = vmatpush2.msra.mxu0 0.0
    %1803 = vmatprep.subr.mxu0 0.0
    %1804 = vmatpush2.msra.mxu0 0.0
    %1805 = vmatprep.subr.mxu0 0.0
    %1806 = vmatpush2.msra.mxu0 0.0
    %1807 = vmatprep.subr.mxu0 0.0
    %1808 = vmatpush2.msra.mxu0 0.0
    %1809 = vmatprep.subr.mxu0 0.0
    %1810 = vmatpush2.msra.mxu0 0.0
    %1811 = vmatprep.mubr.f32.mxu0 0.0
    %1812 = vmatmul.mubr.f32.gmra.mxu0 %v1745
    %v1813 = vpop.f32.mrf.mxu0
    %v1814 = vadd.f32 %v1741, %v1813
    %v1815 = vpop.f32.mrf.mxu0
    %1816 = vdwg.mxu0
    %1817 = vrot.lane.b32.xlu0 %v1337, 112
    %v1818 = vpop.permute.xlu0 %1817
    %1819 = vrot.lane.b32.xlu0 %v1246, 112
    %v1820 = vpop.permute.xlu0 %1819
    %v1821 = vsel %vm1338, %v1818, 0
    %v1823 = vsel %vm1338, %v1820, 0
    %1825 = vmatprep.subr.mxu0 0.0
    %1826 = vmatpush1.xpose.msra.mxu0 0.0
    %1827 = vmatprep.subr.mxu0 0.0
    %1828 = vmatpush1.xpose.msra.mxu0 0.0
    %1829 = vmatprep.subr.mxu0 0.0
    %1830 = vmatpush1.xpose.msra.mxu0 0.0
    %1831 = vmatprep.subr.mxu0 0.0
    %1832 = vmatpush1.xpose.msra.mxu0 0.0
    %1833 = vmatprep.subr.mxu0 0.0
    %1834 = vmatpush1.xpose.msra.mxu0 0.0
    %1835 = vmatprep.subr.mxu0 0.0
    %1836 = vmatpush1.xpose.msra.mxu0 0.0
    %1837 = vmatprep.subr.mxu0 0.0
    %1838 = vmatpush1.xpose.msra.mxu0 0.0
    %1839 = vmatprep.subr.mxu0 0.0
    %1840 = vmatpush1.xpose.msra.mxu0 0.0
    %1841 = vmatprep.subr.mxu0 0.0
    %1842 = vmatpush1.xpose.msra.mxu0 0.0
    %1843 = vmatprep.subr.mxu0 0.0
    %1844 = vmatpush1.xpose.msra.mxu0 0.0
    %1845 = vmatprep.subr.mxu0 0.0
    %1846 = vmatpush1.xpose.msra.mxu0 0.0
    %1847 = vmatprep.subr.mxu0 0.0
    %1848 = vmatpush1.xpose.msra.mxu0 0.0
    %1849 = vmatprep.subr.mxu0 0.0
    %1850 = vmatpush1.xpose.msra.mxu0 0.0
    %1851 = vmatprep.subr.mxu0 0.0
    %1852 = vmatpush1.xpose.msra.mxu0 0.0
    %1853 = vmatprep.subr.mxu0 0.0
    %1854 = vmatpush1.xpose.msra.mxu0 0.0
    %1855 = vmatprep.subr.mxu0 0.0
    %1856 = vmatpush1.xpose.msra.mxu0 %v1823
    %1857 = vmatprep.subr.mxu0 0.0
    %1858 = vmatpush2.xpose.msra.mxu0 0.0
    %1859 = vmatprep.subr.mxu0 0.0
    %1860 = vmatpush2.xpose.msra.mxu0 0.0
    %1861 = vmatprep.subr.mxu0 0.0
    %1862 = vmatpush2.xpose.msra.mxu0 0.0
    %1863 = vmatprep.subr.mxu0 0.0
    %1864 = vmatpush2.xpose.msra.mxu0 0.0
    %1865 = vmatprep.subr.mxu0 0.0
    %1866 = vmatpush2.xpose.msra.mxu0 0.0
    %1867 = vmatprep.subr.mxu0 0.0
    %1868 = vmatpush2.xpose.msra.mxu0 0.0
    %1869 = vmatprep.subr.mxu0 0.0
    %1870 = vmatpush2.xpose.msra.mxu0 0.0
    %1871 = vmatprep.subr.mxu0 0.0
    %1872 = vmatpush2.xpose.msra.mxu0 0.0
    %1873 = vmatprep.subr.mxu0 0.0
    %1874 = vmatpush2.xpose.msra.mxu0 0.0
    %1875 = vmatprep.subr.mxu0 0.0
    %1876 = vmatpush2.xpose.msra.mxu0 0.0
    %1877 = vmatprep.subr.mxu0 0.0
    %1878 = vmatpush2.xpose.msra.mxu0 0.0
    %1879 = vmatprep.subr.mxu0 0.0
    %1880 = vmatpush2.xpose.msra.mxu0 0.0
    %1881 = vmatprep.subr.mxu0 0.0
    %1882 = vmatpush2.xpose.msra.mxu0 0.0
    %1883 = vmatprep.subr.mxu0 0.0
    %1884 = vmatpush2.xpose.msra.mxu0 0.0
    %1885 = vmatprep.subr.mxu0 0.0
    %1886 = vmatpush2.xpose.msra.mxu0 0.0
    %1887 = vmatprep.subr.mxu0 0.0
    %1888 = vmatpush2.xpose.msra.mxu0 0.0
    %1889 = vmatprep.mubr.f32.mxu0 0.0
    %1890 = vmatmul.mubr.f32.gmra.mxu0 %v1821
    %v1891 = vpop.f32.mrf.mxu0
    %v1892 = vadd.f32 0.0, %v1891
    %v1893 = vpop.f32.mrf.mxu0
    %1894 = vdwg.mxu0
    %v1895 = vsel %vm1415, %v1892, -inf
    %1896 = vmax.xlane.f32.xlu0 %v1895
    %v1897 = vpop.xlane.xlu0 %1896
    %v1898 = vsub.f32 %v1892, %v1897
    %v1899 = vmul.f32 %v1898, 1.442695
    %v1900 = vpow.pop %v1899
    %v1901 = vsel %vm1415, %v1900, 0.0
    %1902 = vadd.xlane.f32.xlu0 %v1901
    %v1903 = vpop.xlane.xlu0 %1902
    %v1904 = vrcp.pop %v1903
    %v1905 = vmul.f32 %v1900, %v1904
    %1906 = vrot.lane.b32.xlu0 %v1330, 112
    %v1907 = vpop.permute.xlu0 %1906
    %v1909 = vsel %vm1427, %v1905, 0
    %v1911 = vsel %vm1431, %v1907, 0
    %1913 = vmatprep.subr.mxu0 0.0
    %1914 = vmatpush1.msra.mxu0 0.0
    %1915 = vmatprep.subr.mxu0 0.0
    %1916 = vmatpush1.msra.mxu0 0.0
    %1917 = vmatprep.subr.mxu0 0.0
    %1918 = vmatpush1.msra.mxu0 0.0
    %1919 = vmatprep.subr.mxu0 0.0
    %1920 = vmatpush1.msra.mxu0 0.0
    %1921 = vmatprep.subr.mxu0 0.0
    %1922 = vmatpush1.msra.mxu0 0.0
    %1923 = vmatprep.subr.mxu0 0.0
    %1924 = vmatpush1.msra.mxu0 0.0
    %1925 = vmatprep.subr.mxu0 0.0
    %1926 = vmatpush1.msra.mxu0 0.0
    %1927 = vmatprep.subr.mxu0 0.0
    %1928 = vmatpush1.msra.mxu0 0.0
    %1929 = vmatprep.subr.mxu0 0.0
    %1930 = vmatpush1.msra.mxu0 0.0
    %1931 = vmatprep.subr.mxu0 0.0
    %1932 = vmatpush1.msra.mxu0 0.0
    %1933 = vmatprep.subr.mxu0 0.0
    %1934 = vmatpush1.msra.mxu0 0.0
    %1935 = vmatprep.subr.mxu0 0.0
    %1936 = vmatpush1.msra.mxu0 0.0
    %1937 = vmatprep.subr.mxu0 0.0
    %1938 = vmatpush1.msra.mxu0 0.0
    %1939 = vmatprep.subr.mxu0 0.0
    %1940 = vmatpush1.msra.mxu0 0.0
    %1941 = vmatprep.subr.mxu0 0.0
    %1942 = vmatpush1.msra.mxu0 0.0
    %1943 = vmatprep.subr.mxu0 0.0
    %1944 = vmatpush1.msra.mxu0 %v1911
    %1945 = vmatprep.subr.mxu0 0.0
    %1946 = vmatpush2.msra.mxu0 0.0
    %1947 = vmatprep.subr.mxu0 0.0
    %1948 = vmatpush2.msra.mxu0 0.0
    %1949 = vmatprep.subr.mxu0 0.0
    %1950 = vmatpush2.msra.mxu0 0.0
    %1951 = vmatprep.subr.mxu0 0.0
    %1952 = vmatpush2.msra.mxu0 0.0
    %1953 = vmatprep.subr.mxu0 0.0
    %1954 = vmatpush2.msra.mxu0 0.0
    %1955 = vmatprep.subr.mxu0 0.0
    %1956 = vmatpush2.msra.mxu0 0.0
    %1957 = vmatprep.subr.mxu0 0.0
    %1958 = vmatpush2.msra.mxu0 0.0
    %1959 = vmatprep.subr.mxu0 0.0
    %1960 = vmatpush2.msra.mxu0 0.0
    %1961 = vmatprep.subr.mxu0 0.0
    %1962 = vmatpush2.msra.mxu0 0.0
    %1963 = vmatprep.subr.mxu0 0.0
    %1964 = vmatpush2.msra.mxu0 0.0
    %1965 = vmatprep.subr.mxu0 0.0
    %1966 = vmatpush2.msra.mxu0 0.0
    %1967 = vmatprep.subr.mxu0 0.0
    %1968 = vmatpush2.msra.mxu0 0.0
    %1969 = vmatprep.subr.mxu0 0.0
    %1970 = vmatpush2.msra.mxu0 0.0
    %1971 = vmatprep.subr.mxu0 0.0
    %1972 = vmatpush2.msra.mxu0 0.0
    %1973 = vmatprep.subr.mxu0 0.0
    %1974 = vmatpush2.msra.mxu0 0.0
    %1975 = vmatprep.subr.mxu0 0.0
    %1976 = vmatpush2.msra.mxu0 0.0
    %1977 = vmatprep.mubr.f32.mxu0 0.0
    %1978 = vmatmul.mubr.f32.gmra.mxu0 %v1909
    %v1979 = vpop.f32.mrf.mxu0
    %v1980 = vadd.f32 0.0, %v1979
    %v1981 = vpop.f32.mrf.mxu0
    %1982 = vdwg.mxu0
    %v1984 = vsel %vm1338, %v1980, 0
    %1986 = vmatprep.subr.mxu0 0.0
    %1987 = vmatpush1.msra.mxu0 0.0
    %1988 = vmatprep.subr.mxu0 0.0
    %1989 = vmatpush1.msra.mxu0 0.0
    %1990 = vmatprep.subr.mxu0 0.0
    %1991 = vmatpush1.msra.mxu0 0.0
    %1992 = vmatprep.subr.mxu0 0.0
    %1993 = vmatpush1.msra.mxu0 0.0
    %1994 = vmatprep.subr.mxu0 0.0
    %1995 = vmatpush1.msra.mxu0 0.0
    %1996 = vmatprep.subr.mxu0 0.0
    %1997 = vmatpush1.msra.mxu0 0.0
    %1998 = vmatprep.subr.mxu0 0.0
    %1999 = vmatpush1.msra.mxu0 0.0
    %2000 = vmatprep.subr.mxu0 0.0
    %2001 = vmatpush1.msra.mxu0 0.0
    %2002 = vmatprep.subr.mxu0 0.0
    %2003 = vmatpush1.msra.mxu0 0.0
    %2004 = vmatprep.subr.mxu0 0.0
    %2005 = vmatpush1.msra.mxu0 0.0
    %2006 = vmatprep.subr.mxu0 0.0
    %2007 = vmatpush1.msra.mxu0 0.0
    %2008 = vmatprep.subr.mxu0 0.0
    %2009 = vmatpush1.msra.mxu0 0.0
    %2010 = vmatprep.subr.mxu0 0.0
    %2011 = vmatpush1.msra.mxu0 0.0
    %2012 = vmatprep.subr.mxu0 0.0
    %2013 = vmatpush1.msra.mxu0 0.0
    %2014 = vmatprep.subr.mxu0 0.0
    %2015 = vmatpush1.msra.mxu0 0.0
    %2016 = vmatprep.subr.mxu0 0.0
    %2017 = vmatpush1.msra.mxu0 %v1335
    %2018 = vmatprep.subr.mxu0 0.0
    %2019 = vmatpush2.msra.mxu0 0.0
    %2020 = vmatprep.subr.mxu0 0.0
    %2021 = vmatpush2.msra.mxu0 0.0
    %2022 = vmatprep.subr.mxu0 0.0
    %2023 = vmatpush2.msra.mxu0 0.0
    %2024 = vmatprep.subr.mxu0 0.0
    %2025 = vmatpush2.msra.mxu0 0.0
    %2026 = vmatprep.subr.mxu0 0.0
    %2027 = vmatpush2.msra.mxu0 0.0
    %2028 = vmatprep.subr.mxu0 0.0
    %2029 = vmatpush2.msra.mxu0 0.0
    %2030 = vmatprep.subr.mxu0 0.0
    %2031 = vmatpush2.msra.mxu0 0.0
    %2032 = vmatprep.subr.mxu0 0.0
    %2033 = vmatpush2.msra.mxu0 0.0
    %2034 = vmatprep.subr.mxu0 0.0
    %2035 = vmatpush2.msra.mxu0 0.0
    %2036 = vmatprep.subr.mxu0 0.0
    %2037 = vmatpush2.msra.mxu0 0.0
    %2038 = vmatprep.subr.mxu0 0.0
    %2039 = vmatpush2.msra.mxu0 0.0
    %2040 = vmatprep.subr.mxu0 0.0
    %2041 = vmatpush2.msra.mxu0 0.0
    %2042 = vmatprep.subr.mxu0 0.0
    %2043 = vmatpush2.msra.mxu0 0.0
    %2044 = vmatprep.subr.mxu0 0.0
    %2045 = vmatpush2.msra.mxu0 0.0
    %2046 = vmatprep.subr.mxu0 0.0
    %2047 = vmatpush2.msra.mxu0 0.0
    %2048 = vmatprep.subr.mxu0 0.0
    %2049 = vmatpush2.msra.mxu0 0.0
    %2050 = vmatprep.mubr.f32.mxu0 0.0
    %2051 = vmatmul.mubr.f32.gmra.mxu0 %v1984
    %v2052 = vpop.f32.mrf.mxu0
    %v2053 = vadd.f32 0.0, %v2052
    %v2054 = vpop.f32.mrf.mxu0
    %2055 = vdwg.mxu0
    %v2056 = vadd.f32 %v1814, %v2053
    %2057 = vrot.lane.b32.xlu0 %v1337, 104
    %v2058 = vpop.permute.xlu0 %2057
    %2059 = vrot.lane.b32.xlu0 %v1246, 104
    %v2060 = vpop.permute.xlu0 %2059
    %v2061 = vsel %vm1338, %v2058, 0
    %v2063 = vsel %vm1338, %v2060, 0
    %2065 = vmatprep.subr.mxu0 0.0
    %2066 = vmatpush1.xpose.msra.mxu0 0.0
    %2067 = vmatprep.subr.mxu0 0.0
    %2068 = vmatpush1.xpose.msra.mxu0 0.0
    %2069 = vmatprep.subr.mxu0 0.0
    %2070 = vmatpush1.xpose.msra.mxu0 0.0
    %2071 = vmatprep.subr.mxu0 0.0
    %2072 = vmatpush1.xpose.msra.mxu0 0.0
    %2073 = vmatprep.subr.mxu0 0.0
    %2074 = vmatpush1.xpose.msra.mxu0 0.0
    %2075 = vmatprep.subr.mxu0 0.0
    %2076 = vmatpush1.xpose.msra.mxu0 0.0
    %2077 = vmatprep.subr.mxu0 0.0
    %2078 = vmatpush1.xpose.msra.mxu0 0.0
    %2079 = vmatprep.subr.mxu0 0.0
    %2080 = vmatpush1.xpose.msra.mxu0 0.0
    %2081 = vmatprep.subr.mxu0 0.0
    %2082 = vmatpush1.xpose.msra.mxu0 0.0
    %2083 = vmatprep.subr.mxu0 0.0
    %2084 = vmatpush1.xpose.msra.mxu0 0.0
    %2085 = vmatprep.subr.mxu0 0.0
    %2086 = vmatpush1.xpose.msra.mxu0 0.0
    %2087 = vmatprep.subr.mxu0 0.0
    %2088 = vmatpush1.xpose.msra.mxu0 0.0
    %2089 = vmatprep.subr.mxu0 0.0
    %2090 = vmatpush1.xpose.msra.mxu0 0.0
    %2091 = vmatprep.subr.mxu0 0.0
    %2092 = vmatpush1.xpose.msra.mxu0 0.0
    %2093 = vmatprep.subr.mxu0 0.0
    %2094 = vmatpush1.xpose.msra.mxu0 0.0
    %2095 = vmatprep.subr.mxu0 0.0
    %2096 = vmatpush1.xpose.msra.mxu0 %v2063
    %2097 = vmatprep.subr.mxu0 0.0
    %2098 = vmatpush2.xpose.msra.mxu0 0.0
    %2099 = vmatprep.subr.mxu0 0.0
    %2100 = vmatpush2.xpose.msra.mxu0 0.0
    %2101 = vmatprep.subr.mxu0 0.0
    %2102 = vmatpush2.xpose.msra.mxu0 0.0
    %2103 = vmatprep.subr.mxu0 0.0
    %2104 = vmatpush2.xpose.msra.mxu0 0.0
    %2105 = vmatprep.subr.mxu0 0.0
    %2106 = vmatpush2.xpose.msra.mxu0 0.0
    %2107 = vmatprep.subr.mxu0 0.0
    %2108 = vmatpush2.xpose.msra.mxu0 0.0
    %2109 = vmatprep.subr.mxu0 0.0
    %2110 = vmatpush2.xpose.msra.mxu0 0.0
    %2111 = vmatprep.subr.mxu0 0.0
    %2112 = vmatpush2.xpose.msra.mxu0 0.0
    %2113 = vmatprep.subr.mxu0 0.0
    %2114 = vmatpush2.xpose.msra.mxu0 0.0
    %2115 = vmatprep.subr.mxu0 0.0
    %2116 = vmatpush2.xpose.msra.mxu0 0.0
    %2117 = vmatprep.subr.mxu0 0.0
    %2118 = vmatpush2.xpose.msra.mxu0 0.0
    %2119 = vmatprep.subr.mxu0 0.0
    %2120 = vmatpush2.xpose.msra.mxu0 0.0
    %2121 = vmatprep.subr.mxu0 0.0
    %2122 = vmatpush2.xpose.msra.mxu0 0.0
    %2123 = vmatprep.subr.mxu0 0.0
    %2124 = vmatpush2.xpose.msra.mxu0 0.0
    %2125 = vmatprep.subr.mxu0 0.0
    %2126 = vmatpush2.xpose.msra.mxu0 0.0
    %2127 = vmatprep.subr.mxu0 0.0
    %2128 = vmatpush2.xpose.msra.mxu0 0.0
    %2129 = vmatprep.mubr.f32.mxu0 0.0
    %2130 = vmatmul.mubr.f32.gmra.mxu0 %v2061
    %v2131 = vpop.f32.mrf.mxu0
    %v2132 = vadd.f32 0.0, %v2131
    %v2133 = vpop.f32.mrf.mxu0
    %2134 = vdwg.mxu0
    %v2135 = vsel %vm1415, %v2132, -inf
    %2136 = vmax.xlane.f32.xlu0 %v2135
    %v2137 = vpop.xlane.xlu0 %2136
    %v2138 = vsub.f32 %v2132, %v2137
    %v2139 = vmul.f32 %v2138, 1.442695
    %v2140 = vpow.pop %v2139
    %v2141 = vsel %vm1415, %v2140, 0.0
    %2142 = vadd.xlane.f32.xlu0 %v2141
    %v2143 = vpop.xlane.xlu0 %2142
    %v2144 = vrcp.pop %v2143
    %v2145 = vmul.f32 %v2140, %v2144
    %2146 = vrot.lane.b32.xlu0 %v1330, 104
    %v2147 = vpop.permute.xlu0 %2146
    %v2149 = vsel %vm1427, %v2145, 0
    %v2151 = vsel %vm1431, %v2147, 0
    %2153 = vmatprep.subr.mxu0 0.0
    %2154 = vmatpush1.msra.mxu0 0.0
    %2155 = vmatprep.subr.mxu0 0.0
    %2156 = vmatpush1.msra.mxu0 0.0
    %2157 = vmatprep.subr.mxu0 0.0
    %2158 = vmatpush1.msra.mxu0 0.0
    %2159 = vmatprep.subr.mxu0 0.0
    %2160 = vmatpush1.msra.mxu0 0.0
    %2161 = vmatprep.subr.mxu0 0.0
    %2162 = vmatpush1.msra.mxu0 0.0
    %2163 = vmatprep.subr.mxu0 0.0
    %2164 = vmatpush1.msra.mxu0 0.0
    %2165 = vmatprep.subr.mxu0 0.0
    %2166 = vmatpush1.msra.mxu0 0.0
    %2167 = vmatprep.subr.mxu0 0.0
    %2168 = vmatpush1.msra.mxu0 0.0
    %2169 = vmatprep.subr.mxu0 0.0
    %2170 = vmatpush1.msra.mxu0 0.0
    %2171 = vmatprep.subr.mxu0 0.0
    %2172 = vmatpush1.msra.mxu0 0.0
    %2173 = vmatprep.subr.mxu0 0.0
    %2174 = vmatpush1.msra.mxu0 0.0
    %2175 = vmatprep.subr.mxu0 0.0
    %2176 = vmatpush1.msra.mxu0 0.0
    %2177 = vmatprep.subr.mxu0 0.0
    %2178 = vmatpush1.msra.mxu0 0.0
    %2179 = vmatprep.subr.mxu0 0.0
    %2180 = vmatpush1.msra.mxu0 0.0
    %2181 = vmatprep.subr.mxu0 0.0
    %2182 = vmatpush1.msra.mxu0 0.0
    %2183 = vmatprep.subr.mxu0 0.0
    %2184 = vmatpush1.msra.mxu0 %v2151
    %2185 = vmatprep.subr.mxu0 0.0
    %2186 = vmatpush2.msra.mxu0 0.0
    %2187 = vmatprep.subr.mxu0 0.0
    %2188 = vmatpush2.msra.mxu0 0.0
    %2189 = vmatprep.subr.mxu0 0.0
    %2190 = vmatpush2.msra.mxu0 0.0
    %2191 = vmatprep.subr.mxu0 0.0
    %2192 = vmatpush2.msra.mxu0 0.0
    %2193 = vmatprep.subr.mxu0 0.0
    %2194 = vmatpush2.msra.mxu0 0.0
    %2195 = vmatprep.subr.mxu0 0.0
    %2196 = vmatpush2.msra.mxu0 0.0
    %2197 = vmatprep.subr.mxu0 0.0
    %2198 = vmatpush2.msra.mxu0 0.0
    %2199 = vmatprep.subr.mxu0 0.0
    %2200 = vmatpush2.msra.mxu0 0.0
    %2201 = vmatprep.subr.mxu0 0.0
    %2202 = vmatpush2.msra.mxu0 0.0
    %2203 = vmatprep.subr.mxu0 0.0
    %2204 = vmatpush2.msra.mxu0 0.0
    %2205 = vmatprep.subr.mxu0 0.0
    %2206 = vmatpush2.msra.mxu0 0.0
    %2207 = vmatprep.subr.mxu0 0.0
    %2208 = vmatpush2.msra.mxu0 0.0
    %2209 = vmatprep.subr.mxu0 0.0
    %2210 = vmatpush2.msra.mxu0 0.0
    %2211 = vmatprep.subr.mxu0 0.0
    %2212 = vmatpush2.msra.mxu0 0.0
    %2213 = vmatprep.subr.mxu0 0.0
    %2214 = vmatpush2.msra.mxu0 0.0
    %2215 = vmatprep.subr.mxu0 0.0
    %2216 = vmatpush2.msra.mxu0 0.0
    %2217 = vmatprep.mubr.f32.mxu0 0.0
    %2218 = vmatmul.mubr.f32.gmra.mxu0 %v2149
    %v2219 = vpop.f32.mrf.mxu0
    %v2220 = vadd.f32 0.0, %v2219
    %v2221 = vpop.f32.mrf.mxu0
    %2222 = vdwg.mxu0
    %v2224 = vsel %vm1338, %v2220, 0
    %2226 = vmatprep.subr.mxu0 0.0
    %2227 = vmatpush1.msra.mxu0 0.0
    %2228 = vmatprep.subr.mxu0 0.0
    %2229 = vmatpush1.msra.mxu0 0.0
    %2230 = vmatprep.subr.mxu0 0.0
    %2231 = vmatpush1.msra.mxu0 0.0
    %2232 = vmatprep.subr.mxu0 0.0
    %2233 = vmatpush1.msra.mxu0 0.0
    %2234 = vmatprep.subr.mxu0 0.0
    %2235 = vmatpush1.msra.mxu0 0.0
    %2236 = vmatprep.subr.mxu0 0.0
    %2237 = vmatpush1.msra.mxu0 0.0
    %2238 = vmatprep.subr.mxu0 0.0
    %2239 = vmatpush1.msra.mxu0 0.0
    %2240 = vmatprep.subr.mxu0 0.0
    %2241 = vmatpush1.msra.mxu0 0.0
    %2242 = vmatprep.subr.mxu0 0.0
    %2243 = vmatpush1.msra.mxu0 0.0
    %2244 = vmatprep.subr.mxu0 0.0
    %2245 = vmatpush1.msra.mxu0 0.0
    %2246 = vmatprep.subr.mxu0 0.0
    %2247 = vmatpush1.msra.mxu0 0.0
    %2248 = vmatprep.subr.mxu0 0.0
    %2249 = vmatpush1.msra.mxu0 0.0
    %2250 = vmatprep.subr.mxu0 0.0
    %2251 = vmatpush1.msra.mxu0 0.0
    %2252 = vmatprep.subr.mxu0 0.0
    %2253 = vmatpush1.msra.mxu0 0.0
    %2254 = vmatprep.subr.mxu0 0.0
    %2255 = vmatpush1.msra.mxu0 0.0
    %2256 = vmatprep.subr.mxu0 0.0
    %2257 = vmatpush1.msra.mxu0 %v1336
    %2258 = vmatprep.subr.mxu0 0.0
    %2259 = vmatpush2.msra.mxu0 0.0
    %2260 = vmatprep.subr.mxu0 0.0
    %2261 = vmatpush2.msra.mxu0 0.0
    %2262 = vmatprep.subr.mxu0 0.0
    %2263 = vmatpush2.msra.mxu0 0.0
    %2264 = vmatprep.subr.mxu0 0.0
    %2265 = vmatpush2.msra.mxu0 0.0
    %2266 = vmatprep.subr.mxu0 0.0
    %2267 = vmatpush2.msra.mxu0 0.0
    %2268 = vmatprep.subr.mxu0 0.0
    %2269 = vmatpush2.msra.mxu0 0.0
    %2270 = vmatprep.subr.mxu0 0.0
    %2271 = vmatpush2.msra.mxu0 0.0
    %2272 = vmatprep.subr.mxu0 0.0
    %2273 = vmatpush2.msra.mxu0 0.0
    %2274 = vmatprep.subr.mxu0 0.0
    %2275 = vmatpush2.msra.mxu0 0.0
    %2276 = vmatprep.subr.mxu0 0.0
    %2277 = vmatpush2.msra.mxu0 0.0
    %2278 = vmatprep.subr.mxu0 0.0
    %2279 = vmatpush2.msra.mxu0 0.0
    %2280 = vmatprep.subr.mxu0 0.0
    %2281 = vmatpush2.msra.mxu0 0.0
    %2282 = vmatprep.subr.mxu0 0.0
    %2283 = vmatpush2.msra.mxu0 0.0
    %2284 = vmatprep.subr.mxu0 0.0
    %2285 = vmatpush2.msra.mxu0 0.0
    %2286 = vmatprep.subr.mxu0 0.0
    %2287 = vmatpush2.msra.mxu0 0.0
    %2288 = vmatprep.subr.mxu0 0.0
    %2289 = vmatpush2.msra.mxu0 0.0
    %2290 = vmatprep.mubr.f32.mxu0 0.0
    %2291 = vmatmul.mubr.f32.gmra.mxu0 %v2224
    %v2292 = vpop.f32.mrf.mxu0
    %v2293 = vadd.f32 0.0, %v2292
    %v2294 = vpop.f32.mrf.mxu0
    %2295 = vdwg.mxu0
    %v2296 = vadd.f32 %v2056, %v2293
    %v2297 = vld [vmem:[#allocation16] sm:$0x1]
    %v2299 = vlaneseq
    %v2300 = vshrl.u32 %v2299, 7
    %v2301 = vsub.s32 0, %v2300
    %v2302 = vrot.slane %v2297, %v2301
    %v2304 = vadd.f32 %v2296, %v2302
    %s2305 = scalar_lea.vmem %s3, 96
    %v2306 = vld [vmem:[%s2305] sm:$0xff]
    %v2307 = vld [vmem:[%s2305 + $0x8] sm:$0xff]
    %v2308 = vld [vmem:[%s2305 + $0x10] sm:$0xff]
    %v2309 = vld [vmem:[%s2305 + $0x18] sm:$0xff]
    %s2310 = scalar_lea.vmem [#allocation2], 3
    %v2311 = vld [vmem:[%s2310] sm:$0x1]
    %v2313 = vlaneseq
    %v2314 = vshrl.u32 %v2313, 7
    %v2315 = vsub.s32 0, %v2314
    %v2316 = vrot.slane %v2311, %v2315
    %v2319 = vsel %vm255, %v2304, 0
    %2321 = vmatprep.subr.mxu0 0.0
    %2322 = vmatpush1.msra.mxu0 0.0
    %2323 = vmatprep.subr.mxu0 0.0
    %2324 = vmatpush1.msra.mxu0 0.0
    %2325 = vmatprep.subr.mxu0 0.0
    %2326 = vmatpush1.msra.mxu0 0.0
    %2327 = vmatprep.subr.mxu0 0.0
    %2328 = vmatpush1.msra.mxu0 0.0
    %2329 = vmatprep.subr.mxu0 0.0
    %2330 = vmatpush1.msra.mxu0 0.0
    %2331 = vmatprep.subr.mxu0 0.0
    %2332 = vmatpush1.msra.mxu0 0.0
    %2333 = vmatprep.subr.mxu0 0.0
    %2334 = vmatpush1.msra.mxu0 0.0
    %2335 = vmatprep.subr.mxu0 0.0
    %2336 = vmatpush1.msra.mxu0 0.0
    %2337 = vmatprep.subr.mxu0 0.0
    %2338 = vmatpush1.msra.mxu0 0.0
    %2339 = vmatprep.subr.mxu0 0.0
    %2340 = vmatpush1.msra.mxu0 0.0
    %2341 = vmatprep.subr.mxu0 0.0
    %2342 = vmatpush1.msra.mxu0 0.0
    %2343 = vmatprep.subr.mxu0 0.0
    %2344 = vmatpush1.msra.mxu0 0.0
    %2345 = vmatprep.subr.mxu0 0.0
    %2346 = vmatpush1.msra.mxu0 %v2309
    %2347 = vmatprep.subr.mxu0 0.0
    %2348 = vmatpush1.msra.mxu0 %v2308
    %2349 = vmatprep.subr.mxu0 0.0
    %2350 = vmatpush1.msra.mxu0 %v2307
    %2351 = vmatprep.subr.mxu0 0.0
    %2352 = vmatpush1.msra.mxu0 %v2306
    %2353 = vmatprep.subr.mxu0 0.0
    %2354 = vmatpush2.msra.mxu0 0.0
    %2355 = vmatprep.subr.mxu0 0.0
    %2356 = vmatpush2.msra.mxu0 0.0
    %2357 = vmatprep.subr.mxu0 0.0
    %2358 = vmatpush2.msra.mxu0 0.0
    %2359 = vmatprep.subr.mxu0 0.0
    %2360 = vmatpush2.msra.mxu0 0.0
    %2361 = vmatprep.subr.mxu0 0.0
    %2362 = vmatpush2.msra.mxu0 0.0
    %2363 = vmatprep.subr.mxu0 0.0
    %2364 = vmatpush2.msra.mxu0 0.0
    %2365 = vmatprep.subr.mxu0 0.0
    %2366 = vmatpush2.msra.mxu0 0.0
    %2367 = vmatprep.subr.mxu0 0.0
    %2368 = vmatpush2.msra.mxu0 0.0
    %2369 = vmatprep.subr.mxu0 0.0
    %2370 = vmatpush2.msra.mxu0 0.0
    %2371 = vmatprep.subr.mxu0 0.0
    %2372 = vmatpush2.msra.mxu0 0.0
    %2373 = vmatprep.subr.mxu0 0.0
    %2374 = vmatpush2.msra.mxu0 0.0
    %2375 = vmatprep.subr.mxu0 0.0
    %2376 = vmatpush2.msra.mxu0 0.0
    %2377 = vmatprep.subr.mxu0 0.0
    %2378 = vmatpush2.msra.mxu0 0.0
    %2379 = vmatprep.subr.mxu0 0.0
    %2380 = vmatpush2.msra.mxu0 0.0
    %2381 = vmatprep.subr.mxu0 0.0
    %2382 = vmatpush2.msra.mxu0 0.0
    %2383 = vmatprep.subr.mxu0 0.0
    %2384 = vmatpush2.msra.mxu0 0.0
    %2385 = vmatprep.mubr.f32.mxu0 0.0
    %2386 = vmatmul.mubr.f32.gmra.mxu0 %v2319
    %v2387 = vpop.f32.mrf.mxu0
    %v2388 = vadd.f32 %v2316, %v2387
    %v2389 = vpop.f32.mrf.mxu0
    %2390 = vdwg.mxu0
    %v2391 = vmax.f32 %v2388, 0.0
    %s2392 = scalar_lea.vmem %s5, 384
    %v2393 = vld [vmem:[%s2392] sm:$0xff]
    %v2394 = vld [vmem:[%s2392 + $0x8] sm:$0xff]
    %v2395 = vld [vmem:[%s2392 + $0x10] sm:$0xff]
    %v2396 = vld [vmem:[%s2392 + $0x18] sm:$0xff]
    %v2397 = vld [vmem:[%s2392 + $0x20] sm:$0xff]
    %v2398 = vld [vmem:[%s2392 + $0x28] sm:$0xff]
    %v2399 = vld [vmem:[%s2392 + $0x30] sm:$0xff]
    %v2400 = vld [vmem:[%s2392 + $0x38] sm:$0xff]
    %v2401 = vld [vmem:[%s2392 + $0x40] sm:$0xff]
    %v2402 = vld [vmem:[%s2392 + $0x48] sm:$0xff]
    %v2403 = vld [vmem:[%s2392 + $0x50] sm:$0xff]
    %v2404 = vld [vmem:[%s2392 + $0x58] sm:$0xff]
    %v2405 = vld [vmem:[%s2392 + $0x60] sm:$0xff]
    %v2406 = vld [vmem:[%s2392 + $0x68] sm:$0xff]
    %v2407 = vld [vmem:[%s2392 + $0x70] sm:$0xff]
    %v2408 = vld [vmem:[%s2392 + $0x78] sm:$0xff]
    %s2409 = scalar_lea.vmem [#allocation4], 3
    %v2410 = vld [vmem:[%s2409] sm:$0x1]
    %v2412 = vlaneseq
    %v2413 = vshrl.u32 %v2412, 7
    %v2414 = vsub.s32 0, %v2413
    %v2415 = vrot.slane %v2410, %v2414
    %2417 = vmatprep.subr.mxu0 0.0
    %2418 = vmatpush1.msra.mxu0 %v2408
    %2419 = vmatprep.subr.mxu0 0.0
    %2420 = vmatpush1.msra.mxu0 %v2407
    %2421 = vmatprep.subr.mxu0 0.0
    %2422 = vmatpush1.msra.mxu0 %v2406
    %2423 = vmatprep.subr.mxu0 0.0
    %2424 = vmatpush1.msra.mxu0 %v2405
    %2425 = vmatprep.subr.mxu0 0.0
    %2426 = vmatpush1.msra.mxu0 %v2404
    %2427 = vmatprep.subr.mxu0 0.0
    %2428 = vmatpush1.msra.mxu0 %v2403
    %2429 = vmatprep.subr.mxu0 0.0
    %2430 = vmatpush1.msra.mxu0 %v2402
    %2431 = vmatprep.subr.mxu0 0.0
    %2432 = vmatpush1.msra.mxu0 %v2401
    %2433 = vmatprep.subr.mxu0 0.0
    %2434 = vmatpush1.msra.mxu0 %v2400
    %2435 = vmatprep.subr.mxu0 0.0
    %2436 = vmatpush1.msra.mxu0 %v2399
    %2437 = vmatprep.subr.mxu0 0.0
    %2438 = vmatpush1.msra.mxu0 %v2398
    %2439 = vmatprep.subr.mxu0 0.0
    %2440 = vmatpush1.msra.mxu0 %v2397
    %2441 = vmatprep.subr.mxu0 0.0
    %2442 = vmatpush1.msra.mxu0 %v2396
    %2443 = vmatprep.subr.mxu0 0.0
    %2444 = vmatpush1.msra.mxu0 %v2395
    %2445 = vmatprep.subr.mxu0 0.0
    %2446 = vmatpush1.msra.mxu0 %v2394
    %2447 = vmatprep.subr.mxu0 0.0
    %2448 = vmatpush1.msra.mxu0 %v2393
    %2449 = vmatprep.subr.mxu0 0.0
    %2450 = vmatpush2.msra.mxu0 0.0
    %2451 = vmatprep.subr.mxu0 0.0
    %2452 = vmatpush2.msra.mxu0 0.0
    %2453 = vmatprep.subr.mxu0 0.0
    %2454 = vmatpush2.msra.mxu0 0.0
    %2455 = vmatprep.subr.mxu0 0.0
    %2456 = vmatpush2.msra.mxu0 0.0
    %2457 = vmatprep.subr.mxu0 0.0
    %2458 = vmatpush2.msra.mxu0 0.0
    %2459 = vmatprep.subr.mxu0 0.0
    %2460 = vmatpush2.msra.mxu0 0.0
    %2461 = vmatprep.subr.mxu0 0.0
    %2462 = vmatpush2.msra.mxu0 0.0
    %2463 = vmatprep.subr.mxu0 0.0
    %2464 = vmatpush2.msra.mxu0 0.0
    %2465 = vmatprep.subr.mxu0 0.0
    %2466 = vmatpush2.msra.mxu0 0.0
    %2467 = vmatprep.subr.mxu0 0.0
    %2468 = vmatpush2.msra.mxu0 0.0
    %2469 = vmatprep.subr.mxu0 0.0
    %2470 = vmatpush2.msra.mxu0 0.0
    %2471 = vmatprep.subr.mxu0 0.0
    %2472 = vmatpush2.msra.mxu0 0.0
    %2473 = vmatprep.subr.mxu0 0.0
    %2474 = vmatpush2.msra.mxu0 0.0
    %2475 = vmatprep.subr.mxu0 0.0
    %2476 = vmatpush2.msra.mxu0 0.0
    %2477 = vmatprep.subr.mxu0 0.0
    %2478 = vmatpush2.msra.mxu0 0.0
    %2479 = vmatprep.subr.mxu0 0.0
    %2480 = vmatpush2.msra.mxu0 0.0
    %2481 = vmatprep.mubr.f32.mxu0 0.0
    %2482 = vmatmul.mubr.f32.gmra.mxu0 %v2391
    %v2483 = vpop.f32.mrf.mxu0
    %v2484 = vadd.f32 %v2415, %v2483
    %v2485 = vpop.f32.mrf.mxu0
    %2486 = vdwg.mxu0
    %v2487 = vmax.f32 %v2484, 0.0
    %s2488 = scalar_lea.vmem %s7, 384
    %v2489 = vld [vmem:[%s2488] sm:$0xff]
    %v2490 = vld [vmem:[%s2488 + $0x8] sm:$0xff]
    %v2491 = vld [vmem:[%s2488 + $0x10] sm:$0xff]
    %v2492 = vld [vmem:[%s2488 + $0x18] sm:$0xff]
    %v2493 = vld [vmem:[%s2488 + $0x20] sm:$0xff]
    %v2494 = vld [vmem:[%s2488 + $0x28] sm:$0xff]
    %v2495 = vld [vmem:[%s2488 + $0x30] sm:$0xff]
    %v2496 = vld [vmem:[%s2488 + $0x38] sm:$0xff]
    %v2497 = vld [vmem:[%s2488 + $0x40] sm:$0xff]
    %v2498 = vld [vmem:[%s2488 + $0x48] sm:$0xff]
    %v2499 = vld [vmem:[%s2488 + $0x50] sm:$0xff]
    %v2500 = vld [vmem:[%s2488 + $0x58] sm:$0xff]
    %v2501 = vld [vmem:[%s2488 + $0x60] sm:$0xff]
    %v2502 = vld [vmem:[%s2488 + $0x68] sm:$0xff]
    %v2503 = vld [vmem:[%s2488 + $0x70] sm:$0xff]
    %v2504 = vld [vmem:[%s2488 + $0x78] sm:$0xff]
    %s2505 = scalar_lea.vmem [#allocation6], 3
    %v2506 = vld [vmem:[%s2505] sm:$0x1]
    %v2508 = vlaneseq
    %v2509 = vshrl.u32 %v2508, 7
    %v2510 = vsub.s32 0, %v2509
    %v2511 = vrot.slane %v2506, %v2510
    %2513 = vmatprep.subr.mxu0 0.0
    %2514 = vmatpush1.msra.mxu0 %v2504
    %2515 = vmatprep.subr.mxu0 0.0
    %2516 = vmatpush1.msra.mxu0 %v2503
    %2517 = vmatprep.subr.mxu0 0.0
    %2518 = vmatpush1.msra.mxu0 %v2502
    %2519 = vmatprep.subr.mxu0 0.0
    %2520 = vmatpush1.msra.mxu0 %v2501
    %2521 = vmatprep.subr.mxu0 0.0
    %2522 = vmatpush1.msra.mxu0 %v2500
    %2523 = vmatprep.subr.mxu0 0.0
    %2524 = vmatpush1.msra.mxu0 %v2499
    %2525 = vmatprep.subr.mxu0 0.0
    %2526 = vmatpush1.msra.mxu0 %v2498
    %2527 = vmatprep.subr.mxu0 0.0
    %2528 = vmatpush1.msra.mxu0 %v2497
    %2529 = vmatprep.subr.mxu0 0.0
    %2530 = vmatpush1.msra.mxu0 %v2496
    %2531 = vmatprep.subr.mxu0 0.0
    %2532 = vmatpush1.msra.mxu0 %v2495
    %2533 = vmatprep.subr.mxu0 0.0
    %2534 = vmatpush1.msra.mxu0 %v2494
    %2535 = vmatprep.subr.mxu0 0.0
    %2536 = vmatpush1.msra.mxu0 %v2493
    %2537 = vmatprep.subr.mxu0 0.0
    %2538 = vmatpush1.msra.mxu0 %v2492
    %2539 = vmatprep.subr.mxu0 0.0
    %2540 = vmatpush1.msra.mxu0 %v2491
    %2541 = vmatprep.subr.mxu0 0.0
    %2542 = vmatpush1.msra.mxu0 %v2490
    %2543 = vmatprep.subr.mxu0 0.0
    %2544 = vmatpush1.msra.mxu0 %v2489
    %2545 = vmatprep.subr.mxu0 0.0
    %2546 = vmatpush2.msra.mxu0 0.0
    %2547 = vmatprep.subr.mxu0 0.0
    %2548 = vmatpush2.msra.mxu0 0.0
    %2549 = vmatprep.subr.mxu0 0.0
    %2550 = vmatpush2.msra.mxu0 0.0
    %2551 = vmatprep.subr.mxu0 0.0
    %2552 = vmatpush2.msra.mxu0 0.0
    %2553 = vmatprep.subr.mxu0 0.0
    %2554 = vmatpush2.msra.mxu0 0.0
    %2555 = vmatprep.subr.mxu0 0.0
    %2556 = vmatpush2.msra.mxu0 0.0
    %2557 = vmatprep.subr.mxu0 0.0
    %2558 = vmatpush2.msra.mxu0 0.0
    %2559 = vmatprep.subr.mxu0 0.0
    %2560 = vmatpush2.msra.mxu0 0.0
    %2561 = vmatprep.subr.mxu0 0.0
    %2562 = vmatpush2.msra.mxu0 0.0
    %2563 = vmatprep.subr.mxu0 0.0
    %2564 = vmatpush2.msra.mxu0 0.0
    %2565 = vmatprep.subr.mxu0 0.0
    %2566 = vmatpush2.msra.mxu0 0.0
    %2567 = vmatprep.subr.mxu0 0.0
    %2568 = vmatpush2.msra.mxu0 0.0
    %2569 = vmatprep.subr.mxu0 0.0
    %2570 = vmatpush2.msra.mxu0 0.0
    %2571 = vmatprep.subr.mxu0 0.0
    %2572 = vmatpush2.msra.mxu0 0.0
    %2573 = vmatprep.subr.mxu0 0.0
    %2574 = vmatpush2.msra.mxu0 0.0
    %2575 = vmatprep.subr.mxu0 0.0
    %2576 = vmatpush2.msra.mxu0 0.0
    %2577 = vmatprep.mubr.f32.mxu0 0.0
    %2578 = vmatmul.mubr.f32.gmra.mxu0 %v2487
    %v2579 = vpop.f32.mrf.mxu0
    %v2580 = vadd.f32 %v2511, %v2579
    %v2581 = vpop.f32.mrf.mxu0
    %2582 = vdwg.mxu0
    %v2583 = vmax.f32 %v2580, 0.0
    %s2584 = scalar_lea.vmem %s3, 128
    %v2585 = vld [vmem:[%s2584] sm:$0xff]
    %v2586 = vld [vmem:[%s2584 + $0x8] sm:$0xff]
    %v2587 = vld [vmem:[%s2584 + $0x10] sm:$0xff]
    %v2588 = vld [vmem:[%s2584 + $0x18] sm:$0xff]
    %s2589 = scalar_lea.vmem [#allocation2], 4
    %v2590 = vld [vmem:[%s2589] sm:$0x1]
    %v2592 = vlaneseq
    %v2593 = vshrl.u32 %v2592, 7
    %v2594 = vsub.s32 0, %v2593
    %v2595 = vrot.slane %v2590, %v2594
    %2597 = vmatprep.subr.mxu0 0.0
    %2598 = vmatpush1.msra.mxu0 0.0
    %2599 = vmatprep.subr.mxu0 0.0
    %2600 = vmatpush1.msra.mxu0 0.0
    %2601 = vmatprep.subr.mxu0 0.0
    %2602 = vmatpush1.msra.mxu0 0.0
    %2603 = vmatprep.subr.mxu0 0.0
    %2604 = vmatpush1.msra.mxu0 0.0
    %2605 = vmatprep.subr.mxu0 0.0
    %2606 = vmatpush1.msra.mxu0 0.0
    %2607 = vmatprep.subr.mxu0 0.0
    %2608 = vmatpush1.msra.mxu0 0.0
    %2609 = vmatprep.subr.mxu0 0.0
    %2610 = vmatpush1.msra.mxu0 0.0
    %2611 = vmatprep.subr.mxu0 0.0
    %2612 = vmatpush1.msra.mxu0 0.0
    %2613 = vmatprep.subr.mxu0 0.0
    %2614 = vmatpush1.msra.mxu0 0.0
    %2615 = vmatprep.subr.mxu0 0.0
    %2616 = vmatpush1.msra.mxu0 0.0
    %2617 = vmatprep.subr.mxu0 0.0
    %2618 = vmatpush1.msra.mxu0 0.0
    %2619 = vmatprep.subr.mxu0 0.0
    %2620 = vmatpush1.msra.mxu0 0.0
    %2621 = vmatprep.subr.mxu0 0.0
    %2622 = vmatpush1.msra.mxu0 %v2588
    %2623 = vmatprep.subr.mxu0 0.0
    %2624 = vmatpush1.msra.mxu0 %v2587
    %2625 = vmatprep.subr.mxu0 0.0
    %2626 = vmatpush1.msra.mxu0 %v2586
    %2627 = vmatprep.subr.mxu0 0.0
    %2628 = vmatpush1.msra.mxu0 %v2585
    %2629 = vmatprep.subr.mxu0 0.0
    %2630 = vmatpush2.msra.mxu0 0.0
    %2631 = vmatprep.subr.mxu0 0.0
    %2632 = vmatpush2.msra.mxu0 0.0
    %2633 = vmatprep.subr.mxu0 0.0
    %2634 = vmatpush2.msra.mxu0 0.0
    %2635 = vmatprep.subr.mxu0 0.0
    %2636 = vmatpush2.msra.mxu0 0.0
    %2637 = vmatprep.subr.mxu0 0.0
    %2638 = vmatpush2.msra.mxu0 0.0
    %2639 = vmatprep.subr.mxu0 0.0
    %2640 = vmatpush2.msra.mxu0 0.0
    %2641 = vmatprep.subr.mxu0 0.0
    %2642 = vmatpush2.msra.mxu0 0.0
    %2643 = vmatprep.subr.mxu0 0.0
    %2644 = vmatpush2.msra.mxu0 0.0
    %2645 = vmatprep.subr.mxu0 0.0
    %2646 = vmatpush2.msra.mxu0 0.0
    %2647 = vmatprep.subr.mxu0 0.0
    %2648 = vmatpush2.msra.mxu0 0.0
    %2649 = vmatprep.subr.mxu0 0.0
    %2650 = vmatpush2.msra.mxu0 0.0
    %2651 = vmatprep.subr.mxu0 0.0
    %2652 = vmatpush2.msra.mxu0 0.0
    %2653 = vmatprep.subr.mxu0 0.0
    %2654 = vmatpush2.msra.mxu0 0.0
    %2655 = vmatprep.subr.mxu0 0.0
    %2656 = vmatpush2.msra.mxu0 0.0
    %2657 = vmatprep.subr.mxu0 0.0
    %2658 = vmatpush2.msra.mxu0 0.0
    %2659 = vmatprep.subr.mxu0 0.0
    %2660 = vmatpush2.msra.mxu0 0.0
    %2661 = vmatprep.mubr.f32.mxu0 0.0
    %2662 = vmatmul.mubr.f32.gmra.mxu0 %v2319
    %v2663 = vpop.f32.mrf.mxu0
    %v2664 = vadd.f32 %v2595, %v2663
    %v2665 = vpop.f32.mrf.mxu0
    %2666 = vdwg.mxu0
    %v2667 = vmax.f32 %v2664, 0.0
    %s2668 = scalar_lea.vmem %s5, 512
    %v2669 = vld [vmem:[%s2668] sm:$0xff]
    %v2670 = vld [vmem:[%s2668 + $0x8] sm:$0xff]
    %v2671 = vld [vmem:[%s2668 + $0x10] sm:$0xff]
    %v2672 = vld [vmem:[%s2668 + $0x18] sm:$0xff]
    %v2673 = vld [vmem:[%s2668 + $0x20] sm:$0xff]
    %v2674 = vld [vmem:[%s2668 + $0x28] sm:$0xff]
    %v2675 = vld [vmem:[%s2668 + $0x30] sm:$0xff]
    %v2676 = vld [vmem:[%s2668 + $0x38] sm:$0xff]
    %v2677 = vld [vmem:[%s2668 + $0x40] sm:$0xff]
    %v2678 = vld [vmem:[%s2668 + $0x48] sm:$0xff]
    %v2679 = vld [vmem:[%s2668 + $0x50] sm:$0xff]
    %v2680 = vld [vmem:[%s2668 + $0x58] sm:$0xff]
    %v2681 = vld [vmem:[%s2668 + $0x60] sm:$0xff]
    %v2682 = vld [vmem:[%s2668 + $0x68] sm:$0xff]
    %v2683 = vld [vmem:[%s2668 + $0x70] sm:$0xff]
    %v2684 = vld [vmem:[%s2668 + $0x78] sm:$0xff]
    %s2685 = scalar_lea.vmem [#allocation4], 4
    %v2686 = vld [vmem:[%s2685] sm:$0x1]
    %v2688 = vlaneseq
    %v2689 = vshrl.u32 %v2688, 7
    %v2690 = vsub.s32 0, %v2689
    %v2691 = vrot.slane %v2686, %v2690
    %2693 = vmatprep.subr.mxu0 0.0
    %2694 = vmatpush1.msra.mxu0 %v2684
    %2695 = vmatprep.subr.mxu0 0.0
    %2696 = vmatpush1.msra.mxu0 %v2683
    %2697 = vmatprep.subr.mxu0 0.0
    %2698 = vmatpush1.msra.mxu0 %v2682
    %2699 = vmatprep.subr.mxu0 0.0
    %2700 = vmatpush1.msra.mxu0 %v2681
    %2701 = vmatprep.subr.mxu0 0.0
    %2702 = vmatpush1.msra.mxu0 %v2680
    %2703 = vmatprep.subr.mxu0 0.0
    %2704 = vmatpush1.msra.mxu0 %v2679
    %2705 = vmatprep.subr.mxu0 0.0
    %2706 = vmatpush1.msra.mxu0 %v2678
    %2707 = vmatprep.subr.mxu0 0.0
    %2708 = vmatpush1.msra.mxu0 %v2677
    %2709 = vmatprep.subr.mxu0 0.0
    %2710 = vmatpush1.msra.mxu0 %v2676
    %2711 = vmatprep.subr.mxu0 0.0
    %2712 = vmatpush1.msra.mxu0 %v2675
    %2713 = vmatprep.subr.mxu0 0.0
    %2714 = vmatpush1.msra.mxu0 %v2674
    %2715 = vmatprep.subr.mxu0 0.0
    %2716 = vmatpush1.msra.mxu0 %v2673
    %2717 = vmatprep.subr.mxu0 0.0
    %2718 = vmatpush1.msra.mxu0 %v2672
    %2719 = vmatprep.subr.mxu0 0.0
    %2720 = vmatpush1.msra.mxu0 %v2671
    %2721 = vmatprep.subr.mxu0 0.0
    %2722 = vmatpush1.msra.mxu0 %v2670
    %2723 = vmatprep.subr.mxu0 0.0
    %2724 = vmatpush1.msra.mxu0 %v2669
    %2725 = vmatprep.subr.mxu0 0.0
    %2726 = vmatpush2.msra.mxu0 0.0
    %2727 = vmatprep.subr.mxu0 0.0
    %2728 = vmatpush2.msra.mxu0 0.0
    %2729 = vmatprep.subr.mxu0 0.0
    %2730 = vmatpush2.msra.mxu0 0.0
    %2731 = vmatprep.subr.mxu0 0.0
    %2732 = vmatpush2.msra.mxu0 0.0
    %2733 = vmatprep.subr.mxu0 0.0
    %2734 = vmatpush2.msra.mxu0 0.0
    %2735 = vmatprep.subr.mxu0 0.0
    %2736 = vmatpush2.msra.mxu0 0.0
    %2737 = vmatprep.subr.mxu0 0.0
    %2738 = vmatpush2.msra.mxu0 0.0
    %2739 = vmatprep.subr.mxu0 0.0
    %2740 = vmatpush2.msra.mxu0 0.0
    %2741 = vmatprep.subr.mxu0 0.0
    %2742 = vmatpush2.msra.mxu0 0.0
    %2743 = vmatprep.subr.mxu0 0.0
    %2744 = vmatpush2.msra.mxu0 0.0
    %2745 = vmatprep.subr.mxu0 0.0
    %2746 = vmatpush2.msra.mxu0 0.0
    %2747 = vmatprep.subr.mxu0 0.0
    %2748 = vmatpush2.msra.mxu0 0.0
    %2749 = vmatprep.subr.mxu0 0.0
    %2750 = vmatpush2.msra.mxu0 0.0
    %2751 = vmatprep.subr.mxu0 0.0
    %2752 = vmatpush2.msra.mxu0 0.0
    %2753 = vmatprep.subr.mxu0 0.0
    %2754 = vmatpush2.msra.mxu0 0.0
    %2755 = vmatprep.subr.mxu0 0.0
    %2756 = vmatpush2.msra.mxu0 0.0
    %2757 = vmatprep.mubr.f32.mxu0 0.0
    %2758 = vmatmul.mubr.f32.gmra.mxu0 %v2667
    %v2759 = vpop.f32.mrf.mxu0
    %v2760 = vadd.f32 %v2691, %v2759
    %v2761 = vpop.f32.mrf.mxu0
    %2762 = vdwg.mxu0
    %v2763 = vmax.f32 %v2760, 0.0
    %s2764 = scalar_lea.vmem %s7, 512
    %v2765 = vld [vmem:[%s2764] sm:$0xff]
    %v2766 = vld [vmem:[%s2764 + $0x8] sm:$0xff]
    %v2767 = vld [vmem:[%s2764 + $0x10] sm:$0xff]
    %v2768 = vld [vmem:[%s2764 + $0x18] sm:$0xff]
    %v2769 = vld [vmem:[%s2764 + $0x20] sm:$0xff]
    %v2770 = vld [vmem:[%s2764 + $0x28] sm:$0xff]
    %v2771 = vld [vmem:[%s2764 + $0x30] sm:$0xff]
    %v2772 = vld [vmem:[%s2764 + $0x38] sm:$0xff]
    %v2773 = vld [vmem:[%s2764 + $0x40] sm:$0xff]
    %v2774 = vld [vmem:[%s2764 + $0x48] sm:$0xff]
    %v2775 = vld [vmem:[%s2764 + $0x50] sm:$0xff]
    %v2776 = vld [vmem:[%s2764 + $0x58] sm:$0xff]
    %v2777 = vld [vmem:[%s2764 + $0x60] sm:$0xff]
    %v2778 = vld [vmem:[%s2764 + $0x68] sm:$0xff]
    %v2779 = vld [vmem:[%s2764 + $0x70] sm:$0xff]
    %v2780 = vld [vmem:[%s2764 + $0x78] sm:$0xff]
    %s2781 = scalar_lea.vmem [#allocation6], 4
    %v2782 = vld [vmem:[%s2781] sm:$0x1]
    %v2784 = vlaneseq
    %v2785 = vshrl.u32 %v2784, 7
    %v2786 = vsub.s32 0, %v2785
    %v2787 = vrot.slane %v2782, %v2786
    %2789 = vmatprep.subr.mxu0 0.0
    %2790 = vmatpush1.msra.mxu0 %v2780
    %2791 = vmatprep.subr.mxu0 0.0
    %2792 = vmatpush1.msra.mxu0 %v2779
    %2793 = vmatprep.subr.mxu0 0.0
    %2794 = vmatpush1.msra.mxu0 %v2778
    %2795 = vmatprep.subr.mxu0 0.0
    %2796 = vmatpush1.msra.mxu0 %v2777
    %2797 = vmatprep.subr.mxu0 0.0
    %2798 = vmatpush1.msra.mxu0 %v2776
    %2799 = vmatprep.subr.mxu0 0.0
    %2800 = vmatpush1.msra.mxu0 %v2775
    %2801 = vmatprep.subr.mxu0 0.0
    %2802 = vmatpush1.msra.mxu0 %v2774
    %2803 = vmatprep.subr.mxu0 0.0
    %2804 = vmatpush1.msra.mxu0 %v2773
    %2805 = vmatprep.subr.mxu0 0.0
    %2806 = vmatpush1.msra.mxu0 %v2772
    %2807 = vmatprep.subr.mxu0 0.0
    %2808 = vmatpush1.msra.mxu0 %v2771
    %2809 = vmatprep.subr.mxu0 0.0
    %2810 = vmatpush1.msra.mxu0 %v2770
    %2811 = vmatprep.subr.mxu0 0.0
    %2812 = vmatpush1.msra.mxu0 %v2769
    %2813 = vmatprep.subr.mxu0 0.0
    %2814 = vmatpush1.msra.mxu0 %v2768
    %2815 = vmatprep.subr.mxu0 0.0
    %2816 = vmatpush1.msra.mxu0 %v2767
    %2817 = vmatprep.subr.mxu0 0.0
    %2818 = vmatpush1.msra.mxu0 %v2766
    %2819 = vmatprep.subr.mxu0 0.0
    %2820 = vmatpush1.msra.mxu0 %v2765
    %2821 = vmatprep.subr.mxu0 0.0
    %2822 = vmatpush2.msra.mxu0 0.0
    %2823 = vmatprep.subr.mxu0 0.0
    %2824 = vmatpush2.msra.mxu0 0.0
    %2825 = vmatprep.subr.mxu0 0.0
    %2826 = vmatpush2.msra.mxu0 0.0
    %2827 = vmatprep.subr.mxu0 0.0
    %2828 = vmatpush2.msra.mxu0 0.0
    %2829 = vmatprep.subr.mxu0 0.0
    %2830 = vmatpush2.msra.mxu0 0.0
    %2831 = vmatprep.subr.mxu0 0.0
    %2832 = vmatpush2.msra.mxu0 0.0
    %2833 = vmatprep.subr.mxu0 0.0
    %2834 = vmatpush2.msra.mxu0 0.0
    %2835 = vmatprep.subr.mxu0 0.0
    %2836 = vmatpush2.msra.mxu0 0.0
    %2837 = vmatprep.subr.mxu0 0.0
    %2838 = vmatpush2.msra.mxu0 0.0
    %2839 = vmatprep.subr.mxu0 0.0
    %2840 = vmatpush2.msra.mxu0 0.0
    %2841 = vmatprep.subr.mxu0 0.0
    %2842 = vmatpush2.msra.mxu0 0.0
    %2843 = vmatprep.subr.mxu0 0.0
    %2844 = vmatpush2.msra.mxu0 0.0
    %2845 = vmatprep.subr.mxu0 0.0
    %2846 = vmatpush2.msra.mxu0 0.0
    %2847 = vmatprep.subr.mxu0 0.0
    %2848 = vmatpush2.msra.mxu0 0.0
    %2849 = vmatprep.subr.mxu0 0.0
    %2850 = vmatpush2.msra.mxu0 0.0
    %2851 = vmatprep.subr.mxu0 0.0
    %2852 = vmatpush2.msra.mxu0 0.0
    %2853 = vmatprep.mubr.f32.mxu0 0.0
    %2854 = vmatmul.mubr.f32.gmra.mxu0 %v2763
    %v2855 = vpop.f32.mrf.mxu0
    %v2856 = vadd.f32 %v2787, %v2855
    %v2857 = vpop.f32.mrf.mxu0
    %2858 = vdwg.mxu0
    %v2859 = vmax.f32 %v2856, 0.0
    %s2860 = scalar_lea.vmem %s3, 160
    %v2861 = vld [vmem:[%s2860] sm:$0xff]
    %v2862 = vld [vmem:[%s2860 + $0x8] sm:$0xff]
    %v2863 = vld [vmem:[%s2860 + $0x10] sm:$0xff]
    %v2864 = vld [vmem:[%s2860 + $0x18] sm:$0xff]
    %s2865 = scalar_lea.vmem [#allocation2], 5
    %v2866 = vld [vmem:[%s2865] sm:$0x1]
    %v2868 = vlaneseq
    %v2869 = vshrl.u32 %v2868, 7
    %v2870 = vsub.s32 0, %v2869
    %v2871 = vrot.slane %v2866, %v2870
    %2873 = vmatprep.subr.mxu0 0.0
    %2874 = vmatpush1.msra.mxu0 0.0
    %2875 = vmatprep.subr.mxu0 0.0
    %2876 = vmatpush1.msra.mxu0 0.0
    %2877 = vmatprep.subr.mxu0 0.0
    %2878 = vmatpush1.msra.mxu0 0.0
    %2879 = vmatprep.subr.mxu0 0.0
    %2880 = vmatpush1.msra.mxu0 0.0
    %2881 = vmatprep.subr.mxu0 0.0
    %2882 = vmatpush1.msra.mxu0 0.0
    %2883 = vmatprep.subr.mxu0 0.0
    %2884 = vmatpush1.msra.mxu0 0.0
    %2885 = vmatprep.subr.mxu0 0.0
    %2886 = vmatpush1.msra.mxu0 0.0
    %2887 = vmatprep.subr.mxu0 0.0
    %2888 = vmatpush1.msra.mxu0 0.0
    %2889 = vmatprep.subr.mxu0 0.0
    %2890 = vmatpush1.msra.mxu0 0.0
    %2891 = vmatprep.subr.mxu0 0.0
    %2892 = vmatpush1.msra.mxu0 0.0
    %2893 = vmatprep.subr.mxu0 0.0
    %2894 = vmatpush1.msra.mxu0 0.0
    %2895 = vmatprep.subr.mxu0 0.0
    %2896 = vmatpush1.msra.mxu0 0.0
    %2897 = vmatprep.subr.mxu0 0.0
    %2898 = vmatpush1.msra.mxu0 %v2864
    %2899 = vmatprep.subr.mxu0 0.0
    %2900 = vmatpush1.msra.mxu0 %v2863
    %2901 = vmatprep.subr.mxu0 0.0
    %2902 = vmatpush1.msra.mxu0 %v2862
    %2903 = vmatprep.subr.mxu0 0.0
    %2904 = vmatpush1.msra.mxu0 %v2861
    %2905 = vmatprep.subr.mxu0 0.0
    %2906 = vmatpush2.msra.mxu0 0.0
    %2907 = vmatprep.subr.mxu0 0.0
    %2908 = vmatpush2.msra.mxu0 0.0
    %2909 = vmatprep.subr.mxu0 0.0
    %2910 = vmatpush2.msra.mxu0 0.0
    %2911 = vmatprep.subr.mxu0 0.0
    %2912 = vmatpush2.msra.mxu0 0.0
    %2913 = vmatprep.subr.mxu0 0.0
    %2914 = vmatpush2.msra.mxu0 0.0
    %2915 = vmatprep.subr.mxu0 0.0
    %2916 = vmatpush2.msra.mxu0 0.0
    %2917 = vmatprep.subr.mxu0 0.0
    %2918 = vmatpush2.msra.mxu0 0.0
    %2919 = vmatprep.subr.mxu0 0.0
    %2920 = vmatpush2.msra.mxu0 0.0
    %2921 = vmatprep.subr.mxu0 0.0
    %2922 = vmatpush2.msra.mxu0 0.0
    %2923 = vmatprep.subr.mxu0 0.0
    %2924 = vmatpush2.msra.mxu0 0.0
    %2925 = vmatprep.subr.mxu0 0.0
    %2926 = vmatpush2.msra.mxu0 0.0
    %2927 = vmatprep.subr.mxu0 0.0
    %2928 = vmatpush2.msra.mxu0 0.0
    %2929 = vmatprep.subr.mxu0 0.0
    %2930 = vmatpush2.msra.mxu0 0.0
    %2931 = vmatprep.subr.mxu0 0.0
    %2932 = vmatpush2.msra.mxu0 0.0
    %2933 = vmatprep.subr.mxu0 0.0
    %2934 = vmatpush2.msra.mxu0 0.0
    %2935 = vmatprep.subr.mxu0 0.0
    %2936 = vmatpush2.msra.mxu0 0.0
    %2937 = vmatprep.mubr.f32.mxu0 0.0
    %2938 = vmatmul.mubr.f32.gmra.mxu0 %v2319
    %v2939 = vpop.f32.mrf.mxu0
    %v2940 = vadd.f32 %v2871, %v2939
    %v2941 = vpop.f32.mrf.mxu0
    %2942 = vdwg.mxu0
    %v2943 = vmax.f32 %v2940, 0.0
    %s2944 = scalar_lea.vmem %s5, 640
    %v2945 = vld [vmem:[%s2944] sm:$0xff]
    %v2946 = vld [vmem:[%s2944 + $0x8] sm:$0xff]
    %v2947 = vld [vmem:[%s2944 + $0x10] sm:$0xff]
    %v2948 = vld [vmem:[%s2944 + $0x18] sm:$0xff]
    %v2949 = vld [vmem:[%s2944 + $0x20] sm:$0xff]
    %v2950 = vld [vmem:[%s2944 + $0x28] sm:$0xff]
    %v2951 = vld [vmem:[%s2944 + $0x30] sm:$0xff]
    %v2952 = vld [vmem:[%s2944 + $0x38] sm:$0xff]
    %v2953 = vld [vmem:[%s2944 + $0x40] sm:$0xff]
    %v2954 = vld [vmem:[%s2944 + $0x48] sm:$0xff]
    %v2955 = vld [vmem:[%s2944 + $0x50] sm:$0xff]
    %v2956 = vld [vmem:[%s2944 + $0x58] sm:$0xff]
    %v2957 = vld [vmem:[%s2944 + $0x60] sm:$0xff]
    %v2958 = vld [vmem:[%s2944 + $0x68] sm:$0xff]
    %v2959 = vld [vmem:[%s2944 + $0x70] sm:$0xff]
    %v2960 = vld [vmem:[%s2944 + $0x78] sm:$0xff]
    %s2961 = scalar_lea.vmem [#allocation4], 5
    %v2962 = vld [vmem:[%s2961] sm:$0x1]
    %v2964 = vlaneseq
    %v2965 = vshrl.u32 %v2964, 7
    %v2966 = vsub.s32 0, %v2965
    %v2967 = vrot.slane %v2962, %v2966
    %2969 = vmatprep.subr.mxu0 0.0
    %2970 = vmatpush1.msra.mxu0 %v2960
    %2971 = vmatprep.subr.mxu0 0.0
    %2972 = vmatpush1.msra.mxu0 %v2959
    %2973 = vmatprep.subr.mxu0 0.0
    %2974 = vmatpush1.msra.mxu0 %v2958
    %2975 = vmatprep.subr.mxu0 0.0
    %2976 = vmatpush1.msra.mxu0 %v2957
    %2977 = vmatprep.subr.mxu0 0.0
    %2978 = vmatpush1.msra.mxu0 %v2956
    %2979 = vmatprep.subr.mxu0 0.0
    %2980 = vmatpush1.msra.mxu0 %v2955
    %2981 = vmatprep.subr.mxu0 0.0
    %2982 = vmatpush1.msra.mxu0 %v2954
    %2983 = vmatprep.subr.mxu0 0.0
    %2984 = vmatpush1.msra.mxu0 %v2953
    %2985 = vmatprep.subr.mxu0 0.0
    %2986 = vmatpush1.msra.mxu0 %v2952
    %2987 = vmatprep.subr.mxu0 0.0
    %2988 = vmatpush1.msra.mxu0 %v2951
    %2989 = vmatprep.subr.mxu0 0.0
    %2990 = vmatpush1.msra.mxu0 %v2950
    %2991 = vmatprep.subr.mxu0 0.0
    %2992 = vmatpush1.msra.mxu0 %v2949
    %2993 = vmatprep.subr.mxu0 0.0
    %2994 = vmatpush1.msra.mxu0 %v2948
    %2995 = vmatprep.subr.mxu0 0.0
    %2996 = vmatpush1.msra.mxu0 %v2947
    %2997 = vmatprep.subr.mxu0 0.0
    %2998 = vmatpush1.msra.mxu0 %v2946
    %2999 = vmatprep.subr.mxu0 0.0
    %3000 = vmatpush1.msra.mxu0 %v2945
    %3001 = vmatprep.subr.mxu0 0.0
    %3002 = vmatpush2.msra.mxu0 0.0
    %3003 = vmatprep.subr.mxu0 0.0
    %3004 = vmatpush2.msra.mxu0 0.0
    %3005 = vmatprep.subr.mxu0 0.0
    %3006 = vmatpush2.msra.mxu0 0.0
    %3007 = vmatprep.subr.mxu0 0.0
    %3008 = vmatpush2.msra.mxu0 0.0
    %3009 = vmatprep.subr.mxu0 0.0
    %3010 = vmatpush2.msra.mxu0 0.0
    %3011 = vmatprep.subr.mxu0 0.0
    %3012 = vmatpush2.msra.mxu0 0.0
    %3013 = vmatprep.subr.mxu0 0.0
    %3014 = vmatpush2.msra.mxu0 0.0
    %3015 = vmatprep.subr.mxu0 0.0
    %3016 = vmatpush2.msra.mxu0 0.0
    %3017 = vmatprep.subr.mxu0 0.0
    %3018 = vmatpush2.msra.mxu0 0.0
    %3019 = vmatprep.subr.mxu0 0.0
    %3020 = vmatpush2.msra.mxu0 0.0
    %3021 = vmatprep.subr.mxu0 0.0
    %3022 = vmatpush2.msra.mxu0 0.0
    %3023 = vmatprep.subr.mxu0 0.0
    %3024 = vmatpush2.msra.mxu0 0.0
    %3025 = vmatprep.subr.mxu0 0.0
    %3026 = vmatpush2.msra.mxu0 0.0
    %3027 = vmatprep.subr.mxu0 0.0
    %3028 = vmatpush2.msra.mxu0 0.0
    %3029 = vmatprep.subr.mxu0 0.0
    %3030 = vmatpush2.msra.mxu0 0.0
    %3031 = vmatprep.subr.mxu0 0.0
    %3032 = vmatpush2.msra.mxu0 0.0
    %3033 = vmatprep.mubr.f32.mxu0 0.0
    %3034 = vmatmul.mubr.f32.gmra.mxu0 %v2943
    %v3035 = vpop.f32.mrf.mxu0
    %v3036 = vadd.f32 %v2967, %v3035
    %v3037 = vpop.f32.mrf.mxu0
    %3038 = vdwg.mxu0
    %v3039 = vmax.f32 %v3036, 0.0
    %s3040 = scalar_lea.vmem %s7, 640
    %v3041 = vld [vmem:[%s3040] sm:$0xff]
    %v3042 = vld [vmem:[%s3040 + $0x8] sm:$0xff]
    %v3043 = vld [vmem:[%s3040 + $0x10] sm:$0xff]
    %v3044 = vld [vmem:[%s3040 + $0x18] sm:$0xff]
    %v3045 = vld [vmem:[%s3040 + $0x20] sm:$0xff]
    %v3046 = vld [vmem:[%s3040 + $0x28] sm:$0xff]
    %v3047 = vld [vmem:[%s3040 + $0x30] sm:$0xff]
    %v3048 = vld [vmem:[%s3040 + $0x38] sm:$0xff]
    %v3049 = vld [vmem:[%s3040 + $0x40] sm:$0xff]
    %v3050 = vld [vmem:[%s3040 + $0x48] sm:$0xff]
    %v3051 = vld [vmem:[%s3040 + $0x50] sm:$0xff]
    %v3052 = vld [vmem:[%s3040 + $0x58] sm:$0xff]
    %v3053 = vld [vmem:[%s3040 + $0x60] sm:$0xff]
    %v3054 = vld [vmem:[%s3040 + $0x68] sm:$0xff]
    %v3055 = vld [vmem:[%s3040 + $0x70] sm:$0xff]
    %v3056 = vld [vmem:[%s3040 + $0x78] sm:$0xff]
    %s3057 = scalar_lea.vmem [#allocation6], 5
    %v3058 = vld [vmem:[%s3057] sm:$0x1]
    %v3060 = vlaneseq
    %v3061 = vshrl.u32 %v3060, 7
    %v3062 = vsub.s32 0, %v3061
    %v3063 = vrot.slane %v3058, %v3062
    %3065 = vmatprep.subr.mxu0 0.0
    %3066 = vmatpush1.msra.mxu0 %v3056
    %3067 = vmatprep.subr.mxu0 0.0
    %3068 = vmatpush1.msra.mxu0 %v3055
    %3069 = vmatprep.subr.mxu0 0.0
    %3070 = vmatpush1.msra.mxu0 %v3054
    %3071 = vmatprep.subr.mxu0 0.0
    %3072 = vmatpush1.msra.mxu0 %v3053
    %3073 = vmatprep.subr.mxu0 0.0
    %3074 = vmatpush1.msra.mxu0 %v3052
    %3075 = vmatprep.subr.mxu0 0.0
    %3076 = vmatpush1.msra.mxu0 %v3051
    %3077 = vmatprep.subr.mxu0 0.0
    %3078 = vmatpush1.msra.mxu0 %v3050
    %3079 = vmatprep.subr.mxu0 0.0
    %3080 = vmatpush1.msra.mxu0 %v3049
    %3081 = vmatprep.subr.mxu0 0.0
    %3082 = vmatpush1.msra.mxu0 %v3048
    %3083 = vmatprep.subr.mxu0 0.0
    %3084 = vmatpush1.msra.mxu0 %v3047
    %3085 = vmatprep.subr.mxu0 0.0
    %3086 = vmatpush1.msra.mxu0 %v3046
    %3087 = vmatprep.subr.mxu0 0.0
    %3088 = vmatpush1.msra.mxu0 %v3045
    %3089 = vmatprep.subr.mxu0 0.0
    %3090 = vmatpush1.msra.mxu0 %v3044
    %3091 = vmatprep.subr.mxu0 0.0
    %3092 = vmatpush1.msra.mxu0 %v3043
    %3093 = vmatprep.subr.mxu0 0.0
    %3094 = vmatpush1.msra.mxu0 %v3042
    %3095 = vmatprep.subr.mxu0 0.0
    %3096 = vmatpush1.msra.mxu0 %v3041
    %3097 = vmatprep.subr.mxu0 0.0
    %3098 = vmatpush2.msra.mxu0 0.0
    %3099 = vmatprep.subr.mxu0 0.0
    %3100 = vmatpush2.msra.mxu0 0.0
    %3101 = vmatprep.subr.mxu0 0.0
    %3102 = vmatpush2.msra.mxu0 0.0
    %3103 = vmatprep.subr.mxu0 0.0
    %3104 = vmatpush2.msra.mxu0 0.0
    %3105 = vmatprep.subr.mxu0 0.0
    %3106 = vmatpush2.msra.mxu0 0.0
    %3107 = vmatprep.subr.mxu0 0.0
    %3108 = vmatpush2.msra.mxu0 0.0
    %3109 = vmatprep.subr.mxu0 0.0
    %3110 = vmatpush2.msra.mxu0 0.0
    %3111 = vmatprep.subr.mxu0 0.0
    %3112 = vmatpush2.msra.mxu0 0.0
    %3113 = vmatprep.subr.mxu0 0.0
    %3114 = vmatpush2.msra.mxu0 0.0
    %3115 = vmatprep.subr.mxu0 0.0
    %3116 = vmatpush2.msra.mxu0 0.0
    %3117 = vmatprep.subr.mxu0 0.0
    %3118 = vmatpush2.msra.mxu0 0.0
    %3119 = vmatprep.subr.mxu0 0.0
    %3120 = vmatpush2.msra.mxu0 0.0
    %3121 = vmatprep.subr.mxu0 0.0
    %3122 = vmatpush2.msra.mxu0 0.0
    %3123 = vmatprep.subr.mxu0 0.0
    %3124 = vmatpush2.msra.mxu0 0.0
    %3125 = vmatprep.subr.mxu0 0.0
    %3126 = vmatpush2.msra.mxu0 0.0
    %3127 = vmatprep.subr.mxu0 0.0
    %3128 = vmatpush2.msra.mxu0 0.0
    %3129 = vmatprep.mubr.f32.mxu0 0.0
    %3130 = vmatmul.mubr.f32.gmra.mxu0 %v3039
    %v3131 = vpop.f32.mrf.mxu0
    %v3132 = vadd.f32 %v3063, %v3131
    %v3133 = vpop.f32.mrf.mxu0
    %3134 = vdwg.mxu0
    %v3135 = vsel %vm1069, %v3132, -inf
    %3136 = vmax.xlane.f32.xlu0 %v3135
    %v3137 = vpop.xlane.xlu0 %3136
    %v3138 = vsub.f32 %v3132, %v3137
    %v3139 = vmul.f32 %v3138, 1.442695
    %v3140 = vpow.pop %v3139
    %v3141 = vsel %vm1069, %v3140, 0.0
    %3142 = vadd.xlane.f32.xlu0 %v3141
    %v3143 = vpop.xlane.xlu0 %3142
    %v3144 = vrcp.pop %v3143
    %v3145 = vmul.f32 %v3140, %v3144
    %s3146 = scalar_lea.vmem %s9, 32
    %v3147 = vld [vmem:[%s3146] sm:$0xff]
    %v3148 = vld [vmem:[%s3146 + $0x8] sm:$0xff]
    %v3149 = vld [vmem:[%s3146 + $0x10] sm:$0xff]
    %v3150 = vld [vmem:[%s3146 + $0x18] sm:$0xff]
    %s3151 = scalar_lea.vmem [#allocation7], 1
    %v3152 = vld [vmem:[%s3151] sm:$0x1]
    %v3154 = vlaneseq
    %v3155 = vshrl.u32 %v3154, 7
    %v3156 = vsub.s32 0, %v3155
    %v3157 = vrot.slane %v3152, %v3156
    %v3160 = vsel %vm255, %v3145, 0
    %3162 = vmatprep.subr.mxu0 0.0
    %3163 = vmatpush1.msra.mxu0 0.0
    %3164 = vmatprep.subr.mxu0 0.0
    %3165 = vmatpush1.msra.mxu0 0.0
    %3166 = vmatprep.subr.mxu0 0.0
    %3167 = vmatpush1.msra.mxu0 0.0
    %3168 = vmatprep.subr.mxu0 0.0
    %3169 = vmatpush1.msra.mxu0 0.0
    %3170 = vmatprep.subr.mxu0 0.0
    %3171 = vmatpush1.msra.mxu0 0.0
    %3172 = vmatprep.subr.mxu0 0.0
    %3173 = vmatpush1.msra.mxu0 0.0
    %3174 = vmatprep.subr.mxu0 0.0
    %3175 = vmatpush1.msra.mxu0 0.0
    %3176 = vmatprep.subr.mxu0 0.0
    %3177 = vmatpush1.msra.mxu0 0.0
    %3178 = vmatprep.subr.mxu0 0.0
    %3179 = vmatpush1.msra.mxu0 0.0
    %3180 = vmatprep.subr.mxu0 0.0
    %3181 = vmatpush1.msra.mxu0 0.0
    %3182 = vmatprep.subr.mxu0 0.0
    %3183 = vmatpush1.msra.mxu0 0.0
    %3184 = vmatprep.subr.mxu0 0.0
    %3185 = vmatpush1.msra.mxu0 0.0
    %3186 = vmatprep.subr.mxu0 0.0
    %3187 = vmatpush1.msra.mxu0 %v3150
    %3188 = vmatprep.subr.mxu0 0.0
    %3189 = vmatpush1.msra.mxu0 %v3149
    %3190 = vmatprep.subr.mxu0 0.0
    %3191 = vmatpush1.msra.mxu0 %v3148
    %3192 = vmatprep.subr.mxu0 0.0
    %3193 = vmatpush1.msra.mxu0 %v3147
    %3194 = vmatprep.subr.mxu0 0.0
    %3195 = vmatpush2.msra.mxu0 0.0
    %3196 = vmatprep.subr.mxu0 0.0
    %3197 = vmatpush2.msra.mxu0 0.0
    %3198 = vmatprep.subr.mxu0 0.0
    %3199 = vmatpush2.msra.mxu0 0.0
    %3200 = vmatprep.subr.mxu0 0.0
    %3201 = vmatpush2.msra.mxu0 0.0
    %3202 = vmatprep.subr.mxu0 0.0
    %3203 = vmatpush2.msra.mxu0 0.0
    %3204 = vmatprep.subr.mxu0 0.0
    %3205 = vmatpush2.msra.mxu0 0.0
    %3206 = vmatprep.subr.mxu0 0.0
    %3207 = vmatpush2.msra.mxu0 0.0
    %3208 = vmatprep.subr.mxu0 0.0
    %3209 = vmatpush2.msra.mxu0 0.0
    %3210 = vmatprep.subr.mxu0 0.0
    %3211 = vmatpush2.msra.mxu0 0.0
    %3212 = vmatprep.subr.mxu0 0.0
    %3213 = vmatpush2.msra.mxu0 0.0
    %3214 = vmatprep.subr.mxu0 0.0
    %3215 = vmatpush2.msra.mxu0 0.0
    %3216 = vmatprep.subr.mxu0 0.0
    %3217 = vmatpush2.msra.mxu0 0.0
    %3218 = vmatprep.subr.mxu0 0.0
    %3219 = vmatpush2.msra.mxu0 0.0
    %3220 = vmatprep.subr.mxu0 0.0
    %3221 = vmatpush2.msra.mxu0 0.0
    %3222 = vmatprep.subr.mxu0 0.0
    %3223 = vmatpush2.msra.mxu0 0.0
    %3224 = vmatprep.subr.mxu0 0.0
    %3225 = vmatpush2.msra.mxu0 0.0
    %3226 = vmatprep.mubr.f32.mxu0 0.0
    %3227 = vmatmul.mubr.f32.gmra.mxu0 %v3160
    %v3228 = vpop.f32.mrf.mxu0
    %v3229 = vadd.f32 %v3157, %v3228
    %v3230 = vpop.f32.mrf.mxu0
    %3231 = vdwg.mxu0
    %s3232 = scalar_lea.vmem [#allocation9], 32
    %v3233 = vld [vmem:[%s3232] sm:$0xff]
    %v3234 = vld [vmem:[%s3232 + $0x8] sm:$0xff]
    %v3235 = vld [vmem:[%s3232 + $0x10] sm:$0xff]
    %v3236 = vld [vmem:[%s3232 + $0x18] sm:$0xff]
    %s3237 = scalar_lea.vmem [#allocation10], 1
    %v3238 = vld [vmem:[%s3237] sm:$0x1]
    %v3240 = vlaneseq
    %v3241 = vshrl.u32 %v3240, 7
    %v3242 = vsub.s32 0, %v3241
    %v3243 = vrot.slane %v3238, %v3242
    %v3246 = vsel %vm255, %v2583, 0
    %3248 = vmatprep.subr.mxu0 0.0
    %3249 = vmatpush1.msra.mxu0 0.0
    %3250 = vmatprep.subr.mxu0 0.0
    %3251 = vmatpush1.msra.mxu0 0.0
    %3252 = vmatprep.subr.mxu0 0.0
    %3253 = vmatpush1.msra.mxu0 0.0
    %3254 = vmatprep.subr.mxu0 0.0
    %3255 = vmatpush1.msra.mxu0 0.0
    %3256 = vmatprep.subr.mxu0 0.0
    %3257 = vmatpush1.msra.mxu0 0.0
    %3258 = vmatprep.subr.mxu0 0.0
    %3259 = vmatpush1.msra.mxu0 0.0
    %3260 = vmatprep.subr.mxu0 0.0
    %3261 = vmatpush1.msra.mxu0 0.0
    %3262 = vmatprep.subr.mxu0 0.0
    %3263 = vmatpush1.msra.mxu0 0.0
    %3264 = vmatprep.subr.mxu0 0.0
    %3265 = vmatpush1.msra.mxu0 0.0
    %3266 = vmatprep.subr.mxu0 0.0
    %3267 = vmatpush1.msra.mxu0 0.0
    %3268 = vmatprep.subr.mxu0 0.0
    %3269 = vmatpush1.msra.mxu0 0.0
    %3270 = vmatprep.subr.mxu0 0.0
    %3271 = vmatpush1.msra.mxu0 0.0
    %3272 = vmatprep.subr.mxu0 0.0
    %3273 = vmatpush1.msra.mxu0 %v3236
    %3274 = vmatprep.subr.mxu0 0.0
    %3275 = vmatpush1.msra.mxu0 %v3235
    %3276 = vmatprep.subr.mxu0 0.0
    %3277 = vmatpush1.msra.mxu0 %v3234
    %3278 = vmatprep.subr.mxu0 0.0
    %3279 = vmatpush1.msra.mxu0 %v3233
    %3280 = vmatprep.subr.mxu0 0.0
    %3281 = vmatpush2.msra.mxu0 0.0
    %3282 = vmatprep.subr.mxu0 0.0
    %3283 = vmatpush2.msra.mxu0 0.0
    %3284 = vmatprep.subr.mxu0 0.0
    %3285 = vmatpush2.msra.mxu0 0.0
    %3286 = vmatprep.subr.mxu0 0.0
    %3287 = vmatpush2.msra.mxu0 0.0
    %3288 = vmatprep.subr.mxu0 0.0
    %3289 = vmatpush2.msra.mxu0 0.0
    %3290 = vmatprep.subr.mxu0 0.0
    %3291 = vmatpush2.msra.mxu0 0.0
    %3292 = vmatprep.subr.mxu0 0.0
    %3293 = vmatpush2.msra.mxu0 0.0
    %3294 = vmatprep.subr.mxu0 0.0
    %3295 = vmatpush2.msra.mxu0 0.0
    %3296 = vmatprep.subr.mxu0 0.0
    %3297 = vmatpush2.msra.mxu0 0.0
    %3298 = vmatprep.subr.mxu0 0.0
    %3299 = vmatpush2.msra.mxu0 0.0
    %3300 = vmatprep.subr.mxu0 0.0
    %3301 = vmatpush2.msra.mxu0 0.0
    %3302 = vmatprep.subr.mxu0 0.0
    %3303 = vmatpush2.msra.mxu0 0.0
    %3304 = vmatprep.subr.mxu0 0.0
    %3305 = vmatpush2.msra.mxu0 0.0
    %3306 = vmatprep.subr.mxu0 0.0
    %3307 = vmatpush2.msra.mxu0 0.0
    %3308 = vmatprep.subr.mxu0 0.0
    %3309 = vmatpush2.msra.mxu0 0.0
    %3310 = vmatprep.subr.mxu0 0.0
    %3311 = vmatpush2.msra.mxu0 0.0
    %3312 = vmatprep.mubr.f32.mxu0 0.0
    %3313 = vmatmul.mubr.f32.gmra.mxu0 %v3246
    %v3314 = vpop.f32.mrf.mxu0
    %v3315 = vadd.f32 %v3243, %v3314
    %v3316 = vpop.f32.mrf.mxu0
    %3317 = vdwg.mxu0
    %s3318 = scalar_lea.vmem [#allocation12], 32
    %v3319 = vld [vmem:[%s3318] sm:$0xff]
    %v3320 = vld [vmem:[%s3318 + $0x8] sm:$0xff]
    %v3321 = vld [vmem:[%s3318 + $0x10] sm:$0xff]
    %v3322 = vld [vmem:[%s3318 + $0x18] sm:$0xff]
    %s3323 = scalar_lea.vmem [#allocation13], 1
    %v3324 = vld [vmem:[%s3323] sm:$0x1]
    %v3326 = vlaneseq
    %v3327 = vshrl.u32 %v3326, 7
    %v3328 = vsub.s32 0, %v3327
    %v3329 = vrot.slane %v3324, %v3328
    %v3332 = vsel %vm255, %v2859, 0
    %3334 = vmatprep.subr.mxu0 0.0
    %3335 = vmatpush1.msra.mxu0 0.0
    %3336 = vmatprep.subr.mxu0 0.0
    %3337 = vmatpush1.msra.mxu0 0.0
    %3338 = vmatprep.subr.mxu0 0.0
    %3339 = vmatpush1.msra.mxu0 0.0
    %3340 = vmatprep.subr.mxu0 0.0
    %3341 = vmatpush1.msra.mxu0 0.0
    %3342 = vmatprep.subr.mxu0 0.0
    %3343 = vmatpush1.msra.mxu0 0.0
    %3344 = vmatprep.subr.mxu0 0.0
    %3345 = vmatpush1.msra.mxu0 0.0
    %3346 = vmatprep.subr.mxu0 0.0
    %3347 = vmatpush1.msra.mxu0 0.0
    %3348 = vmatprep.subr.mxu0 0.0
    %3349 = vmatpush1.msra.mxu0 0.0
    %3350 = vmatprep.subr.mxu0 0.0
    %3351 = vmatpush1.msra.mxu0 0.0
    %3352 = vmatprep.subr.mxu0 0.0
    %3353 = vmatpush1.msra.mxu0 0.0
    %3354 = vmatprep.subr.mxu0 0.0
    %3355 = vmatpush1.msra.mxu0 0.0
    %3356 = vmatprep.subr.mxu0 0.0
    %3357 = vmatpush1.msra.mxu0 0.0
    %3358 = vmatprep.subr.mxu0 0.0
    %3359 = vmatpush1.msra.mxu0 %v3322
    %3360 = vmatprep.subr.mxu0 0.0
    %3361 = vmatpush1.msra.mxu0 %v3321
    %3362 = vmatprep.subr.mxu0 0.0
    %3363 = vmatpush1.msra.mxu0 %v3320
    %3364 = vmatprep.subr.mxu0 0.0
    %3365 = vmatpush1.msra.mxu0 %v3319
    %3366 = vmatprep.subr.mxu0 0.0
    %3367 = vmatpush2.msra.mxu0 0.0
    %3368 = vmatprep.subr.mxu0 0.0
    %3369 = vmatpush2.msra.mxu0 0.0
    %3370 = vmatprep.subr.mxu0 0.0
    %3371 = vmatpush2.msra.mxu0 0.0
    %3372 = vmatprep.subr.mxu0 0.0
    %3373 = vmatpush2.msra.mxu0 0.0
    %3374 = vmatprep.subr.mxu0 0.0
    %3375 = vmatpush2.msra.mxu0 0.0
    %3376 = vmatprep.subr.mxu0 0.0
    %3377 = vmatpush2.msra.mxu0 0.0
    %3378 = vmatprep.subr.mxu0 0.0
    %3379 = vmatpush2.msra.mxu0 0.0
    %3380 = vmatprep.subr.mxu0 0.0
    %3381 = vmatpush2.msra.mxu0 0.0
    %3382 = vmatprep.subr.mxu0 0.0
    %3383 = vmatpush2.msra.mxu0 0.0
    %3384 = vmatprep.subr.mxu0 0.0
    %3385 = vmatpush2.msra.mxu0 0.0
    %3386 = vmatprep.subr.mxu0 0.0
    %3387 = vmatpush2.msra.mxu0 0.0
    %3388 = vmatprep.subr.mxu0 0.0
    %3389 = vmatpush2.msra.mxu0 0.0
    %3390 = vmatprep.subr.mxu0 0.0
    %3391 = vmatpush2.msra.mxu0 0.0
    %3392 = vmatprep.subr.mxu0 0.0
    %3393 = vmatpush2.msra.mxu0 0.0
    %3394 = vmatprep.subr.mxu0 0.0
    %3395 = vmatpush2.msra.mxu0 0.0
    %3396 = vmatprep.subr.mxu0 0.0
    %3397 = vmatpush2.msra.mxu0 0.0
    %3398 = vmatprep.mubr.f32.mxu0 0.0
    %3399 = vmatmul.mubr.f32.gmra.mxu0 %v3332
    %v3400 = vpop.f32.mrf.mxu0
    %v3401 = vadd.f32 %v3329, %v3400
    %v3402 = vpop.f32.mrf.mxu0
    %3403 = vdwg.mxu0
    %s3404 = scalar_lea.vmem [#allocation15], 32
    %v3405 = vld [vmem:[%s3404] sm:$0xff]
    %v3406 = vld [vmem:[%s3404 + $0x8] sm:$0xff]
    %v3407 = vld [vmem:[%s3404 + $0x10] sm:$0xff]
    %v3408 = vld [vmem:[%s3404 + $0x18] sm:$0xff]
    %v3409 = vmul.f32 %v3229, 0.35355338
    %v3411 = vsel %vm1338, %v3409, 0
    %v3414 = vsel %vm1338, %v3315, 0
    %3416 = vmatprep.subr.mxu0 0.0
    %3417 = vmatpush1.xpose.msra.mxu0 0.0
    %3418 = vmatprep.subr.mxu0 0.0
    %3419 = vmatpush1.xpose.msra.mxu0 0.0
    %3420 = vmatprep.subr.mxu0 0.0
    %3421 = vmatpush1.xpose.msra.mxu0 0.0
    %3422 = vmatprep.subr.mxu0 0.0
    %3423 = vmatpush1.xpose.msra.mxu0 0.0
    %3424 = vmatprep.subr.mxu0 0.0
    %3425 = vmatpush1.xpose.msra.mxu0 0.0
    %3426 = vmatprep.subr.mxu0 0.0
    %3427 = vmatpush1.xpose.msra.mxu0 0.0
    %3428 = vmatprep.subr.mxu0 0.0
    %3429 = vmatpush1.xpose.msra.mxu0 0.0
    %3430 = vmatprep.subr.mxu0 0.0
    %3431 = vmatpush1.xpose.msra.mxu0 0.0
    %3432 = vmatprep.subr.mxu0 0.0
    %3433 = vmatpush1.xpose.msra.mxu0 0.0
    %3434 = vmatprep.subr.mxu0 0.0
    %3435 = vmatpush1.xpose.msra.mxu0 0.0
    %3436 = vmatprep.subr.mxu0 0.0
    %3437 = vmatpush1.xpose.msra.mxu0 0.0
    %3438 = vmatprep.subr.mxu0 0.0
    %3439 = vmatpush1.xpose.msra.mxu0 0.0
    %3440 = vmatprep.subr.mxu0 0.0
    %3441 = vmatpush1.xpose.msra.mxu0 0.0
    %3442 = vmatprep.subr.mxu0 0.0
    %3443 = vmatpush1.xpose.msra.mxu0 0.0
    %3444 = vmatprep.subr.mxu0 0.0
    %3445 = vmatpush1.xpose.msra.mxu0 0.0
    %3446 = vmatprep.subr.mxu0 0.0
    %3447 = vmatpush1.xpose.msra.mxu0 %v3414
    %3448 = vmatprep.subr.mxu0 0.0
    %3449 = vmatpush2.xpose.msra.mxu0 0.0
    %3450 = vmatprep.subr.mxu0 0.0
    %3451 = vmatpush2.xpose.msra.mxu0 0.0
    %3452 = vmatprep.subr.mxu0 0.0
    %3453 = vmatpush2.xpose.msra.mxu0 0.0
    %3454 = vmatprep.subr.mxu0 0.0
    %3455 = vmatpush2.xpose.msra.mxu0 0.0
    %3456 = vmatprep.subr.mxu0 0.0
    %3457 = vmatpush2.xpose.msra.mxu0 0.0
    %3458 = vmatprep.subr.mxu0 0.0
    %3459 = vmatpush2.xpose.msra.mxu0 0.0
    %3460 = vmatprep.subr.mxu0 0.0
    %3461 = vmatpush2.xpose.msra.mxu0 0.0
    %3462 = vmatprep.subr.mxu0 0.0
    %3463 = vmatpush2.xpose.msra.mxu0 0.0
    %3464 = vmatprep.subr.mxu0 0.0
    %3465 = vmatpush2.xpose.msra.mxu0 0.0
    %3466 = vmatprep.subr.mxu0 0.0
    %3467 = vmatpush2.xpose.msra.mxu0 0.0
    %3468 = vmatprep.subr.mxu0 0.0
    %3469 = vmatpush2.xpose.msra.mxu0 0.0
    %3470 = vmatprep.subr.mxu0 0.0
    %3471 = vmatpush2.xpose.msra.mxu0 0.0
    %3472 = vmatprep.subr.mxu0 0.0
    %3473 = vmatpush2.xpose.msra.mxu0 0.0
    %3474 = vmatprep.subr.mxu0 0.0
    %3475 = vmatpush2.xpose.msra.mxu0 0.0
    %3476 = vmatprep.subr.mxu0 0.0
    %3477 = vmatpush2.xpose.msra.mxu0 0.0
    %3478 = vmatprep.subr.mxu0 0.0
    %3479 = vmatpush2.xpose.msra.mxu0 0.0
    %3480 = vmatprep.mubr.f32.mxu0 0.0
    %3481 = vmatmul.mubr.f32.gmra.mxu0 %v3411
    %v3482 = vpop.f32.mrf.mxu0
    %v3483 = vadd.f32 0.0, %v3482
    %v3484 = vpop.f32.mrf.mxu0
    %3485 = vdwg.mxu0
    %v3486 = vsel %vm1415, %v3483, -inf
    %3487 = vmax.xlane.f32.xlu0 %v3486
    %v3488 = vpop.xlane.xlu0 %3487
    %v3489 = vsub.f32 %v3483, %v3488
    %v3490 = vmul.f32 %v3489, 1.442695
    %v3491 = vpow.pop %v3490
    %v3492 = vsel %vm1415, %v3491, 0.0
    %3493 = vadd.xlane.f32.xlu0 %v3492
    %v3494 = vpop.xlane.xlu0 %3493
    %v3495 = vrcp.pop %v3494
    %v3496 = vmul.f32 %v3491, %v3495
    %v3498 = vsel %vm1427, %v3496, 0
    %v3501 = vsel %vm1431, %v3401, 0
    %3503 = vmatprep.subr.mxu0 0.0
    %3504 = vmatpush1.msra.mxu0 0.0
    %3505 = vmatprep.subr.mxu0 0.0
    %3506 = vmatpush1.msra.mxu0 0.0
    %3507 = vmatprep.subr.mxu0 0.0
    %3508 = vmatpush1.msra.mxu0 0.0
    %3509 = vmatprep.subr.mxu0 0.0
    %3510 = vmatpush1.msra.mxu0 0.0
    %3511 = vmatprep.subr.mxu0 0.0
    %3512 = vmatpush1.msra.mxu0 0.0
    %3513 = vmatprep.subr.mxu0 0.0
    %3514 = vmatpush1.msra.mxu0 0.0
    %3515 = vmatprep.subr.mxu0 0.0
    %3516 = vmatpush1.msra.mxu0 0.0
    %3517 = vmatprep.subr.mxu0 0.0
    %3518 = vmatpush1.msra.mxu0 0.0
    %3519 = vmatprep.subr.mxu0 0.0
    %3520 = vmatpush1.msra.mxu0 0.0
    %3521 = vmatprep.subr.mxu0 0.0
    %3522 = vmatpush1.msra.mxu0 0.0
    %3523 = vmatprep.subr.mxu0 0.0
    %3524 = vmatpush1.msra.mxu0 0.0
    %3525 = vmatprep.subr.mxu0 0.0
    %3526 = vmatpush1.msra.mxu0 0.0
    %3527 = vmatprep.subr.mxu0 0.0
    %3528 = vmatpush1.msra.mxu0 0.0
    %3529 = vmatprep.subr.mxu0 0.0
    %3530 = vmatpush1.msra.mxu0 0.0
    %3531 = vmatprep.subr.mxu0 0.0
    %3532 = vmatpush1.msra.mxu0 0.0
    %3533 = vmatprep.subr.mxu0 0.0
    %3534 = vmatpush1.msra.mxu0 %v3501
    %3535 = vmatprep.subr.mxu0 0.0
    %3536 = vmatpush2.msra.mxu0 0.0
    %3537 = vmatprep.subr.mxu0 0.0
    %3538 = vmatpush2.msra.mxu0 0.0
    %3539 = vmatprep.subr.mxu0 0.0
    %3540 = vmatpush2.msra.mxu0 0.0
    %3541 = vmatprep.subr.mxu0 0.0
    %3542 = vmatpush2.msra.mxu0 0.0
    %3543 = vmatprep.subr.mxu0 0.0
    %3544 = vmatpush2.msra.mxu0 0.0
    %3545 = vmatprep.subr.mxu0 0.0
    %3546 = vmatpush2.msra.mxu0 0.0
    %3547 = vmatprep.subr.mxu0 0.0
    %3548 = vmatpush2.msra.mxu0 0.0
    %3549 = vmatprep.subr.mxu0 0.0
    %3550 = vmatpush2.msra.mxu0 0.0
    %3551 = vmatprep.subr.mxu0 0.0
    %3552 = vmatpush2.msra.mxu0 0.0
    %3553 = vmatprep.subr.mxu0 0.0
    %3554 = vmatpush2.msra.mxu0 0.0
    %3555 = vmatprep.subr.mxu0 0.0
    %3556 = vmatpush2.msra.mxu0 0.0
    %3557 = vmatprep.subr.mxu0 0.0
    %3558 = vmatpush2.msra.mxu0 0.0
    %3559 = vmatprep.subr.mxu0 0.0
    %3560 = vmatpush2.msra.mxu0 0.0
    %3561 = vmatprep.subr.mxu0 0.0
    %3562 = vmatpush2.msra.mxu0 0.0
    %3563 = vmatprep.subr.mxu0 0.0
    %3564 = vmatpush2.msra.mxu0 0.0
    %3565 = vmatprep.subr.mxu0 0.0
    %3566 = vmatpush2.msra.mxu0 0.0
    %3567 = vmatprep.mubr.f32.mxu0 0.0
    %3568 = vmatmul.mubr.f32.gmra.mxu0 %v3498
    %v3569 = vpop.f32.mrf.mxu0
    %v3570 = vadd.f32 0.0, %v3569
    %v3571 = vpop.f32.mrf.mxu0
    %3572 = vdwg.mxu0
    %3573 = vrot.lane.b32.xlu0 %v3409, 120
    %v3574 = vpop.permute.xlu0 %3573
    %3575 = vrot.lane.b32.xlu0 %v3315, 120
    %v3576 = vpop.permute.xlu0 %3575
    %v3577 = vsel %vm1338, %v3574, 0
    %v3579 = vsel %vm1338, %v3576, 0
    %3581 = vmatprep.subr.mxu0 0.0
    %3582 = vmatpush1.xpose.msra.mxu0 0.0
    %3583 = vmatprep.subr.mxu0 0.0
    %3584 = vmatpush1.xpose.msra.mxu0 0.0
    %3585 = vmatprep.subr.mxu0 0.0
    %3586 = vmatpush1.xpose.msra.mxu0 0.0
    %3587 = vmatprep.subr.mxu0 0.0
    %3588 = vmatpush1.xpose.msra.mxu0 0.0
    %3589 = vmatprep.subr.mxu0 0.0
    %3590 = vmatpush1.xpose.msra.mxu0 0.0
    %3591 = vmatprep.subr.mxu0 0.0
    %3592 = vmatpush1.xpose.msra.mxu0 0.0
    %3593 = vmatprep.subr.mxu0 0.0
    %3594 = vmatpush1.xpose.msra.mxu0 0.0
    %3595 = vmatprep.subr.mxu0 0.0
    %3596 = vmatpush1.xpose.msra.mxu0 0.0
    %3597 = vmatprep.subr.mxu0 0.0
    %3598 = vmatpush1.xpose.msra.mxu0 0.0
    %3599 = vmatprep.subr.mxu0 0.0
    %3600 = vmatpush1.xpose.msra.mxu0 0.0
    %3601 = vmatprep.subr.mxu0 0.0
    %3602 = vmatpush1.xpose.msra.mxu0 0.0
    %3603 = vmatprep.subr.mxu0 0.0
    %3604 = vmatpush1.xpose.msra.mxu0 0.0
    %3605 = vmatprep.subr.mxu0 0.0
    %3606 = vmatpush1.xpose.msra.mxu0 0.0
    %3607 = vmatprep.subr.mxu0 0.0
    %3608 = vmatpush1.xpose.msra.mxu0 0.0
    %3609 = vmatprep.subr.mxu0 0.0
    %3610 = vmatpush1.xpose.msra.mxu0 0.0
    %3611 = vmatprep.subr.mxu0 0.0
    %3612 = vmatpush1.xpose.msra.mxu0 %v3579
    %3613 = vmatprep.subr.mxu0 0.0
    %3614 = vmatpush2.xpose.msra.mxu0 0.0
    %3615 = vmatprep.subr.mxu0 0.0
    %3616 = vmatpush2.xpose.msra.mxu0 0.0
    %3617 = vmatprep.subr.mxu0 0.0
    %3618 = vmatpush2.xpose.msra.mxu0 0.0
    %3619 = vmatprep.subr.mxu0 0.0
    %3620 = vmatpush2.xpose.msra.mxu0 0.0
    %3621 = vmatprep.subr.mxu0 0.0
    %3622 = vmatpush2.xpose.msra.mxu0 0.0
    %3623 = vmatprep.subr.mxu0 0.0
    %3624 = vmatpush2.xpose.msra.mxu0 0.0
    %3625 = vmatprep.subr.mxu0 0.0
    %3626 = vmatpush2.xpose.msra.mxu0 0.0
    %3627 = vmatprep.subr.mxu0 0.0
    %3628 = vmatpush2.xpose.msra.mxu0 0.0
    %3629 = vmatprep.subr.mxu0 0.0
    %3630 = vmatpush2.xpose.msra.mxu0 0.0
    %3631 = vmatprep.subr.mxu0 0.0
    %3632 = vmatpush2.xpose.msra.mxu0 0.0
    %3633 = vmatprep.subr.mxu0 0.0
    %3634 = vmatpush2.xpose.msra.mxu0 0.0
    %3635 = vmatprep.subr.mxu0 0.0
    %3636 = vmatpush2.xpose.msra.mxu0 0.0
    %3637 = vmatprep.subr.mxu0 0.0
    %3638 = vmatpush2.xpose.msra.mxu0 0.0
    %3639 = vmatprep.subr.mxu0 0.0
    %3640 = vmatpush2.xpose.msra.mxu0 0.0
    %3641 = vmatprep.subr.mxu0 0.0
    %3642 = vmatpush2.xpose.msra.mxu0 0.0
    %3643 = vmatprep.subr.mxu0 0.0
    %3644 = vmatpush2.xpose.msra.mxu0 0.0
    %3645 = vmatprep.mubr.f32.mxu0 0.0
    %3646 = vmatmul.mubr.f32.gmra.mxu0 %v3577
    %v3647 = vpop.f32.mrf.mxu0
    %v3648 = vadd.f32 0.0, %v3647
    %v3649 = vpop.f32.mrf.mxu0
    %3650 = vdwg.mxu0
    %v3651 = vsel %vm1415, %v3648, -inf
    %3652 = vmax.xlane.f32.xlu0 %v3651
    %v3653 = vpop.xlane.xlu0 %3652
    %v3654 = vsub.f32 %v3648, %v3653
    %v3655 = vmul.f32 %v3654, 1.442695
    %v3656 = vpow.pop %v3655
    %v3657 = vsel %vm1415, %v3656, 0.0
    %3658 = vadd.xlane.f32.xlu0 %v3657
    %v3659 = vpop.xlane.xlu0 %3658
    %v3660 = vrcp.pop %v3659
    %v3661 = vmul.f32 %v3656, %v3660
    %3662 = vrot.lane.b32.xlu0 %v3401, 120
    %v3663 = vpop.permute.xlu0 %3662
    %v3665 = vsel %vm1427, %v3661, 0
    %v3667 = vsel %vm1431, %v3663, 0
    %3669 = vmatprep.subr.mxu0 0.0
    %3670 = vmatpush1.msra.mxu0 0.0
    %3671 = vmatprep.subr.mxu0 0.0
    %3672 = vmatpush1.msra.mxu0 0.0
    %3673 = vmatprep.subr.mxu0 0.0
    %3674 = vmatpush1.msra.mxu0 0.0
    %3675 = vmatprep.subr.mxu0 0.0
    %3676 = vmatpush1.msra.mxu0 0.0
    %3677 = vmatprep.subr.mxu0 0.0
    %3678 = vmatpush1.msra.mxu0 0.0
    %3679 = vmatprep.subr.mxu0 0.0
    %3680 = vmatpush1.msra.mxu0 0.0
    %3681 = vmatprep.subr.mxu0 0.0
    %3682 = vmatpush1.msra.mxu0 0.0
    %3683 = vmatprep.subr.mxu0 0.0
    %3684 = vmatpush1.msra.mxu0 0.0
    %3685 = vmatprep.subr.mxu0 0.0
    %3686 = vmatpush1.msra.mxu0 0.0
    %3687 = vmatprep.subr.mxu0 0.0
    %3688 = vmatpush1.msra.mxu0 0.0
    %3689 = vmatprep.subr.mxu0 0.0
    %3690 = vmatpush1.msra.mxu0 0.0
    %3691 = vmatprep.subr.mxu0 0.0
    %3692 = vmatpush1.msra.mxu0 0.0
    %3693 = vmatprep.subr.mxu0 0.0
    %3694 = vmatpush1.msra.mxu0 0.0
    %3695 = vmatprep.subr.mxu0 0.0
    %3696 = vmatpush1.msra.mxu0 0.0
    %3697 = vmatprep.subr.mxu0 0.0
    %3698 = vmatpush1.msra.mxu0 0.0
    %3699 = vmatprep.subr.mxu0 0.0
    %3700 = vmatpush1.msra.mxu0 %v3667
    %3701 = vmatprep.subr.mxu0 0.0
    %3702 = vmatpush2.msra.mxu0 0.0
    %3703 = vmatprep.subr.mxu0 0.0
    %3704 = vmatpush2.msra.mxu0 0.0
    %3705 = vmatprep.subr.mxu0 0.0
    %3706 = vmatpush2.msra.mxu0 0.0
    %3707 = vmatprep.subr.mxu0 0.0
    %3708 = vmatpush2.msra.mxu0 0.0
    %3709 = vmatprep.subr.mxu0 0.0
    %3710 = vmatpush2.msra.mxu0 0.0
    %3711 = vmatprep.subr.mxu0 0.0
    %3712 = vmatpush2.msra.mxu0 0.0
    %3713 = vmatprep.subr.mxu0 0.0
    %3714 = vmatpush2.msra.mxu0 0.0
    %3715 = vmatprep.subr.mxu0 0.0
    %3716 = vmatpush2.msra.mxu0 0.0
    %3717 = vmatprep.subr.mxu0 0.0
    %3718 = vmatpush2.msra.mxu0 0.0
    %3719 = vmatprep.subr.mxu0 0.0
    %3720 = vmatpush2.msra.mxu0 0.0
    %3721 = vmatprep.subr.mxu0 0.0
    %3722 = vmatpush2.msra.mxu0 0.0
    %3723 = vmatprep.subr.mxu0 0.0
    %3724 = vmatpush2.msra.mxu0 0.0
    %3725 = vmatprep.subr.mxu0 0.0
    %3726 = vmatpush2.msra.mxu0 0.0
    %3727 = vmatprep.subr.mxu0 0.0
    %3728 = vmatpush2.msra.mxu0 0.0
    %3729 = vmatprep.subr.mxu0 0.0
    %3730 = vmatpush2.msra.mxu0 0.0
    %3731 = vmatprep.subr.mxu0 0.0
    %3732 = vmatpush2.msra.mxu0 0.0
    %3733 = vmatprep.mubr.f32.mxu0 0.0
    %3734 = vmatmul.mubr.f32.gmra.mxu0 %v3665
    %v3735 = vpop.f32.mrf.mxu0
    %v3736 = vadd.f32 0.0, %v3735
    %v3737 = vpop.f32.mrf.mxu0
    %3738 = vdwg.mxu0
    %v3740 = vsel %vm1338, %v3736, 0
    %3742 = vmatprep.subr.mxu0 0.0
    %3743 = vmatpush1.msra.mxu0 0.0
    %3744 = vmatprep.subr.mxu0 0.0
    %3745 = vmatpush1.msra.mxu0 0.0
    %3746 = vmatprep.subr.mxu0 0.0
    %3747 = vmatpush1.msra.mxu0 0.0
    %3748 = vmatprep.subr.mxu0 0.0
    %3749 = vmatpush1.msra.mxu0 0.0
    %3750 = vmatprep.subr.mxu0 0.0
    %3751 = vmatpush1.msra.mxu0 0.0
    %3752 = vmatprep.subr.mxu0 0.0
    %3753 = vmatpush1.msra.mxu0 0.0
    %3754 = vmatprep.subr.mxu0 0.0
    %3755 = vmatpush1.msra.mxu0 0.0
    %3756 = vmatprep.subr.mxu0 0.0
    %3757 = vmatpush1.msra.mxu0 0.0
    %3758 = vmatprep.subr.mxu0 0.0
    %3759 = vmatpush1.msra.mxu0 0.0
    %3760 = vmatprep.subr.mxu0 0.0
    %3761 = vmatpush1.msra.mxu0 0.0
    %3762 = vmatprep.subr.mxu0 0.0
    %3763 = vmatpush1.msra.mxu0 0.0
    %3764 = vmatprep.subr.mxu0 0.0
    %3765 = vmatpush1.msra.mxu0 0.0
    %3766 = vmatprep.subr.mxu0 0.0
    %3767 = vmatpush1.msra.mxu0 0.0
    %3768 = vmatprep.subr.mxu0 0.0
    %3769 = vmatpush1.msra.mxu0 0.0
    %3770 = vmatprep.subr.mxu0 0.0
    %3771 = vmatpush1.msra.mxu0 0.0
    %3772 = vmatprep.subr.mxu0 0.0
    %3773 = vmatpush1.msra.mxu0 %v3406
    %3774 = vmatprep.subr.mxu0 0.0
    %3775 = vmatpush2.msra.mxu0 0.0
    %3776 = vmatprep.subr.mxu0 0.0
    %3777 = vmatpush2.msra.mxu0 0.0
    %3778 = vmatprep.subr.mxu0 0.0
    %3779 = vmatpush2.msra.mxu0 0.0
    %3780 = vmatprep.subr.mxu0 0.0
    %3781 = vmatpush2.msra.mxu0 0.0
    %3782 = vmatprep.subr.mxu0 0.0
    %3783 = vmatpush2.msra.mxu0 0.0
    %3784 = vmatprep.subr.mxu0 0.0
    %3785 = vmatpush2.msra.mxu0 0.0
    %3786 = vmatprep.subr.mxu0 0.0
    %3787 = vmatpush2.msra.mxu0 0.0
    %3788 = vmatprep.subr.mxu0 0.0
    %3789 = vmatpush2.msra.mxu0 0.0
    %3790 = vmatprep.subr.mxu0 0.0
    %3791 = vmatpush2.msra.mxu0 0.0
    %3792 = vmatprep.subr.mxu0 0.0
    %3793 = vmatpush2.msra.mxu0 0.0
    %3794 = vmatprep.subr.mxu0 0.0
    %3795 = vmatpush2.msra.mxu0 0.0
    %3796 = vmatprep.subr.mxu0 0.0
    %3797 = vmatpush2.msra.mxu0 0.0
    %3798 = vmatprep.subr.mxu0 0.0
    %3799 = vmatpush2.msra.mxu0 0.0
    %3800 = vmatprep.subr.mxu0 0.0
    %3801 = vmatpush2.msra.mxu0 0.0
    %3802 = vmatprep.subr.mxu0 0.0
    %3803 = vmatpush2.msra.mxu0 0.0
    %3804 = vmatprep.subr.mxu0 0.0
    %3805 = vmatpush2.msra.mxu0 0.0
    %3806 = vmatprep.mubr.f32.mxu0 0.0
    %3807 = vmatmul.mubr.f32.gmra.mxu0 %v3740
    %v3808 = vpop.f32.mrf.mxu0
    %v3809 = vadd.f32 0.0, %v3808
    %v3810 = vpop.f32.mrf.mxu0
    %3811 = vdwg.mxu0
    %v3813 = vsel %vm1338, %v3570, 0
    %3815 = vmatprep.subr.mxu0 0.0
    %3816 = vmatpush1.msra.mxu0 0.0
    %3817 = vmatprep.subr.mxu0 0.0
    %3818 = vmatpush1.msra.mxu0 0.0
    %3819 = vmatprep.subr.mxu0 0.0
    %3820 = vmatpush1.msra.mxu0 0.0
    %3821 = vmatprep.subr.mxu0 0.0
    %3822 = vmatpush1.msra.mxu0 0.0
    %3823 = vmatprep.subr.mxu0 0.0
    %3824 = vmatpush1.msra.mxu0 0.0
    %3825 = vmatprep.subr.mxu0 0.0
    %3826 = vmatpush1.msra.mxu0 0.0
    %3827 = vmatprep.subr.mxu0 0.0
    %3828 = vmatpush1.msra.mxu0 0.0
    %3829 = vmatprep.subr.mxu0 0.0
    %3830 = vmatpush1.msra.mxu0 0.0
    %3831 = vmatprep.subr.mxu0 0.0
    %3832 = vmatpush1.msra.mxu0 0.0
    %3833 = vmatprep.subr.mxu0 0.0
    %3834 = vmatpush1.msra.mxu0 0.0
    %3835 = vmatprep.subr.mxu0 0.0
    %3836 = vmatpush1.msra.mxu0 0.0
    %3837 = vmatprep.subr.mxu0 0.0
    %3838 = vmatpush1.msra.mxu0 0.0
    %3839 = vmatprep.subr.mxu0 0.0
    %3840 = vmatpush1.msra.mxu0 0.0
    %3841 = vmatprep.subr.mxu0 0.0
    %3842 = vmatpush1.msra.mxu0 0.0
    %3843 = vmatprep.subr.mxu0 0.0
    %3844 = vmatpush1.msra.mxu0 0.0
    %3845 = vmatprep.subr.mxu0 0.0
    %3846 = vmatpush1.msra.mxu0 %v3405
    %3847 = vmatprep.subr.mxu0 0.0
    %3848 = vmatpush2.msra.mxu0 0.0
    %3849 = vmatprep.subr.mxu0 0.0
    %3850 = vmatpush2.msra.mxu0 0.0
    %3851 = vmatprep.subr.mxu0 0.0
    %3852 = vmatpush2.msra.mxu0 0.0
    %3853 = vmatprep.subr.mxu0 0.0
    %3854 = vmatpush2.msra.mxu0 0.0
    %3855 = vmatprep.subr.mxu0 0.0
    %3856 = vmatpush2.msra.mxu0 0.0
    %3857 = vmatprep.subr.mxu0 0.0
    %3858 = vmatpush2.msra.mxu0 0.0
    %3859 = vmatprep.subr.mxu0 0.0
    %3860 = vmatpush2.msra.mxu0 0.0
    %3861 = vmatprep.subr.mxu0 0.0
    %3862 = vmatpush2.msra.mxu0 0.0
    %3863 = vmatprep.subr.mxu0 0.0
    %3864 = vmatpush2.msra.mxu0 0.0
    %3865 = vmatprep.subr.mxu0 0.0
    %3866 = vmatpush2.msra.mxu0 0.0
    %3867 = vmatprep.subr.mxu0 0.0
    %3868 = vmatpush2.msra.mxu0 0.0
    %3869 = vmatprep.subr.mxu0 0.0
    %3870 = vmatpush2.msra.mxu0 0.0
    %3871 = vmatprep.subr.mxu0 0.0
    %3872 = vmatpush2.msra.mxu0 0.0
    %3873 = vmatprep.subr.mxu0 0.0
    %3874 = vmatpush2.msra.mxu0 0.0
    %3875 = vmatprep.subr.mxu0 0.0
    %3876 = vmatpush2.msra.mxu0 0.0
    %3877 = vmatprep.subr.mxu0 0.0
    %3878 = vmatpush2.msra.mxu0 0.0
    %3879 = vmatprep.mubr.f32.mxu0 0.0
    %3880 = vmatmul.mubr.f32.gmra.mxu0 %v3813
    %v3881 = vpop.f32.mrf.mxu0
    %v3882 = vadd.f32 %v3809, %v3881
    %v3883 = vpop.f32.mrf.mxu0
    %3884 = vdwg.mxu0
    %3885 = vrot.lane.b32.xlu0 %v3409, 112
    %v3886 = vpop.permute.xlu0 %3885
    %3887 = vrot.lane.b32.xlu0 %v3315, 112
    %v3888 = vpop.permute.xlu0 %3887
    %v3889 = vsel %vm1338, %v3886, 0
    %v3891 = vsel %vm1338, %v3888, 0
    %3893 = vmatprep.subr.mxu0 0.0
    %3894 = vmatpush1.xpose.msra.mxu0 0.0
    %3895 = vmatprep.subr.mxu0 0.0
    %3896 = vmatpush1.xpose.msra.mxu0 0.0
    %3897 = vmatprep.subr.mxu0 0.0
    %3898 = vmatpush1.xpose.msra.mxu0 0.0
    %3899 = vmatprep.subr.mxu0 0.0
    %3900 = vmatpush1.xpose.msra.mxu0 0.0
    %3901 = vmatprep.subr.mxu0 0.0
    %3902 = vmatpush1.xpose.msra.mxu0 0.0
    %3903 = vmatprep.subr.mxu0 0.0
    %3904 = vmatpush1.xpose.msra.mxu0 0.0
    %3905 = vmatprep.subr.mxu0 0.0
    %3906 = vmatpush1.xpose.msra.mxu0 0.0
    %3907 = vmatprep.subr.mxu0 0.0
    %3908 = vmatpush1.xpose.msra.mxu0 0.0
    %3909 = vmatprep.subr.mxu0 0.0
    %3910 = vmatpush1.xpose.msra.mxu0 0.0
    %3911 = vmatprep.subr.mxu0 0.0
    %3912 = vmatpush1.xpose.msra.mxu0 0.0
    %3913 = vmatprep.subr.mxu0 0.0
    %3914 = vmatpush1.xpose.msra.mxu0 0.0
    %3915 = vmatprep.subr.mxu0 0.0
    %3916 = vmatpush1.xpose.msra.mxu0 0.0
    %3917 = vmatprep.subr.mxu0 0.0
    %3918 = vmatpush1.xpose.msra.mxu0 0.0
    %3919 = vmatprep.subr.mxu0 0.0
    %3920 = vmatpush1.xpose.msra.mxu0 0.0
    %3921 = vmatprep.subr.mxu0 0.0
    %3922 = vmatpush1.xpose.msra.mxu0 0.0
    %3923 = vmatprep.subr.mxu0 0.0
    %3924 = vmatpush1.xpose.msra.mxu0 %v3891
    %3925 = vmatprep.subr.mxu0 0.0
    %3926 = vmatpush2.xpose.msra.mxu0 0.0
    %3927 = vmatprep.subr.mxu0 0.0
    %3928 = vmatpush2.xpose.msra.mxu0 0.0
    %3929 = vmatprep.subr.mxu0 0.0
    %3930 = vmatpush2.xpose.msra.mxu0 0.0
    %3931 = vmatprep.subr.mxu0 0.0
    %3932 = vmatpush2.xpose.msra.mxu0 0.0
    %3933 = vmatprep.subr.mxu0 0.0
    %3934 = vmatpush2.xpose.msra.mxu0 0.0
    %3935 = vmatprep.subr.mxu0 0.0
    %3936 = vmatpush2.xpose.msra.mxu0 0.0
    %3937 = vmatprep.subr.mxu0 0.0
    %3938 = vmatpush2.xpose.msra.mxu0 0.0
    %3939 = vmatprep.subr.mxu0 0.0
    %3940 = vmatpush2.xpose.msra.mxu0 0.0
    %3941 = vmatprep.subr.mxu0 0.0
    %3942 = vmatpush2.xpose.msra.mxu0 0.0
    %3943 = vmatprep.subr.mxu0 0.0
    %3944 = vmatpush2.xpose.msra.mxu0 0.0
    %3945 = vmatprep.subr.mxu0 0.0
    %3946 = vmatpush2.xpose.msra.mxu0 0.0
    %3947 = vmatprep.subr.mxu0 0.0
    %3948 = vmatpush2.xpose.msra.mxu0 0.0
    %3949 = vmatprep.subr.mxu0 0.0
    %3950 = vmatpush2.xpose.msra.mxu0 0.0
    %3951 = vmatprep.subr.mxu0 0.0
    %3952 = vmatpush2.xpose.msra.mxu0 0.0
    %3953 = vmatprep.subr.mxu0 0.0
    %3954 = vmatpush2.xpose.msra.mxu0 0.0
    %3955 = vmatprep.subr.mxu0 0.0
    %3956 = vmatpush2.xpose.msra.mxu0 0.0
    %3957 = vmatprep.mubr.f32.mxu0 0.0
    %3958 = vmatmul.mubr.f32.gmra.mxu0 %v3889
    %v3959 = vpop.f32.mrf.mxu0
    %v3960 = vadd.f32 0.0, %v3959
    %v3961 = vpop.f32.mrf.mxu0
    %3962 = vdwg.mxu0
    %v3963 = vsel %vm1415, %v3960, -inf
    %3964 = vmax.xlane.f32.xlu0 %v3963
    %v3965 = vpop.xlane.xlu0 %3964
    %v3966 = vsub.f32 %v3960, %v3965
    %v3967 = vmul.f32 %v3966, 1.442695
    %v3968 = vpow.pop %v3967
    %v3969 = vsel %vm1415, %v3968, 0.0
    %3970 = vadd.xlane.f32.xlu0 %v3969
    %v3971 = vpop.xlane.xlu0 %3970
    %v3972 = vrcp.pop %v3971
    %v3973 = vmul.f32 %v3968, %v3972
    %3974 = vrot.lane.b32.xlu0 %v3401, 112
    %v3975 = vpop.permute.xlu0 %3974
    %v3977 = vsel %vm1427, %v3973, 0
    %v3979 = vsel %vm1431, %v3975, 0
    %3981 = vmatprep.subr.mxu0 0.0
    %3982 = vmatpush1.msra.mxu0 0.0
    %3983 = vmatprep.subr.mxu0 0.0
    %3984 = vmatpush1.msra.mxu0 0.0
    %3985 = vmatprep.subr.mxu0 0.0
    %3986 = vmatpush1.msra.mxu0 0.0
    %3987 = vmatprep.subr.mxu0 0.0
    %3988 = vmatpush1.msra.mxu0 0.0
    %3989 = vmatprep.subr.mxu0 0.0
    %3990 = vmatpush1.msra.mxu0 0.0
    %3991 = vmatprep.subr.mxu0 0.0
    %3992 = vmatpush1.msra.mxu0 0.0
    %3993 = vmatprep.subr.mxu0 0.0
    %3994 = vmatpush1.msra.mxu0 0.0
    %3995 = vmatprep.subr.mxu0 0.0
    %3996 = vmatpush1.msra.mxu0 0.0
    %3997 = vmatprep.subr.mxu0 0.0
    %3998 = vmatpush1.msra.mxu0 0.0
    %3999 = vmatprep.subr.mxu0 0.0
    %4000 = vmatpush1.msra.mxu0 0.0
    %4001 = vmatprep.subr.mxu0 0.0
    %4002 = vmatpush1.msra.mxu0 0.0
    %4003 = vmatprep.subr.mxu0 0.0
    %4004 = vmatpush1.msra.mxu0 0.0
    %4005 = vmatprep.subr.mxu0 0.0
    %4006 = vmatpush1.msra.mxu0 0.0
    %4007 = vmatprep.subr.mxu0 0.0
    %4008 = vmatpush1.msra.mxu0 0.0
    %4009 = vmatprep.subr.mxu0 0.0
    %4010 = vmatpush1.msra.mxu0 0.0
    %4011 = vmatprep.subr.mxu0 0.0
    %4012 = vmatpush1.msra.mxu0 %v3979
    %4013 = vmatprep.subr.mxu0 0.0
    %4014 = vmatpush2.msra.mxu0 0.0
    %4015 = vmatprep.subr.mxu0 0.0
    %4016 = vmatpush2.msra.mxu0 0.0
    %4017 = vmatprep.subr.mxu0 0.0
    %4018 = vmatpush2.msra.mxu0 0.0
    %4019 = vmatprep.subr.mxu0 0.0
    %4020 = vmatpush2.msra.mxu0 0.0
    %4021 = vmatprep.subr.mxu0 0.0
    %4022 = vmatpush2.msra.mxu0 0.0
    %4023 = vmatprep.subr.mxu0 0.0
    %4024 = vmatpush2.msra.mxu0 0.0
    %4025 = vmatprep.subr.mxu0 0.0
    %4026 = vmatpush2.msra.mxu0 0.0
    %4027 = vmatprep.subr.mxu0 0.0
    %4028 = vmatpush2.msra.mxu0 0.0
    %4029 = vmatprep.subr.mxu0 0.0
    %4030 = vmatpush2.msra.mxu0 0.0
    %4031 = vmatprep.subr.mxu0 0.0
    %4032 = vmatpush2.msra.mxu0 0.0
    %4033 = vmatprep.subr.mxu0 0.0
    %4034 = vmatpush2.msra.mxu0 0.0
    %4035 = vmatprep.subr.mxu0 0.0
    %4036 = vmatpush2.msra.mxu0 0.0
    %4037 = vmatprep.subr.mxu0 0.0
    %4038 = vmatpush2.msra.mxu0 0.0
    %4039 = vmatprep.subr.mxu0 0.0
    %4040 = vmatpush2.msra.mxu0 0.0
    %4041 = vmatprep.subr.mxu0 0.0
    %4042 = vmatpush2.msra.mxu0 0.0
    %4043 = vmatprep.subr.mxu0 0.0
    %4044 = vmatpush2.msra.mxu0 0.0
    %4045 = vmatprep.mubr.f32.mxu0 0.0
    %4046 = vmatmul.mubr.f32.gmra.mxu0 %v3977
    %v4047 = vpop.f32.mrf.mxu0
    %v4048 = vadd.f32 0.0, %v4047
    %v4049 = vpop.f32.mrf.mxu0
    %4050 = vdwg.mxu0
    %v4052 = vsel %vm1338, %v4048, 0
    %4054 = vmatprep.subr.mxu0 0.0
    %4055 = vmatpush1.msra.mxu0 0.0
    %4056 = vmatprep.subr.mxu0 0.0
    %4057 = vmatpush1.msra.mxu0 0.0
    %4058 = vmatprep.subr.mxu0 0.0
    %4059 = vmatpush1.msra.mxu0 0.0
    %4060 = vmatprep.subr.mxu0 0.0
    %4061 = vmatpush1.msra.mxu0 0.0
    %4062 = vmatprep.subr.mxu0 0.0
    %4063 = vmatpush1.msra.mxu0 0.0
    %4064 = vmatprep.subr.mxu0 0.0
    %4065 = vmatpush1.msra.mxu0 0.0
    %4066 = vmatprep.subr.mxu0 0.0
    %4067 = vmatpush1.msra.mxu0 0.0
    %4068 = vmatprep.subr.mxu0 0.0
    %4069 = vmatpush1.msra.mxu0 0.0
    %4070 = vmatprep.subr.mxu0 0.0
    %4071 = vmatpush1.msra.mxu0 0.0
    %4072 = vmatprep.subr.mxu0 0.0
    %4073 = vmatpush1.msra.mxu0 0.0
    %4074 = vmatprep.subr.mxu0 0.0
    %4075 = vmatpush1.msra.mxu0 0.0
    %4076 = vmatprep.subr.mxu0 0.0
    %4077 = vmatpush1.msra.mxu0 0.0
    %4078 = vmatprep.subr.mxu0 0.0
    %4079 = vmatpush1.msra.mxu0 0.0
    %4080 = vmatprep.subr.mxu0 0.0
    %4081 = vmatpush1.msra.mxu0 0.0
    %4082 = vmatprep.subr.mxu0 0.0
    %4083 = vmatpush1.msra.mxu0 0.0
    %4084 = vmatprep.subr.mxu0 0.0
    %4085 = vmatpush1.msra.mxu0 %v3407
    %4086 = vmatprep.subr.mxu0 0.0
    %4087 = vmatpush2.msra.mxu0 0.0
    %4088 = vmatprep.subr.mxu0 0.0
    %4089 = vmatpush2.msra.mxu0 0.0
    %4090 = vmatprep.subr.mxu0 0.0
    %4091 = vmatpush2.msra.mxu0 0.0
    %4092 = vmatprep.subr.mxu0 0.0
    %4093 = vmatpush2.msra.mxu0 0.0
    %4094 = vmatprep.subr.mxu0 0.0
    %4095 = vmatpush2.msra.mxu0 0.0
    %4096 = vmatprep.subr.mxu0 0.0
    %4097 = vmatpush2.msra.mxu0 0.0
    %4098 = vmatprep.subr.mxu0 0.0
    %4099 = vmatpush2.msra.mxu0 0.0
    %4100 = vmatprep.subr.mxu0 0.0
    %4101 = vmatpush2.msra.mxu0 0.0
    %4102 = vmatprep.subr.mxu0 0.0
    %4103 = vmatpush2.msra.mxu0 0.0
    %4104 = vmatprep.subr.mxu0 0.0
    %4105 = vmatpush2.msra.mxu0 0.0
    %4106 = vmatprep.subr.mxu0 0.0
    %4107 = vmatpush2.msra.mxu0 0.0
    %4108 = vmatprep.subr.mxu0 0.0
    %4109 = vmatpush2.msra.mxu0 0.0
    %4110 = vmatprep.subr.mxu0 0.0
    %4111 = vmatpush2.msra.mxu0 0.0
    %4112 = vmatprep.subr.mxu0 0.0
    %4113 = vmatpush2.msra.mxu0 0.0
    %4114 = vmatprep.subr.mxu0 0.0
    %4115 = vmatpush2.msra.mxu0 0.0
    %4116 = vmatprep.subr.mxu0 0.0
    %4117 = vmatpush2.msra.mxu0 0.0
    %4118 = vmatprep.mubr.f32.mxu0 0.0
    %4119 = vmatmul.mubr.f32.gmra.mxu0 %v4052
    %v4120 = vpop.f32.mrf.mxu0
    %v4121 = vadd.f32 0.0, %v4120
    %v4122 = vpop.f32.mrf.mxu0
    %4123 = vdwg.mxu0
    %v4124 = vadd.f32 %v3882, %v4121
    %4125 = vrot.lane.b32.xlu0 %v3409, 104
    %v4126 = vpop.permute.xlu0 %4125
    %4127 = vrot.lane.b32.xlu0 %v3315, 104
    %v4128 = vpop.permute.xlu0 %4127
    %v4129 = vsel %vm1338, %v4126, 0
    %v4131 = vsel %vm1338, %v4128, 0
    %4133 = vmatprep.subr.mxu0 0.0
    %4134 = vmatpush1.xpose.msra.mxu0 0.0
    %4135 = vmatprep.subr.mxu0 0.0
    %4136 = vmatpush1.xpose.msra.mxu0 0.0
    %4137 = vmatprep.subr.mxu0 0.0
    %4138 = vmatpush1.xpose.msra.mxu0 0.0
    %4139 = vmatprep.subr.mxu0 0.0
    %4140 = vmatpush1.xpose.msra.mxu0 0.0
    %4141 = vmatprep.subr.mxu0 0.0
    %4142 = vmatpush1.xpose.msra.mxu0 0.0
    %4143 = vmatprep.subr.mxu0 0.0
    %4144 = vmatpush1.xpose.msra.mxu0 0.0
    %4145 = vmatprep.subr.mxu0 0.0
    %4146 = vmatpush1.xpose.msra.mxu0 0.0
    %4147 = vmatprep.subr.mxu0 0.0
    %4148 = vmatpush1.xpose.msra.mxu0 0.0
    %4149 = vmatprep.subr.mxu0 0.0
    %4150 = vmatpush1.xpose.msra.mxu0 0.0
    %4151 = vmatprep.subr.mxu0 0.0
    %4152 = vmatpush1.xpose.msra.mxu0 0.0
    %4153 = vmatprep.subr.mxu0 0.0
    %4154 = vmatpush1.xpose.msra.mxu0 0.0
    %4155 = vmatprep.subr.mxu0 0.0
    %4156 = vmatpush1.xpose.msra.mxu0 0.0
    %4157 = vmatprep.subr.mxu0 0.0
    %4158 = vmatpush1.xpose.msra.mxu0 0.0
    %4159 = vmatprep.subr.mxu0 0.0
    %4160 = vmatpush1.xpose.msra.mxu0 0.0
    %4161 = vmatprep.subr.mxu0 0.0
    %4162 = vmatpush1.xpose.msra.mxu0 0.0
    %4163 = vmatprep.subr.mxu0 0.0
    %4164 = vmatpush1.xpose.msra.mxu0 %v4131
    %4165 = vmatprep.subr.mxu0 0.0
    %4166 = vmatpush2.xpose.msra.mxu0 0.0
    %4167 = vmatprep.subr.mxu0 0.0
    %4168 = vmatpush2.xpose.msra.mxu0 0.0
    %4169 = vmatprep.subr.mxu0 0.0
    %4170 = vmatpush2.xpose.msra.mxu0 0.0
    %4171 = vmatprep.subr.mxu0 0.0
    %4172 = vmatpush2.xpose.msra.mxu0 0.0
    %4173 = vmatprep.subr.mxu0 0.0
    %4174 = vmatpush2.xpose.msra.mxu0 0.0
    %4175 = vmatprep.subr.mxu0 0.0
    %4176 = vmatpush2.xpose.msra.mxu0 0.0
    %4177 = vmatprep.subr.mxu0 0.0
    %4178 = vmatpush2.xpose.msra.mxu0 0.0
    %4179 = vmatprep.subr.mxu0 0.0
    %4180 = vmatpush2.xpose.msra.mxu0 0.0
    %4181 = vmatprep.subr.mxu0 0.0
    %4182 = vmatpush2.xpose.msra.mxu0 0.0
    %4183 = vmatprep.subr.mxu0 0.0
    %4184 = vmatpush2.xpose.msra.mxu0 0.0
    %4185 = vmatprep.subr.mxu0 0.0
    %4186 = vmatpush2.xpose.msra.mxu0 0.0
    %4187 = vmatprep.subr.mxu0 0.0
    %4188 = vmatpush2.xpose.msra.mxu0 0.0
    %4189 = vmatprep.subr.mxu0 0.0
    %4190 = vmatpush2.xpose.msra.mxu0 0.0
    %4191 = vmatprep.subr.mxu0 0.0
    %4192 = vmatpush2.xpose.msra.mxu0 0.0
    %4193 = vmatprep.subr.mxu0 0.0
    %4194 = vmatpush2.xpose.msra.mxu0 0.0
    %4195 = vmatprep.subr.mxu0 0.0
    %4196 = vmatpush2.xpose.msra.mxu0 0.0
    %4197 = vmatprep.mubr.f32.mxu0 0.0
    %4198 = vmatmul.mubr.f32.gmra.mxu0 %v4129
    %v4199 = vpop.f32.mrf.mxu0
    %v4200 = vadd.f32 0.0, %v4199
    %v4201 = vpop.f32.mrf.mxu0
    %4202 = vdwg.mxu0
    %v4203 = vsel %vm1415, %v4200, -inf
    %4204 = vmax.xlane.f32.xlu0 %v4203
    %v4205 = vpop.xlane.xlu0 %4204
    %v4206 = vsub.f32 %v4200, %v4205
    %v4207 = vmul.f32 %v4206, 1.442695
    %v4208 = vpow.pop %v4207
    %v4209 = vsel %vm1415, %v4208, 0.0
    %4210 = vadd.xlane.f32.xlu0 %v4209
    %v4211 = vpop.xlane.xlu0 %4210
    %v4212 = vrcp.pop %v4211
    %v4213 = vmul.f32 %v4208, %v4212
    %4214 = vrot.lane.b32.xlu0 %v3401, 104
    %v4215 = vpop.permute.xlu0 %4214
    %v4217 = vsel %vm1427, %v4213, 0
    %v4219 = vsel %vm1431, %v4215, 0
    %4221 = vmatprep.subr.mxu0 0.0
    %4222 = vmatpush1.msra.mxu0 0.0
    %4223 = vmatprep.subr.mxu0 0.0
    %4224 = vmatpush1.msra.mxu0 0.0
    %4225 = vmatprep.subr.mxu0 0.0
    %4226 = vmatpush1.msra.mxu0 0.0
    %4227 = vmatprep.subr.mxu0 0.0
    %4228 = vmatpush1.msra.mxu0 0.0
    %4229 = vmatprep.subr.mxu0 0.0
    %4230 = vmatpush1.msra.mxu0 0.0
    %4231 = vmatprep.subr.mxu0 0.0
    %4232 = vmatpush1.msra.mxu0 0.0
    %4233 = vmatprep.subr.mxu0 0.0
    %4234 = vmatpush1.msra.mxu0 0.0
    %4235 = vmatprep.subr.mxu0 0.0
    %4236 = vmatpush1.msra.mxu0 0.0
    %4237 = vmatprep.subr.mxu0 0.0
    %4238 = vmatpush1.msra.mxu0 0.0
    %4239 = vmatprep.subr.mxu0 0.0
    %4240 = vmatpush1.msra.mxu0 0.0
    %4241 = vmatprep.subr.mxu0 0.0
    %4242 = vmatpush1.msra.mxu0 0.0
    %4243 = vmatprep.subr.mxu0 0.0
    %4244 = vmatpush1.msra.mxu0 0.0
    %4245 = vmatprep.subr.mxu0 0.0
    %4246 = vmatpush1.msra.mxu0 0.0
    %4247 = vmatprep.subr.mxu0 0.0
    %4248 = vmatpush1.msra.mxu0 0.0
    %4249 = vmatprep.subr.mxu0 0.0
    %4250 = vmatpush1.msra.mxu0 0.0
    %4251 = vmatprep.subr.mxu0 0.0
    %4252 = vmatpush1.msra.mxu0 %v4219
    %4253 = vmatprep.subr.mxu0 0.0
    %4254 = vmatpush2.msra.mxu0 0.0
    %4255 = vmatprep.subr.mxu0 0.0
    %4256 = vmatpush2.msra.mxu0 0.0
    %4257 = vmatprep.subr.mxu0 0.0
    %4258 = vmatpush2.msra.mxu0 0.0
    %4259 = vmatprep.subr.mxu0 0.0
    %4260 = vmatpush2.msra.mxu0 0.0
    %4261 = vmatprep.subr.mxu0 0.0
    %4262 = vmatpush2.msra.mxu0 0.0
    %4263 = vmatprep.subr.mxu0 0.0
    %4264 = vmatpush2.msra.mxu0 0.0
    %4265 = vmatprep.subr.mxu0 0.0
    %4266 = vmatpush2.msra.mxu0 0.0
    %4267 = vmatprep.subr.mxu0 0.0
    %4268 = vmatpush2.msra.mxu0 0.0
    %4269 = vmatprep.subr.mxu0 0.0
    %4270 = vmatpush2.msra.mxu0 0.0
    %4271 = vmatprep.subr.mxu0 0.0
    %4272 = vmatpush2.msra.mxu0 0.0
    %4273 = vmatprep.subr.mxu0 0.0
    %4274 = vmatpush2.msra.mxu0 0.0
    %4275 = vmatprep.subr.mxu0 0.0
    %4276 = vmatpush2.msra.mxu0 0.0
    %4277 = vmatprep.subr.mxu0 0.0
    %4278 = vmatpush2.msra.mxu0 0.0
    %4279 = vmatprep.subr.mxu0 0.0
    %4280 = vmatpush2.msra.mxu0 0.0
    %4281 = vmatprep.subr.mxu0 0.0
    %4282 = vmatpush2.msra.mxu0 0.0
    %4283 = vmatprep.subr.mxu0 0.0
    %4284 = vmatpush2.msra.mxu0 0.0
    %4285 = vmatprep.mubr.f32.mxu0 0.0
    %4286 = vmatmul.mubr.f32.gmra.mxu0 %v4217
    %v4287 = vpop.f32.mrf.mxu0
    %v4288 = vadd.f32 0.0, %v4287
    %v4289 = vpop.f32.mrf.mxu0
    %4290 = vdwg.mxu0
    %v4292 = vsel %vm1338, %v4288, 0
    %4294 = vmatprep.subr.mxu0 0.0
    %4295 = vmatpush1.msra.mxu0 0.0
    %4296 = vmatprep.subr.mxu0 0.0
    %4297 = vmatpush1.msra.mxu0 0.0
    %4298 = vmatprep.subr.mxu0 0.0
    %4299 = vmatpush1.msra.mxu0 0.0
    %4300 = vmatprep.subr.mxu0 0.0
    %4301 = vmatpush1.msra.mxu0 0.0
    %4302 = vmatprep.subr.mxu0 0.0
    %4303 = vmatpush1.msra.mxu0 0.0
    %4304 = vmatprep.subr.mxu0 0.0
    %4305 = vmatpush1.msra.mxu0 0.0
    %4306 = vmatprep.subr.mxu0 0.0
    %4307 = vmatpush1.msra.mxu0 0.0
    %4308 = vmatprep.subr.mxu0 0.0
    %4309 = vmatpush1.msra.mxu0 0.0
    %4310 = vmatprep.subr.mxu0 0.0
    %4311 = vmatpush1.msra.mxu0 0.0
    %4312 = vmatprep.subr.mxu0 0.0
    %4313 = vmatpush1.msra.mxu0 0.0
    %4314 = vmatprep.subr.mxu0 0.0
    %4315 = vmatpush1.msra.mxu0 0.0
    %4316 = vmatprep.subr.mxu0 0.0
    %4317 = vmatpush1.msra.mxu0 0.0
    %4318 = vmatprep.subr.mxu0 0.0
    %4319 = vmatpush1.msra.mxu0 0.0
    %4320 = vmatprep.subr.mxu0 0.0
    %4321 = vmatpush1.msra.mxu0 0.0
    %4322 = vmatprep.subr.mxu0 0.0
    %4323 = vmatpush1.msra.mxu0 0.0
    %4324 = vmatprep.subr.mxu0 0.0
    %4325 = vmatpush1.msra.mxu0 %v3408
    %4326 = vmatprep.subr.mxu0 0.0
    %4327 = vmatpush2.msra.mxu0 0.0
    %4328 = vmatprep.subr.mxu0 0.0
    %4329 = vmatpush2.msra.mxu0 0.0
    %4330 = vmatprep.subr.mxu0 0.0
    %4331 = vmatpush2.msra.mxu0 0.0
    %4332 = vmatprep.subr.mxu0 0.0
    %4333 = vmatpush2.msra.mxu0 0.0
    %4334 = vmatprep.subr.mxu0 0.0
    %4335 = vmatpush2.msra.mxu0 0.0
    %4336 = vmatprep.subr.mxu0 0.0
    %4337 = vmatpush2.msra.mxu0 0.0
    %4338 = vmatprep.subr.mxu0 0.0
    %4339 = vmatpush2.msra.mxu0 0.0
    %4340 = vmatprep.subr.mxu0 0.0
    %4341 = vmatpush2.msra.mxu0 0.0
    %4342 = vmatprep.subr.mxu0 0.0
    %4343 = vmatpush2.msra.mxu0 0.0
    %4344 = vmatprep.subr.mxu0 0.0
    %4345 = vmatpush2.msra.mxu0 0.0
    %4346 = vmatprep.subr.mxu0 0.0
    %4347 = vmatpush2.msra.mxu0 0.0
    %4348 = vmatprep.subr.mxu0 0.0
    %4349 = vmatpush2.msra.mxu0 0.0
    %4350 = vmatprep.subr.mxu0 0.0
    %4351 = vmatpush2.msra.mxu0 0.0
    %4352 = vmatprep.subr.mxu0 0.0
    %4353 = vmatpush2.msra.mxu0 0.0
    %4354 = vmatprep.subr.mxu0 0.0
    %4355 = vmatpush2.msra.mxu0 0.0
    %4356 = vmatprep.subr.mxu0 0.0
    %4357 = vmatpush2.msra.mxu0 0.0
    %4358 = vmatprep.mubr.f32.mxu0 0.0
    %4359 = vmatmul.mubr.f32.gmra.mxu0 %v4292
    %v4360 = vpop.f32.mrf.mxu0
    %v4361 = vadd.f32 0.0, %v4360
    %v4362 = vpop.f32.mrf.mxu0
    %4363 = vdwg.mxu0
    %v4364 = vadd.f32 %v4124, %v4361
    %s4365 = scalar_lea.vmem [#allocation16], 1
    %v4366 = vld [vmem:[%s4365] sm:$0x1]
    %v4368 = vlaneseq
    %v4369 = vshrl.u32 %v4368, 7
    %v4370 = vsub.s32 0, %v4369
    %v4371 = vrot.slane %v4366, %v4370
    %v4373 = vadd.f32 %v4364, %v4371
    %v4374 = vadd.f32 %v4373, %v2304
    %s4375 = scalar_lea.vmem %s3, 192
    %v4376 = vld [vmem:[%s4375] sm:$0xff]
    %v4377 = vld [vmem:[%s4375 + $0x8] sm:$0xff]
    %v4378 = vld [vmem:[%s4375 + $0x10] sm:$0xff]
    %v4379 = vld [vmem:[%s4375 + $0x18] sm:$0xff]
    %s4380 = scalar_lea.vmem [#allocation2], 6
    %v4381 = vld [vmem:[%s4380] sm:$0x1]
    %v4383 = vlaneseq
    %v4384 = vshrl.u32 %v4383, 7
    %v4385 = vsub.s32 0, %v4384
    %v4386 = vrot.slane %v4381, %v4385
    %v4389 = vsel %vm255, %v4374, 0
    %4391 = vmatprep.subr.mxu0 0.0
    %4392 = vmatpush1.msra.mxu0 0.0
    %4393 = vmatprep.subr.mxu0 0.0
    %4394 = vmatpush1.msra.mxu0 0.0
    %4395 = vmatprep.subr.mxu0 0.0
    %4396 = vmatpush1.msra.mxu0 0.0
    %4397 = vmatprep.subr.mxu0 0.0
    %4398 = vmatpush1.msra.mxu0 0.0
    %4399 = vmatprep.subr.mxu0 0.0
    %4400 = vmatpush1.msra.mxu0 0.0
    %4401 = vmatprep.subr.mxu0 0.0
    %4402 = vmatpush1.msra.mxu0 0.0
    %4403 = vmatprep.subr.mxu0 0.0
    %4404 = vmatpush1.msra.mxu0 0.0
    %4405 = vmatprep.subr.mxu0 0.0
    %4406 = vmatpush1.msra.mxu0 0.0
    %4407 = vmatprep.subr.mxu0 0.0
    %4408 = vmatpush1.msra.mxu0 0.0
    %4409 = vmatprep.subr.mxu0 0.0
    %4410 = vmatpush1.msra.mxu0 0.0
    %4411 = vmatprep.subr.mxu0 0.0
    %4412 = vmatpush1.msra.mxu0 0.0
    %4413 = vmatprep.subr.mxu0 0.0
    %4414 = vmatpush1.msra.mxu0 0.0
    %4415 = vmatprep.subr.mxu0 0.0
    %4416 = vmatpush1.msra.mxu0 %v4379
    %4417 = vmatprep.subr.mxu0 0.0
    %4418 = vmatpush1.msra.mxu0 %v4378
    %4419 = vmatprep.subr.mxu0 0.0
    %4420 = vmatpush1.msra.mxu0 %v4377
    %4421 = vmatprep.subr.mxu0 0.0
    %4422 = vmatpush1.msra.mxu0 %v4376
    %4423 = vmatprep.subr.mxu0 0.0
    %4424 = vmatpush2.msra.mxu0 0.0
    %4425 = vmatprep.subr.mxu0 0.0
    %4426 = vmatpush2.msra.mxu0 0.0
    %4427 = vmatprep.subr.mxu0 0.0
    %4428 = vmatpush2.msra.mxu0 0.0
    %4429 = vmatprep.subr.mxu0 0.0
    %4430 = vmatpush2.msra.mxu0 0.0
    %4431 = vmatprep.subr.mxu0 0.0
    %4432 = vmatpush2.msra.mxu0 0.0
    %4433 = vmatprep.subr.mxu0 0.0
    %4434 = vmatpush2.msra.mxu0 0.0
    %4435 = vmatprep.subr.mxu0 0.0
    %4436 = vmatpush2.msra.mxu0 0.0
    %4437 = vmatprep.subr.mxu0 0.0
    %4438 = vmatpush2.msra.mxu0 0.0
    %4439 = vmatprep.subr.mxu0 0.0
    %4440 = vmatpush2.msra.mxu0 0.0
    %4441 = vmatprep.subr.mxu0 0.0
    %4442 = vmatpush2.msra.mxu0 0.0
    %4443 = vmatprep.subr.mxu0 0.0
    %4444 = vmatpush2.msra.mxu0 0.0
    %4445 = vmatprep.subr.mxu0 0.0
    %4446 = vmatpush2.msra.mxu0 0.0
    %4447 = vmatprep.subr.mxu0 0.0
    %4448 = vmatpush2.msra.mxu0 0.0
    %4449 = vmatprep.subr.mxu0 0.0
    %4450 = vmatpush2.msra.mxu0 0.0
    %4451 = vmatprep.subr.mxu0 0.0
    %4452 = vmatpush2.msra.mxu0 0.0
    %4453 = vmatprep.subr.mxu0 0.0
    %4454 = vmatpush2.msra.mxu0 0.0
    %4455 = vmatprep.mubr.f32.mxu0 0.0
    %4456 = vmatmul.mubr.f32.gmra.mxu0 %v4389
    %v4457 = vpop.f32.mrf.mxu0
    %v4458 = vadd.f32 %v4386, %v4457
    %v4459 = vpop.f32.mrf.mxu0
    %4460 = vdwg.mxu0
    %v4461 = vmax.f32 %v4458, 0.0
    %s4462 = scalar_lea.vmem %s5, 768
    %v4463 = vld [vmem:[%s4462] sm:$0xff]
    %v4464 = vld [vmem:[%s4462 + $0x8] sm:$0xff]
    %v4465 = vld [vmem:[%s4462 + $0x10] sm:$0xff]
    %v4466 = vld [vmem:[%s4462 + $0x18] sm:$0xff]
    %v4467 = vld [vmem:[%s4462 + $0x20] sm:$0xff]
    %v4468 = vld [vmem:[%s4462 + $0x28] sm:$0xff]
    %v4469 = vld [vmem:[%s4462 + $0x30] sm:$0xff]
    %v4470 = vld [vmem:[%s4462 + $0x38] sm:$0xff]
    %v4471 = vld [vmem:[%s4462 + $0x40] sm:$0xff]
    %v4472 = vld [vmem:[%s4462 + $0x48] sm:$0xff]
    %v4473 = vld [vmem:[%s4462 + $0x50] sm:$0xff]
    %v4474 = vld [vmem:[%s4462 + $0x58] sm:$0xff]
    %v4475 = vld [vmem:[%s4462 + $0x60] sm:$0xff]
    %v4476 = vld [vmem:[%s4462 + $0x68] sm:$0xff]
    %v4477 = vld [vmem:[%s4462 + $0x70] sm:$0xff]
    %v4478 = vld [vmem:[%s4462 + $0x78] sm:$0xff]
    %s4479 = scalar_lea.vmem [#allocation4], 6
    %v4480 = vld [vmem:[%s4479] sm:$0x1]
    %v4482 = vlaneseq
    %v4483 = vshrl.u32 %v4482, 7
    %v4484 = vsub.s32 0, %v4483
    %v4485 = vrot.slane %v4480, %v4484
    %4487 = vmatprep.subr.mxu0 0.0
    %4488 = vmatpush1.msra.mxu0 %v4478
    %4489 = vmatprep.subr.mxu0 0.0
    %4490 = vmatpush1.msra.mxu0 %v4477
    %4491 = vmatprep.subr.mxu0 0.0
    %4492 = vmatpush1.msra.mxu0 %v4476
    %4493 = vmatprep.subr.mxu0 0.0
    %4494 = vmatpush1.msra.mxu0 %v4475
    %4495 = vmatprep.subr.mxu0 0.0
    %4496 = vmatpush1.msra.mxu0 %v4474
    %4497 = vmatprep.subr.mxu0 0.0
    %4498 = vmatpush1.msra.mxu0 %v4473
    %4499 = vmatprep.subr.mxu0 0.0
    %4500 = vmatpush1.msra.mxu0 %v4472
    %4501 = vmatprep.subr.mxu0 0.0
    %4502 = vmatpush1.msra.mxu0 %v4471
    %4503 = vmatprep.subr.mxu0 0.0
    %4504 = vmatpush1.msra.mxu0 %v4470
    %4505 = vmatprep.subr.mxu0 0.0
    %4506 = vmatpush1.msra.mxu0 %v4469
    %4507 = vmatprep.subr.mxu0 0.0
    %4508 = vmatpush1.msra.mxu0 %v4468
    %4509 = vmatprep.subr.mxu0 0.0
    %4510 = vmatpush1.msra.mxu0 %v4467
    %4511 = vmatprep.subr.mxu0 0.0
    %4512 = vmatpush1.msra.mxu0 %v4466
    %4513 = vmatprep.subr.mxu0 0.0
    %4514 = vmatpush1.msra.mxu0 %v4465
    %4515 = vmatprep.subr.mxu0 0.0
    %4516 = vmatpush1.msra.mxu0 %v4464
    %4517 = vmatprep.subr.mxu0 0.0
    %4518 = vmatpush1.msra.mxu0 %v4463
    %4519 = vmatprep.subr.mxu0 0.0
    %4520 = vmatpush2.msra.mxu0 0.0
    %4521 = vmatprep.subr.mxu0 0.0
    %4522 = vmatpush2.msra.mxu0 0.0
    %4523 = vmatprep.subr.mxu0 0.0
    %4524 = vmatpush2.msra.mxu0 0.0
    %4525 = vmatprep.subr.mxu0 0.0
    %4526 = vmatpush2.msra.mxu0 0.0
    %4527 = vmatprep.subr.mxu0 0.0
    %4528 = vmatpush2.msra.mxu0 0.0
    %4529 = vmatprep.subr.mxu0 0.0
    %4530 = vmatpush2.msra.mxu0 0.0
    %4531 = vmatprep.subr.mxu0 0.0
    %4532 = vmatpush2.msra.mxu0 0.0
    %4533 = vmatprep.subr.mxu0 0.0
    %4534 = vmatpush2.msra.mxu0 0.0
    %4535 = vmatprep.subr.mxu0 0.0
    %4536 = vmatpush2.msra.mxu0 0.0
    %4537 = vmatprep.subr.mxu0 0.0
    %4538 = vmatpush2.msra.mxu0 0.0
    %4539 = vmatprep.subr.mxu0 0.0
    %4540 = vmatpush2.msra.mxu0 0.0
    %4541 = vmatprep.subr.mxu0 0.0
    %4542 = vmatpush2.msra.mxu0 0.0
    %4543 = vmatprep.subr.mxu0 0.0
    %4544 = vmatpush2.msra.mxu0 0.0
    %4545 = vmatprep.subr.mxu0 0.0
    %4546 = vmatpush2.msra.mxu0 0.0
    %4547 = vmatprep.subr.mxu0 0.0
    %4548 = vmatpush2.msra.mxu0 0.0
    %4549 = vmatprep.subr.mxu0 0.0
    %4550 = vmatpush2.msra.mxu0 0.0
    %4551 = vmatprep.mubr.f32.mxu0 0.0
    %4552 = vmatmul.mubr.f32.gmra.mxu0 %v4461
    %v4553 = vpop.f32.mrf.mxu0
    %v4554 = vadd.f32 %v4485, %v4553
    %v4555 = vpop.f32.mrf.mxu0
    %4556 = vdwg.mxu0
    %v4557 = vmax.f32 %v4554, 0.0
    %s4558 = scalar_lea.vmem %s7, 768
    %v4559 = vld [vmem:[%s4558] sm:$0xff]
    %v4560 = vld [vmem:[%s4558 + $0x8] sm:$0xff]
    %v4561 = vld [vmem:[%s4558 + $0x10] sm:$0xff]
    %v4562 = vld [vmem:[%s4558 + $0x18] sm:$0xff]
    %v4563 = vld [vmem:[%s4558 + $0x20] sm:$0xff]
    %v4564 = vld [vmem:[%s4558 + $0x28] sm:$0xff]
    %v4565 = vld [vmem:[%s4558 + $0x30] sm:$0xff]
    %v4566 = vld [vmem:[%s4558 + $0x38] sm:$0xff]
    %v4567 = vld [vmem:[%s4558 + $0x40] sm:$0xff]
    %v4568 = vld [vmem:[%s4558 + $0x48] sm:$0xff]
    %v4569 = vld [vmem:[%s4558 + $0x50] sm:$0xff]
    %v4570 = vld [vmem:[%s4558 + $0x58] sm:$0xff]
    %v4571 = vld [vmem:[%s4558 + $0x60] sm:$0xff]
    %v4572 = vld [vmem:[%s4558 + $0x68] sm:$0xff]
    %v4573 = vld [vmem:[%s4558 + $0x70] sm:$0xff]
    %v4574 = vld [vmem:[%s4558 + $0x78] sm:$0xff]
    %s4575 = scalar_lea.vmem [#allocation6], 6
    %v4576 = vld [vmem:[%s4575] sm:$0x1]
    %v4578 = vlaneseq
    %v4579 = vshrl.u32 %v4578, 7
    %v4580 = vsub.s32 0, %v4579
    %v4581 = vrot.slane %v4576, %v4580
    %4583 = vmatprep.subr.mxu0 0.0
    %4584 = vmatpush1.msra.mxu0 %v4574
    %4585 = vmatprep.subr.mxu0 0.0
    %4586 = vmatpush1.msra.mxu0 %v4573
    %4587 = vmatprep.subr.mxu0 0.0
    %4588 = vmatpush1.msra.mxu0 %v4572
    %4589 = vmatprep.subr.mxu0 0.0
    %4590 = vmatpush1.msra.mxu0 %v4571
    %4591 = vmatprep.subr.mxu0 0.0
    %4592 = vmatpush1.msra.mxu0 %v4570
    %4593 = vmatprep.subr.mxu0 0.0
    %4594 = vmatpush1.msra.mxu0 %v4569
    %4595 = vmatprep.subr.mxu0 0.0
    %4596 = vmatpush1.msra.mxu0 %v4568
    %4597 = vmatprep.subr.mxu0 0.0
    %4598 = vmatpush1.msra.mxu0 %v4567
    %4599 = vmatprep.subr.mxu0 0.0
    %4600 = vmatpush1.msra.mxu0 %v4566
    %4601 = vmatprep.subr.mxu0 0.0
    %4602 = vmatpush1.msra.mxu0 %v4565
    %4603 = vmatprep.subr.mxu0 0.0
    %4604 = vmatpush1.msra.mxu0 %v4564
    %4605 = vmatprep.subr.mxu0 0.0
    %4606 = vmatpush1.msra.mxu0 %v4563
    %4607 = vmatprep.subr.mxu0 0.0
    %4608 = vmatpush1.msra.mxu0 %v4562
    %4609 = vmatprep.subr.mxu0 0.0
    %4610 = vmatpush1.msra.mxu0 %v4561
    %4611 = vmatprep.subr.mxu0 0.0
    %4612 = vmatpush1.msra.mxu0 %v4560
    %4613 = vmatprep.subr.mxu0 0.0
    %4614 = vmatpush1.msra.mxu0 %v4559
    %4615 = vmatprep.subr.mxu0 0.0
    %4616 = vmatpush2.msra.mxu0 0.0
    %4617 = vmatprep.subr.mxu0 0.0
    %4618 = vmatpush2.msra.mxu0 0.0
    %4619 = vmatprep.subr.mxu0 0.0
    %4620 = vmatpush2.msra.mxu0 0.0
    %4621 = vmatprep.subr.mxu0 0.0
    %4622 = vmatpush2.msra.mxu0 0.0
    %4623 = vmatprep.subr.mxu0 0.0
    %4624 = vmatpush2.msra.mxu0 0.0
    %4625 = vmatprep.subr.mxu0 0.0
    %4626 = vmatpush2.msra.mxu0 0.0
    %4627 = vmatprep.subr.mxu0 0.0
    %4628 = vmatpush2.msra.mxu0 0.0
    %4629 = vmatprep.subr.mxu0 0.0
    %4630 = vmatpush2.msra.mxu0 0.0
    %4631 = vmatprep.subr.mxu0 0.0
    %4632 = vmatpush2.msra.mxu0 0.0
    %4633 = vmatprep.subr.mxu0 0.0
    %4634 = vmatpush2.msra.mxu0 0.0
    %4635 = vmatprep.subr.mxu0 0.0
    %4636 = vmatpush2.msra.mxu0 0.0
    %4637 = vmatprep.subr.mxu0 0.0
    %4638 = vmatpush2.msra.mxu0 0.0
    %4639 = vmatprep.subr.mxu0 0.0
    %4640 = vmatpush2.msra.mxu0 0.0
    %4641 = vmatprep.subr.mxu0 0.0
    %4642 = vmatpush2.msra.mxu0 0.0
    %4643 = vmatprep.subr.mxu0 0.0
    %4644 = vmatpush2.msra.mxu0 0.0
    %4645 = vmatprep.subr.mxu0 0.0
    %4646 = vmatpush2.msra.mxu0 0.0
    %4647 = vmatprep.mubr.f32.mxu0 0.0
    %4648 = vmatmul.mubr.f32.gmra.mxu0 %v4557
    %v4649 = vpop.f32.mrf.mxu0
    %v4650 = vadd.f32 %v4581, %v4649
    %v4651 = vpop.f32.mrf.mxu0
    %4652 = vdwg.mxu0
    %v4653 = vmax.f32 %v4650, 0.0
    %s4654 = scalar_lea.vmem %s3, 224
    %v4655 = vld [vmem:[%s4654] sm:$0xff]
    %v4656 = vld [vmem:[%s4654 + $0x8] sm:$0xff]
    %v4657 = vld [vmem:[%s4654 + $0x10] sm:$0xff]
    %v4658 = vld [vmem:[%s4654 + $0x18] sm:$0xff]
    %s4659 = scalar_lea.vmem [#allocation2], 7
    %v4660 = vld [vmem:[%s4659] sm:$0x1]
    %v4662 = vlaneseq
    %v4663 = vshrl.u32 %v4662, 7
    %v4664 = vsub.s32 0, %v4663
    %v4665 = vrot.slane %v4660, %v4664
    %4667 = vmatprep.subr.mxu0 0.0
    %4668 = vmatpush1.msra.mxu0 0.0
    %4669 = vmatprep.subr.mxu0 0.0
    %4670 = vmatpush1.msra.mxu0 0.0
    %4671 = vmatprep.subr.mxu0 0.0
    %4672 = vmatpush1.msra.mxu0 0.0
    %4673 = vmatprep.subr.mxu0 0.0
    %4674 = vmatpush1.msra.mxu0 0.0
    %4675 = vmatprep.subr.mxu0 0.0
    %4676 = vmatpush1.msra.mxu0 0.0
    %4677 = vmatprep.subr.mxu0 0.0
    %4678 = vmatpush1.msra.mxu0 0.0
    %4679 = vmatprep.subr.mxu0 0.0
    %4680 = vmatpush1.msra.mxu0 0.0
    %4681 = vmatprep.subr.mxu0 0.0
    %4682 = vmatpush1.msra.mxu0 0.0
    %4683 = vmatprep.subr.mxu0 0.0
    %4684 = vmatpush1.msra.mxu0 0.0
    %4685 = vmatprep.subr.mxu0 0.0
    %4686 = vmatpush1.msra.mxu0 0.0
    %4687 = vmatprep.subr.mxu0 0.0
    %4688 = vmatpush1.msra.mxu0 0.0
    %4689 = vmatprep.subr.mxu0 0.0
    %4690 = vmatpush1.msra.mxu0 0.0
    %4691 = vmatprep.subr.mxu0 0.0
    %4692 = vmatpush1.msra.mxu0 %v4658
    %4693 = vmatprep.subr.mxu0 0.0
    %4694 = vmatpush1.msra.mxu0 %v4657
    %4695 = vmatprep.subr.mxu0 0.0
    %4696 = vmatpush1.msra.mxu0 %v4656
    %4697 = vmatprep.subr.mxu0 0.0
    %4698 = vmatpush1.msra.mxu0 %v4655
    %4699 = vmatprep.subr.mxu0 0.0
    %4700 = vmatpush2.msra.mxu0 0.0
    %4701 = vmatprep.subr.mxu0 0.0
    %4702 = vmatpush2.msra.mxu0 0.0
    %4703 = vmatprep.subr.mxu0 0.0
    %4704 = vmatpush2.msra.mxu0 0.0
    %4705 = vmatprep.subr.mxu0 0.0
    %4706 = vmatpush2.msra.mxu0 0.0
    %4707 = vmatprep.subr.mxu0 0.0
    %4708 = vmatpush2.msra.mxu0 0.0
    %4709 = vmatprep.subr.mxu0 0.0
    %4710 = vmatpush2.msra.mxu0 0.0
    %4711 = vmatprep.subr.mxu0 0.0
    %4712 = vmatpush2.msra.mxu0 0.0
    %4713 = vmatprep.subr.mxu0 0.0
    %4714 = vmatpush2.msra.mxu0 0.0
    %4715 = vmatprep.subr.mxu0 0.0
    %4716 = vmatpush2.msra.mxu0 0.0
    %4717 = vmatprep.subr.mxu0 0.0
    %4718 = vmatpush2.msra.mxu0 0.0
    %4719 = vmatprep.subr.mxu0 0.0
    %4720 = vmatpush2.msra.mxu0 0.0
    %4721 = vmatprep.subr.mxu0 0.0
    %4722 = vmatpush2.msra.mxu0 0.0
    %4723 = vmatprep.subr.mxu0 0.0
    %4724 = vmatpush2.msra.mxu0 0.0
    %4725 = vmatprep.subr.mxu0 0.0
    %4726 = vmatpush2.msra.mxu0 0.0
    %4727 = vmatprep.subr.mxu0 0.0
    %4728 = vmatpush2.msra.mxu0 0.0
    %4729 = vmatprep.subr.mxu0 0.0
    %4730 = vmatpush2.msra.mxu0 0.0
    %4731 = vmatprep.mubr.f32.mxu0 0.0
    %4732 = vmatmul.mubr.f32.gmra.mxu0 %v4389
    %v4733 = vpop.f32.mrf.mxu0
    %v4734 = vadd.f32 %v4665, %v4733
    %v4735 = vpop.f32.mrf.mxu0
    %4736 = vdwg.mxu0
    %v4737 = vmax.f32 %v4734, 0.0
    %s4738 = scalar_lea.vmem %s5, 896
    %v4739 = vld [vmem:[%s4738] sm:$0xff]
    %v4740 = vld [vmem:[%s4738 + $0x8] sm:$0xff]
    %v4741 = vld [vmem:[%s4738 + $0x10] sm:$0xff]
    %v4742 = vld [vmem:[%s4738 + $0x18] sm:$0xff]
    %v4743 = vld [vmem:[%s4738 + $0x20] sm:$0xff]
    %v4744 = vld [vmem:[%s4738 + $0x28] sm:$0xff]
    %v4745 = vld [vmem:[%s4738 + $0x30] sm:$0xff]
    %v4746 = vld [vmem:[%s4738 + $0x38] sm:$0xff]
    %v4747 = vld [vmem:[%s4738 + $0x40] sm:$0xff]
    %v4748 = vld [vmem:[%s4738 + $0x48] sm:$0xff]
    %v4749 = vld [vmem:[%s4738 + $0x50] sm:$0xff]
    %v4750 = vld [vmem:[%s4738 + $0x58] sm:$0xff]
    %v4751 = vld [vmem:[%s4738 + $0x60] sm:$0xff]
    %v4752 = vld [vmem:[%s4738 + $0x68] sm:$0xff]
    %v4753 = vld [vmem:[%s4738 + $0x70] sm:$0xff]
    %v4754 = vld [vmem:[%s4738 + $0x78] sm:$0xff]
    %s4755 = scalar_lea.vmem [#allocation4], 7
    %v4756 = vld [vmem:[%s4755] sm:$0x1]
    %v4758 = vlaneseq
    %v4759 = vshrl.u32 %v4758, 7
    %v4760 = vsub.s32 0, %v4759
    %v4761 = vrot.slane %v4756, %v4760
    %4763 = vmatprep.subr.mxu0 0.0
    %4764 = vmatpush1.msra.mxu0 %v4754
    %4765 = vmatprep.subr.mxu0 0.0
    %4766 = vmatpush1.msra.mxu0 %v4753
    %4767 = vmatprep.subr.mxu0 0.0
    %4768 = vmatpush1.msra.mxu0 %v4752
    %4769 = vmatprep.subr.mxu0 0.0
    %4770 = vmatpush1.msra.mxu0 %v4751
    %4771 = vmatprep.subr.mxu0 0.0
    %4772 = vmatpush1.msra.mxu0 %v4750
    %4773 = vmatprep.subr.mxu0 0.0
    %4774 = vmatpush1.msra.mxu0 %v4749
    %4775 = vmatprep.subr.mxu0 0.0
    %4776 = vmatpush1.msra.mxu0 %v4748
    %4777 = vmatprep.subr.mxu0 0.0
    %4778 = vmatpush1.msra.mxu0 %v4747
    %4779 = vmatprep.subr.mxu0 0.0
    %4780 = vmatpush1.msra.mxu0 %v4746
    %4781 = vmatprep.subr.mxu0 0.0
    %4782 = vmatpush1.msra.mxu0 %v4745
    %4783 = vmatprep.subr.mxu0 0.0
    %4784 = vmatpush1.msra.mxu0 %v4744
    %4785 = vmatprep.subr.mxu0 0.0
    %4786 = vmatpush1.msra.mxu0 %v4743
    %4787 = vmatprep.subr.mxu0 0.0
    %4788 = vmatpush1.msra.mxu0 %v4742
    %4789 = vmatprep.subr.mxu0 0.0
    %4790 = vmatpush1.msra.mxu0 %v4741
    %4791 = vmatprep.subr.mxu0 0.0
    %4792 = vmatpush1.msra.mxu0 %v4740
    %4793 = vmatprep.subr.mxu0 0.0
    %4794 = vmatpush1.msra.mxu0 %v4739
    %4795 = vmatprep.subr.mxu0 0.0
    %4796 = vmatpush2.msra.mxu0 0.0
    %4797 = vmatprep.subr.mxu0 0.0
    %4798 = vmatpush2.msra.mxu0 0.0
    %4799 = vmatprep.subr.mxu0 0.0
    %4800 = vmatpush2.msra.mxu0 0.0
    %4801 = vmatprep.subr.mxu0 0.0
    %4802 = vmatpush2.msra.mxu0 0.0
    %4803 = vmatprep.subr.mxu0 0.0
    %4804 = vmatpush2.msra.mxu0 0.0
    %4805 = vmatprep.subr.mxu0 0.0
    %4806 = vmatpush2.msra.mxu0 0.0
    %4807 = vmatprep.subr.mxu0 0.0
    %4808 = vmatpush2.msra.mxu0 0.0
    %4809 = vmatprep.subr.mxu0 0.0
    %4810 = vmatpush2.msra.mxu0 0.0
    %4811 = vmatprep.subr.mxu0 0.0
    %4812 = vmatpush2.msra.mxu0 0.0
    %4813 = vmatprep.subr.mxu0 0.0
    %4814 = vmatpush2.msra.mxu0 0.0
    %4815 = vmatprep.subr.mxu0 0.0
    %4816 = vmatpush2.msra.mxu0 0.0
    %4817 = vmatprep.subr.mxu0 0.0
    %4818 = vmatpush2.msra.mxu0 0.0
    %4819 = vmatprep.subr.mxu0 0.0
    %4820 = vmatpush2.msra.mxu0 0.0
    %4821 = vmatprep.subr.mxu0 0.0
    %4822 = vmatpush2.msra.mxu0 0.0
    %4823 = vmatprep.subr.mxu0 0.0
    %4824 = vmatpush2.msra.mxu0 0.0
    %4825 = vmatprep.subr.mxu0 0.0
    %4826 = vmatpush2.msra.mxu0 0.0
    %4827 = vmatprep.mubr.f32.mxu0 0.0
    %4828 = vmatmul.mubr.f32.gmra.mxu0 %v4737
    %v4829 = vpop.f32.mrf.mxu0
    %v4830 = vadd.f32 %v4761, %v4829
    %v4831 = vpop.f32.mrf.mxu0
    %4832 = vdwg.mxu0
    %v4833 = vmax.f32 %v4830, 0.0
    %s4834 = scalar_lea.vmem %s7, 896
    %v4835 = vld [vmem:[%s4834] sm:$0xff]
    %v4836 = vld [vmem:[%s4834 + $0x8] sm:$0xff]
    %v4837 = vld [vmem:[%s4834 + $0x10] sm:$0xff]
    %v4838 = vld [vmem:[%s4834 + $0x18] sm:$0xff]
    %v4839 = vld [vmem:[%s4834 + $0x20] sm:$0xff]
    %v4840 = vld [vmem:[%s4834 + $0x28] sm:$0xff]
    %v4841 = vld [vmem:[%s4834 + $0x30] sm:$0xff]
    %v4842 = vld [vmem:[%s4834 + $0x38] sm:$0xff]
    %v4843 = vld [vmem:[%s4834 + $0x40] sm:$0xff]
    %v4844 = vld [vmem:[%s4834 + $0x48] sm:$0xff]
    %v4845 = vld [vmem:[%s4834 + $0x50] sm:$0xff]
    %v4846 = vld [vmem:[%s4834 + $0x58] sm:$0xff]
    %v4847 = vld [vmem:[%s4834 + $0x60] sm:$0xff]
    %v4848 = vld [vmem:[%s4834 + $0x68] sm:$0xff]
    %v4849 = vld [vmem:[%s4834 + $0x70] sm:$0xff]
    %v4850 = vld [vmem:[%s4834 + $0x78] sm:$0xff]
    %s4851 = scalar_lea.vmem [#allocation6], 7
    %v4852 = vld [vmem:[%s4851] sm:$0x1]
    %v4854 = vlaneseq
    %v4855 = vshrl.u32 %v4854, 7
    %v4856 = vsub.s32 0, %v4855
    %v4857 = vrot.slane %v4852, %v4856
    %4859 = vmatprep.subr.mxu0 0.0
    %4860 = vmatpush1.msra.mxu0 %v4850
    %4861 = vmatprep.subr.mxu0 0.0
    %4862 = vmatpush1.msra.mxu0 %v4849
    %4863 = vmatprep.subr.mxu0 0.0
    %4864 = vmatpush1.msra.mxu0 %v4848
    %4865 = vmatprep.subr.mxu0 0.0
    %4866 = vmatpush1.msra.mxu0 %v4847
    %4867 = vmatprep.subr.mxu0 0.0
    %4868 = vmatpush1.msra.mxu0 %v4846
    %4869 = vmatprep.subr.mxu0 0.0
    %4870 = vmatpush1.msra.mxu0 %v4845
    %4871 = vmatprep.subr.mxu0 0.0
    %4872 = vmatpush1.msra.mxu0 %v4844
    %4873 = vmatprep.subr.mxu0 0.0
    %4874 = vmatpush1.msra.mxu0 %v4843
    %4875 = vmatprep.subr.mxu0 0.0
    %4876 = vmatpush1.msra.mxu0 %v4842
    %4877 = vmatprep.subr.mxu0 0.0
    %4878 = vmatpush1.msra.mxu0 %v4841
    %4879 = vmatprep.subr.mxu0 0.0
    %4880 = vmatpush1.msra.mxu0 %v4840
    %4881 = vmatprep.subr.mxu0 0.0
    %4882 = vmatpush1.msra.mxu0 %v4839
    %4883 = vmatprep.subr.mxu0 0.0
    %4884 = vmatpush1.msra.mxu0 %v4838
    %4885 = vmatprep.subr.mxu0 0.0
    %4886 = vmatpush1.msra.mxu0 %v4837
    %4887 = vmatprep.subr.mxu0 0.0
    %4888 = vmatpush1.msra.mxu0 %v4836
    %4889 = vmatprep.subr.mxu0 0.0
    %4890 = vmatpush1.msra.mxu0 %v4835
    %4891 = vmatprep.subr.mxu0 0.0
    %4892 = vmatpush2.msra.mxu0 0.0
    %4893 = vmatprep.subr.mxu0 0.0
    %4894 = vmatpush2.msra.mxu0 0.0
    %4895 = vmatprep.subr.mxu0 0.0
    %4896 = vmatpush2.msra.mxu0 0.0
    %4897 = vmatprep.subr.mxu0 0.0
    %4898 = vmatpush2.msra.mxu0 0.0
    %4899 = vmatprep.subr.mxu0 0.0
    %4900 = vmatpush2.msra.mxu0 0.0
    %4901 = vmatprep.subr.mxu0 0.0
    %4902 = vmatpush2.msra.mxu0 0.0
    %4903 = vmatprep.subr.mxu0 0.0
    %4904 = vmatpush2.msra.mxu0 0.0
    %4905 = vmatprep.subr.mxu0 0.0
    %4906 = vmatpush2.msra.mxu0 0.0
    %4907 = vmatprep.subr.mxu0 0.0
    %4908 = vmatpush2.msra.mxu0 0.0
    %4909 = vmatprep.subr.mxu0 0.0
    %4910 = vmatpush2.msra.mxu0 0.0
    %4911 = vmatprep.subr.mxu0 0.0
    %4912 = vmatpush2.msra.mxu0 0.0
    %4913 = vmatprep.subr.mxu0 0.0
    %4914 = vmatpush2.msra.mxu0 0.0
    %4915 = vmatprep.subr.mxu0 0.0
    %4916 = vmatpush2.msra.mxu0 0.0
    %4917 = vmatprep.subr.mxu0 0.0
    %4918 = vmatpush2.msra.mxu0 0.0
    %4919 = vmatprep.subr.mxu0 0.0
    %4920 = vmatpush2.msra.mxu0 0.0
    %4921 = vmatprep.subr.mxu0 0.0
    %4922 = vmatpush2.msra.mxu0 0.0
    %4923 = vmatprep.mubr.f32.mxu0 0.0
    %4924 = vmatmul.mubr.f32.gmra.mxu0 %v4833
    %v4925 = vpop.f32.mrf.mxu0
    %v4926 = vadd.f32 %v4857, %v4925
    %v4927 = vpop.f32.mrf.mxu0
    %4928 = vdwg.mxu0
    %v4929 = vmax.f32 %v4926, 0.0
    %s4930 = scalar_lea.vmem %s3, 256
    %v4931 = vld [vmem:[%s4930] sm:$0xff]
    %v4932 = vld [vmem:[%s4930 + $0x8] sm:$0xff]
    %v4933 = vld [vmem:[%s4930 + $0x10] sm:$0xff]
    %v4934 = vld [vmem:[%s4930 + $0x18] sm:$0xff]
    %s4935 = scalar_lea.vmem [#allocation2], 8
    %v4936 = vld [vmem:[%s4935] sm:$0x1]
    %v4938 = vlaneseq
    %v4939 = vshrl.u32 %v4938, 7
    %v4940 = vsub.s32 0, %v4939
    %v4941 = vrot.slane %v4936, %v4940
    %4943 = vmatprep.subr.mxu0 0.0
    %4944 = vmatpush1.msra.mxu0 0.0
    %4945 = vmatprep.subr.mxu0 0.0
    %4946 = vmatpush1.msra.mxu0 0.0
    %4947 = vmatprep.subr.mxu0 0.0
    %4948 = vmatpush1.msra.mxu0 0.0
    %4949 = vmatprep.subr.mxu0 0.0
    %4950 = vmatpush1.msra.mxu0 0.0
    %4951 = vmatprep.subr.mxu0 0.0
    %4952 = vmatpush1.msra.mxu0 0.0
    %4953 = vmatprep.subr.mxu0 0.0
    %4954 = vmatpush1.msra.mxu0 0.0
    %4955 = vmatprep.subr.mxu0 0.0
    %4956 = vmatpush1.msra.mxu0 0.0
    %4957 = vmatprep.subr.mxu0 0.0
    %4958 = vmatpush1.msra.mxu0 0.0
    %4959 = vmatprep.subr.mxu0 0.0
    %4960 = vmatpush1.msra.mxu0 0.0
    %4961 = vmatprep.subr.mxu0 0.0
    %4962 = vmatpush1.msra.mxu0 0.0
    %4963 = vmatprep.subr.mxu0 0.0
    %4964 = vmatpush1.msra.mxu0 0.0
    %4965 = vmatprep.subr.mxu0 0.0
    %4966 = vmatpush1.msra.mxu0 0.0
    %4967 = vmatprep.subr.mxu0 0.0
    %4968 = vmatpush1.msra.mxu0 %v4934
    %4969 = vmatprep.subr.mxu0 0.0
    %4970 = vmatpush1.msra.mxu0 %v4933
    %4971 = vmatprep.subr.mxu0 0.0
    %4972 = vmatpush1.msra.mxu0 %v4932
    %4973 = vmatprep.subr.mxu0 0.0
    %4974 = vmatpush1.msra.mxu0 %v4931
    %4975 = vmatprep.subr.mxu0 0.0
    %4976 = vmatpush2.msra.mxu0 0.0
    %4977 = vmatprep.subr.mxu0 0.0
    %4978 = vmatpush2.msra.mxu0 0.0
    %4979 = vmatprep.subr.mxu0 0.0
    %4980 = vmatpush2.msra.mxu0 0.0
    %4981 = vmatprep.subr.mxu0 0.0
    %4982 = vmatpush2.msra.mxu0 0.0
    %4983 = vmatprep.subr.mxu0 0.0
    %4984 = vmatpush2.msra.mxu0 0.0
    %4985 = vmatprep.subr.mxu0 0.0
    %4986 = vmatpush2.msra.mxu0 0.0
    %4987 = vmatprep.subr.mxu0 0.0
    %4988 = vmatpush2.msra.mxu0 0.0
    %4989 = vmatprep.subr.mxu0 0.0
    %4990 = vmatpush2.msra.mxu0 0.0
    %4991 = vmatprep.subr.mxu0 0.0
    %4992 = vmatpush2.msra.mxu0 0.0
    %4993 = vmatprep.subr.mxu0 0.0
    %4994 = vmatpush2.msra.mxu0 0.0
    %4995 = vmatprep.subr.mxu0 0.0
    %4996 = vmatpush2.msra.mxu0 0.0
    %4997 = vmatprep.subr.mxu0 0.0
    %4998 = vmatpush2.msra.mxu0 0.0
    %4999 = vmatprep.subr.mxu0 0.0
    %5000 = vmatpush2.msra.mxu0 0.0
    %5001 = vmatprep.subr.mxu0 0.0
    %5002 = vmatpush2.msra.mxu0 0.0
    %5003 = vmatprep.subr.mxu0 0.0
    %5004 = vmatpush2.msra.mxu0 0.0
    %5005 = vmatprep.subr.mxu0 0.0
    %5006 = vmatpush2.msra.mxu0 0.0
    %5007 = vmatprep.mubr.f32.mxu0 0.0
    %5008 = vmatmul.mubr.f32.gmra.mxu0 %v4389
    %v5009 = vpop.f32.mrf.mxu0
    %v5010 = vadd.f32 %v4941, %v5009
    %v5011 = vpop.f32.mrf.mxu0
    %5012 = vdwg.mxu0
    %v5013 = vmax.f32 %v5010, 0.0
    %s5014 = scalar_lea.vmem %s5, 1024
    %v5015 = vld [vmem:[%s5014] sm:$0xff]
    %v5016 = vld [vmem:[%s5014 + $0x8] sm:$0xff]
    %v5017 = vld [vmem:[%s5014 + $0x10] sm:$0xff]
    %v5018 = vld [vmem:[%s5014 + $0x18] sm:$0xff]
    %v5019 = vld [vmem:[%s5014 + $0x20] sm:$0xff]
    %v5020 = vld [vmem:[%s5014 + $0x28] sm:$0xff]
    %v5021 = vld [vmem:[%s5014 + $0x30] sm:$0xff]
    %v5022 = vld [vmem:[%s5014 + $0x38] sm:$0xff]
    %v5023 = vld [vmem:[%s5014 + $0x40] sm:$0xff]
    %v5024 = vld [vmem:[%s5014 + $0x48] sm:$0xff]
    %v5025 = vld [vmem:[%s5014 + $0x50] sm:$0xff]
    %v5026 = vld [vmem:[%s5014 + $0x58] sm:$0xff]
    %v5027 = vld [vmem:[%s5014 + $0x60] sm:$0xff]
    %v5028 = vld [vmem:[%s5014 + $0x68] sm:$0xff]
    %v5029 = vld [vmem:[%s5014 + $0x70] sm:$0xff]
    %v5030 = vld [vmem:[%s5014 + $0x78] sm:$0xff]
    %s5031 = scalar_lea.vmem [#allocation4], 8
    %v5032 = vld [vmem:[%s5031] sm:$0x1]
    %v5034 = vlaneseq
    %v5035 = vshrl.u32 %v5034, 7
    %v5036 = vsub.s32 0, %v5035
    %v5037 = vrot.slane %v5032, %v5036
    %5039 = vmatprep.subr.mxu0 0.0
    %5040 = vmatpush1.msra.mxu0 %v5030
    %5041 = vmatprep.subr.mxu0 0.0
    %5042 = vmatpush1.msra.mxu0 %v5029
    %5043 = vmatprep.subr.mxu0 0.0
    %5044 = vmatpush1.msra.mxu0 %v5028
    %5045 = vmatprep.subr.mxu0 0.0
    %5046 = vmatpush1.msra.mxu0 %v5027
    %5047 = vmatprep.subr.mxu0 0.0
    %5048 = vmatpush1.msra.mxu0 %v5026
    %5049 = vmatprep.subr.mxu0 0.0
    %5050 = vmatpush1.msra.mxu0 %v5025
    %5051 = vmatprep.subr.mxu0 0.0
    %5052 = vmatpush1.msra.mxu0 %v5024
    %5053 = vmatprep.subr.mxu0 0.0
    %5054 = vmatpush1.msra.mxu0 %v5023
    %5055 = vmatprep.subr.mxu0 0.0
    %5056 = vmatpush1.msra.mxu0 %v5022
    %5057 = vmatprep.subr.mxu0 0.0
    %5058 = vmatpush1.msra.mxu0 %v5021
    %5059 = vmatprep.subr.mxu0 0.0
    %5060 = vmatpush1.msra.mxu0 %v5020
    %5061 = vmatprep.subr.mxu0 0.0
    %5062 = vmatpush1.msra.mxu0 %v5019
    %5063 = vmatprep.subr.mxu0 0.0
    %5064 = vmatpush1.msra.mxu0 %v5018
    %5065 = vmatprep.subr.mxu0 0.0
    %5066 = vmatpush1.msra.mxu0 %v5017
    %5067 = vmatprep.subr.mxu0 0.0
    %5068 = vmatpush1.msra.mxu0 %v5016
    %5069 = vmatprep.subr.mxu0 0.0
    %5070 = vmatpush1.msra.mxu0 %v5015
    %5071 = vmatprep.subr.mxu0 0.0
    %5072 = vmatpush2.msra.mxu0 0.0
    %5073 = vmatprep.subr.mxu0 0.0
    %5074 = vmatpush2.msra.mxu0 0.0
    %5075 = vmatprep.subr.mxu0 0.0
    %5076 = vmatpush2.msra.mxu0 0.0
    %5077 = vmatprep.subr.mxu0 0.0
    %5078 = vmatpush2.msra.mxu0 0.0
    %5079 = vmatprep.subr.mxu0 0.0
    %5080 = vmatpush2.msra.mxu0 0.0
    %5081 = vmatprep.subr.mxu0 0.0
    %5082 = vmatpush2.msra.mxu0 0.0
    %5083 = vmatprep.subr.mxu0 0.0
    %5084 = vmatpush2.msra.mxu0 0.0
    %5085 = vmatprep.subr.mxu0 0.0
    %5086 = vmatpush2.msra.mxu0 0.0
    %5087 = vmatprep.subr.mxu0 0.0
    %5088 = vmatpush2.msra.mxu0 0.0
    %5089 = vmatprep.subr.mxu0 0.0
    %5090 = vmatpush2.msra.mxu0 0.0
    %5091 = vmatprep.subr.mxu0 0.0
    %5092 = vmatpush2.msra.mxu0 0.0
    %5093 = vmatprep.subr.mxu0 0.0
    %5094 = vmatpush2.msra.mxu0 0.0
    %5095 = vmatprep.subr.mxu0 0.0
    %5096 = vmatpush2.msra.mxu0 0.0
    %5097 = vmatprep.subr.mxu0 0.0
    %5098 = vmatpush2.msra.mxu0 0.0
    %5099 = vmatprep.subr.mxu0 0.0
    %5100 = vmatpush2.msra.mxu0 0.0
    %5101 = vmatprep.subr.mxu0 0.0
    %5102 = vmatpush2.msra.mxu0 0.0
    %5103 = vmatprep.mubr.f32.mxu0 0.0
    %5104 = vmatmul.mubr.f32.gmra.mxu0 %v5013
    %v5105 = vpop.f32.mrf.mxu0
    %v5106 = vadd.f32 %v5037, %v5105
    %v5107 = vpop.f32.mrf.mxu0
    %5108 = vdwg.mxu0
    %v5109 = vmax.f32 %v5106, 0.0
    %s5110 = scalar_lea.vmem %s7, 1024
    %v5111 = vld [vmem:[%s5110] sm:$0xff]
    %v5112 = vld [vmem:[%s5110 + $0x8] sm:$0xff]
    %v5113 = vld [vmem:[%s5110 + $0x10] sm:$0xff]
    %v5114 = vld [vmem:[%s5110 + $0x18] sm:$0xff]
    %v5115 = vld [vmem:[%s5110 + $0x20] sm:$0xff]
    %v5116 = vld [vmem:[%s5110 + $0x28] sm:$0xff]
    %v5117 = vld [vmem:[%s5110 + $0x30] sm:$0xff]
    %v5118 = vld [vmem:[%s5110 + $0x38] sm:$0xff]
    %v5119 = vld [vmem:[%s5110 + $0x40] sm:$0xff]
    %v5120 = vld [vmem:[%s5110 + $0x48] sm:$0xff]
    %v5121 = vld [vmem:[%s5110 + $0x50] sm:$0xff]
    %v5122 = vld [vmem:[%s5110 + $0x58] sm:$0xff]
    %v5123 = vld [vmem:[%s5110 + $0x60] sm:$0xff]
    %v5124 = vld [vmem:[%s5110 + $0x68] sm:$0xff]
    %v5125 = vld [vmem:[%s5110 + $0x70] sm:$0xff]
    %v5126 = vld [vmem:[%s5110 + $0x78] sm:$0xff]
    %s5127 = scalar_lea.vmem [#allocation6], 8
    %v5128 = vld [vmem:[%s5127] sm:$0x1]
    %v5130 = vlaneseq
    %v5131 = vshrl.u32 %v5130, 7
    %v5132 = vsub.s32 0, %v5131
    %v5133 = vrot.slane %v5128, %v5132
    %5135 = vmatprep.subr.mxu0 0.0
    %5136 = vmatpush1.msra.mxu0 %v5126
    %5137 = vmatprep.subr.mxu0 0.0
    %5138 = vmatpush1.msra.mxu0 %v5125
    %5139 = vmatprep.subr.mxu0 0.0
    %5140 = vmatpush1.msra.mxu0 %v5124
    %5141 = vmatprep.subr.mxu0 0.0
    %5142 = vmatpush1.msra.mxu0 %v5123
    %5143 = vmatprep.subr.mxu0 0.0
    %5144 = vmatpush1.msra.mxu0 %v5122
    %5145 = vmatprep.subr.mxu0 0.0
    %5146 = vmatpush1.msra.mxu0 %v5121
    %5147 = vmatprep.subr.mxu0 0.0
    %5148 = vmatpush1.msra.mxu0 %v5120
    %5149 = vmatprep.subr.mxu0 0.0
    %5150 = vmatpush1.msra.mxu0 %v5119
    %5151 = vmatprep.subr.mxu0 0.0
    %5152 = vmatpush1.msra.mxu0 %v5118
    %5153 = vmatprep.subr.mxu0 0.0
    %5154 = vmatpush1.msra.mxu0 %v5117
    %5155 = vmatprep.subr.mxu0 0.0
    %5156 = vmatpush1.msra.mxu0 %v5116
    %5157 = vmatprep.subr.mxu0 0.0
    %5158 = vmatpush1.msra.mxu0 %v5115
    %5159 = vmatprep.subr.mxu0 0.0
    %5160 = vmatpush1.msra.mxu0 %v5114
    %5161 = vmatprep.subr.mxu0 0.0
    %5162 = vmatpush1.msra.mxu0 %v5113
    %5163 = vmatprep.subr.mxu0 0.0
    %5164 = vmatpush1.msra.mxu0 %v5112
    %5165 = vmatprep.subr.mxu0 0.0
    %5166 = vmatpush1.msra.mxu0 %v5111
    %5167 = vmatprep.subr.mxu0 0.0
    %5168 = vmatpush2.msra.mxu0 0.0
    %5169 = vmatprep.subr.mxu0 0.0
    %5170 = vmatpush2.msra.mxu0 0.0
    %5171 = vmatprep.subr.mxu0 0.0
    %5172 = vmatpush2.msra.mxu0 0.0
    %5173 = vmatprep.subr.mxu0 0.0
    %5174 = vmatpush2.msra.mxu0 0.0
    %5175 = vmatprep.subr.mxu0 0.0
    %5176 = vmatpush2.msra.mxu0 0.0
    %5177 = vmatprep.subr.mxu0 0.0
    %5178 = vmatpush2.msra.mxu0 0.0
    %5179 = vmatprep.subr.mxu0 0.0
    %5180 = vmatpush2.msra.mxu0 0.0
    %5181 = vmatprep.subr.mxu0 0.0
    %5182 = vmatpush2.msra.mxu0 0.0
    %5183 = vmatprep.subr.mxu0 0.0
    %5184 = vmatpush2.msra.mxu0 0.0
    %5185 = vmatprep.subr.mxu0 0.0
    %5186 = vmatpush2.msra.mxu0 0.0
    %5187 = vmatprep.subr.mxu0 0.0
    %5188 = vmatpush2.msra.mxu0 0.0
    %5189 = vmatprep.subr.mxu0 0.0
    %5190 = vmatpush2.msra.mxu0 0.0
    %5191 = vmatprep.subr.mxu0 0.0
    %5192 = vmatpush2.msra.mxu0 0.0
    %5193 = vmatprep.subr.mxu0 0.0
    %5194 = vmatpush2.msra.mxu0 0.0
    %5195 = vmatprep.subr.mxu0 0.0
    %5196 = vmatpush2.msra.mxu0 0.0
    %5197 = vmatprep.subr.mxu0 0.0
    %5198 = vmatpush2.msra.mxu0 0.0
    %5199 = vmatprep.mubr.f32.mxu0 0.0
    %5200 = vmatmul.mubr.f32.gmra.mxu0 %v5109
    %v5201 = vpop.f32.mrf.mxu0
    %v5202 = vadd.f32 %v5133, %v5201
    %v5203 = vpop.f32.mrf.mxu0
    %5204 = vdwg.mxu0
    %v5205 = vsel %vm1069, %v5202, -inf
    %5206 = vmax.xlane.f32.xlu0 %v5205
    %v5207 = vpop.xlane.xlu0 %5206
    %v5208 = vsub.f32 %v5202, %v5207
    %v5209 = vmul.f32 %v5208, 1.442695
    %v5210 = vpow.pop %v5209
    %v5211 = vsel %vm1069, %v5210, 0.0
    %5212 = vadd.xlane.f32.xlu0 %v5211
    %v5213 = vpop.xlane.xlu0 %5212
    %v5214 = vrcp.pop %v5213
    %v5215 = vmul.f32 %v5210, %v5214
    %s5216 = scalar_lea.vmem %s9, 64
    %v5217 = vld [vmem:[%s5216] sm:$0xff]
    %v5218 = vld [vmem:[%s5216 + $0x8] sm:$0xff]
    %v5219 = vld [vmem:[%s5216 + $0x10] sm:$0xff]
    %v5220 = vld [vmem:[%s5216 + $0x18] sm:$0xff]
    %s5221 = scalar_lea.vmem [#allocation7], 2
    %v5222 = vld [vmem:[%s5221] sm:$0x1]
    %v5224 = vlaneseq
    %v5225 = vshrl.u32 %v5224, 7
    %v5226 = vsub.s32 0, %v5225
    %v5227 = vrot.slane %v5222, %v5226
    %v5230 = vsel %vm255, %v5215, 0
    %5232 = vmatprep.subr.mxu0 0.0
    %5233 = vmatpush1.msra.mxu0 0.0
    %5234 = vmatprep.subr.mxu0 0.0
    %5235 = vmatpush1.msra.mxu0 0.0
    %5236 = vmatprep.subr.mxu0 0.0
    %5237 = vmatpush1.msra.mxu0 0.0
    %5238 = vmatprep.subr.mxu0 0.0
    %5239 = vmatpush1.msra.mxu0 0.0
    %5240 = vmatprep.subr.mxu0 0.0
    %5241 = vmatpush1.msra.mxu0 0.0
    %5242 = vmatprep.subr.mxu0 0.0
    %5243 = vmatpush1.msra.mxu0 0.0
    %5244 = vmatprep.subr.mxu0 0.0
    %5245 = vmatpush1.msra.mxu0 0.0
    %5246 = vmatprep.subr.mxu0 0.0
    %5247 = vmatpush1.msra.mxu0 0.0
    %5248 = vmatprep.subr.mxu0 0.0
    %5249 = vmatpush1.msra.mxu0 0.0
    %5250 = vmatprep.subr.mxu0 0.0
    %5251 = vmatpush1.msra.mxu0 0.0
    %5252 = vmatprep.subr.mxu0 0.0
    %5253 = vmatpush1.msra.mxu0 0.0
    %5254 = vmatprep.subr.mxu0 0.0
    %5255 = vmatpush1.msra.mxu0 0.0
    %5256 = vmatprep.subr.mxu0 0.0
    %5257 = vmatpush1.msra.mxu0 %v5220
    %5258 = vmatprep.subr.mxu0 0.0
    %5259 = vmatpush1.msra.mxu0 %v5219
    %5260 = vmatprep.subr.mxu0 0.0
    %5261 = vmatpush1.msra.mxu0 %v5218
    %5262 = vmatprep.subr.mxu0 0.0
    %5263 = vmatpush1.msra.mxu0 %v5217
    %5264 = vmatprep.subr.mxu0 0.0
    %5265 = vmatpush2.msra.mxu0 0.0
    %5266 = vmatprep.subr.mxu0 0.0
    %5267 = vmatpush2.msra.mxu0 0.0
    %5268 = vmatprep.subr.mxu0 0.0
    %5269 = vmatpush2.msra.mxu0 0.0
    %5270 = vmatprep.subr.mxu0 0.0
    %5271 = vmatpush2.msra.mxu0 0.0
    %5272 = vmatprep.subr.mxu0 0.0
    %5273 = vmatpush2.msra.mxu0 0.0
    %5274 = vmatprep.subr.mxu0 0.0
    %5275 = vmatpush2.msra.mxu0 0.0
    %5276 = vmatprep.subr.mxu0 0.0
    %5277 = vmatpush2.msra.mxu0 0.0
    %5278 = vmatprep.subr.mxu0 0.0
    %5279 = vmatpush2.msra.mxu0 0.0
    %5280 = vmatprep.subr.mxu0 0.0
    %5281 = vmatpush2.msra.mxu0 0.0
    %5282 = vmatprep.subr.mxu0 0.0
    %5283 = vmatpush2.msra.mxu0 0.0
    %5284 = vmatprep.subr.mxu0 0.0
    %5285 = vmatpush2.msra.mxu0 0.0
    %5286 = vmatprep.subr.mxu0 0.0
    %5287 = vmatpush2.msra.mxu0 0.0
    %5288 = vmatprep.subr.mxu0 0.0
    %5289 = vmatpush2.msra.mxu0 0.0
    %5290 = vmatprep.subr.mxu0 0.0
    %5291 = vmatpush2.msra.mxu0 0.0
    %5292 = vmatprep.subr.mxu0 0.0
    %5293 = vmatpush2.msra.mxu0 0.0
    %5294 = vmatprep.subr.mxu0 0.0
    %5295 = vmatpush2.msra.mxu0 0.0
    %5296 = vmatprep.mubr.f32.mxu0 0.0
    %5297 = vmatmul.mubr.f32.gmra.mxu0 %v5230
    %v5298 = vpop.f32.mrf.mxu0
    %v5299 = vadd.f32 %v5227, %v5298
    %v5300 = vpop.f32.mrf.mxu0
    %5301 = vdwg.mxu0
    %s5302 = scalar_lea.vmem [#allocation9], 64
    %v5303 = vld [vmem:[%s5302] sm:$0xff]
    %v5304 = vld [vmem:[%s5302 + $0x8] sm:$0xff]
    %v5305 = vld [vmem:[%s5302 + $0x10] sm:$0xff]
    %v5306 = vld [vmem:[%s5302 + $0x18] sm:$0xff]
    %s5307 = scalar_lea.vmem [#allocation10], 2
    %v5308 = vld [vmem:[%s5307] sm:$0x1]
    %v5310 = vlaneseq
    %v5311 = vshrl.u32 %v5310, 7
    %v5312 = vsub.s32 0, %v5311
    %v5313 = vrot.slane %v5308, %v5312
    %v5316 = vsel %vm255, %v4653, 0
    %5318 = vmatprep.subr.mxu0 0.0
    %5319 = vmatpush1.msra.mxu0 0.0
    %5320 = vmatprep.subr.mxu0 0.0
    %5321 = vmatpush1.msra.mxu0 0.0
    %5322 = vmatprep.subr.mxu0 0.0
    %5323 = vmatpush1.msra.mxu0 0.0
    %5324 = vmatprep.subr.mxu0 0.0
    %5325 = vmatpush1.msra.mxu0 0.0
    %5326 = vmatprep.subr.mxu0 0.0
    %5327 = vmatpush1.msra.mxu0 0.0
    %5328 = vmatprep.subr.mxu0 0.0
    %5329 = vmatpush1.msra.mxu0 0.0
    %5330 = vmatprep.subr.mxu0 0.0
    %5331 = vmatpush1.msra.mxu0 0.0
    %5332 = vmatprep.subr.mxu0 0.0
    %5333 = vmatpush1.msra.mxu0 0.0
    %5334 = vmatprep.subr.mxu0 0.0
    %5335 = vmatpush1.msra.mxu0 0.0
    %5336 = vmatprep.subr.mxu0 0.0
    %5337 = vmatpush1.msra.mxu0 0.0
    %5338 = vmatprep.subr.mxu0 0.0
    %5339 = vmatpush1.msra.mxu0 0.0
    %5340 = vmatprep.subr.mxu0 0.0
    %5341 = vmatpush1.msra.mxu0 0.0
    %5342 = vmatprep.subr.mxu0 0.0
    %5343 = vmatpush1.msra.mxu0 %v5306
    %5344 = vmatprep.subr.mxu0 0.0
    %5345 = vmatpush1.msra.mxu0 %v5305
    %5346 = vmatprep.subr.mxu0 0.0
    %5347 = vmatpush1.msra.mxu0 %v5304
    %5348 = vmatprep.subr.mxu0 0.0
    %5349 = vmatpush1.msra.mxu0 %v5303
    %5350 = vmatprep.subr.mxu0 0.0
    %5351 = vmatpush2.msra.mxu0 0.0
    %5352 = vmatprep.subr.mxu0 0.0
    %5353 = vmatpush2.msra.mxu0 0.0
    %5354 = vmatprep.subr.mxu0 0.0
    %5355 = vmatpush2.msra.mxu0 0.0
    %5356 = vmatprep.subr.mxu0 0.0
    %5357 = vmatpush2.msra.mxu0 0.0
    %5358 = vmatprep.subr.mxu0 0.0
    %5359 = vmatpush2.msra.mxu0 0.0
    %5360 = vmatprep.subr.mxu0 0.0
    %5361 = vmatpush2.msra.mxu0 0.0
    %5362 = vmatprep.subr.mxu0 0.0
    %5363 = vmatpush2.msra.mxu0 0.0
    %5364 = vmatprep.subr.mxu0 0.0
    %5365 = vmatpush2.msra.mxu0 0.0
    %5366 = vmatprep.subr.mxu0 0.0
    %5367 = vmatpush2.msra.mxu0 0.0
    %5368 = vmatprep.subr.mxu0 0.0
    %5369 = vmatpush2.msra.mxu0 0.0
    %5370 = vmatprep.subr.mxu0 0.0
    %5371 = vmatpush2.msra.mxu0 0.0
    %5372 = vmatprep.subr.mxu0 0.0
    %5373 = vmatpush2.msra.mxu0 0.0
    %5374 = vmatprep.subr.mxu0 0.0
    %5375 = vmatpush2.msra.mxu0 0.0
    %5376 = vmatprep.subr.mxu0 0.0
    %5377 = vmatpush2.msra.mxu0 0.0
    %5378 = vmatprep.subr.mxu0 0.0
    %5379 = vmatpush2.msra.mxu0 0.0
    %5380 = vmatprep.subr.mxu0 0.0
    %5381 = vmatpush2.msra.mxu0 0.0
    %5382 = vmatprep.mubr.f32.mxu0 0.0
    %5383 = vmatmul.mubr.f32.gmra.mxu0 %v5316
    %v5384 = vpop.f32.mrf.mxu0
    %v5385 = vadd.f32 %v5313, %v5384
    %v5386 = vpop.f32.mrf.mxu0
    %5387 = vdwg.mxu0
    %s5388 = scalar_lea.vmem [#allocation12], 64
    %v5389 = vld [vmem:[%s5388] sm:$0xff]
    %v5390 = vld [vmem:[%s5388 + $0x8] sm:$0xff]
    %v5391 = vld [vmem:[%s5388 + $0x10] sm:$0xff]
    %v5392 = vld [vmem:[%s5388 + $0x18] sm:$0xff]
    %s5393 = scalar_lea.vmem [#allocation13], 2
    %v5394 = vld [vmem:[%s5393] sm:$0x1]
    %v5396 = vlaneseq
    %v5397 = vshrl.u32 %v5396, 7
    %v5398 = vsub.s32 0, %v5397
    %v5399 = vrot.slane %v5394, %v5398
    %v5402 = vsel %vm255, %v4929, 0
    %5404 = vmatprep.subr.mxu0 0.0
    %5405 = vmatpush1.msra.mxu0 0.0
    %5406 = vmatprep.subr.mxu0 0.0
    %5407 = vmatpush1.msra.mxu0 0.0
    %5408 = vmatprep.subr.mxu0 0.0
    %5409 = vmatpush1.msra.mxu0 0.0
    %5410 = vmatprep.subr.mxu0 0.0
    %5411 = vmatpush1.msra.mxu0 0.0
    %5412 = vmatprep.subr.mxu0 0.0
    %5413 = vmatpush1.msra.mxu0 0.0
    %5414 = vmatprep.subr.mxu0 0.0
    %5415 = vmatpush1.msra.mxu0 0.0
    %5416 = vmatprep.subr.mxu0 0.0
    %5417 = vmatpush1.msra.mxu0 0.0
    %5418 = vmatprep.subr.mxu0 0.0
    %5419 = vmatpush1.msra.mxu0 0.0
    %5420 = vmatprep.subr.mxu0 0.0
    %5421 = vmatpush1.msra.mxu0 0.0
    %5422 = vmatprep.subr.mxu0 0.0
    %5423 = vmatpush1.msra.mxu0 0.0
    %5424 = vmatprep.subr.mxu0 0.0
    %5425 = vmatpush1.msra.mxu0 0.0
    %5426 = vmatprep.subr.mxu0 0.0
    %5427 = vmatpush1.msra.mxu0 0.0
    %5428 = vmatprep.subr.mxu0 0.0
    %5429 = vmatpush1.msra.mxu0 %v5392
    %5430 = vmatprep.subr.mxu0 0.0
    %5431 = vmatpush1.msra.mxu0 %v5391
    %5432 = vmatprep.subr.mxu0 0.0
    %5433 = vmatpush1.msra.mxu0 %v5390
    %5434 = vmatprep.subr.mxu0 0.0
    %5435 = vmatpush1.msra.mxu0 %v5389
    %5436 = vmatprep.subr.mxu0 0.0
    %5437 = vmatpush2.msra.mxu0 0.0
    %5438 = vmatprep.subr.mxu0 0.0
    %5439 = vmatpush2.msra.mxu0 0.0
    %5440 = vmatprep.subr.mxu0 0.0
    %5441 = vmatpush2.msra.mxu0 0.0
    %5442 = vmatprep.subr.mxu0 0.0
    %5443 = vmatpush2.msra.mxu0 0.0
    %5444 = vmatprep.subr.mxu0 0.0
    %5445 = vmatpush2.msra.mxu0 0.0
    %5446 = vmatprep.subr.mxu0 0.0
    %5447 = vmatpush2.msra.mxu0 0.0
    %5448 = vmatprep.subr.mxu0 0.0
    %5449 = vmatpush2.msra.mxu0 0.0
    %5450 = vmatprep.subr.mxu0 0.0
    %5451 = vmatpush2.msra.mxu0 0.0
    %5452 = vmatprep.subr.mxu0 0.0
    %5453 = vmatpush2.msra.mxu0 0.0
    %5454 = vmatprep.subr.mxu0 0.0
    %5455 = vmatpush2.msra.mxu0 0.0
    %5456 = vmatprep.subr.mxu0 0.0
    %5457 = vmatpush2.msra.mxu0 0.0
    %5458 = vmatprep.subr.mxu0 0.0
    %5459 = vmatpush2.msra.mxu0 0.0
    %5460 = vmatprep.subr.mxu0 0.0
    %5461 = vmatpush2.msra.mxu0 0.0
    %5462 = vmatprep.subr.mxu0 0.0
    %5463 = vmatpush2.msra.mxu0 0.0
    %5464 = vmatprep.subr.mxu0 0.0
    %5465 = vmatpush2.msra.mxu0 0.0
    %5466 = vmatprep.subr.mxu0 0.0
    %5467 = vmatpush2.msra.mxu0 0.0
    %5468 = vmatprep.mubr.f32.mxu0 0.0
    %5469 = vmatmul.mubr.f32.gmra.mxu0 %v5402
    %v5470 = vpop.f32.mrf.mxu0
    %v5471 = vadd.f32 %v5399, %v5470
    %v5472 = vpop.f32.mrf.mxu0
    %5473 = vdwg.mxu0
    %s5474 = scalar_lea.vmem [#allocation15], 64
    %v5475 = vld [vmem:[%s5474] sm:$0xff]
    %v5476 = vld [vmem:[%s5474 + $0x8] sm:$0xff]
    %v5477 = vld [vmem:[%s5474 + $0x10] sm:$0xff]
    %v5478 = vld [vmem:[%s5474 + $0x18] sm:$0xff]
    %v5479 = vmul.f32 %v5299, 0.35355338
    %v5481 = vsel %vm1338, %v5479, 0
    %v5484 = vsel %vm1338, %v5385, 0
    %5486 = vmatprep.subr.mxu0 0.0
    %5487 = vmatpush1.xpose.msra.mxu0 0.0
    %5488 = vmatprep.subr.mxu0 0.0
    %5489 = vmatpush1.xpose.msra.mxu0 0.0
    %5490 = vmatprep.subr.mxu0 0.0
    %5491 = vmatpush1.xpose.msra.mxu0 0.0
    %5492 = vmatprep.subr.mxu0 0.0
    %5493 = vmatpush1.xpose.msra.mxu0 0.0
    %5494 = vmatprep.subr.mxu0 0.0
    %5495 = vmatpush1.xpose.msra.mxu0 0.0
    %5496 = vmatprep.subr.mxu0 0.0
    %5497 = vmatpush1.xpose.msra.mxu0 0.0
    %5498 = vmatprep.subr.mxu0 0.0
    %5499 = vmatpush1.xpose.msra.mxu0 0.0
    %5500 = vmatprep.subr.mxu0 0.0
    %5501 = vmatpush1.xpose.msra.mxu0 0.0
    %5502 = vmatprep.subr.mxu0 0.0
    %5503 = vmatpush1.xpose.msra.mxu0 0.0
    %5504 = vmatprep.subr.mxu0 0.0
    %5505 = vmatpush1.xpose.msra.mxu0 0.0
    %5506 = vmatprep.subr.mxu0 0.0
    %5507 = vmatpush1.xpose.msra.mxu0 0.0
    %5508 = vmatprep.subr.mxu0 0.0
    %5509 = vmatpush1.xpose.msra.mxu0 0.0
    %5510 = vmatprep.subr.mxu0 0.0
    %5511 = vmatpush1.xpose.msra.mxu0 0.0
    %5512 = vmatprep.subr.mxu0 0.0
    %5513 = vmatpush1.xpose.msra.mxu0 0.0
    %5514 = vmatprep.subr.mxu0 0.0
    %5515 = vmatpush1.xpose.msra.mxu0 0.0
    %5516 = vmatprep.subr.mxu0 0.0
    %5517 = vmatpush1.xpose.msra.mxu0 %v5484
    %5518 = vmatprep.subr.mxu0 0.0
    %5519 = vmatpush2.xpose.msra.mxu0 0.0
    %5520 = vmatprep.subr.mxu0 0.0
    %5521 = vmatpush2.xpose.msra.mxu0 0.0
    %5522 = vmatprep.subr.mxu0 0.0
    %5523 = vmatpush2.xpose.msra.mxu0 0.0
    %5524 = vmatprep.subr.mxu0 0.0
    %5525 = vmatpush2.xpose.msra.mxu0 0.0
    %5526 = vmatprep.subr.mxu0 0.0
    %5527 = vmatpush2.xpose.msra.mxu0 0.0
    %5528 = vmatprep.subr.mxu0 0.0
    %5529 = vmatpush2.xpose.msra.mxu0 0.0
    %5530 = vmatprep.subr.mxu0 0.0
    %5531 = vmatpush2.xpose.msra.mxu0 0.0
    %5532 = vmatprep.subr.mxu0 0.0
    %5533 = vmatpush2.xpose.msra.mxu0 0.0
    %5534 = vmatprep.subr.mxu0 0.0
    %5535 = vmatpush2.xpose.msra.mxu0 0.0
    %5536 = vmatprep.subr.mxu0 0.0
    %5537 = vmatpush2.xpose.msra.mxu0 0.0
    %5538 = vmatprep.subr.mxu0 0.0
    %5539 = vmatpush2.xpose.msra.mxu0 0.0
    %5540 = vmatprep.subr.mxu0 0.0
    %5541 = vmatpush2.xpose.msra.mxu0 0.0
    %5542 = vmatprep.subr.mxu0 0.0
    %5543 = vmatpush2.xpose.msra.mxu0 0.0
    %5544 = vmatprep.subr.mxu0 0.0
    %5545 = vmatpush2.xpose.msra.mxu0 0.0
    %5546 = vmatprep.subr.mxu0 0.0
    %5547 = vmatpush2.xpose.msra.mxu0 0.0
    %5548 = vmatprep.subr.mxu0 0.0
    %5549 = vmatpush2.xpose.msra.mxu0 0.0
    %5550 = vmatprep.mubr.f32.mxu0 0.0
    %5551 = vmatmul.mubr.f32.gmra.mxu0 %v5481
    %v5552 = vpop.f32.mrf.mxu0
    %v5553 = vadd.f32 0.0, %v5552
    %v5554 = vpop.f32.mrf.mxu0
    %5555 = vdwg.mxu0
    %v5556 = vsel %vm1415, %v5553, -inf
    %5557 = vmax.xlane.f32.xlu0 %v5556
    %v5558 = vpop.xlane.xlu0 %5557
    %v5559 = vsub.f32 %v5553, %v5558
    %v5560 = vmul.f32 %v5559, 1.442695
    %v5561 = vpow.pop %v5560
    %v5562 = vsel %vm1415, %v5561, 0.0
    %5563 = vadd.xlane.f32.xlu0 %v5562
    %v5564 = vpop.xlane.xlu0 %5563
    %v5565 = vrcp.pop %v5564
    %v5566 = vmul.f32 %v5561, %v5565
    %v5568 = vsel %vm1427, %v5566, 0
    %v5571 = vsel %vm1431, %v5471, 0
    %5573 = vmatprep.subr.mxu0 0.0
    %5574 = vmatpush1.msra.mxu0 0.0
    %5575 = vmatprep.subr.mxu0 0.0
    %5576 = vmatpush1.msra.mxu0 0.0
    %5577 = vmatprep.subr.mxu0 0.0
    %5578 = vmatpush1.msra.mxu0 0.0
    %5579 = vmatprep.subr.mxu0 0.0
    %5580 = vmatpush1.msra.mxu0 0.0
    %5581 = vmatprep.subr.mxu0 0.0
    %5582 = vmatpush1.msra.mxu0 0.0
    %5583 = vmatprep.subr.mxu0 0.0
    %5584 = vmatpush1.msra.mxu0 0.0
    %5585 = vmatprep.subr.mxu0 0.0
    %5586 = vmatpush1.msra.mxu0 0.0
    %5587 = vmatprep.subr.mxu0 0.0
    %5588 = vmatpush1.msra.mxu0 0.0
    %5589 = vmatprep.subr.mxu0 0.0
    %5590 = vmatpush1.msra.mxu0 0.0
    %5591 = vmatprep.subr.mxu0 0.0
    %5592 = vmatpush1.msra.mxu0 0.0
    %5593 = vmatprep.subr.mxu0 0.0
    %5594 = vmatpush1.msra.mxu0 0.0
    %5595 = vmatprep.subr.mxu0 0.0
    %5596 = vmatpush1.msra.mxu0 0.0
    %5597 = vmatprep.subr.mxu0 0.0
    %5598 = vmatpush1.msra.mxu0 0.0
    %5599 = vmatprep.subr.mxu0 0.0
    %5600 = vmatpush1.msra.mxu0 0.0
    %5601 = vmatprep.subr.mxu0 0.0
    %5602 = vmatpush1.msra.mxu0 0.0
    %5603 = vmatprep.subr.mxu0 0.0
    %5604 = vmatpush1.msra.mxu0 %v5571
    %5605 = vmatprep.subr.mxu0 0.0
    %5606 = vmatpush2.msra.mxu0 0.0
    %5607 = vmatprep.subr.mxu0 0.0
    %5608 = vmatpush2.msra.mxu0 0.0
    %5609 = vmatprep.subr.mxu0 0.0
    %5610 = vmatpush2.msra.mxu0 0.0
    %5611 = vmatprep.subr.mxu0 0.0
    %5612 = vmatpush2.msra.mxu0 0.0
    %5613 = vmatprep.subr.mxu0 0.0
    %5614 = vmatpush2.msra.mxu0 0.0
    %5615 = vmatprep.subr.mxu0 0.0
    %5616 = vmatpush2.msra.mxu0 0.0
    %5617 = vmatprep.subr.mxu0 0.0
    %5618 = vmatpush2.msra.mxu0 0.0
    %5619 = vmatprep.subr.mxu0 0.0
    %5620 = vmatpush2.msra.mxu0 0.0
    %5621 = vmatprep.subr.mxu0 0.0
    %5622 = vmatpush2.msra.mxu0 0.0
    %5623 = vmatprep.subr.mxu0 0.0
    %5624 = vmatpush2.msra.mxu0 0.0
    %5625 = vmatprep.subr.mxu0 0.0
    %5626 = vmatpush2.msra.mxu0 0.0
    %5627 = vmatprep.subr.mxu0 0.0
    %5628 = vmatpush2.msra.mxu0 0.0
    %5629 = vmatprep.subr.mxu0 0.0
    %5630 = vmatpush2.msra.mxu0 0.0
    %5631 = vmatprep.subr.mxu0 0.0
    %5632 = vmatpush2.msra.mxu0 0.0
    %5633 = vmatprep.subr.mxu0 0.0
    %5634 = vmatpush2.msra.mxu0 0.0
    %5635 = vmatprep.subr.mxu0 0.0
    %5636 = vmatpush2.msra.mxu0 0.0
    %5637 = vmatprep.mubr.f32.mxu0 0.0
    %5638 = vmatmul.mubr.f32.gmra.mxu0 %v5568
    %v5639 = vpop.f32.mrf.mxu0
    %v5640 = vadd.f32 0.0, %v5639
    %v5641 = vpop.f32.mrf.mxu0
    %5642 = vdwg.mxu0
    %5643 = vrot.lane.b32.xlu0 %v5479, 120
    %v5644 = vpop.permute.xlu0 %5643
    %5645 = vrot.lane.b32.xlu0 %v5385, 120
    %v5646 = vpop.permute.xlu0 %5645
    %v5647 = vsel %vm1338, %v5644, 0
    %v5649 = vsel %vm1338, %v5646, 0
    %5651 = vmatprep.subr.mxu0 0.0
    %5652 = vmatpush1.xpose.msra.mxu0 0.0
    %5653 = vmatprep.subr.mxu0 0.0
    %5654 = vmatpush1.xpose.msra.mxu0 0.0
    %5655 = vmatprep.subr.mxu0 0.0
    %5656 = vmatpush1.xpose.msra.mxu0 0.0
    %5657 = vmatprep.subr.mxu0 0.0
    %5658 = vmatpush1.xpose.msra.mxu0 0.0
    %5659 = vmatprep.subr.mxu0 0.0
    %5660 = vmatpush1.xpose.msra.mxu0 0.0
    %5661 = vmatprep.subr.mxu0 0.0
    %5662 = vmatpush1.xpose.msra.mxu0 0.0
    %5663 = vmatprep.subr.mxu0 0.0
    %5664 = vmatpush1.xpose.msra.mxu0 0.0
    %5665 = vmatprep.subr.mxu0 0.0
    %5666 = vmatpush1.xpose.msra.mxu0 0.0
    %5667 = vmatprep.subr.mxu0 0.0
    %5668 = vmatpush1.xpose.msra.mxu0 0.0
    %5669 = vmatprep.subr.mxu0 0.0
    %5670 = vmatpush1.xpose.msra.mxu0 0.0
    %5671 = vmatprep.subr.mxu0 0.0
    %5672 = vmatpush1.xpose.msra.mxu0 0.0
    %5673 = vmatprep.subr.mxu0 0.0
    %5674 = vmatpush1.xpose.msra.mxu0 0.0
    %5675 = vmatprep.subr.mxu0 0.0
    %5676 = vmatpush1.xpose.msra.mxu0 0.0
    %5677 = vmatprep.subr.mxu0 0.0
    %5678 = vmatpush1.xpose.msra.mxu0 0.0
    %5679 = vmatprep.subr.mxu0 0.0
    %5680 = vmatpush1.xpose.msra.mxu0 0.0
    %5681 = vmatprep.subr.mxu0 0.0
    %5682 = vmatpush1.xpose.msra.mxu0 %v5649
    %5683 = vmatprep.subr.mxu0 0.0
    %5684 = vmatpush2.xpose.msra.mxu0 0.0
    %5685 = vmatprep.subr.mxu0 0.0
    %5686 = vmatpush2.xpose.msra.mxu0 0.0
    %5687 = vmatprep.subr.mxu0 0.0
    %5688 = vmatpush2.xpose.msra.mxu0 0.0
    %5689 = vmatprep.subr.mxu0 0.0
    %5690 = vmatpush2.xpose.msra.mxu0 0.0
    %5691 = vmatprep.subr.mxu0 0.0
    %5692 = vmatpush2.xpose.msra.mxu0 0.0
    %5693 = vmatprep.subr.mxu0 0.0
    %5694 = vmatpush2.xpose.msra.mxu0 0.0
    %5695 = vmatprep.subr.mxu0 0.0
    %5696 = vmatpush2.xpose.msra.mxu0 0.0
    %5697 = vmatprep.subr.mxu0 0.0
    %5698 = vmatpush2.xpose.msra.mxu0 0.0
    %5699 = vmatprep.subr.mxu0 0.0
    %5700 = vmatpush2.xpose.msra.mxu0 0.0
    %5701 = vmatprep.subr.mxu0 0.0
    %5702 = vmatpush2.xpose.msra.mxu0 0.0
    %5703 = vmatprep.subr.mxu0 0.0
    %5704 = vmatpush2.xpose.msra.mxu0 0.0
    %5705 = vmatprep.subr.mxu0 0.0
    %5706 = vmatpush2.xpose.msra.mxu0 0.0
    %5707 = vmatprep.subr.mxu0 0.0
    %5708 = vmatpush2.xpose.msra.mxu0 0.0
    %5709 = vmatprep.subr.mxu0 0.0
    %5710 = vmatpush2.xpose.msra.mxu0 0.0
    %5711 = vmatprep.subr.mxu0 0.0
    %5712 = vmatpush2.xpose.msra.mxu0 0.0
    %5713 = vmatprep.subr.mxu0 0.0
    %5714 = vmatpush2.xpose.msra.mxu0 0.0
    %5715 = vmatprep.mubr.f32.mxu0 0.0
    %5716 = vmatmul.mubr.f32.gmra.mxu0 %v5647
    %v5717 = vpop.f32.mrf.mxu0
    %v5718 = vadd.f32 0.0, %v5717
    %v5719 = vpop.f32.mrf.mxu0
    %5720 = vdwg.mxu0
    %v5721 = vsel %vm1415, %v5718, -inf
    %5722 = vmax.xlane.f32.xlu0 %v5721
    %v5723 = vpop.xlane.xlu0 %5722
    %v5724 = vsub.f32 %v5718, %v5723
    %v5725 = vmul.f32 %v5724, 1.442695
    %v5726 = vpow.pop %v5725
    %v5727 = vsel %vm1415, %v5726, 0.0
    %5728 = vadd.xlane.f32.xlu0 %v5727
    %v5729 = vpop.xlane.xlu0 %5728
    %v5730 = vrcp.pop %v5729
    %v5731 = vmul.f32 %v5726, %v5730
    %5732 = vrot.lane.b32.xlu0 %v5471, 120
    %v5733 = vpop.permute.xlu0 %5732
    %v5735 = vsel %vm1427, %v5731, 0
    %v5737 = vsel %vm1431, %v5733, 0
    %5739 = vmatprep.subr.mxu0 0.0
    %5740 = vmatpush1.msra.mxu0 0.0
    %5741 = vmatprep.subr.mxu0 0.0
    %5742 = vmatpush1.msra.mxu0 0.0
    %5743 = vmatprep.subr.mxu0 0.0
    %5744 = vmatpush1.msra.mxu0 0.0
    %5745 = vmatprep.subr.mxu0 0.0
    %5746 = vmatpush1.msra.mxu0 0.0
    %5747 = vmatprep.subr.mxu0 0.0
    %5748 = vmatpush1.msra.mxu0 0.0
    %5749 = vmatprep.subr.mxu0 0.0
    %5750 = vmatpush1.msra.mxu0 0.0
    %5751 = vmatprep.subr.mxu0 0.0
    %5752 = vmatpush1.msra.mxu0 0.0
    %5753 = vmatprep.subr.mxu0 0.0
    %5754 = vmatpush1.msra.mxu0 0.0
    %5755 = vmatprep.subr.mxu0 0.0
    %5756 = vmatpush1.msra.mxu0 0.0
    %5757 = vmatprep.subr.mxu0 0.0
    %5758 = vmatpush1.msra.mxu0 0.0
    %5759 = vmatprep.subr.mxu0 0.0
    %5760 = vmatpush1.msra.mxu0 0.0
    %5761 = vmatprep.subr.mxu0 0.0
    %5762 = vmatpush1.msra.mxu0 0.0
    %5763 = vmatprep.subr.mxu0 0.0
    %5764 = vmatpush1.msra.mxu0 0.0
    %5765 = vmatprep.subr.mxu0 0.0
    %5766 = vmatpush1.msra.mxu0 0.0
    %5767 = vmatprep.subr.mxu0 0.0
    %5768 = vmatpush1.msra.mxu0 0.0
    %5769 = vmatprep.subr.mxu0 0.0
    %5770 = vmatpush1.msra.mxu0 %v5737
    %5771 = vmatprep.subr.mxu0 0.0
    %5772 = vmatpush2.msra.mxu0 0.0
    %5773 = vmatprep.subr.mxu0 0.0
    %5774 = vmatpush2.msra.mxu0 0.0
    %5775 = vmatprep.subr.mxu0 0.0
    %5776 = vmatpush2.msra.mxu0 0.0
    %5777 = vmatprep.subr.mxu0 0.0
    %5778 = vmatpush2.msra.mxu0 0.0
    %5779 = vmatprep.subr.mxu0 0.0
    %5780 = vmatpush2.msra.mxu0 0.0
    %5781 = vmatprep.subr.mxu0 0.0
    %5782 = vmatpush2.msra.mxu0 0.0
    %5783 = vmatprep.subr.mxu0 0.0
    %5784 = vmatpush2.msra.mxu0 0.0
    %5785 = vmatprep.subr.mxu0 0.0
    %5786 = vmatpush2.msra.mxu0 0.0
    %5787 = vmatprep.subr.mxu0 0.0
    %5788 = vmatpush2.msra.mxu0 0.0
    %5789 = vmatprep.subr.mxu0 0.0
    %5790 = vmatpush2.msra.mxu0 0.0
    %5791 = vmatprep.subr.mxu0 0.0
    %5792 = vmatpush2.msra.mxu0 0.0
    %5793 = vmatprep.subr.mxu0 0.0
    %5794 = vmatpush2.msra.mxu0 0.0
    %5795 = vmatprep.subr.mxu0 0.0
    %5796 = vmatpush2.msra.mxu0 0.0
    %5797 = vmatprep.subr.mxu0 0.0
    %5798 = vmatpush2.msra.mxu0 0.0
    %5799 = vmatprep.subr.mxu0 0.0
    %5800 = vmatpush2.msra.mxu0 0.0
    %5801 = vmatprep.subr.mxu0 0.0
    %5802 = vmatpush2.msra.mxu0 0.0
    %5803 = vmatprep.mubr.f32.mxu0 0.0
    %5804 = vmatmul.mubr.f32.gmra.mxu0 %v5735
    %v5805 = vpop.f32.mrf.mxu0
    %v5806 = vadd.f32 0.0, %v5805
    %v5807 = vpop.f32.mrf.mxu0
    %5808 = vdwg.mxu0
    %v5810 = vsel %vm1338, %v5806, 0
    %5812 = vmatprep.subr.mxu0 0.0
    %5813 = vmatpush1.msra.mxu0 0.0
    %5814 = vmatprep.subr.mxu0 0.0
    %5815 = vmatpush1.msra.mxu0 0.0
    %5816 = vmatprep.subr.mxu0 0.0
    %5817 = vmatpush1.msra.mxu0 0.0
    %5818 = vmatprep.subr.mxu0 0.0
    %5819 = vmatpush1.msra.mxu0 0.0
    %5820 = vmatprep.subr.mxu0 0.0
    %5821 = vmatpush1.msra.mxu0 0.0
    %5822 = vmatprep.subr.mxu0 0.0
    %5823 = vmatpush1.msra.mxu0 0.0
    %5824 = vmatprep.subr.mxu0 0.0
    %5825 = vmatpush1.msra.mxu0 0.0
    %5826 = vmatprep.subr.mxu0 0.0
    %5827 = vmatpush1.msra.mxu0 0.0
    %5828 = vmatprep.subr.mxu0 0.0
    %5829 = vmatpush1.msra.mxu0 0.0
    %5830 = vmatprep.subr.mxu0 0.0
    %5831 = vmatpush1.msra.mxu0 0.0
    %5832 = vmatprep.subr.mxu0 0.0
    %5833 = vmatpush1.msra.mxu0 0.0
    %5834 = vmatprep.subr.mxu0 0.0
    %5835 = vmatpush1.msra.mxu0 0.0
    %5836 = vmatprep.subr.mxu0 0.0
    %5837 = vmatpush1.msra.mxu0 0.0
    %5838 = vmatprep.subr.mxu0 0.0
    %5839 = vmatpush1.msra.mxu0 0.0
    %5840 = vmatprep.subr.mxu0 0.0
    %5841 = vmatpush1.msra.mxu0 0.0
    %5842 = vmatprep.subr.mxu0 0.0
    %5843 = vmatpush1.msra.mxu0 %v5476
    %5844 = vmatprep.subr.mxu0 0.0
    %5845 = vmatpush2.msra.mxu0 0.0
    %5846 = vmatprep.subr.mxu0 0.0
    %5847 = vmatpush2.msra.mxu0 0.0
    %5848 = vmatprep.subr.mxu0 0.0
    %5849 = vmatpush2.msra.mxu0 0.0
    %5850 = vmatprep.subr.mxu0 0.0
    %5851 = vmatpush2.msra.mxu0 0.0
    %5852 = vmatprep.subr.mxu0 0.0
    %5853 = vmatpush2.msra.mxu0 0.0
    %5854 = vmatprep.subr.mxu0 0.0
    %5855 = vmatpush2.msra.mxu0 0.0
    %5856 = vmatprep.subr.mxu0 0.0
    %5857 = vmatpush2.msra.mxu0 0.0
    %5858 = vmatprep.subr.mxu0 0.0
    %5859 = vmatpush2.msra.mxu0 0.0
    %5860 = vmatprep.subr.mxu0 0.0
    %5861 = vmatpush2.msra.mxu0 0.0
    %5862 = vmatprep.subr.mxu0 0.0
    %5863 = vmatpush2.msra.mxu0 0.0
    %5864 = vmatprep.subr.mxu0 0.0
    %5865 = vmatpush2.msra.mxu0 0.0
    %5866 = vmatprep.subr.mxu0 0.0
    %5867 = vmatpush2.msra.mxu0 0.0
    %5868 = vmatprep.subr.mxu0 0.0
    %5869 = vmatpush2.msra.mxu0 0.0
    %5870 = vmatprep.subr.mxu0 0.0
    %5871 = vmatpush2.msra.mxu0 0.0
    %5872 = vmatprep.subr.mxu0 0.0
    %5873 = vmatpush2.msra.mxu0 0.0
    %5874 = vmatprep.subr.mxu0 0.0
    %5875 = vmatpush2.msra.mxu0 0.0
    %5876 = vmatprep.mubr.f32.mxu0 0.0
    %5877 = vmatmul.mubr.f32.gmra.mxu0 %v5810
    %v5878 = vpop.f32.mrf.mxu0
    %v5879 = vadd.f32 0.0, %v5878
    %v5880 = vpop.f32.mrf.mxu0
    %5881 = vdwg.mxu0
    %v5883 = vsel %vm1338, %v5640, 0
    %5885 = vmatprep.subr.mxu0 0.0
    %5886 = vmatpush1.msra.mxu0 0.0
    %5887 = vmatprep.subr.mxu0 0.0
    %5888 = vmatpush1.msra.mxu0 0.0
    %5889 = vmatprep.subr.mxu0 0.0
    %5890 = vmatpush1.msra.mxu0 0.0
    %5891 = vmatprep.subr.mxu0 0.0
    %5892 = vmatpush1.msra.mxu0 0.0
    %5893 = vmatprep.subr.mxu0 0.0
    %5894 = vmatpush1.msra.mxu0 0.0
    %5895 = vmatprep.subr.mxu0 0.0
    %5896 = vmatpush1.msra.mxu0 0.0
    %5897 = vmatprep.subr.mxu0 0.0
    %5898 = vmatpush1.msra.mxu0 0.0
    %5899 = vmatprep.subr.mxu0 0.0
    %5900 = vmatpush1.msra.mxu0 0.0
    %5901 = vmatprep.subr.mxu0 0.0
    %5902 = vmatpush1.msra.mxu0 0.0
    %5903 = vmatprep.subr.mxu0 0.0
    %5904 = vmatpush1.msra.mxu0 0.0
    %5905 = vmatprep.subr.mxu0 0.0
    %5906 = vmatpush1.msra.mxu0 0.0
    %5907 = vmatprep.subr.mxu0 0.0
    %5908 = vmatpush1.msra.mxu0 0.0
    %5909 = vmatprep.subr.mxu0 0.0
    %5910 = vmatpush1.msra.mxu0 0.0
    %5911 = vmatprep.subr.mxu0 0.0
    %5912 = vmatpush1.msra.mxu0 0.0
    %5913 = vmatprep.subr.mxu0 0.0
    %5914 = vmatpush1.msra.mxu0 0.0
    %5915 = vmatprep.subr.mxu0 0.0
    %5916 = vmatpush1.msra.mxu0 %v5475
    %5917 = vmatprep.subr.mxu0 0.0
    %5918 = vmatpush2.msra.mxu0 0.0
    %5919 = vmatprep.subr.mxu0 0.0
    %5920 = vmatpush2.msra.mxu0 0.0
    %5921 = vmatprep.subr.mxu0 0.0
    %5922 = vmatpush2.msra.mxu0 0.0
    %5923 = vmatprep.subr.mxu0 0.0
    %5924 = vmatpush2.msra.mxu0 0.0
    %5925 = vmatprep.subr.mxu0 0.0
    %5926 = vmatpush2.msra.mxu0 0.0
    %5927 = vmatprep.subr.mxu0 0.0
    %5928 = vmatpush2.msra.mxu0 0.0
    %5929 = vmatprep.subr.mxu0 0.0
    %5930 = vmatpush2.msra.mxu0 0.0
    %5931 = vmatprep.subr.mxu0 0.0
    %5932 = vmatpush2.msra.mxu0 0.0
    %5933 = vmatprep.subr.mxu0 0.0
    %5934 = vmatpush2.msra.mxu0 0.0
    %5935 = vmatprep.subr.mxu0 0.0
    %5936 = vmatpush2.msra.mxu0 0.0
    %5937 = vmatprep.subr.mxu0 0.0
    %5938 = vmatpush2.msra.mxu0 0.0
    %5939 = vmatprep.subr.mxu0 0.0
    %5940 = vmatpush2.msra.mxu0 0.0
    %5941 = vmatprep.subr.mxu0 0.0
    %5942 = vmatpush2.msra.mxu0 0.0
    %5943 = vmatprep.subr.mxu0 0.0
    %5944 = vmatpush2.msra.mxu0 0.0
    %5945 = vmatprep.subr.mxu0 0.0
    %5946 = vmatpush2.msra.mxu0 0.0
    %5947 = vmatprep.subr.mxu0 0.0
    %5948 = vmatpush2.msra.mxu0 0.0
    %5949 = vmatprep.mubr.f32.mxu0 0.0
    %5950 = vmatmul.mubr.f32.gmra.mxu0 %v5883
    %v5951 = vpop.f32.mrf.mxu0
    %v5952 = vadd.f32 %v5879, %v5951
    %v5953 = vpop.f32.mrf.mxu0
    %5954 = vdwg.mxu0
    %5955 = vrot.lane.b32.xlu0 %v5479, 112
    %v5956 = vpop.permute.xlu0 %5955
    %5957 = vrot.lane.b32.xlu0 %v5385, 112
    %v5958 = vpop.permute.xlu0 %5957
    %v5959 = vsel %vm1338, %v5956, 0
    %v5961 = vsel %vm1338, %v5958, 0
    %5963 = vmatprep.subr.mxu0 0.0
    %5964 = vmatpush1.xpose.msra.mxu0 0.0
    %5965 = vmatprep.subr.mxu0 0.0
    %5966 = vmatpush1.xpose.msra.mxu0 0.0
    %5967 = vmatprep.subr.mxu0 0.0
    %5968 = vmatpush1.xpose.msra.mxu0 0.0
    %5969 = vmatprep.subr.mxu0 0.0
    %5970 = vmatpush1.xpose.msra.mxu0 0.0
    %5971 = vmatprep.subr.mxu0 0.0
    %5972 = vmatpush1.xpose.msra.mxu0 0.0
    %5973 = vmatprep.subr.mxu0 0.0
    %5974 = vmatpush1.xpose.msra.mxu0 0.0
    %5975 = vmatprep.subr.mxu0 0.0
    %5976 = vmatpush1.xpose.msra.mxu0 0.0
    %5977 = vmatprep.subr.mxu0 0.0
    %5978 = vmatpush1.xpose.msra.mxu0 0.0
    %5979 = vmatprep.subr.mxu0 0.0
    %5980 = vmatpush1.xpose.msra.mxu0 0.0
    %5981 = vmatprep.subr.mxu0 0.0
    %5982 = vmatpush1.xpose.msra.mxu0 0.0
    %5983 = vmatprep.subr.mxu0 0.0
    %5984 = vmatpush1.xpose.msra.mxu0 0.0
    %5985 = vmatprep.subr.mxu0 0.0
    %5986 = vmatpush1.xpose.msra.mxu0 0.0
    %5987 = vmatprep.subr.mxu0 0.0
    %5988 = vmatpush1.xpose.msra.mxu0 0.0
    %5989 = vmatprep.subr.mxu0 0.0
    %5990 = vmatpush1.xpose.msra.mxu0 0.0
    %5991 = vmatprep.subr.mxu0 0.0
    %5992 = vmatpush1.xpose.msra.mxu0 0.0
    %5993 = vmatprep.subr.mxu0 0.0
    %5994 = vmatpush1.xpose.msra.mxu0 %v5961
    %5995 = vmatprep.subr.mxu0 0.0
    %5996 = vmatpush2.xpose.msra.mxu0 0.0
    %5997 = vmatprep.subr.mxu0 0.0
    %5998 = vmatpush2.xpose.msra.mxu0 0.0
    %5999 = vmatprep.subr.mxu0 0.0
    %6000 = vmatpush2.xpose.msra.mxu0 0.0
    %6001 = vmatprep.subr.mxu0 0.0
    %6002 = vmatpush2.xpose.msra.mxu0 0.0
    %6003 = vmatprep.subr.mxu0 0.0
    %6004 = vmatpush2.xpose.msra.mxu0 0.0
    %6005 = vmatprep.subr.mxu0 0.0
    %6006 = vmatpush2.xpose.msra.mxu0 0.0
    %6007 = vmatprep.subr.mxu0 0.0
    %6008 = vmatpush2.xpose.msra.mxu0 0.0
    %6009 = vmatprep.subr.mxu0 0.0
    %6010 = vmatpush2.xpose.msra.mxu0 0.0
    %6011 = vmatprep.subr.mxu0 0.0
    %6012 = vmatpush2.xpose.msra.mxu0 0.0
    %6013 = vmatprep.subr.mxu0 0.0
    %6014 = vmatpush2.xpose.msra.mxu0 0.0
    %6015 = vmatprep.subr.mxu0 0.0
    %6016 = vmatpush2.xpose.msra.mxu0 0.0
    %6017 = vmatprep.subr.mxu0 0.0
    %6018 = vmatpush2.xpose.msra.mxu0 0.0
    %6019 = vmatprep.subr.mxu0 0.0
    %6020 = vmatpush2.xpose.msra.mxu0 0.0
    %6021 = vmatprep.subr.mxu0 0.0
    %6022 = vmatpush2.xpose.msra.mxu0 0.0
    %6023 = vmatprep.subr.mxu0 0.0
    %6024 = vmatpush2.xpose.msra.mxu0 0.0
    %6025 = vmatprep.subr.mxu0 0.0
    %6026 = vmatpush2.xpose.msra.mxu0 0.0
    %6027 = vmatprep.mubr.f32.mxu0 0.0
    %6028 = vmatmul.mubr.f32.gmra.mxu0 %v5959
    %v6029 = vpop.f32.mrf.mxu0
    %v6030 = vadd.f32 0.0, %v6029
    %v6031 = vpop.f32.mrf.mxu0
    %6032 = vdwg.mxu0
    %v6033 = vsel %vm1415, %v6030, -inf
    %6034 = vmax.xlane.f32.xlu0 %v6033
    %v6035 = vpop.xlane.xlu0 %6034
    %v6036 = vsub.f32 %v6030, %v6035
    %v6037 = vmul.f32 %v6036, 1.442695
    %v6038 = vpow.pop %v6037
    %v6039 = vsel %vm1415, %v6038, 0.0
    %6040 = vadd.xlane.f32.xlu0 %v6039
    %v6041 = vpop.xlane.xlu0 %6040
    %v6042 = vrcp.pop %v6041
    %v6043 = vmul.f32 %v6038, %v6042
    %6044 = vrot.lane.b32.xlu0 %v5471, 112
    %v6045 = vpop.permute.xlu0 %6044
    %v6047 = vsel %vm1427, %v6043, 0
    %v6049 = vsel %vm1431, %v6045, 0
    %6051 = vmatprep.subr.mxu0 0.0
    %6052 = vmatpush1.msra.mxu0 0.0
    %6053 = vmatprep.subr.mxu0 0.0
    %6054 = vmatpush1.msra.mxu0 0.0
    %6055 = vmatprep.subr.mxu0 0.0
    %6056 = vmatpush1.msra.mxu0 0.0
    %6057 = vmatprep.subr.mxu0 0.0
    %6058 = vmatpush1.msra.mxu0 0.0
    %6059 = vmatprep.subr.mxu0 0.0
    %6060 = vmatpush1.msra.mxu0 0.0
    %6061 = vmatprep.subr.mxu0 0.0
    %6062 = vmatpush1.msra.mxu0 0.0
    %6063 = vmatprep.subr.mxu0 0.0
    %6064 = vmatpush1.msra.mxu0 0.0
    %6065 = vmatprep.subr.mxu0 0.0
    %6066 = vmatpush1.msra.mxu0 0.0
    %6067 = vmatprep.subr.mxu0 0.0
    %6068 = vmatpush1.msra.mxu0 0.0
    %6069 = vmatprep.subr.mxu0 0.0
    %6070 = vmatpush1.msra.mxu0 0.0
    %6071 = vmatprep.subr.mxu0 0.0
    %6072 = vmatpush1.msra.mxu0 0.0
    %6073 = vmatprep.subr.mxu0 0.0
    %6074 = vmatpush1.msra.mxu0 0.0
    %6075 = vmatprep.subr.mxu0 0.0
    %6076 = vmatpush1.msra.mxu0 0.0
    %6077 = vmatprep.subr.mxu0 0.0
    %6078 = vmatpush1.msra.mxu0 0.0
    %6079 = vmatprep.subr.mxu0 0.0
    %6080 = vmatpush1.msra.mxu0 0.0
    %6081 = vmatprep.subr.mxu0 0.0
    %6082 = vmatpush1.msra.mxu0 %v6049
    %6083 = vmatprep.subr.mxu0 0.0
    %6084 = vmatpush2.msra.mxu0 0.0
    %6085 = vmatprep.subr.mxu0 0.0
    %6086 = vmatpush2.msra.mxu0 0.0
    %6087 = vmatprep.subr.mxu0 0.0
    %6088 = vmatpush2.msra.mxu0 0.0
    %6089 = vmatprep.subr.mxu0 0.0
    %6090 = vmatpush2.msra.mxu0 0.0
    %6091 = vmatprep.subr.mxu0 0.0
    %6092 = vmatpush2.msra.mxu0 0.0
    %6093 = vmatprep.subr.mxu0 0.0
    %6094 = vmatpush2.msra.mxu0 0.0
    %6095 = vmatprep.subr.mxu0 0.0
    %6096 = vmatpush2.msra.mxu0 0.0
    %6097 = vmatprep.subr.mxu0 0.0
    %6098 = vmatpush2.msra.mxu0 0.0
    %6099 = vmatprep.subr.mxu0 0.0
    %6100 = vmatpush2.msra.mxu0 0.0
    %6101 = vmatprep.subr.mxu0 0.0
    %6102 = vmatpush2.msra.mxu0 0.0
    %6103 = vmatprep.subr.mxu0 0.0
    %6104 = vmatpush2.msra.mxu0 0.0
    %6105 = vmatprep.subr.mxu0 0.0
    %6106 = vmatpush2.msra.mxu0 0.0
    %6107 = vmatprep.subr.mxu0 0.0
    %6108 = vmatpush2.msra.mxu0 0.0
    %6109 = vmatprep.subr.mxu0 0.0
    %6110 = vmatpush2.msra.mxu0 0.0
    %6111 = vmatprep.subr.mxu0 0.0
    %6112 = vmatpush2.msra.mxu0 0.0
    %6113 = vmatprep.subr.mxu0 0.0
    %6114 = vmatpush2.msra.mxu0 0.0
    %6115 = vmatprep.mubr.f32.mxu0 0.0
    %6116 = vmatmul.mubr.f32.gmra.mxu0 %v6047
    %v6117 = vpop.f32.mrf.mxu0
    %v6118 = vadd.f32 0.0, %v6117
    %v6119 = vpop.f32.mrf.mxu0
    %6120 = vdwg.mxu0
    %v6122 = vsel %vm1338, %v6118, 0
    %6124 = vmatprep.subr.mxu0 0.0
    %6125 = vmatpush1.msra.mxu0 0.0
    %6126 = vmatprep.subr.mxu0 0.0
    %6127 = vmatpush1.msra.mxu0 0.0
    %6128 = vmatprep.subr.mxu0 0.0
    %6129 = vmatpush1.msra.mxu0 0.0
    %6130 = vmatprep.subr.mxu0 0.0
    %6131 = vmatpush1.msra.mxu0 0.0
    %6132 = vmatprep.subr.mxu0 0.0
    %6133 = vmatpush1.msra.mxu0 0.0
    %6134 = vmatprep.subr.mxu0 0.0
    %6135 = vmatpush1.msra.mxu0 0.0
    %6136 = vmatprep.subr.mxu0 0.0
    %6137 = vmatpush1.msra.mxu0 0.0
    %6138 = vmatprep.subr.mxu0 0.0
    %6139 = vmatpush1.msra.mxu0 0.0
    %6140 = vmatprep.subr.mxu0 0.0
    %6141 = vmatpush1.msra.mxu0 0.0
    %6142 = vmatprep.subr.mxu0 0.0
    %6143 = vmatpush1.msra.mxu0 0.0
    %6144 = vmatprep.subr.mxu0 0.0
    %6145 = vmatpush1.msra.mxu0 0.0
    %6146 = vmatprep.subr.mxu0 0.0
    %6147 = vmatpush1.msra.mxu0 0.0
    %6148 = vmatprep.subr.mxu0 0.0
    %6149 = vmatpush1.msra.mxu0 0.0
    %6150 = vmatprep.subr.mxu0 0.0
    %6151 = vmatpush1.msra.mxu0 0.0
    %6152 = vmatprep.subr.mxu0 0.0
    %6153 = vmatpush1.msra.mxu0 0.0
    %6154 = vmatprep.subr.mxu0 0.0
    %6155 = vmatpush1.msra.mxu0 %v5477
    %6156 = vmatprep.subr.mxu0 0.0
    %6157 = vmatpush2.msra.mxu0 0.0
    %6158 = vmatprep.subr.mxu0 0.0
    %6159 = vmatpush2.msra.mxu0 0.0
    %6160 = vmatprep.subr.mxu0 0.0
    %6161 = vmatpush2.msra.mxu0 0.0
    %6162 = vmatprep.subr.mxu0 0.0
    %6163 = vmatpush2.msra.mxu0 0.0
    %6164 = vmatprep.subr.mxu0 0.0
    %6165 = vmatpush2.msra.mxu0 0.0
    %6166 = vmatprep.subr.mxu0 0.0
    %6167 = vmatpush2.msra.mxu0 0.0
    %6168 = vmatprep.subr.mxu0 0.0
    %6169 = vmatpush2.msra.mxu0 0.0
    %6170 = vmatprep.subr.mxu0 0.0
    %6171 = vmatpush2.msra.mxu0 0.0
    %6172 = vmatprep.subr.mxu0 0.0
    %6173 = vmatpush2.msra.mxu0 0.0
    %6174 = vmatprep.subr.mxu0 0.0
    %6175 = vmatpush2.msra.mxu0 0.0
    %6176 = vmatprep.subr.mxu0 0.0
    %6177 = vmatpush2.msra.mxu0 0.0
    %6178 = vmatprep.subr.mxu0 0.0
    %6179 = vmatpush2.msra.mxu0 0.0
    %6180 = vmatprep.subr.mxu0 0.0
    %6181 = vmatpush2.msra.mxu0 0.0
    %6182 = vmatprep.subr.mxu0 0.0
    %6183 = vmatpush2.msra.mxu0 0.0
    %6184 = vmatprep.subr.mxu0 0.0
    %6185 = vmatpush2.msra.mxu0 0.0
    %6186 = vmatprep.subr.mxu0 0.0
    %6187 = vmatpush2.msra.mxu0 0.0
    %6188 = vmatprep.mubr.f32.mxu0 0.0
    %6189 = vmatmul.mubr.f32.gmra.mxu0 %v6122
    %v6190 = vpop.f32.mrf.mxu0
    %v6191 = vadd.f32 0.0, %v6190
    %v6192 = vpop.f32.mrf.mxu0
    %6193 = vdwg.mxu0
    %v6194 = vadd.f32 %v5952, %v6191
    %6195 = vrot.lane.b32.xlu0 %v5479, 104
    %v6196 = vpop.permute.xlu0 %6195
    %6197 = vrot.lane.b32.xlu0 %v5385, 104
    %v6198 = vpop.permute.xlu0 %6197
    %v6199 = vsel %vm1338, %v6196, 0
    %v6201 = vsel %vm1338, %v6198, 0
    %6203 = vmatprep.subr.mxu0 0.0
    %6204 = vmatpush1.xpose.msra.mxu0 0.0
    %6205 = vmatprep.subr.mxu0 0.0
    %6206 = vmatpush1.xpose.msra.mxu0 0.0
    %6207 = vmatprep.subr.mxu0 0.0
    %6208 = vmatpush1.xpose.msra.mxu0 0.0
    %6209 = vmatprep.subr.mxu0 0.0
    %6210 = vmatpush1.xpose.msra.mxu0 0.0
    %6211 = vmatprep.subr.mxu0 0.0
    %6212 = vmatpush1.xpose.msra.mxu0 0.0
    %6213 = vmatprep.subr.mxu0 0.0
    %6214 = vmatpush1.xpose.msra.mxu0 0.0
    %6215 = vmatprep.subr.mxu0 0.0
    %6216 = vmatpush1.xpose.msra.mxu0 0.0
    %6217 = vmatprep.subr.mxu0 0.0
    %6218 = vmatpush1.xpose.msra.mxu0 0.0
    %6219 = vmatprep.subr.mxu0 0.0
    %6220 = vmatpush1.xpose.msra.mxu0 0.0
    %6221 = vmatprep.subr.mxu0 0.0
    %6222 = vmatpush1.xpose.msra.mxu0 0.0
    %6223 = vmatprep.subr.mxu0 0.0
    %6224 = vmatpush1.xpose.msra.mxu0 0.0
    %6225 = vmatprep.subr.mxu0 0.0
    %6226 = vmatpush1.xpose.msra.mxu0 0.0
    %6227 = vmatprep.subr.mxu0 0.0
    %6228 = vmatpush1.xpose.msra.mxu0 0.0
    %6229 = vmatprep.subr.mxu0 0.0
    %6230 = vmatpush1.xpose.msra.mxu0 0.0
    %6231 = vmatprep.subr.mxu0 0.0
    %6232 = vmatpush1.xpose.msra.mxu0 0.0
    %6233 = vmatprep.subr.mxu0 0.0
    %6234 = vmatpush1.xpose.msra.mxu0 %v6201
    %6235 = vmatprep.subr.mxu0 0.0
    %6236 = vmatpush2.xpose.msra.mxu0 0.0
    %6237 = vmatprep.subr.mxu0 0.0
    %6238 = vmatpush2.xpose.msra.mxu0 0.0
    %6239 = vmatprep.subr.mxu0 0.0
    %6240 = vmatpush2.xpose.msra.mxu0 0.0
    %6241 = vmatprep.subr.mxu0 0.0
    %6242 = vmatpush2.xpose.msra.mxu0 0.0
    %6243 = vmatprep.subr.mxu0 0.0
    %6244 = vmatpush2.xpose.msra.mxu0 0.0
    %6245 = vmatprep.subr.mxu0 0.0
    %6246 = vmatpush2.xpose.msra.mxu0 0.0
    %6247 = vmatprep.subr.mxu0 0.0
    %6248 = vmatpush2.xpose.msra.mxu0 0.0
    %6249 = vmatprep.subr.mxu0 0.0
    %6250 = vmatpush2.xpose.msra.mxu0 0.0
    %6251 = vmatprep.subr.mxu0 0.0
    %6252 = vmatpush2.xpose.msra.mxu0 0.0
    %6253 = vmatprep.subr.mxu0 0.0
    %6254 = vmatpush2.xpose.msra.mxu0 0.0
    %6255 = vmatprep.subr.mxu0 0.0
    %6256 = vmatpush2.xpose.msra.mxu0 0.0
    %6257 = vmatprep.subr.mxu0 0.0
    %6258 = vmatpush2.xpose.msra.mxu0 0.0
    %6259 = vmatprep.subr.mxu0 0.0
    %6260 = vmatpush2.xpose.msra.mxu0 0.0
    %6261 = vmatprep.subr.mxu0 0.0
    %6262 = vmatpush2.xpose.msra.mxu0 0.0
    %6263 = vmatprep.subr.mxu0 0.0
    %6264 = vmatpush2.xpose.msra.mxu0 0.0
    %6265 = vmatprep.subr.mxu0 0.0
    %6266 = vmatpush2.xpose.msra.mxu0 0.0
    %6267 = vmatprep.mubr.f32.mxu0 0.0
    %6268 = vmatmul.mubr.f32.gmra.mxu0 %v6199
    %v6269 = vpop.f32.mrf.mxu0
    %v6270 = vadd.f32 0.0, %v6269
    %v6271 = vpop.f32.mrf.mxu0
    %6272 = vdwg.mxu0
    %v6273 = vsel %vm1415, %v6270, -inf
    %6274 = vmax.xlane.f32.xlu0 %v6273
    %v6275 = vpop.xlane.xlu0 %6274
    %v6276 = vsub.f32 %v6270, %v6275
    %v6277 = vmul.f32 %v6276, 1.442695
    %v6278 = vpow.pop %v6277
    %v6279 = vsel %vm1415, %v6278, 0.0
    %6280 = vadd.xlane.f32.xlu0 %v6279
    %v6281 = vpop.xlane.xlu0 %6280
    %v6282 = vrcp.pop %v6281
    %v6283 = vmul.f32 %v6278, %v6282
    %6284 = vrot.lane.b32.xlu0 %v5471, 104
    %v6285 = vpop.permute.xlu0 %6284
    %v6287 = vsel %vm1427, %v6283, 0
    %v6289 = vsel %vm1431, %v6285, 0
    %6291 = vmatprep.subr.mxu0 0.0
    %6292 = vmatpush1.msra.mxu0 0.0
    %6293 = vmatprep.subr.mxu0 0.0
    %6294 = vmatpush1.msra.mxu0 0.0
    %6295 = vmatprep.subr.mxu0 0.0
    %6296 = vmatpush1.msra.mxu0 0.0
    %6297 = vmatprep.subr.mxu0 0.0
    %6298 = vmatpush1.msra.mxu0 0.0
    %6299 = vmatprep.subr.mxu0 0.0
    %6300 = vmatpush1.msra.mxu0 0.0
    %6301 = vmatprep.subr.mxu0 0.0
    %6302 = vmatpush1.msra.mxu0 0.0
    %6303 = vmatprep.subr.mxu0 0.0
    %6304 = vmatpush1.msra.mxu0 0.0
    %6305 = vmatprep.subr.mxu0 0.0
    %6306 = vmatpush1.msra.mxu0 0.0
    %6307 = vmatprep.subr.mxu0 0.0
    %6308 = vmatpush1.msra.mxu0 0.0
    %6309 = vmatprep.subr.mxu0 0.0
    %6310 = vmatpush1.msra.mxu0 0.0
    %6311 = vmatprep.subr.mxu0 0.0
    %6312 = vmatpush1.msra.mxu0 0.0
    %6313 = vmatprep.subr.mxu0 0.0
    %6314 = vmatpush1.msra.mxu0 0.0
    %6315 = vmatprep.subr.mxu0 0.0
    %6316 = vmatpush1.msra.mxu0 0.0
    %6317 = vmatprep.subr.mxu0 0.0
    %6318 = vmatpush1.msra.mxu0 0.0
    %6319 = vmatprep.subr.mxu0 0.0
    %6320 = vmatpush1.msra.mxu0 0.0
    %6321 = vmatprep.subr.mxu0 0.0
    %6322 = vmatpush1.msra.mxu0 %v6289
    %6323 = vmatprep.subr.mxu0 0.0
    %6324 = vmatpush2.msra.mxu0 0.0
    %6325 = vmatprep.subr.mxu0 0.0
    %6326 = vmatpush2.msra.mxu0 0.0
    %6327 = vmatprep.subr.mxu0 0.0
    %6328 = vmatpush2.msra.mxu0 0.0
    %6329 = vmatprep.subr.mxu0 0.0
    %6330 = vmatpush2.msra.mxu0 0.0
    %6331 = vmatprep.subr.mxu0 0.0
    %6332 = vmatpush2.msra.mxu0 0.0
    %6333 = vmatprep.subr.mxu0 0.0
    %6334 = vmatpush2.msra.mxu0 0.0
    %6335 = vmatprep.subr.mxu0 0.0
    %6336 = vmatpush2.msra.mxu0 0.0
    %6337 = vmatprep.subr.mxu0 0.0
    %6338 = vmatpush2.msra.mxu0 0.0
    %6339 = vmatprep.subr.mxu0 0.0
    %6340 = vmatpush2.msra.mxu0 0.0
    %6341 = vmatprep.subr.mxu0 0.0
    %6342 = vmatpush2.msra.mxu0 0.0
    %6343 = vmatprep.subr.mxu0 0.0
    %6344 = vmatpush2.msra.mxu0 0.0
    %6345 = vmatprep.subr.mxu0 0.0
    %6346 = vmatpush2.msra.mxu0 0.0
    %6347 = vmatprep.subr.mxu0 0.0
    %6348 = vmatpush2.msra.mxu0 0.0
    %6349 = vmatprep.subr.mxu0 0.0
    %6350 = vmatpush2.msra.mxu0 0.0
    %6351 = vmatprep.subr.mxu0 0.0
    %6352 = vmatpush2.msra.mxu0 0.0
    %6353 = vmatprep.subr.mxu0 0.0
    %6354 = vmatpush2.msra.mxu0 0.0
    %6355 = vmatprep.mubr.f32.mxu0 0.0
    %6356 = vmatmul.mubr.f32.gmra.mxu0 %v6287
    %v6357 = vpop.f32.mrf.mxu0
    %v6358 = vadd.f32 0.0, %v6357
    %v6359 = vpop.f32.mrf.mxu0
    %6360 = vdwg.mxu0
    %v6362 = vsel %vm1338, %v6358, 0
    %6364 = vmatprep.subr.mxu0 0.0
    %6365 = vmatpush1.msra.mxu0 0.0
    %6366 = vmatprep.subr.mxu0 0.0
    %6367 = vmatpush1.msra.mxu0 0.0
    %6368 = vmatprep.subr.mxu0 0.0
    %6369 = vmatpush1.msra.mxu0 0.0
    %6370 = vmatprep.subr.mxu0 0.0
    %6371 = vmatpush1.msra.mxu0 0.0
    %6372 = vmatprep.subr.mxu0 0.0
    %6373 = vmatpush1.msra.mxu0 0.0
    %6374 = vmatprep.subr.mxu0 0.0
    %6375 = vmatpush1.msra.mxu0 0.0
    %6376 = vmatprep.subr.mxu0 0.0
    %6377 = vmatpush1.msra.mxu0 0.0
    %6378 = vmatprep.subr.mxu0 0.0
    %6379 = vmatpush1.msra.mxu0 0.0
    %6380 = vmatprep.subr.mxu0 0.0
    %6381 = vmatpush1.msra.mxu0 0.0
    %6382 = vmatprep.subr.mxu0 0.0
    %6383 = vmatpush1.msra.mxu0 0.0
    %6384 = vmatprep.subr.mxu0 0.0
    %6385 = vmatpush1.msra.mxu0 0.0
    %6386 = vmatprep.subr.mxu0 0.0
    %6387 = vmatpush1.msra.mxu0 0.0
    %6388 = vmatprep.subr.mxu0 0.0
    %6389 = vmatpush1.msra.mxu0 0.0
    %6390 = vmatprep.subr.mxu0 0.0
    %6391 = vmatpush1.msra.mxu0 0.0
    %6392 = vmatprep.subr.mxu0 0.0
    %6393 = vmatpush1.msra.mxu0 0.0
    %6394 = vmatprep.subr.mxu0 0.0
    %6395 = vmatpush1.msra.mxu0 %v5478
    %6396 = vmatprep.subr.mxu0 0.0
    %6397 = vmatpush2.msra.mxu0 0.0
    %6398 = vmatprep.subr.mxu0 0.0
    %6399 = vmatpush2.msra.mxu0 0.0
    %6400 = vmatprep.subr.mxu0 0.0
    %6401 = vmatpush2.msra.mxu0 0.0
    %6402 = vmatprep.subr.mxu0 0.0
    %6403 = vmatpush2.msra.mxu0 0.0
    %6404 = vmatprep.subr.mxu0 0.0
    %6405 = vmatpush2.msra.mxu0 0.0
    %6406 = vmatprep.subr.mxu0 0.0
    %6407 = vmatpush2.msra.mxu0 0.0
    %6408 = vmatprep.subr.mxu0 0.0
    %6409 = vmatpush2.msra.mxu0 0.0
    %6410 = vmatprep.subr.mxu0 0.0
    %6411 = vmatpush2.msra.mxu0 0.0
    %6412 = vmatprep.subr.mxu0 0.0
    %6413 = vmatpush2.msra.mxu0 0.0
    %6414 = vmatprep.subr.mxu0 0.0
    %6415 = vmatpush2.msra.mxu0 0.0
    %6416 = vmatprep.subr.mxu0 0.0
    %6417 = vmatpush2.msra.mxu0 0.0
    %6418 = vmatprep.subr.mxu0 0.0
    %6419 = vmatpush2.msra.mxu0 0.0
    %6420 = vmatprep.subr.mxu0 0.0
    %6421 = vmatpush2.msra.mxu0 0.0
    %6422 = vmatprep.subr.mxu0 0.0
    %6423 = vmatpush2.msra.mxu0 0.0
    %6424 = vmatprep.subr.mxu0 0.0
    %6425 = vmatpush2.msra.mxu0 0.0
    %6426 = vmatprep.subr.mxu0 0.0
    %6427 = vmatpush2.msra.mxu0 0.0
    %6428 = vmatprep.mubr.f32.mxu0 0.0
    %6429 = vmatmul.mubr.f32.gmra.mxu0 %v6362
    %v6430 = vpop.f32.mrf.mxu0
    %v6431 = vadd.f32 0.0, %v6430
    %v6432 = vpop.f32.mrf.mxu0
    %6433 = vdwg.mxu0
    %v6434 = vadd.f32 %v6194, %v6431
    %s6435 = scalar_lea.vmem [#allocation16], 2
    %v6436 = vld [vmem:[%s6435] sm:$0x1]
    %v6438 = vlaneseq
    %v6439 = vshrl.u32 %v6438, 7
    %v6440 = vsub.s32 0, %v6439
    %v6441 = vrot.slane %v6436, %v6440
    %v6443 = vadd.f32 %v6434, %v6441
    %v6444 = vadd.f32 %v6443, %v4374
    %v6445 = vld [vmem:[#allocation18] sm:$0xff]
    %v6446 = vld [vmem:[#allocation18 + $0x8] sm:$0xff]
    %v6447 = vld [vmem:[%s18] sm:$0xff]
    %v6448 = vld [vmem:[%s18 + $0x8] sm:$0xff]
    %v6449 = vld [vmem:[%s18 + $0x10] sm:$0xff]
    %v6450 = vld [vmem:[%s18 + $0x18] sm:$0xff]
    %v6451 = vld [vmem:[#allocation19] sm:$0x1]
    %v6452 = vld [vmem:[%s2] sm:$0xff]
    %v6453 = vld [vmem:[%s2 + $0x8] sm:$0xff]
    %v6454 = vld [vmem:[%s2 + $0x10] sm:$0xff]
    %v6455 = vld [vmem:[%s2 + $0x18] sm:$0xff]
    %v6456 = vld [vmem:[%s2 + $0x20] sm:$0xff]
    %v6457 = vld [vmem:[%s2 + $0x28] sm:$0xff]
    %v6458 = vld [vmem:[%s2 + $0x30] sm:$0xff]
    %v6459 = vld [vmem:[%s2 + $0x38] sm:$0xff]
    %v6460 = vld [vmem:[%s20] sm:$0xff]
    %v6461 = vld [vmem:[%s20 + $0x8] sm:$0xff]
    %v6462 = vld [vmem:[%s20 + $0x10] sm:$0xff]
    %v6463 = vld [vmem:[%s20 + $0x18] sm:$0xff]
    %v6464 = vld [vmem:[#allocation21] sm:$0x1]
    %v6465 = vlaneseq
    %v6466 = vand.u32 %v6465, 127
    %v6467 = vld [vmem:[%s1] sm:$0xf]
    %6468 = vset.pattern.permute.xlu0 0
    %6469 = vperm.xlu0 %6468, %v6467
    %v6470 = vpop.permute.xlu0 %6469
    %vm6471 = vcmp.eq.s32.totalorder %v6470, %v6466
    %v6472 = vsel %vm6471, 1, 0
    %v6473 = vcvt.s32.f32 %v6472
    %vm6474 = vcmask 523264
    %v6476 = vsel %vm6474, %v6473, 0
    %6478 = vmatprep.subr.mxu0 0.0
    %6479 = vmatpush1.msra.mxu0 0.0
    %6480 = vmatprep.subr.mxu0 0.0
    %6481 = vmatpush1.msra.mxu0 0.0
    %6482 = vmatprep.subr.mxu0 0.0
    %6483 = vmatpush1.msra.mxu0 0.0
    %6484 = vmatprep.subr.mxu0 0.0
    %6485 = vmatpush1.msra.mxu0 0.0
    %6486 = vmatprep.subr.mxu0 0.0
    %6487 = vmatpush1.msra.mxu0 0.0
    %6488 = vmatprep.subr.mxu0 0.0
    %6489 = vmatpush1.msra.mxu0 0.0
    %6490 = vmatprep.subr.mxu0 0.0
    %6491 = vmatpush1.msra.mxu0 0.0
    %6492 = vmatprep.subr.mxu0 0.0
    %6493 = vmatpush1.msra.mxu0 0.0
    %6494 = vmatprep.subr.mxu0 0.0
    %6495 = vmatpush1.msra.mxu0 %v6459
    %6496 = vmatprep.subr.mxu0 0.0
    %6497 = vmatpush1.msra.mxu0 %v6458
    %6498 = vmatprep.subr.mxu0 0.0
    %6499 = vmatpush1.msra.mxu0 %v6457
    %6500 = vmatprep.subr.mxu0 0.0
    %6501 = vmatpush1.msra.mxu0 %v6456
    %6502 = vmatprep.subr.mxu0 0.0
    %6503 = vmatpush1.msra.mxu0 %v6455
    %6504 = vmatprep.subr.mxu0 0.0
    %6505 = vmatpush1.msra.mxu0 %v6454
    %6506 = vmatprep.subr.mxu0 0.0
    %6507 = vmatpush1.msra.mxu0 %v6453
    %6508 = vmatprep.subr.mxu0 0.0
    %6509 = vmatpush1.msra.mxu0 %v6452
    %6510 = vmatprep.subr.mxu0 0.0
    %6511 = vmatpush2.msra.mxu0 0.0
    %6512 = vmatprep.subr.mxu0 0.0
    %6513 = vmatpush2.msra.mxu0 0.0
    %6514 = vmatprep.subr.mxu0 0.0
    %6515 = vmatpush2.msra.mxu0 0.0
    %6516 = vmatprep.subr.mxu0 0.0
    %6517 = vmatpush2.msra.mxu0 0.0
    %6518 = vmatprep.subr.mxu0 0.0
    %6519 = vmatpush2.msra.mxu0 0.0
    %6520 = vmatprep.subr.mxu0 0.0
    %6521 = vmatpush2.msra.mxu0 0.0
    %6522 = vmatprep.subr.mxu0 0.0
    %6523 = vmatpush2.msra.mxu0 0.0
    %6524 = vmatprep.subr.mxu0 0.0
    %6525 = vmatpush2.msra.mxu0 0.0
    %6526 = vmatprep.subr.mxu0 0.0
    %6527 = vmatpush2.msra.mxu0 0.0
    %6528 = vmatprep.subr.mxu0 0.0
    %6529 = vmatpush2.msra.mxu0 0.0
    %6530 = vmatprep.subr.mxu0 0.0
    %6531 = vmatpush2.msra.mxu0 0.0
    %6532 = vmatprep.subr.mxu0 0.0
    %6533 = vmatpush2.msra.mxu0 0.0
    %6534 = vmatprep.subr.mxu0 0.0
    %6535 = vmatpush2.msra.mxu0 0.0
    %6536 = vmatprep.subr.mxu0 0.0
    %6537 = vmatpush2.msra.mxu0 0.0
    %6538 = vmatprep.subr.mxu0 0.0
    %6539 = vmatpush2.msra.mxu0 0.0
    %6540 = vmatprep.subr.mxu0 0.0
    %6541 = vmatpush2.msra.mxu0 0.0
    %6542 = vmatprep.mubr.f32.mxu0 0.0
    %6543 = vmatmul.mubr.f32.gmra.mxu0 %v6476
    %v6544 = vpop.f32.mrf.mxu0
    %v6545 = vadd.f32 0.0, %v6544
    %v6546 = vpop.f32.mrf.mxu0
    %6547 = vdwg.mxu0
    %v6549 = vsel %vm255, %v6444, 0
    %6551 = vmatprep.subr.mxu0 0.0
    %6552 = vmatpush1.msra.mxu0 0.0
    %6553 = vmatprep.subr.mxu0 0.0
    %6554 = vmatpush1.msra.mxu0 0.0
    %6555 = vmatprep.subr.mxu0 0.0
    %6556 = vmatpush1.msra.mxu0 0.0
    %6557 = vmatprep.subr.mxu0 0.0
    %6558 = vmatpush1.msra.mxu0 0.0
    %6559 = vmatprep.subr.mxu0 0.0
    %6560 = vmatpush1.msra.mxu0 0.0
    %6561 = vmatprep.subr.mxu0 0.0
    %6562 = vmatpush1.msra.mxu0 0.0
    %6563 = vmatprep.subr.mxu0 0.0
    %6564 = vmatpush1.msra.mxu0 0.0
    %6565 = vmatprep.subr.mxu0 0.0
    %6566 = vmatpush1.msra.mxu0 0.0
    %6567 = vmatprep.subr.mxu0 0.0
    %6568 = vmatpush1.msra.mxu0 0.0
    %6569 = vmatprep.subr.mxu0 0.0
    %6570 = vmatpush1.msra.mxu0 0.0
    %6571 = vmatprep.subr.mxu0 0.0
    %6572 = vmatpush1.msra.mxu0 0.0
    %6573 = vmatprep.subr.mxu0 0.0
    %6574 = vmatpush1.msra.mxu0 0.0
    %6575 = vmatprep.subr.mxu0 0.0
    %6576 = vmatpush1.msra.mxu0 %v6450
    %6577 = vmatprep.subr.mxu0 0.0
    %6578 = vmatpush1.msra.mxu0 %v6449
    %6579 = vmatprep.subr.mxu0 0.0
    %6580 = vmatpush1.msra.mxu0 %v6448
    %6581 = vmatprep.subr.mxu0 0.0
    %6582 = vmatpush1.msra.mxu0 %v6447
    %6583 = vmatprep.subr.mxu0 0.0
    %6584 = vmatpush2.msra.mxu0 0.0
    %6585 = vmatprep.subr.mxu0 0.0
    %6586 = vmatpush2.msra.mxu0 0.0
    %6587 = vmatprep.subr.mxu0 0.0
    %6588 = vmatpush2.msra.mxu0 0.0
    %6589 = vmatprep.subr.mxu0 0.0
    %6590 = vmatpush2.msra.mxu0 0.0
    %6591 = vmatprep.subr.mxu0 0.0
    %6592 = vmatpush2.msra.mxu0 0.0
    %6593 = vmatprep.subr.mxu0 0.0
    %6594 = vmatpush2.msra.mxu0 0.0
    %6595 = vmatprep.subr.mxu0 0.0
    %6596 = vmatpush2.msra.mxu0 0.0
    %6597 = vmatprep.subr.mxu0 0.0
    %6598 = vmatpush2.msra.mxu0 0.0
    %6599 = vmatprep.subr.mxu0 0.0
    %6600 = vmatpush2.msra.mxu0 0.0
    %6601 = vmatprep.subr.mxu0 0.0
    %6602 = vmatpush2.msra.mxu0 0.0
    %6603 = vmatprep.subr.mxu0 0.0
    %6604 = vmatpush2.msra.mxu0 0.0
    %6605 = vmatprep.subr.mxu0 0.0
    %6606 = vmatpush2.msra.mxu0 0.0
    %6607 = vmatprep.subr.mxu0 0.0
    %6608 = vmatpush2.msra.mxu0 0.0
    %6609 = vmatprep.subr.mxu0 0.0
    %6610 = vmatpush2.msra.mxu0 0.0
    %6611 = vmatprep.subr.mxu0 0.0
    %6612 = vmatpush2.msra.mxu0 0.0
    %6613 = vmatprep.subr.mxu0 0.0
    %6614 = vmatpush2.msra.mxu0 0.0
    %6615 = vmatprep.mubr.f32.mxu0 0.0
    %6616 = vmatmul.mubr.f32.gmra.mxu0 %v6549
    %v6617 = vpop.f32.mrf.mxu0
    %v6618 = vadd.f32 0.0, %v6617
    %v6619 = vpop.f32.mrf.mxu0
    %6620 = vdwg.mxu0
    %vm6621 = vcmask 130048
    %v6623 = vsel %vm6621, %v6545, 0
    %6625 = vmatprep.subr.mxu0 0.0
    %6626 = vmatpush1.msra.mxu0 0.0
    %6627 = vmatprep.subr.mxu0 0.0
    %6628 = vmatpush1.msra.mxu0 0.0
    %6629 = vmatprep.subr.mxu0 0.0
    %6630 = vmatpush1.msra.mxu0 0.0
    %6631 = vmatprep.subr.mxu0 0.0
    %6632 = vmatpush1.msra.mxu0 0.0
    %6633 = vmatprep.subr.mxu0 0.0
    %6634 = vmatpush1.msra.mxu0 0.0
    %6635 = vmatprep.subr.mxu0 0.0
    %6636 = vmatpush1.msra.mxu0 0.0
    %6637 = vmatprep.subr.mxu0 0.0
    %6638 = vmatpush1.msra.mxu0 0.0
    %6639 = vmatprep.subr.mxu0 0.0
    %6640 = vmatpush1.msra.mxu0 0.0
    %6641 = vmatprep.subr.mxu0 0.0
    %6642 = vmatpush1.msra.mxu0 0.0
    %6643 = vmatprep.subr.mxu0 0.0
    %6644 = vmatpush1.msra.mxu0 0.0
    %6645 = vmatprep.subr.mxu0 0.0
    %6646 = vmatpush1.msra.mxu0 0.0
    %6647 = vmatprep.subr.mxu0 0.0
    %6648 = vmatpush1.msra.mxu0 0.0
    %6649 = vmatprep.subr.mxu0 0.0
    %6650 = vmatpush1.msra.mxu0 0.0
    %6651 = vmatprep.subr.mxu0 0.0
    %6652 = vmatpush1.msra.mxu0 0.0
    %6653 = vmatprep.subr.mxu0 0.0
    %6654 = vmatpush1.msra.mxu0 %v6446
    %6655 = vmatprep.subr.mxu0 0.0
    %6656 = vmatpush1.msra.mxu0 %v6445
    %6657 = vmatprep.subr.mxu0 0.0
    %6658 = vmatpush2.msra.mxu0 0.0
    %6659 = vmatprep.subr.mxu0 0.0
    %6660 = vmatpush2.msra.mxu0 0.0
    %6661 = vmatprep.subr.mxu0 0.0
    %6662 = vmatpush2.msra.mxu0 0.0
    %6663 = vmatprep.subr.mxu0 0.0
    %6664 = vmatpush2.msra.mxu0 0.0
    %6665 = vmatprep.subr.mxu0 0.0
    %6666 = vmatpush2.msra.mxu0 0.0
    %6667 = vmatprep.subr.mxu0 0.0
    %6668 = vmatpush2.msra.mxu0 0.0
    %6669 = vmatprep.subr.mxu0 0.0
    %6670 = vmatpush2.msra.mxu0 0.0
    %6671 = vmatprep.subr.mxu0 0.0
    %6672 = vmatpush2.msra.mxu0 0.0
    %6673 = vmatprep.subr.mxu0 0.0
    %6674 = vmatpush2.msra.mxu0 0.0
    %6675 = vmatprep.subr.mxu0 0.0
    %6676 = vmatpush2.msra.mxu0 0.0
    %6677 = vmatprep.subr.mxu0 0.0
    %6678 = vmatpush2.msra.mxu0 0.0
    %6679 = vmatprep.subr.mxu0 0.0
    %6680 = vmatpush2.msra.mxu0 0.0
    %6681 = vmatprep.subr.mxu0 0.0
    %6682 = vmatpush2.msra.mxu0 0.0
    %6683 = vmatprep.subr.mxu0 0.0
    %6684 = vmatpush2.msra.mxu0 0.0
    %6685 = vmatprep.subr.mxu0 0.0
    %6686 = vmatpush2.msra.mxu0 0.0
    %6687 = vmatprep.subr.mxu0 0.0
    %6688 = vmatpush2.msra.mxu0 0.0
    %6689 = vmatprep.mubr.f32.mxu0 0.0
    %6690 = vmatmul.mubr.f32.gmra.mxu0 %v6623
    %v6691 = vpop.f32.mrf.mxu0
    %v6692 = vadd.f32 %v6618, %v6691
    %v6693 = vpop.f32.mrf.mxu0
    %6694 = vdwg.mxu0
    %v6696 = vlaneseq
    %v6697 = vshrl.u32 %v6696, 7
    %v6698 = vsub.s32 0, %v6697
    %v6699 = vrot.slane %v6451, %v6698
    %v6701 = vadd.f32 %v6692, %v6699
    %v6702 = vxor.u32 %v6701, 2147483648
    %v6703 = vmul.f32 %v6702, 1.442695
    %v6704 = vpow.pop %v6703
    %v6705 = vadd.f32 %v6704, 1.0
    %v6706 = vrcp.pop %v6705
    %v6707 = vmul.f32 1.0, %v6706
    %v6708 = vtanh.pop %v6701
    %6709 = vrot.lane.b32.xlu0 %v6444, 32
    %v6710 = vpop.permute.xlu0 %6709
    %v6712 = vmul.f32 %v6707, %v6710
    %6714 = vrot.lane.b32.xlu0 %v6708, 64
    %v6715 = vpop.permute.xlu0 %6714
    %v6717 = vmul.f32 %v6707, %v6715
    %6719 = vrot.lane.b32.xlu0 %v6717, 32
    %v6720 = vpop.permute.xlu0 %6719
    %v6722 = vadd.f32 %v6712, %v6720
    %v6723 = vtanh.pop %v6722
    %6725 = vrot.lane.b32.xlu0 %v6723, 64
    %v6726 = vpop.permute.xlu0 %6725
    %v6728 = vmul.f32 %v6707, %v6726
    %v6730 = vlaneseq
    %v6731 = vshrl.u32 %v6730, 7
    %v6732 = vsub.s32 0, %v6731
    %v6733 = vrot.slane %v6464, %v6732
    %6736 = vrot.lane.b32.xlu0 %v6728, 32
    %v6737 = vpop.permute.xlu0 %6736
    %v6738 = vsel %vm255, %v6737, 0
    %6740 = vmatprep.subr.mxu0 0.0
    %6741 = vmatpush1.msra.mxu0 0.0
    %6742 = vmatprep.subr.mxu0 0.0
    %6743 = vmatpush1.msra.mxu0 0.0
    %6744 = vmatprep.subr.mxu0 0.0
    %6745 = vmatpush1.msra.mxu0 0.0
    %6746 = vmatprep.subr.mxu0 0.0
    %6747 = vmatpush1.msra.mxu0 0.0
    %6748 = vmatprep.subr.mxu0 0.0
    %6749 = vmatpush1.msra.mxu0 0.0
    %6750 = vmatprep.subr.mxu0 0.0
    %6751 = vmatpush1.msra.mxu0 0.0
    %6752 = vmatprep.subr.mxu0 0.0
    %6753 = vmatpush1.msra.mxu0 0.0
    %6754 = vmatprep.subr.mxu0 0.0
    %6755 = vmatpush1.msra.mxu0 0.0
    %6756 = vmatprep.subr.mxu0 0.0
    %6757 = vmatpush1.msra.mxu0 0.0
    %6758 = vmatprep.subr.mxu0 0.0
    %6759 = vmatpush1.msra.mxu0 0.0
    %6760 = vmatprep.subr.mxu0 0.0
    %6761 = vmatpush1.msra.mxu0 0.0
    %6762 = vmatprep.subr.mxu0 0.0
    %6763 = vmatpush1.msra.mxu0 0.0
    %6764 = vmatprep.subr.mxu0 0.0
    %6765 = vmatpush1.msra.mxu0 %v6463
    %6766 = vmatprep.subr.mxu0 0.0
    %6767 = vmatpush1.msra.mxu0 %v6462
    %6768 = vmatprep.subr.mxu0 0.0
    %6769 = vmatpush1.msra.mxu0 %v6461
    %6770 = vmatprep.subr.mxu0 0.0
    %6771 = vmatpush1.msra.mxu0 %v6460
    %6772 = vmatprep.subr.mxu0 0.0
    %6773 = vmatpush2.msra.mxu0 0.0
    %6774 = vmatprep.subr.mxu0 0.0
    %6775 = vmatpush2.msra.mxu0 0.0
    %6776 = vmatprep.subr.mxu0 0.0
    %6777 = vmatpush2.msra.mxu0 0.0
    %6778 = vmatprep.subr.mxu0 0.0
    %6779 = vmatpush2.msra.mxu0 0.0
    %6780 = vmatprep.subr.mxu0 0.0
    %6781 = vmatpush2.msra.mxu0 0.0
    %6782 = vmatprep.subr.mxu0 0.0
    %6783 = vmatpush2.msra.mxu0 0.0
    %6784 = vmatprep.subr.mxu0 0.0
    %6785 = vmatpush2.msra.mxu0 0.0
    %6786 = vmatprep.subr.mxu0 0.0
    %6787 = vmatpush2.msra.mxu0 0.0
    %6788 = vmatprep.subr.mxu0 0.0
    %6789 = vmatpush2.msra.mxu0 0.0
    %6790 = vmatprep.subr.mxu0 0.0
    %6791 = vmatpush2.msra.mxu0 0.0
    %6792 = vmatprep.subr.mxu0 0.0
    %6793 = vmatpush2.msra.mxu0 0.0
    %6794 = vmatprep.subr.mxu0 0.0
    %6795 = vmatpush2.msra.mxu0 0.0
    %6796 = vmatprep.subr.mxu0 0.0
    %6797 = vmatpush2.msra.mxu0 0.0
    %6798 = vmatprep.subr.mxu0 0.0
    %6799 = vmatpush2.msra.mxu0 0.0
    %6800 = vmatprep.subr.mxu0 0.0
    %6801 = vmatpush2.msra.mxu0 0.0
    %6802 = vmatprep.subr.mxu0 0.0
    %6803 = vmatpush2.msra.mxu0 0.0
    %6804 = vmatprep.mubr.f32.mxu0 0.0
    %6805 = vmatmul.mubr.f32.gmra.mxu0 %v6738
    %v6806 = vpop.f32.mrf.mxu0
    %v6807 = vadd.f32 %v6733, %v6806
    %v6808 = vpop.f32.mrf.mxu0
    %6809 = vdwg.mxu0
    %6810 = vst [vmem:[%s22] sm:$0xf] %v6807
    %s6811 = scalar_lea.vmem %s1, 4
    %v6812 = vld [vmem:[%s6811] sm:$0xf]
    %6813 = vset.pattern.permute.xlu0 0
    %6814 = vperm.xlu0 %6813, %v6812
    %v6815 = vpop.permute.xlu0 %6814
    %vm6816 = vcmp.eq.s32.totalorder %v6815, %v6466
    %v6817 = vsel %vm6816, 1, 0
    %v6818 = vcvt.s32.f32 %v6817
    %v6820 = vsel %vm6474, %v6818, 0
    %6822 = vmatprep.subr.mxu0 0.0
    %6823 = vmatpush1.msra.mxu0 0.0
    %6824 = vmatprep.subr.mxu0 0.0
    %6825 = vmatpush1.msra.mxu0 0.0
    %6826 = vmatprep.subr.mxu0 0.0
    %6827 = vmatpush1.msra.mxu0 0.0
    %6828 = vmatprep.subr.mxu0 0.0
    %6829 = vmatpush1.msra.mxu0 0.0
    %6830 = vmatprep.subr.mxu0 0.0
    %6831 = vmatpush1.msra.mxu0 0.0
    %6832 = vmatprep.subr.mxu0 0.0
    %6833 = vmatpush1.msra.mxu0 0.0
    %6834 = vmatprep.subr.mxu0 0.0
    %6835 = vmatpush1.msra.mxu0 0.0
    %6836 = vmatprep.subr.mxu0 0.0
    %6837 = vmatpush1.msra.mxu0 0.0
    %6838 = vmatprep.subr.mxu0 0.0
    %6839 = vmatpush1.msra.mxu0 %v6459
    %6840 = vmatprep.subr.mxu0 0.0
    %6841 = vmatpush1.msra.mxu0 %v6458
    %6842 = vmatprep.subr.mxu0 0.0
    %6843 = vmatpush1.msra.mxu0 %v6457
    %6844 = vmatprep.subr.mxu0 0.0
    %6845 = vmatpush1.msra.mxu0 %v6456
    %6846 = vmatprep.subr.mxu0 0.0
    %6847 = vmatpush1.msra.mxu0 %v6455
    %6848 = vmatprep.subr.mxu0 0.0
    %6849 = vmatpush1.msra.mxu0 %v6454
    %6850 = vmatprep.subr.mxu0 0.0
    %6851 = vmatpush1.msra.mxu0 %v6453
    %6852 = vmatprep.subr.mxu0 0.0
    %6853 = vmatpush1.msra.mxu0 %v6452
    %6854 = vmatprep.subr.mxu0 0.0
    %6855 = vmatpush2.msra.mxu0 0.0
    %6856 = vmatprep.subr.mxu0 0.0
    %6857 = vmatpush2.msra.mxu0 0.0
    %6858 = vmatprep.subr.mxu0 0.0
    %6859 = vmatpush2.msra.mxu0 0.0
    %6860 = vmatprep.subr.mxu0 0.0
    %6861 = vmatpush2.msra.mxu0 0.0
    %6862 = vmatprep.subr.mxu0 0.0
    %6863 = vmatpush2.msra.mxu0 0.0
    %6864 = vmatprep.subr.mxu0 0.0
    %6865 = vmatpush2.msra.mxu0 0.0
    %6866 = vmatprep.subr.mxu0 0.0
    %6867 = vmatpush2.msra.mxu0 0.0
    %6868 = vmatprep.subr.mxu0 0.0
    %6869 = vmatpush2.msra.mxu0 0.0
    %6870 = vmatprep.subr.mxu0 0.0
    %6871 = vmatpush2.msra.mxu0 0.0
    %6872 = vmatprep.subr.mxu0 0.0
    %6873 = vmatpush2.msra.mxu0 0.0
    %6874 = vmatprep.subr.mxu0 0.0
    %6875 = vmatpush2.msra.mxu0 0.0
    %6876 = vmatprep.subr.mxu0 0.0
    %6877 = vmatpush2.msra.mxu0 0.0
    %6878 = vmatprep.subr.mxu0 0.0
    %6879 = vmatpush2.msra.mxu0 0.0
    %6880 = vmatprep.subr.mxu0 0.0
    %6881 = vmatpush2.msra.mxu0 0.0
    %6882 = vmatprep.subr.mxu0 0.0
    %6883 = vmatpush2.msra.mxu0 0.0
    %6884 = vmatprep.subr.mxu0 0.0
    %6885 = vmatpush2.msra.mxu0 0.0
    %6886 = vmatprep.mubr.f32.mxu0 0.0
    %6887 = vmatmul.mubr.f32.gmra.mxu0 %v6820
    %v6888 = vpop.f32.mrf.mxu0
    %v6889 = vadd.f32 0.0, %v6888
    %v6890 = vpop.f32.mrf.mxu0
    %6891 = vdwg.mxu0
    %6892 = vmatprep.subr.mxu0 0.0
    %6893 = vmatpush1.msra.mxu0 0.0
    %6894 = vmatprep.subr.mxu0 0.0
    %6895 = vmatpush1.msra.mxu0 0.0
    %6896 = vmatprep.subr.mxu0 0.0
    %6897 = vmatpush1.msra.mxu0 0.0
    %6898 = vmatprep.subr.mxu0 0.0
    %6899 = vmatpush1.msra.mxu0 0.0
    %6900 = vmatprep.subr.mxu0 0.0
    %6901 = vmatpush1.msra.mxu0 0.0
    %6902 = vmatprep.subr.mxu0 0.0
    %6903 = vmatpush1.msra.mxu0 0.0
    %6904 = vmatprep.subr.mxu0 0.0
    %6905 = vmatpush1.msra.mxu0 0.0
    %6906 = vmatprep.subr.mxu0 0.0
    %6907 = vmatpush1.msra.mxu0 0.0
    %6908 = vmatprep.subr.mxu0 0.0
    %6909 = vmatpush1.msra.mxu0 0.0
    %6910 = vmatprep.subr.mxu0 0.0
    %6911 = vmatpush1.msra.mxu0 0.0
    %6912 = vmatprep.subr.mxu0 0.0
    %6913 = vmatpush1.msra.mxu0 0.0
    %6914 = vmatprep.subr.mxu0 0.0
    %6915 = vmatpush1.msra.mxu0 0.0
    %6916 = vmatprep.subr.mxu0 0.0
    %6917 = vmatpush1.msra.mxu0 %v6450
    %6918 = vmatprep.subr.mxu0 0.0
    %6919 = vmatpush1.msra.mxu0 %v6449
    %6920 = vmatprep.subr.mxu0 0.0
    %6921 = vmatpush1.msra.mxu0 %v6448
    %6922 = vmatprep.subr.mxu0 0.0
    %6923 = vmatpush1.msra.mxu0 %v6447
    %6924 = vmatprep.subr.mxu0 0.0
    %6925 = vmatpush2.msra.mxu0 0.0
    %6926 = vmatprep.subr.mxu0 0.0
    %6927 = vmatpush2.msra.mxu0 0.0
    %6928 = vmatprep.subr.mxu0 0.0
    %6929 = vmatpush2.msra.mxu0 0.0
    %6930 = vmatprep.subr.mxu0 0.0
    %6931 = vmatpush2.msra.mxu0 0.0
    %6932 = vmatprep.subr.mxu0 0.0
    %6933 = vmatpush2.msra.mxu0 0.0
    %6934 = vmatprep.subr.mxu0 0.0
    %6935 = vmatpush2.msra.mxu0 0.0
    %6936 = vmatprep.subr.mxu0 0.0
    %6937 = vmatpush2.msra.mxu0 0.0
    %6938 = vmatprep.subr.mxu0 0.0
    %6939 = vmatpush2.msra.mxu0 0.0
    %6940 = vmatprep.subr.mxu0 0.0
    %6941 = vmatpush2.msra.mxu0 0.0
    %6942 = vmatprep.subr.mxu0 0.0
    %6943 = vmatpush2.msra.mxu0 0.0
    %6944 = vmatprep.subr.mxu0 0.0
    %6945 = vmatpush2.msra.mxu0 0.0
    %6946 = vmatprep.subr.mxu0 0.0
    %6947 = vmatpush2.msra.mxu0 0.0
    %6948 = vmatprep.subr.mxu0 0.0
    %6949 = vmatpush2.msra.mxu0 0.0
    %6950 = vmatprep.subr.mxu0 0.0
    %6951 = vmatpush2.msra.mxu0 0.0
    %6952 = vmatprep.subr.mxu0 0.0
    %6953 = vmatpush2.msra.mxu0 0.0
    %6954 = vmatprep.subr.mxu0 0.0
    %6955 = vmatpush2.msra.mxu0 0.0
    %6956 = vmatprep.mubr.f32.mxu0 0.0
    %6957 = vmatmul.mubr.f32.gmra.mxu0 %v6738
    %v6958 = vpop.f32.mrf.mxu0
    %v6959 = vadd.f32 0.0, %v6958
    %v6960 = vpop.f32.mrf.mxu0
    %6961 = vdwg.mxu0
    %v6963 = vsel %vm6621, %v6889, 0
    %6965 = vmatprep.subr.mxu0 0.0
    %6966 = vmatpush1.msra.mxu0 0.0
    %6967 = vmatprep.subr.mxu0 0.0
    %6968 = vmatpush1.msra.mxu0 0.0
    %6969 = vmatprep.subr.mxu0 0.0
    %6970 = vmatpush1.msra.mxu0 0.0
    %6971 = vmatprep.subr.mxu0 0.0
    %6972 = vmatpush1.msra.mxu0 0.0
    %6973 = vmatprep.subr.mxu0 0.0
    %6974 = vmatpush1.msra.mxu0 0.0
    %6975 = vmatprep.subr.mxu0 0.0
    %6976 = vmatpush1.msra.mxu0 0.0
    %6977 = vmatprep.subr.mxu0 0.0
    %6978 = vmatpush1.msra.mxu0 0.0
    %6979 = vmatprep.subr.mxu0 0.0
    %6980 = vmatpush1.msra.mxu0 0.0
    %6981 = vmatprep.subr.mxu0 0.0
    %6982 = vmatpush1.msra.mxu0 0.0
    %6983 = vmatprep.subr.mxu0 0.0
    %6984 = vmatpush1.msra.mxu0 0.0
    %6985 = vmatprep.subr.mxu0 0.0
    %6986 = vmatpush1.msra.mxu0 0.0
    %6987 = vmatprep.subr.mxu0 0.0
    %6988 = vmatpush1.msra.mxu0 0.0
    %6989 = vmatprep.subr.mxu0 0.0
    %6990 = vmatpush1.msra.mxu0 0.0
    %6991 = vmatprep.subr.mxu0 0.0
    %6992 = vmatpush1.msra.mxu0 0.0
    %6993 = vmatprep.subr.mxu0 0.0
    %6994 = vmatpush1.msra.mxu0 %v6446
    %6995 = vmatprep.subr.mxu0 0.0
    %6996 = vmatpush1.msra.mxu0 %v6445
    %6997 = vmatprep.subr.mxu0 0.0
    %6998 = vmatpush2.msra.mxu0 0.0
    %6999 = vmatprep.subr.mxu0 0.0
    %7000 = vmatpush2.msra.mxu0 0.0
    %7001 = vmatprep.subr.mxu0 0.0
    %7002 = vmatpush2.msra.mxu0 0.0
    %7003 = vmatprep.subr.mxu0 0.0
    %7004 = vmatpush2.msra.mxu0 0.0
    %7005 = vmatprep.subr.mxu0 0.0
    %7006 = vmatpush2.msra.mxu0 0.0
    %7007 = vmatprep.subr.mxu0 0.0
    %7008 = vmatpush2.msra.mxu0 0.0
    %7009 = vmatprep.subr.mxu0 0.0
    %7010 = vmatpush2.msra.mxu0 0.0
    %7011 = vmatprep.subr.mxu0 0.0
    %7012 = vmatpush2.msra.mxu0 0.0
    %7013 = vmatprep.subr.mxu0 0.0
    %7014 = vmatpush2.msra.mxu0 0.0
    %7015 = vmatprep.subr.mxu0 0.0
    %7016 = vmatpush2.msra.mxu0 0.0
    %7017 = vmatprep.subr.mxu0 0.0
    %7018 = vmatpush2.msra.mxu0 0.0
    %7019 = vmatprep.subr.mxu0 0.0
    %7020 = vmatpush2.msra.mxu0 0.0
    %7021 = vmatprep.subr.mxu0 0.0
    %7022 = vmatpush2.msra.mxu0 0.0
    %7023 = vmatprep.subr.mxu0 0.0
    %7024 = vmatpush2.msra.mxu0 0.0
    %7025 = vmatprep.subr.mxu0 0.0
    %7026 = vmatpush2.msra.mxu0 0.0
    %7027 = vmatprep.subr.mxu0 0.0
    %7028 = vmatpush2.msra.mxu0 0.0
    %7029 = vmatprep.mubr.f32.mxu0 0.0
    %7030 = vmatmul.mubr.f32.gmra.mxu0 %v6963
    %v7031 = vpop.f32.mrf.mxu0
    %v7032 = vadd.f32 %v6959, %v7031
    %v7033 = vpop.f32.mrf.mxu0
    %7034 = vdwg.mxu0
    %v7035 = vadd.f32 %v7032, %v6699
    %v7036 = vxor.u32 %v7035, 2147483648
    %v7037 = vmul.f32 %v7036, 1.442695
    %v7038 = vpow.pop %v7037
    %v7039 = vadd.f32 %v7038, 1.0
    %v7040 = vrcp.pop %v7039
    %v7041 = vmul.f32 1.0, %v7040
    %v7042 = vtanh.pop %v7035
    %v7043 = vmul.f32 %v7041, %v6722
    %7045 = vrot.lane.b32.xlu0 %v7042, 64
    %v7046 = vpop.permute.xlu0 %7045
    %v7048 = vmul.f32 %v7041, %v7046
    %7050 = vrot.lane.b32.xlu0 %v7048, 32
    %v7051 = vpop.permute.xlu0 %7050
    %v7053 = vadd.f32 %v7043, %v7051
    %v7054 = vtanh.pop %v7053
    %7056 = vrot.lane.b32.xlu0 %v7054, 64
    %v7057 = vpop.permute.xlu0 %7056
    %v7059 = vmul.f32 %v7041, %v7057
    %7061 = vrot.lane.b32.xlu0 %v7059, 32
    %v7062 = vpop.permute.xlu0 %7061
    %v7063 = vsel %vm255, %v7062, 0
    %7065 = vmatprep.subr.mxu0 0.0
    %7066 = vmatpush1.msra.mxu0 0.0
    %7067 = vmatprep.subr.mxu0 0.0
    %7068 = vmatpush1.msra.mxu0 0.0
    %7069 = vmatprep.subr.mxu0 0.0
    %7070 = vmatpush1.msra.mxu0 0.0
    %7071 = vmatprep.subr.mxu0 0.0
    %7072 = vmatpush1.msra.mxu0 0.0
    %7073 = vmatprep.subr.mxu0 0.0
    %7074 = vmatpush1.msra.mxu0 0.0
    %7075 = vmatprep.subr.mxu0 0.0
    %7076 = vmatpush1.msra.mxu0 0.0
    %7077 = vmatprep.subr.mxu0 0.0
    %7078 = vmatpush1.msra.mxu0 0.0
    %7079 = vmatprep.subr.mxu0 0.0
    %7080 = vmatpush1.msra.mxu0 0.0
    %7081 = vmatprep.subr.mxu0 0.0
    %7082 = vmatpush1.msra.mxu0 0.0
    %7083 = vmatprep.subr.mxu0 0.0
    %7084 = vmatpush1.msra.mxu0 0.0
    %7085 = vmatprep.subr.mxu0 0.0
    %7086 = vmatpush1.msra.mxu0 0.0
    %7087 = vmatprep.subr.mxu0 0.0
    %7088 = vmatpush1.msra.mxu0 0.0
    %7089 = vmatprep.subr.mxu0 0.0
    %7090 = vmatpush1.msra.mxu0 %v6463
    %7091 = vmatprep.subr.mxu0 0.0
    %7092 = vmatpush1.msra.mxu0 %v6462
    %7093 = vmatprep.subr.mxu0 0.0
    %7094 = vmatpush1.msra.mxu0 %v6461
    %7095 = vmatprep.subr.mxu0 0.0
    %7096 = vmatpush1.msra.mxu0 %v6460
    %7097 = vmatprep.subr.mxu0 0.0
    %7098 = vmatpush2.msra.mxu0 0.0
    %7099 = vmatprep.subr.mxu0 0.0
    %7100 = vmatpush2.msra.mxu0 0.0
    %7101 = vmatprep.subr.mxu0 0.0
    %7102 = vmatpush2.msra.mxu0 0.0
    %7103 = vmatprep.subr.mxu0 0.0
    %7104 = vmatpush2.msra.mxu0 0.0
    %7105 = vmatprep.subr.mxu0 0.0
    %7106 = vmatpush2.msra.mxu0 0.0
    %7107 = vmatprep.subr.mxu0 0.0
    %7108 = vmatpush2.msra.mxu0 0.0
    %7109 = vmatprep.subr.mxu0 0.0
    %7110 = vmatpush2.msra.mxu0 0.0
    %7111 = vmatprep.subr.mxu0 0.0
    %7112 = vmatpush2.msra.mxu0 0.0
    %7113 = vmatprep.subr.mxu0 0.0
    %7114 = vmatpush2.msra.mxu0 0.0
    %7115 = vmatprep.subr.mxu0 0.0
    %7116 = vmatpush2.msra.mxu0 0.0
    %7117 = vmatprep.subr.mxu0 0.0
    %7118 = vmatpush2.msra.mxu0 0.0
    %7119 = vmatprep.subr.mxu0 0.0
    %7120 = vmatpush2.msra.mxu0 0.0
    %7121 = vmatprep.subr.mxu0 0.0
    %7122 = vmatpush2.msra.mxu0 0.0
    %7123 = vmatprep.subr.mxu0 0.0
    %7124 = vmatpush2.msra.mxu0 0.0
    %7125 = vmatprep.subr.mxu0 0.0
    %7126 = vmatpush2.msra.mxu0 0.0
    %7127 = vmatprep.subr.mxu0 0.0
    %7128 = vmatpush2.msra.mxu0 0.0
    %7129 = vmatprep.mubr.f32.mxu0 0.0
    %7130 = vmatmul.mubr.f32.gmra.mxu0 %v7063
    %v7131 = vpop.f32.mrf.mxu0
    %v7132 = vadd.f32 %v6733, %v7131
    %v7133 = vpop.f32.mrf.mxu0
    %7134 = vdwg.mxu0
    %s7135 = scalar_lea.vmem %s22, 4
    %7136 = vst [vmem:[%s7135] sm:$0xf] %v7132
    %s7137 = scalar_lea.vmem %s1, 8
    %v7138 = vld [vmem:[%s7137] sm:$0xf]
    %7139 = vset.pattern.permute.xlu0 0
    %7140 = vperm.xlu0 %7139, %v7138
    %v7141 = vpop.permute.xlu0 %7140
    %vm7142 = vcmp.eq.s32.totalorder %v7141, %v6466
    %v7143 = vsel %vm7142, 1, 0
    %v7144 = vcvt.s32.f32 %v7143
    %v7146 = vsel %vm6474, %v7144, 0
    %7148 = vmatprep.subr.mxu0 0.0
    %7149 = vmatpush1.msra.mxu0 0.0
    %7150 = vmatprep.subr.mxu0 0.0
    %7151 = vmatpush1.msra.mxu0 0.0
    %7152 = vmatprep.subr.mxu0 0.0
    %7153 = vmatpush1.msra.mxu0 0.0
    %7154 = vmatprep.subr.mxu0 0.0
    %7155 = vmatpush1.msra.mxu0 0.0
    %7156 = vmatprep.subr.mxu0 0.0
    %7157 = vmatpush1.msra.mxu0 0.0
    %7158 = vmatprep.subr.mxu0 0.0
    %7159 = vmatpush1.msra.mxu0 0.0
    %7160 = vmatprep.subr.mxu0 0.0
    %7161 = vmatpush1.msra.mxu0 0.0
    %7162 = vmatprep.subr.mxu0 0.0
    %7163 = vmatpush1.msra.mxu0 0.0
    %7164 = vmatprep.subr.mxu0 0.0
    %7165 = vmatpush1.msra.mxu0 %v6459
    %7166 = vmatprep.subr.mxu0 0.0
    %7167 = vmatpush1.msra.mxu0 %v6458
    %7168 = vmatprep.subr.mxu0 0.0
    %7169 = vmatpush1.msra.mxu0 %v6457
    %7170 = vmatprep.subr.mxu0 0.0
    %7171 = vmatpush1.msra.mxu0 %v6456
    %7172 = vmatprep.subr.mxu0 0.0
    %7173 = vmatpush1.msra.mxu0 %v6455
    %7174 = vmatprep.subr.mxu0 0.0
    %7175 = vmatpush1.msra.mxu0 %v6454
    %7176 = vmatprep.subr.mxu0 0.0
    %7177 = vmatpush1.msra.mxu0 %v6453
    %7178 = vmatprep.subr.mxu0 0.0
    %7179 = vmatpush1.msra.mxu0 %v6452
    %7180 = vmatprep.subr.mxu0 0.0
    %7181 = vmatpush2.msra.mxu0 0.0
    %7182 = vmatprep.subr.mxu0 0.0
    %7183 = vmatpush2.msra.mxu0 0.0
    %7184 = vmatprep.subr.mxu0 0.0
    %7185 = vmatpush2.msra.mxu0 0.0
    %7186 = vmatprep.subr.mxu0 0.0
    %7187 = vmatpush2.msra.mxu0 0.0
    %7188 = vmatprep.subr.mxu0 0.0
    %7189 = vmatpush2.msra.mxu0 0.0
    %7190 = vmatprep.subr.mxu0 0.0
    %7191 = vmatpush2.msra.mxu0 0.0
    %7192 = vmatprep.subr.mxu0 0.0
    %7193 = vmatpush2.msra.mxu0 0.0
    %7194 = vmatprep.subr.mxu0 0.0
    %7195 = vmatpush2.msra.mxu0 0.0
    %7196 = vmatprep.subr.mxu0 0.0
    %7197 = vmatpush2.msra.mxu0 0.0
    %7198 = vmatprep.subr.mxu0 0.0
    %7199 = vmatpush2.msra.mxu0 0.0
    %7200 = vmatprep.subr.mxu0 0.0
    %7201 = vmatpush2.msra.mxu0 0.0
    %7202 = vmatprep.subr.mxu0 0.0
    %7203 = vmatpush2.msra.mxu0 0.0
    %7204 = vmatprep.subr.mxu0 0.0
    %7205 = vmatpush2.msra.mxu0 0.0
    %7206 = vmatprep.subr.mxu0 0.0
    %7207 = vmatpush2.msra.mxu0 0.0
    %7208 = vmatprep.subr.mxu0 0.0
    %7209 = vmatpush2.msra.mxu0 0.0
    %7210 = vmatprep.subr.mxu0 0.0
    %7211 = vmatpush2.msra.mxu0 0.0
    %7212 = vmatprep.mubr.f32.mxu0 0.0
    %7213 = vmatmul.mubr.f32.gmra.mxu0 %v7146
    %v7214 = vpop.f32.mrf.mxu0
    %v7215 = vadd.f32 0.0, %v7214
    %v7216 = vpop.f32.mrf.mxu0
    %7217 = vdwg.mxu0
    %7218 = vmatprep.subr.mxu0 0.0
    %7219 = vmatpush1.msra.mxu0 0.0
    %7220 = vmatprep.subr.mxu0 0.0
    %7221 = vmatpush1.msra.mxu0 0.0
    %7222 = vmatprep.subr.mxu0 0.0
    %7223 = vmatpush1.msra.mxu0 0.0
    %7224 = vmatprep.subr.mxu0 0.0
    %7225 = vmatpush1.msra.mxu0 0.0
    %7226 = vmatprep.subr.mxu0 0.0
    %7227 = vmatpush1.msra.mxu0 0.0
    %7228 = vmatprep.subr.mxu0 0.0
    %7229 = vmatpush1.msra.mxu0 0.0
    %7230 = vmatprep.subr.mxu0 0.0
    %7231 = vmatpush1.msra.mxu0 0.0
    %7232 = vmatprep.subr.mxu0 0.0
    %7233 = vmatpush1.msra.mxu0 0.0
    %7234 = vmatprep.subr.mxu0 0.0
    %7235 = vmatpush1.msra.mxu0 0.0
    %7236 = vmatprep.subr.mxu0 0.0
    %7237 = vmatpush1.msra.mxu0 0.0
    %7238 = vmatprep.subr.mxu0 0.0
    %7239 = vmatpush1.msra.mxu0 0.0
    %7240 = vmatprep.subr.mxu0 0.0
    %7241 = vmatpush1.msra.mxu0 0.0
    %7242 = vmatprep.subr.mxu0 0.0
    %7243 = vmatpush1.msra.mxu0 %v6450
    %7244 = vmatprep.subr.mxu0 0.0
    %7245 = vmatpush1.msra.mxu0 %v6449
    %7246 = vmatprep.subr.mxu0 0.0
    %7247 = vmatpush1.msra.mxu0 %v6448
    %7248 = vmatprep.subr.mxu0 0.0
    %7249 = vmatpush1.msra.mxu0 %v6447
    %7250 = vmatprep.subr.mxu0 0.0
    %7251 = vmatpush2.msra.mxu0 0.0
    %7252 = vmatprep.subr.mxu0 0.0
    %7253 = vmatpush2.msra.mxu0 0.0
    %7254 = vmatprep.subr.mxu0 0.0
    %7255 = vmatpush2.msra.mxu0 0.0
    %7256 = vmatprep.subr.mxu0 0.0
    %7257 = vmatpush2.msra.mxu0 0.0
    %7258 = vmatprep.subr.mxu0 0.0
    %7259 = vmatpush2.msra.mxu0 0.0
    %7260 = vmatprep.subr.mxu0 0.0
    %7261 = vmatpush2.msra.mxu0 0.0
    %7262 = vmatprep.subr.mxu0 0.0
    %7263 = vmatpush2.msra.mxu0 0.0
    %7264 = vmatprep.subr.mxu0 0.0
    %7265 = vmatpush2.msra.mxu0 0.0
    %7266 = vmatprep.subr.mxu0 0.0
    %7267 = vmatpush2.msra.mxu0 0.0
    %7268 = vmatprep.subr.mxu0 0.0
    %7269 = vmatpush2.msra.mxu0 0.0
    %7270 = vmatprep.subr.mxu0 0.0
    %7271 = vmatpush2.msra.mxu0 0.0
    %7272 = vmatprep.subr.mxu0 0.0
    %7273 = vmatpush2.msra.mxu0 0.0
    %7274 = vmatprep.subr.mxu0 0.0
    %7275 = vmatpush2.msra.mxu0 0.0
    %7276 = vmatprep.subr.mxu0 0.0
    %7277 = vmatpush2.msra.mxu0 0.0
    %7278 = vmatprep.subr.mxu0 0.0
    %7279 = vmatpush2.msra.mxu0 0.0
    %7280 = vmatprep.subr.mxu0 0.0
    %7281 = vmatpush2.msra.mxu0 0.0
    %7282 = vmatprep.mubr.f32.mxu0 0.0
    %7283 = vmatmul.mubr.f32.gmra.mxu0 %v7063
    %v7284 = vpop.f32.mrf.mxu0
    %v7285 = vadd.f32 0.0, %v7284
    %v7286 = vpop.f32.mrf.mxu0
    %7287 = vdwg.mxu0
    %v7289 = vsel %vm6621, %v7215, 0
    %7291 = vmatprep.subr.mxu0 0.0
    %7292 = vmatpush1.msra.mxu0 0.0
    %7293 = vmatprep.subr.mxu0 0.0
    %7294 = vmatpush1.msra.mxu0 0.0
    %7295 = vmatprep.subr.mxu0 0.0
    %7296 = vmatpush1.msra.mxu0 0.0
    %7297 = vmatprep.subr.mxu0 0.0
    %7298 = vmatpush1.msra.mxu0 0.0
    %7299 = vmatprep.subr.mxu0 0.0
    %7300 = vmatpush1.msra.mxu0 0.0
    %7301 = vmatprep.subr.mxu0 0.0
    %7302 = vmatpush1.msra.mxu0 0.0
    %7303 = vmatprep.subr.mxu0 0.0
    %7304 = vmatpush1.msra.mxu0 0.0
    %7305 = vmatprep.subr.mxu0 0.0
    %7306 = vmatpush1.msra.mxu0 0.0
    %7307 = vmatprep.subr.mxu0 0.0
    %7308 = vmatpush1.msra.mxu0 0.0
    %7309 = vmatprep.subr.mxu0 0.0
    %7310 = vmatpush1.msra.mxu0 0.0
    %7311 = vmatprep.subr.mxu0 0.0
    %7312 = vmatpush1.msra.mxu0 0.0
    %7313 = vmatprep.subr.mxu0 0.0
    %7314 = vmatpush1.msra.mxu0 0.0
    %7315 = vmatprep.subr.mxu0 0.0
    %7316 = vmatpush1.msra.mxu0 0.0
    %7317 = vmatprep.subr.mxu0 0.0
    %7318 = vmatpush1.msra.mxu0 0.0
    %7319 = vmatprep.subr.mxu0 0.0
    %7320 = vmatpush1.msra.mxu0 %v6446
    %7321 = vmatprep.subr.mxu0 0.0
    %7322 = vmatpush1.msra.mxu0 %v6445
    %7323 = vmatprep.subr.mxu0 0.0
    %7324 = vmatpush2.msra.mxu0 0.0
    %7325 = vmatprep.subr.mxu0 0.0
    %7326 = vmatpush2.msra.mxu0 0.0
    %7327 = vmatprep.subr.mxu0 0.0
    %7328 = vmatpush2.msra.mxu0 0.0
    %7329 = vmatprep.subr.mxu0 0.0
    %7330 = vmatpush2.msra.mxu0 0.0
    %7331 = vmatprep.subr.mxu0 0.0
    %7332 = vmatpush2.msra.mxu0 0.0
    %7333 = vmatprep.subr.mxu0 0.0
    %7334 = vmatpush2.msra.mxu0 0.0
    %7335 = vmatprep.subr.mxu0 0.0
    %7336 = vmatpush2.msra.mxu0 0.0
    %7337 = vmatprep.subr.mxu0 0.0
    %7338 = vmatpush2.msra.mxu0 0.0
    %7339 = vmatprep.subr.mxu0 0.0
    %7340 = vmatpush2.msra.mxu0 0.0
    %7341 = vmatprep.subr.mxu0 0.0
    %7342 = vmatpush2.msra.mxu0 0.0
    %7343 = vmatprep.subr.mxu0 0.0
    %7344 = vmatpush2.msra.mxu0 0.0
    %7345 = vmatprep.subr.mxu0 0.0
    %7346 = vmatpush2.msra.mxu0 0.0
    %7347 = vmatprep.subr.mxu0 0.0
    %7348 = vmatpush2.msra.mxu0 0.0
    %7349 = vmatprep.subr.mxu0 0.0
    %7350 = vmatpush2.msra.mxu0 0.0
    %7351 = vmatprep.subr.mxu0 0.0
    %7352 = vmatpush2.msra.mxu0 0.0
    %7353 = vmatprep.subr.mxu0 0.0
    %7354 = vmatpush2.msra.mxu0 0.0
    %7355 = vmatprep.mubr.f32.mxu0 0.0
    %7356 = vmatmul.mubr.f32.gmra.mxu0 %v7289
    %v7357 = vpop.f32.mrf.mxu0
    %v7358 = vadd.f32 %v7285, %v7357
    %v7359 = vpop.f32.mrf.mxu0
    %7360 = vdwg.mxu0
    %v7361 = vadd.f32 %v7358, %v6699
    %v7362 = vxor.u32 %v7361, 2147483648
    %v7363 = vmul.f32 %v7362, 1.442695
    %v7364 = vpow.pop %v7363
    %v7365 = vadd.f32 %v7364, 1.0
    %v7366 = vrcp.pop %v7365
    %v7367 = vmul.f32 1.0, %v7366
    %v7368 = vtanh.pop %v7361
    %v7369 = vmul.f32 %v7367, %v7053
    %7371 = vrot.lane.b32.xlu0 %v7368, 64
    %v7372 = vpop.permute.xlu0 %7371
    %v7374 = vmul.f32 %v7367, %v7372
    %7376 = vrot.lane.b32.xlu0 %v7374, 32
    %v7377 = vpop.permute.xlu0 %7376
    %v7379 = vadd.f32 %v7369, %v7377
    %v7380 = vtanh.pop %v7379
    %7382 = vrot.lane.b32.xlu0 %v7380, 64
    %v7383 = vpop.permute.xlu0 %7382
    %v7385 = vmul.f32 %v7367, %v7383
    %7387 = vrot.lane.b32.xlu0 %v7385, 32
    %v7388 = vpop.permute.xlu0 %7387
    %v7389 = vsel %vm255, %v7388, 0
    %7391 = vmatprep.subr.mxu0 0.0
    %7392 = vmatpush1.msra.mxu0 0.0
    %7393 = vmatprep.subr.mxu0 0.0
    %7394 = vmatpush1.msra.mxu0 0.0
    %7395 = vmatprep.subr.mxu0 0.0
    %7396 = vmatpush1.msra.mxu0 0.0
    %7397 = vmatprep.subr.mxu0 0.0
    %7398 = vmatpush1.msra.mxu0 0.0
    %7399 = vmatprep.subr.mxu0 0.0
    %7400 = vmatpush1.msra.mxu0 0.0
    %7401 = vmatprep.subr.mxu0 0.0
    %7402 = vmatpush1.msra.mxu0 0.0
    %7403 = vmatprep.subr.mxu0 0.0
    %7404 = vmatpush1.msra.mxu0 0.0
    %7405 = vmatprep.subr.mxu0 0.0
    %7406 = vmatpush1.msra.mxu0 0.0
    %7407 = vmatprep.subr.mxu0 0.0
    %7408 = vmatpush1.msra.mxu0 0.0
    %7409 = vmatprep.subr.mxu0 0.0
    %7410 = vmatpush1.msra.mxu0 0.0
    %7411 = vmatprep.subr.mxu0 0.0
    %7412 = vmatpush1.msra.mxu0 0.0
    %7413 = vmatprep.subr.mxu0 0.0
    %7414 = vmatpush1.msra.mxu0 0.0
    %7415 = vmatprep.subr.mxu0 0.0
    %7416 = vmatpush1.msra.mxu0 %v6463
    %7417 = vmatprep.subr.mxu0 0.0
    %7418 = vmatpush1.msra.mxu0 %v6462
    %7419 = vmatprep.subr.mxu0 0.0
    %7420 = vmatpush1.msra.mxu0 %v6461
    %7421 = vmatprep.subr.mxu0 0.0
    %7422 = vmatpush1.msra.mxu0 %v6460
    %7423 = vmatprep.subr.mxu0 0.0
    %7424 = vmatpush2.msra.mxu0 0.0
    %7425 = vmatprep.subr.mxu0 0.0
    %7426 = vmatpush2.msra.mxu0 0.0
    %7427 = vmatprep.subr.mxu0 0.0
    %7428 = vmatpush2.msra.mxu0 0.0
    %7429 = vmatprep.subr.mxu0 0.0
    %7430 = vmatpush2.msra.mxu0 0.0
    %7431 = vmatprep.subr.mxu0 0.0
    %7432 = vmatpush2.msra.mxu0 0.0
    %7433 = vmatprep.subr.mxu0 0.0
    %7434 = vmatpush2.msra.mxu0 0.0
    %7435 = vmatprep.subr.mxu0 0.0
    %7436 = vmatpush2.msra.mxu0 0.0
    %7437 = vmatprep.subr.mxu0 0.0
    %7438 = vmatpush2.msra.mxu0 0.0
    %7439 = vmatprep.subr.mxu0 0.0
    %7440 = vmatpush2.msra.mxu0 0.0
    %7441 = vmatprep.subr.mxu0 0.0
    %7442 = vmatpush2.msra.mxu0 0.0
    %7443 = vmatprep.subr.mxu0 0.0
    %7444 = vmatpush2.msra.mxu0 0.0
    %7445 = vmatprep.subr.mxu0 0.0
    %7446 = vmatpush2.msra.mxu0 0.0
    %7447 = vmatprep.subr.mxu0 0.0
    %7448 = vmatpush2.msra.mxu0 0.0
    %7449 = vmatprep.subr.mxu0 0.0
    %7450 = vmatpush2.msra.mxu0 0.0
    %7451 = vmatprep.subr.mxu0 0.0
    %7452 = vmatpush2.msra.mxu0 0.0
    %7453 = vmatprep.subr.mxu0 0.0
    %7454 = vmatpush2.msra.mxu0 0.0
    %7455 = vmatprep.mubr.f32.mxu0 0.0
    %7456 = vmatmul.mubr.f32.gmra.mxu0 %v7389
    %v7457 = vpop.f32.mrf.mxu0
    %v7458 = vadd.f32 %v6733, %v7457
    %v7459 = vpop.f32.mrf.mxu0
    %7460 = vdwg.mxu0
    %s7461 = scalar_lea.vmem %s22, 8
    %7462 = vst [vmem:[%s7461] sm:$0xf] %v7458
    %s7463 = scalar_lea.vmem %s1, 12
    %v7464 = vld [vmem:[%s7463] sm:$0xf]
    %7465 = vset.pattern.permute.xlu0 0
    %7466 = vperm.xlu0 %7465, %v7464
    %v7467 = vpop.permute.xlu0 %7466
    %vm7468 = vcmp.eq.s32.totalorder %v7467, %v6466
    %v7469 = vsel %vm7468, 1, 0
    %v7470 = vcvt.s32.f32 %v7469
    %v7472 = vsel %vm6474, %v7470, 0
    %7474 = vmatprep.subr.mxu0 0.0
    %7475 = vmatpush1.msra.mxu0 0.0
    %7476 = vmatprep.subr.mxu0 0.0
    %7477 = vmatpush1.msra.mxu0 0.0
    %7478 = vmatprep.subr.mxu0 0.0
    %7479 = vmatpush1.msra.mxu0 0.0
    %7480 = vmatprep.subr.mxu0 0.0
    %7481 = vmatpush1.msra.mxu0 0.0
    %7482 = vmatprep.subr.mxu0 0.0
    %7483 = vmatpush1.msra.mxu0 0.0
    %7484 = vmatprep.subr.mxu0 0.0
    %7485 = vmatpush1.msra.mxu0 0.0
    %7486 = vmatprep.subr.mxu0 0.0
    %7487 = vmatpush1.msra.mxu0 0.0
    %7488 = vmatprep.subr.mxu0 0.0
    %7489 = vmatpush1.msra.mxu0 0.0
    %7490 = vmatprep.subr.mxu0 0.0
    %7491 = vmatpush1.msra.mxu0 %v6459
    %7492 = vmatprep.subr.mxu0 0.0
    %7493 = vmatpush1.msra.mxu0 %v6458
    %7494 = vmatprep.subr.mxu0 0.0
    %7495 = vmatpush1.msra.mxu0 %v6457
    %7496 = vmatprep.subr.mxu0 0.0
    %7497 = vmatpush1.msra.mxu0 %v6456
    %7498 = vmatprep.subr.mxu0 0.0
    %7499 = vmatpush1.msra.mxu0 %v6455
    %7500 = vmatprep.subr.mxu0 0.0
    %7501 = vmatpush1.msra.mxu0 %v6454
    %7502 = vmatprep.subr.mxu0 0.0
    %7503 = vmatpush1.msra.mxu0 %v6453
    %7504 = vmatprep.subr.mxu0 0.0
    %7505 = vmatpush1.msra.mxu0 %v6452
    %7506 = vmatprep.subr.mxu0 0.0
    %7507 = vmatpush2.msra.mxu0 0.0
    %7508 = vmatprep.subr.mxu0 0.0
    %7509 = vmatpush2.msra.mxu0 0.0
    %7510 = vmatprep.subr.mxu0 0.0
    %7511 = vmatpush2.msra.mxu0 0.0
    %7512 = vmatprep.subr.mxu0 0.0
    %7513 = vmatpush2.msra.mxu0 0.0
    %7514 = vmatprep.subr.mxu0 0.0
    %7515 = vmatpush2.msra.mxu0 0.0
    %7516 = vmatprep.subr.mxu0 0.0
    %7517 = vmatpush2.msra.mxu0 0.0
    %7518 = vmatprep.subr.mxu0 0.0
    %7519 = vmatpush2.msra.mxu0 0.0
    %7520 = vmatprep.subr.mxu0 0.0
    %7521 = vmatpush2.msra.mxu0 0.0
    %7522 = vmatprep.subr.mxu0 0.0
    %7523 = vmatpush2.msra.mxu0 0.0
    %7524 = vmatprep.subr.mxu0 0.0
    %7525 = vmatpush2.msra.mxu0 0.0
    %7526 = vmatprep.subr.mxu0 0.0
    %7527 = vmatpush2.msra.mxu0 0.0
    %7528 = vmatprep.subr.mxu0 0.0
    %7529 = vmatpush2.msra.mxu0 0.0
    %7530 = vmatprep.subr.mxu0 0.0
    %7531 = vmatpush2.msra.mxu0 0.0
    %7532 = vmatprep.subr.mxu0 0.0
    %7533 = vmatpush2.msra.mxu0 0.0
    %7534 = vmatprep.subr.mxu0 0.0
    %7535 = vmatpush2.msra.mxu0 0.0
    %7536 = vmatprep.subr.mxu0 0.0
    %7537 = vmatpush2.msra.mxu0 0.0
    %7538 = vmatprep.mubr.f32.mxu0 0.0
    %7539 = vmatmul.mubr.f32.gmra.mxu0 %v7472
    %v7540 = vpop.f32.mrf.mxu0
    %v7541 = vadd.f32 0.0, %v7540
    %v7542 = vpop.f32.mrf.mxu0
    %7543 = vdwg.mxu0
    %7544 = vmatprep.subr.mxu0 0.0
    %7545 = vmatpush1.msra.mxu0 0.0
    %7546 = vmatprep.subr.mxu0 0.0
    %7547 = vmatpush1.msra.mxu0 0.0
    %7548 = vmatprep.subr.mxu0 0.0
    %7549 = vmatpush1.msra.mxu0 0.0
    %7550 = vmatprep.subr.mxu0 0.0
    %7551 = vmatpush1.msra.mxu0 0.0
    %7552 = vmatprep.subr.mxu0 0.0
    %7553 = vmatpush1.msra.mxu0 0.0
    %7554 = vmatprep.subr.mxu0 0.0
    %7555 = vmatpush1.msra.mxu0 0.0
    %7556 = vmatprep.subr.mxu0 0.0
    %7557 = vmatpush1.msra.mxu0 0.0
    %7558 = vmatprep.subr.mxu0 0.0
    %7559 = vmatpush1.msra.mxu0 0.0
    %7560 = vmatprep.subr.mxu0 0.0
    %7561 = vmatpush1.msra.mxu0 0.0
    %7562 = vmatprep.subr.mxu0 0.0
    %7563 = vmatpush1.msra.mxu0 0.0
    %7564 = vmatprep.subr.mxu0 0.0
    %7565 = vmatpush1.msra.mxu0 0.0
    %7566 = vmatprep.subr.mxu0 0.0
    %7567 = vmatpush1.msra.mxu0 0.0
    %7568 = vmatprep.subr.mxu0 0.0
    %7569 = vmatpush1.msra.mxu0 %v6450
    %7570 = vmatprep.subr.mxu0 0.0
    %7571 = vmatpush1.msra.mxu0 %v6449
    %7572 = vmatprep.subr.mxu0 0.0
    %7573 = vmatpush1.msra.mxu0 %v6448
    %7574 = vmatprep.subr.mxu0 0.0
    %7575 = vmatpush1.msra.mxu0 %v6447
    %7576 = vmatprep.subr.mxu0 0.0
    %7577 = vmatpush2.msra.mxu0 0.0
    %7578 = vmatprep.subr.mxu0 0.0
    %7579 = vmatpush2.msra.mxu0 0.0
    %7580 = vmatprep.subr.mxu0 0.0
    %7581 = vmatpush2.msra.mxu0 0.0
    %7582 = vmatprep.subr.mxu0 0.0
    %7583 = vmatpush2.msra.mxu0 0.0
    %7584 = vmatprep.subr.mxu0 0.0
    %7585 = vmatpush2.msra.mxu0 0.0
    %7586 = vmatprep.subr.mxu0 0.0
    %7587 = vmatpush2.msra.mxu0 0.0
    %7588 = vmatprep.subr.mxu0 0.0
    %7589 = vmatpush2.msra.mxu0 0.0
    %7590 = vmatprep.subr.mxu0 0.0
    %7591 = vmatpush2.msra.mxu0 0.0
    %7592 = vmatprep.subr.mxu0 0.0
    %7593 = vmatpush2.msra.mxu0 0.0
    %7594 = vmatprep.subr.mxu0 0.0
    %7595 = vmatpush2.msra.mxu0 0.0
    %7596 = vmatprep.subr.mxu0 0.0
    %7597 = vmatpush2.msra.mxu0 0.0
    %7598 = vmatprep.subr.mxu0 0.0
    %7599 = vmatpush2.msra.mxu0 0.0
    %7600 = vmatprep.subr.mxu0 0.0
    %7601 = vmatpush2.msra.mxu0 0.0
    %7602 = vmatprep.subr.mxu0 0.0
    %7603 = vmatpush2.msra.mxu0 0.0
    %7604 = vmatprep.subr.mxu0 0.0
    %7605 = vmatpush2.msra.mxu0 0.0
    %7606 = vmatprep.subr.mxu0 0.0
    %7607 = vmatpush2.msra.mxu0 0.0
    %7608 = vmatprep.mubr.f32.mxu0 0.0
    %7609 = vmatmul.mubr.f32.gmra.mxu0 %v7389
    %v7610 = vpop.f32.mrf.mxu0
    %v7611 = vadd.f32 0.0, %v7610
    %v7612 = vpop.f32.mrf.mxu0
    %7613 = vdwg.mxu0
    %v7615 = vsel %vm6621, %v7541, 0
    %7617 = vmatprep.subr.mxu0 0.0
    %7618 = vmatpush1.msra.mxu0 0.0
    %7619 = vmatprep.subr.mxu0 0.0
    %7620 = vmatpush1.msra.mxu0 0.0
    %7621 = vmatprep.subr.mxu0 0.0
    %7622 = vmatpush1.msra.mxu0 0.0
    %7623 = vmatprep.subr.mxu0 0.0
    %7624 = vmatpush1.msra.mxu0 0.0
    %7625 = vmatprep.subr.mxu0 0.0
    %7626 = vmatpush1.msra.mxu0 0.0
    %7627 = vmatprep.subr.mxu0 0.0
    %7628 = vmatpush1.msra.mxu0 0.0
    %7629 = vmatprep.subr.mxu0 0.0
    %7630 = vmatpush1.msra.mxu0 0.0
    %7631 = vmatprep.subr.mxu0 0.0
    %7632 = vmatpush1.msra.mxu0 0.0
    %7633 = vmatprep.subr.mxu0 0.0
    %7634 = vmatpush1.msra.mxu0 0.0
    %7635 = vmatprep.subr.mxu0 0.0
    %7636 = vmatpush1.msra.mxu0 0.0
    %7637 = vmatprep.subr.mxu0 0.0
    %7638 = vmatpush1.msra.mxu0 0.0
    %7639 = vmatprep.subr.mxu0 0.0
    %7640 = vmatpush1.msra.mxu0 0.0
    %7641 = vmatprep.subr.mxu0 0.0
    %7642 = vmatpush1.msra.mxu0 0.0
    %7643 = vmatprep.subr.mxu0 0.0
    %7644 = vmatpush1.msra.mxu0 0.0
    %7645 = vmatprep.subr.mxu0 0.0
    %7646 = vmatpush1.msra.mxu0 %v6446
    %7647 = vmatprep.subr.mxu0 0.0
    %7648 = vmatpush1.msra.mxu0 %v6445
    %7649 = vmatprep.subr.mxu0 0.0
    %7650 = vmatpush2.msra.mxu0 0.0
    %7651 = vmatprep.subr.mxu0 0.0
    %7652 = vmatpush2.msra.mxu0 0.0
    %7653 = vmatprep.subr.mxu0 0.0
    %7654 = vmatpush2.msra.mxu0 0.0
    %7655 = vmatprep.subr.mxu0 0.0
    %7656 = vmatpush2.msra.mxu0 0.0
    %7657 = vmatprep.subr.mxu0 0.0
    %7658 = vmatpush2.msra.mxu0 0.0
    %7659 = vmatprep.subr.mxu0 0.0
    %7660 = vmatpush2.msra.mxu0 0.0
    %7661 = vmatprep.subr.mxu0 0.0
    %7662 = vmatpush2.msra.mxu0 0.0
    %7663 = vmatprep.subr.mxu0 0.0
    %7664 = vmatpush2.msra.mxu0 0.0
    %7665 = vmatprep.subr.mxu0 0.0
    %7666 = vmatpush2.msra.mxu0 0.0
    %7667 = vmatprep.subr.mxu0 0.0
    %7668 = vmatpush2.msra.mxu0 0.0
    %7669 = vmatprep.subr.mxu0 0.0
    %7670 = vmatpush2.msra.mxu0 0.0
    %7671 = vmatprep.subr.mxu0 0.0
    %7672 = vmatpush2.msra.mxu0 0.0
    %7673 = vmatprep.subr.mxu0 0.0
    %7674 = vmatpush2.msra.mxu0 0.0
    %7675 = vmatprep.subr.mxu0 0.0
    %7676 = vmatpush2.msra.mxu0 0.0
    %7677 = vmatprep.subr.mxu0 0.0
    %7678 = vmatpush2.msra.mxu0 0.0
    %7679 = vmatprep.subr.mxu0 0.0
    %7680 = vmatpush2.msra.mxu0 0.0
    %7681 = vmatprep.mubr.f32.mxu0 0.0
    %7682 = vmatmul.mubr.f32.gmra.mxu0 %v7615
    %v7683 = vpop.f32.mrf.mxu0
    %v7684 = vadd.f32 %v7611, %v7683
    %v7685 = vpop.f32.mrf.mxu0
    %7686 = vdwg.mxu0
    %v7687 = vadd.f32 %v7684, %v6699
    %v7688 = vxor.u32 %v7687, 2147483648
    %v7689 = vmul.f32 %v7688, 1.442695
    %v7690 = vpow.pop %v7689
    %v7691 = vadd.f32 %v7690, 1.0
    %v7692 = vrcp.pop %v7691
    %v7693 = vmul.f32 1.0, %v7692
    %v7694 = vtanh.pop %v7687
    %v7695 = vmul.f32 %v7693, %v7379
    %7697 = vrot.lane.b32.xlu0 %v7694, 64
    %v7698 = vpop.permute.xlu0 %7697
    %v7700 = vmul.f32 %v7693, %v7698
    %7702 = vrot.lane.b32.xlu0 %v7700, 32
    %v7703 = vpop.permute.xlu0 %7702
    %v7705 = vadd.f32 %v7695, %v7703
    %v7706 = vtanh.pop %v7705
    %7708 = vrot.lane.b32.xlu0 %v7706, 64
    %v7709 = vpop.permute.xlu0 %7708
    %v7711 = vmul.f32 %v7693, %v7709
    %7713 = vrot.lane.b32.xlu0 %v7711, 32
    %v7714 = vpop.permute.xlu0 %7713
    %v7715 = vsel %vm255, %v7714, 0
    %7717 = vmatprep.subr.mxu0 0.0
    %7718 = vmatpush1.msra.mxu0 0.0
    %7719 = vmatprep.subr.mxu0 0.0
    %7720 = vmatpush1.msra.mxu0 0.0
    %7721 = vmatprep.subr.mxu0 0.0
    %7722 = vmatpush1.msra.mxu0 0.0
    %7723 = vmatprep.subr.mxu0 0.0
    %7724 = vmatpush1.msra.mxu0 0.0
    %7725 = vmatprep.subr.mxu0 0.0
    %7726 = vmatpush1.msra.mxu0 0.0
    %7727 = vmatprep.subr.mxu0 0.0
    %7728 = vmatpush1.msra.mxu0 0.0
    %7729 = vmatprep.subr.mxu0 0.0
    %7730 = vmatpush1.msra.mxu0 0.0
    %7731 = vmatprep.subr.mxu0 0.0
    %7732 = vmatpush1.msra.mxu0 0.0
    %7733 = vmatprep.subr.mxu0 0.0
    %7734 = vmatpush1.msra.mxu0 0.0
    %7735 = vmatprep.subr.mxu0 0.0
    %7736 = vmatpush1.msra.mxu0 0.0
    %7737 = vmatprep.subr.mxu0 0.0
    %7738 = vmatpush1.msra.mxu0 0.0
    %7739 = vmatprep.subr.mxu0 0.0
    %7740 = vmatpush1.msra.mxu0 0.0
    %7741 = vmatprep.subr.mxu0 0.0
    %7742 = vmatpush1.msra.mxu0 %v6463
    %7743 = vmatprep.subr.mxu0 0.0
    %7744 = vmatpush1.msra.mxu0 %v6462
    %7745 = vmatprep.subr.mxu0 0.0
    %7746 = vmatpush1.msra.mxu0 %v6461
    %7747 = vmatprep.subr.mxu0 0.0
    %7748 = vmatpush1.msra.mxu0 %v6460
    %7749 = vmatprep.subr.mxu0 0.0
    %7750 = vmatpush2.msra.mxu0 0.0
    %7751 = vmatprep.subr.mxu0 0.0
    %7752 = vmatpush2.msra.mxu0 0.0
    %7753 = vmatprep.subr.mxu0 0.0
    %7754 = vmatpush2.msra.mxu0 0.0
    %7755 = vmatprep.subr.mxu0 0.0
    %7756 = vmatpush2.msra.mxu0 0.0
    %7757 = vmatprep.subr.mxu0 0.0
    %7758 = vmatpush2.msra.mxu0 0.0
    %7759 = vmatprep.subr.mxu0 0.0
    %7760 = vmatpush2.msra.mxu0 0.0
    %7761 = vmatprep.subr.mxu0 0.0
    %7762 = vmatpush2.msra.mxu0 0.0
    %7763 = vmatprep.subr.mxu0 0.0
    %7764 = vmatpush2.msra.mxu0 0.0
    %7765 = vmatprep.subr.mxu0 0.0
    %7766 = vmatpush2.msra.mxu0 0.0
    %7767 = vmatprep.subr.mxu0 0.0
    %7768 = vmatpush2.msra.mxu0 0.0
    %7769 = vmatprep.subr.mxu0 0.0
    %7770 = vmatpush2.msra.mxu0 0.0
    %7771 = vmatprep.subr.mxu0 0.0
    %7772 = vmatpush2.msra.mxu0 0.0
    %7773 = vmatprep.subr.mxu0 0.0
    %7774 = vmatpush2.msra.mxu0 0.0
    %7775 = vmatprep.subr.mxu0 0.0
    %7776 = vmatpush2.msra.mxu0 0.0
    %7777 = vmatprep.subr.mxu0 0.0
    %7778 = vmatpush2.msra.mxu0 0.0
    %7779 = vmatprep.subr.mxu0 0.0
    %7780 = vmatpush2.msra.mxu0 0.0
    %7781 = vmatprep.mubr.f32.mxu0 0.0
    %7782 = vmatmul.mubr.f32.gmra.mxu0 %v7715
    %v7783 = vpop.f32.mrf.mxu0
    %v7784 = vadd.f32 %v6733, %v7783
    %v7785 = vpop.f32.mrf.mxu0
    %7786 = vdwg.mxu0
    %s7787 = scalar_lea.vmem %s22, 12
    %7788 = vst [vmem:[%s7787] sm:$0xf] %v7784
    %s7789 = scalar_lea.vmem %s1, 16
    %v7790 = vld [vmem:[%s7789] sm:$0xf]
    %7791 = vset.pattern.permute.xlu0 0
    %7792 = vperm.xlu0 %7791, %v7790
    %v7793 = vpop.permute.xlu0 %7792
    %vm7794 = vcmp.eq.s32.totalorder %v7793, %v6466
    %v7795 = vsel %vm7794, 1, 0
    %v7796 = vcvt.s32.f32 %v7795
    %v7798 = vsel %vm6474, %v7796, 0
    %7800 = vmatprep.subr.mxu0 0.0
    %7801 = vmatpush1.msra.mxu0 0.0
    %7802 = vmatprep.subr.mxu0 0.0
    %7803 = vmatpush1.msra.mxu0 0.0
    %7804 = vmatprep.subr.mxu0 0.0
    %7805 = vmatpush1.msra.mxu0 0.0
    %7806 = vmatprep.subr.mxu0 0.0
    %7807 = vmatpush1.msra.mxu0 0.0
    %7808 = vmatprep.subr.mxu0 0.0
    %7809 = vmatpush1.msra.mxu0 0.0
    %7810 = vmatprep.subr.mxu0 0.0
    %7811 = vmatpush1.msra.mxu0 0.0
    %7812 = vmatprep.subr.mxu0 0.0
    %7813 = vmatpush1.msra.mxu0 0.0
    %7814 = vmatprep.subr.mxu0 0.0
    %7815 = vmatpush1.msra.mxu0 0.0
    %7816 = vmatprep.subr.mxu0 0.0
    %7817 = vmatpush1.msra.mxu0 %v6459
    %7818 = vmatprep.subr.mxu0 0.0
    %7819 = vmatpush1.msra.mxu0 %v6458
    %7820 = vmatprep.subr.mxu0 0.0
    %7821 = vmatpush1.msra.mxu0 %v6457
    %7822 = vmatprep.subr.mxu0 0.0
    %7823 = vmatpush1.msra.mxu0 %v6456
    %7824 = vmatprep.subr.mxu0 0.0
    %7825 = vmatpush1.msra.mxu0 %v6455
    %7826 = vmatprep.subr.mxu0 0.0
    %7827 = vmatpush1.msra.mxu0 %v6454
    %7828 = vmatprep.subr.mxu0 0.0
    %7829 = vmatpush1.msra.mxu0 %v6453
    %7830 = vmatprep.subr.mxu0 0.0
    %7831 = vmatpush1.msra.mxu0 %v6452
    %7832 = vmatprep.subr.mxu0 0.0
    %7833 = vmatpush2.msra.mxu0 0.0
    %7834 = vmatprep.subr.mxu0 0.0
    %7835 = vmatpush2.msra.mxu0 0.0
    %7836 = vmatprep.subr.mxu0 0.0
    %7837 = vmatpush2.msra.mxu0 0.0
    %7838 = vmatprep.subr.mxu0 0.0
    %7839 = vmatpush2.msra.mxu0 0.0
    %7840 = vmatprep.subr.mxu0 0.0
    %7841 = vmatpush2.msra.mxu0 0.0
    %7842 = vmatprep.subr.mxu0 0.0
    %7843 = vmatpush2.msra.mxu0 0.0
    %7844 = vmatprep.subr.mxu0 0.0
    %7845 = vmatpush2.msra.mxu0 0.0
    %7846 = vmatprep.subr.mxu0 0.0
    %7847 = vmatpush2.msra.mxu0 0.0
    %7848 = vmatprep.subr.mxu0 0.0
    %7849 = vmatpush2.msra.mxu0 0.0
    %7850 = vmatprep.subr.mxu0 0.0
    %7851 = vmatpush2.msra.mxu0 0.0
    %7852 = vmatprep.subr.mxu0 0.0
    %7853 = vmatpush2.msra.mxu0 0.0
    %7854 = vmatprep.subr.mxu0 0.0
    %7855 = vmatpush2.msra.mxu0 0.0
    %7856 = vmatprep.subr.mxu0 0.0
    %7857 = vmatpush2.msra.mxu0 0.0
    %7858 = vmatprep.subr.mxu0 0.0
    %7859 = vmatpush2.msra.mxu0 0.0
    %7860 = vmatprep.subr.mxu0 0.0
    %7861 = vmatpush2.msra.mxu0 0.0
    %7862 = vmatprep.subr.mxu0 0.0
    %7863 = vmatpush2.msra.mxu0 0.0
    %7864 = vmatprep.mubr.f32.mxu0 0.0
    %7865 = vmatmul.mubr.f32.gmra.mxu0 %v7798
    %v7866 = vpop.f32.mrf.mxu0
    %v7867 = vadd.f32 0.0, %v7866
    %v7868 = vpop.f32.mrf.mxu0
    %7869 = vdwg.mxu0
    %7870 = vmatprep.subr.mxu0 0.0
    %7871 = vmatpush1.msra.mxu0 0.0
    %7872 = vmatprep.subr.mxu0 0.0
    %7873 = vmatpush1.msra.mxu0 0.0
    %7874 = vmatprep.subr.mxu0 0.0
    %7875 = vmatpush1.msra.mxu0 0.0
    %7876 = vmatprep.subr.mxu0 0.0
    %7877 = vmatpush1.msra.mxu0 0.0
    %7878 = vmatprep.subr.mxu0 0.0
    %7879 = vmatpush1.msra.mxu0 0.0
    %7880 = vmatprep.subr.mxu0 0.0
    %7881 = vmatpush1.msra.mxu0 0.0
    %7882 = vmatprep.subr.mxu0 0.0
    %7883 = vmatpush1.msra.mxu0 0.0
    %7884 = vmatprep.subr.mxu0 0.0
    %7885 = vmatpush1.msra.mxu0 0.0
    %7886 = vmatprep.subr.mxu0 0.0
    %7887 = vmatpush1.msra.mxu0 0.0
    %7888 = vmatprep.subr.mxu0 0.0
    %7889 = vmatpush1.msra.mxu0 0.0
    %7890 = vmatprep.subr.mxu0 0.0
    %7891 = vmatpush1.msra.mxu0 0.0
    %7892 = vmatprep.subr.mxu0 0.0
    %7893 = vmatpush1.msra.mxu0 0.0
    %7894 = vmatprep.subr.mxu0 0.0
    %7895 = vmatpush1.msra.mxu0 %v6450
    %7896 = vmatprep.subr.mxu0 0.0
    %7897 = vmatpush1.msra.mxu0 %v6449
    %7898 = vmatprep.subr.mxu0 0.0
    %7899 = vmatpush1.msra.mxu0 %v6448
    %7900 = vmatprep.subr.mxu0 0.0
    %7901 = vmatpush1.msra.mxu0 %v6447
    %7902 = vmatprep.subr.mxu0 0.0
    %7903 = vmatpush2.msra.mxu0 0.0
    %7904 = vmatprep.subr.mxu0 0.0
    %7905 = vmatpush2.msra.mxu0 0.0
    %7906 = vmatprep.subr.mxu0 0.0
    %7907 = vmatpush2.msra.mxu0 0.0
    %7908 = vmatprep.subr.mxu0 0.0
    %7909 = vmatpush2.msra.mxu0 0.0
    %7910 = vmatprep.subr.mxu0 0.0
    %7911 = vmatpush2.msra.mxu0 0.0
    %7912 = vmatprep.subr.mxu0 0.0
    %7913 = vmatpush2.msra.mxu0 0.0
    %7914 = vmatprep.subr.mxu0 0.0
    %7915 = vmatpush2.msra.mxu0 0.0
    %7916 = vmatprep.subr.mxu0 0.0
    %7917 = vmatpush2.msra.mxu0 0.0
    %7918 = vmatprep.subr.mxu0 0.0
    %7919 = vmatpush2.msra.mxu0 0.0
    %7920 = vmatprep.subr.mxu0 0.0
    %7921 = vmatpush2.msra.mxu0 0.0
    %7922 = vmatprep.subr.mxu0 0.0
    %7923 = vmatpush2.msra.mxu0 0.0
    %7924 = vmatprep.subr.mxu0 0.0
    %7925 = vmatpush2.msra.mxu0 0.0
    %7926 = vmatprep.subr.mxu0 0.0
    %7927 = vmatpush2.msra.mxu0 0.0
    %7928 = vmatprep.subr.mxu0 0.0
    %7929 = vmatpush2.msra.mxu0 0.0
    %7930 = vmatprep.subr.mxu0 0.0
    %7931 = vmatpush2.msra.mxu0 0.0
    %7932 = vmatprep.subr.mxu0 0.0
    %7933 = vmatpush2.msra.mxu0 0.0
    %7934 = vmatprep.mubr.f32.mxu0 0.0
    %7935 = vmatmul.mubr.f32.gmra.mxu0 %v7715
    %v7936 = vpop.f32.mrf.mxu0
    %v7937 = vadd.f32 0.0, %v7936
    %v7938 = vpop.f32.mrf.mxu0
    %7939 = vdwg.mxu0
    %v7941 = vsel %vm6621, %v7867, 0
    %7943 = vmatprep.subr.mxu0 0.0
    %7944 = vmatpush1.msra.mxu0 0.0
    %7945 = vmatprep.subr.mxu0 0.0
    %7946 = vmatpush1.msra.mxu0 0.0
    %7947 = vmatprep.subr.mxu0 0.0
    %7948 = vmatpush1.msra.mxu0 0.0
    %7949 = vmatprep.subr.mxu0 0.0
    %7950 = vmatpush1.msra.mxu0 0.0
    %7951 = vmatprep.subr.mxu0 0.0
    %7952 = vmatpush1.msra.mxu0 0.0
    %7953 = vmatprep.subr.mxu0 0.0
    %7954 = vmatpush1.msra.mxu0 0.0
    %7955 = vmatprep.subr.mxu0 0.0
    %7956 = vmatpush1.msra.mxu0 0.0
    %7957 = vmatprep.subr.mxu0 0.0
    %7958 = vmatpush1.msra.mxu0 0.0
    %7959 = vmatprep.subr.mxu0 0.0
    %7960 = vmatpush1.msra.mxu0 0.0
    %7961 = vmatprep.subr.mxu0 0.0
    %7962 = vmatpush1.msra.mxu0 0.0
    %7963 = vmatprep.subr.mxu0 0.0
    %7964 = vmatpush1.msra.mxu0 0.0
    %7965 = vmatprep.subr.mxu0 0.0
    %7966 = vmatpush1.msra.mxu0 0.0
    %7967 = vmatprep.subr.mxu0 0.0
    %7968 = vmatpush1.msra.mxu0 0.0
    %7969 = vmatprep.subr.mxu0 0.0
    %7970 = vmatpush1.msra.mxu0 0.0
    %7971 = vmatprep.subr.mxu0 0.0
    %7972 = vmatpush1.msra.mxu0 %v6446
    %7973 = vmatprep.subr.mxu0 0.0
    %7974 = vmatpush1.msra.mxu0 %v6445
    %7975 = vmatprep.subr.mxu0 0.0
    %7976 = vmatpush2.msra.mxu0 0.0
    %7977 = vmatprep.subr.mxu0 0.0
    %7978 = vmatpush2.msra.mxu0 0.0
    %7979 = vmatprep.subr.mxu0 0.0
    %7980 = vmatpush2.msra.mxu0 0.0
    %7981 = vmatprep.subr.mxu0 0.0
    %7982 = vmatpush2.msra.mxu0 0.0
    %7983 = vmatprep.subr.mxu0 0.0
    %7984 = vmatpush2.msra.mxu0 0.0
    %7985 = vmatprep.subr.mxu0 0.0
    %7986 = vmatpush2.msra.mxu0 0.0
    %7987 = vmatprep.subr.mxu0 0.0
    %7988 = vmatpush2.msra.mxu0 0.0
    %7989 = vmatprep.subr.mxu0 0.0
    %7990 = vmatpush2.msra.mxu0 0.0
    %7991 = vmatprep.subr.mxu0 0.0
    %7992 = vmatpush2.msra.mxu0 0.0
    %7993 = vmatprep.subr.mxu0 0.0
    %7994 = vmatpush2.msra.mxu0 0.0
    %7995 = vmatprep.subr.mxu0 0.0
    %7996 = vmatpush2.msra.mxu0 0.0
    %7997 = vmatprep.subr.mxu0 0.0
    %7998 = vmatpush2.msra.mxu0 0.0
    %7999 = vmatprep.subr.mxu0 0.0
    %8000 = vmatpush2.msra.mxu0 0.0
    %8001 = vmatprep.subr.mxu0 0.0
    %8002 = vmatpush2.msra.mxu0 0.0
    %8003 = vmatprep.subr.mxu0 0.0
    %8004 = vmatpush2.msra.mxu0 0.0
    %8005 = vmatprep.subr.mxu0 0.0
    %8006 = vmatpush2.msra.mxu0 0.0
    %8007 = vmatprep.mubr.f32.mxu0 0.0
    %8008 = vmatmul.mubr.f32.gmra.mxu0 %v7941
    %v8009 = vpop.f32.mrf.mxu0
    %v8010 = vadd.f32 %v7937, %v8009
    %v8011 = vpop.f32.mrf.mxu0
    %8012 = vdwg.mxu0
    %v8013 = vadd.f32 %v8010, %v6699
    %v8014 = vxor.u32 %v8013, 2147483648
    %v8015 = vmul.f32 %v8014, 1.442695
    %v8016 = vpow.pop %v8015
    %v8017 = vadd.f32 %v8016, 1.0
    %v8018 = vrcp.pop %v8017
    %v8019 = vmul.f32 1.0, %v8018
    %v8020 = vtanh.pop %v8013
    %v8021 = vmul.f32 %v8019, %v7705
    %8023 = vrot.lane.b32.xlu0 %v8020, 64
    %v8024 = vpop.permute.xlu0 %8023
    %v8026 = vmul.f32 %v8019, %v8024
    %8028 = vrot.lane.b32.xlu0 %v8026, 32
    %v8029 = vpop.permute.xlu0 %8028
    %v8031 = vadd.f32 %v8021, %v8029
    %v8032 = vtanh.pop %v8031
    %8034 = vrot.lane.b32.xlu0 %v8032, 64
    %v8035 = vpop.permute.xlu0 %8034
    %v8037 = vmul.f32 %v8019, %v8035
    %8039 = vrot.lane.b32.xlu0 %v8037, 32
    %v8040 = vpop.permute.xlu0 %8039
    %v8041 = vsel %vm255, %v8040, 0
    %8043 = vmatprep.subr.mxu0 0.0
    %8044 = vmatpush1.msra.mxu0 0.0
    %8045 = vmatprep.subr.mxu0 0.0
    %8046 = vmatpush1.msra.mxu0 0.0
    %8047 = vmatprep.subr.mxu0 0.0
    %8048 = vmatpush1.msra.mxu0 0.0
    %8049 = vmatprep.subr.mxu0 0.0
    %8050 = vmatpush1.msra.mxu0 0.0
    %8051 = vmatprep.subr.mxu0 0.0
    %8052 = vmatpush1.msra.mxu0 0.0
    %8053 = vmatprep.subr.mxu0 0.0
    %8054 = vmatpush1.msra.mxu0 0.0
    %8055 = vmatprep.subr.mxu0 0.0
    %8056 = vmatpush1.msra.mxu0 0.0
    %8057 = vmatprep.subr.mxu0 0.0
    %8058 = vmatpush1.msra.mxu0 0.0
    %8059 = vmatprep.subr.mxu0 0.0
    %8060 = vmatpush1.msra.mxu0 0.0
    %8061 = vmatprep.subr.mxu0 0.0
    %8062 = vmatpush1.msra.mxu0 0.0
    %8063 = vmatprep.subr.mxu0 0.0
    %8064 = vmatpush1.msra.mxu0 0.0
    %8065 = vmatprep.subr.mxu0 0.0
    %8066 = vmatpush1.msra.mxu0 0.0
    %8067 = vmatprep.subr.mxu0 0.0
    %8068 = vmatpush1.msra.mxu0 %v6463
    %8069 = vmatprep.subr.mxu0 0.0
    %8070 = vmatpush1.msra.mxu0 %v6462
    %8071 = vmatprep.subr.mxu0 0.0
    %8072 = vmatpush1.msra.mxu0 %v6461
    %8073 = vmatprep.subr.mxu0 0.0
    %8074 = vmatpush1.msra.mxu0 %v6460
    %8075 = vmatprep.subr.mxu0 0.0
    %8076 = vmatpush2.msra.mxu0 0.0
    %8077 = vmatprep.subr.mxu0 0.0
    %8078 = vmatpush2.msra.mxu0 0.0
    %8079 = vmatprep.subr.mxu0 0.0
    %8080 = vmatpush2.msra.mxu0 0.0
    %8081 = vmatprep.subr.mxu0 0.0
    %8082 = vmatpush2.msra.mxu0 0.0
    %8083 = vmatprep.subr.mxu0 0.0
    %8084 = vmatpush2.msra.mxu0 0.0
    %8085 = vmatprep.subr.mxu0 0.0
    %8086 = vmatpush2.msra.mxu0 0.0
    %8087 = vmatprep.subr.mxu0 0.0
    %8088 = vmatpush2.msra.mxu0 0.0
    %8089 = vmatprep.subr.mxu0 0.0
    %8090 = vmatpush2.msra.mxu0 0.0
    %8091 = vmatprep.subr.mxu0 0.0
    %8092 = vmatpush2.msra.mxu0 0.0
    %8093 = vmatprep.subr.mxu0 0.0
    %8094 = vmatpush2.msra.mxu0 0.0
    %8095 = vmatprep.subr.mxu0 0.0
    %8096 = vmatpush2.msra.mxu0 0.0
    %8097 = vmatprep.subr.mxu0 0.0
    %8098 = vmatpush2.msra.mxu0 0.0
    %8099 = vmatprep.subr.mxu0 0.0
    %8100 = vmatpush2.msra.mxu0 0.0
    %8101 = vmatprep.subr.mxu0 0.0
    %8102 = vmatpush2.msra.mxu0 0.0
    %8103 = vmatprep.subr.mxu0 0.0
    %8104 = vmatpush2.msra.mxu0 0.0
    %8105 = vmatprep.subr.mxu0 0.0
    %8106 = vmatpush2.msra.mxu0 0.0
    %8107 = vmatprep.mubr.f32.mxu0 0.0
    %8108 = vmatmul.mubr.f32.gmra.mxu0 %v8041
    %v8109 = vpop.f32.mrf.mxu0
    %v8110 = vadd.f32 %v6733, %v8109
    %v8111 = vpop.f32.mrf.mxu0
    %8112 = vdwg.mxu0
    %s8113 = scalar_lea.vmem %s22, 16
    %8114 = vst [vmem:[%s8113] sm:$0xf] %v8110
    %s8115 = scalar_lea.vmem %s1, 20
    %v8116 = vld [vmem:[%s8115] sm:$0xf]
    %8117 = vset.pattern.permute.xlu0 0
    %8118 = vperm.xlu0 %8117, %v8116
    %v8119 = vpop.permute.xlu0 %8118
    %vm8120 = vcmp.eq.s32.totalorder %v8119, %v6466
    %v8121 = vsel %vm8120, 1, 0
    %v8122 = vcvt.s32.f32 %v8121
    %v8124 = vsel %vm6474, %v8122, 0
    %8126 = vmatprep.subr.mxu0 0.0
    %8127 = vmatpush1.msra.mxu0 0.0
    %8128 = vmatprep.subr.mxu0 0.0
    %8129 = vmatpush1.msra.mxu0 0.0
    %8130 = vmatprep.subr.mxu0 0.0
    %8131 = vmatpush1.msra.mxu0 0.0
    %8132 = vmatprep.subr.mxu0 0.0
    %8133 = vmatpush1.msra.mxu0 0.0
    %8134 = vmatprep.subr.mxu0 0.0
    %8135 = vmatpush1.msra.mxu0 0.0
    %8136 = vmatprep.subr.mxu0 0.0
    %8137 = vmatpush1.msra.mxu0 0.0
    %8138 = vmatprep.subr.mxu0 0.0
    %8139 = vmatpush1.msra.mxu0 0.0
    %8140 = vmatprep.subr.mxu0 0.0
    %8141 = vmatpush1.msra.mxu0 0.0
    %8142 = vmatprep.subr.mxu0 0.0
    %8143 = vmatpush1.msra.mxu0 %v6459
    %8144 = vmatprep.subr.mxu0 0.0
    %8145 = vmatpush1.msra.mxu0 %v6458
    %8146 = vmatprep.subr.mxu0 0.0
    %8147 = vmatpush1.msra.mxu0 %v6457
    %8148 = vmatprep.subr.mxu0 0.0
    %8149 = vmatpush1.msra.mxu0 %v6456
    %8150 = vmatprep.subr.mxu0 0.0
    %8151 = vmatpush1.msra.mxu0 %v6455
    %8152 = vmatprep.subr.mxu0 0.0
    %8153 = vmatpush1.msra.mxu0 %v6454
    %8154 = vmatprep.subr.mxu0 0.0
    %8155 = vmatpush1.msra.mxu0 %v6453
    %8156 = vmatprep.subr.mxu0 0.0
    %8157 = vmatpush1.msra.mxu0 %v6452
    %8158 = vmatprep.subr.mxu0 0.0
    %8159 = vmatpush2.msra.mxu0 0.0
    %8160 = vmatprep.subr.mxu0 0.0
    %8161 = vmatpush2.msra.mxu0 0.0
    %8162 = vmatprep.subr.mxu0 0.0
    %8163 = vmatpush2.msra.mxu0 0.0
    %8164 = vmatprep.subr.mxu0 0.0
    %8165 = vmatpush2.msra.mxu0 0.0
    %8166 = vmatprep.subr.mxu0 0.0
    %8167 = vmatpush2.msra.mxu0 0.0
    %8168 = vmatprep.subr.mxu0 0.0
    %8169 = vmatpush2.msra.mxu0 0.0
    %8170 = vmatprep.subr.mxu0 0.0
    %8171 = vmatpush2.msra.mxu0 0.0
    %8172 = vmatprep.subr.mxu0 0.0
    %8173 = vmatpush2.msra.mxu0 0.0
    %8174 = vmatprep.subr.mxu0 0.0
    %8175 = vmatpush2.msra.mxu0 0.0
    %8176 = vmatprep.subr.mxu0 0.0
    %8177 = vmatpush2.msra.mxu0 0.0
    %8178 = vmatprep.subr.mxu0 0.0
    %8179 = vmatpush2.msra.mxu0 0.0
    %8180 = vmatprep.subr.mxu0 0.0
    %8181 = vmatpush2.msra.mxu0 0.0
    %8182 = vmatprep.subr.mxu0 0.0
    %8183 = vmatpush2.msra.mxu0 0.0
    %8184 = vmatprep.subr.mxu0 0.0
    %8185 = vmatpush2.msra.mxu0 0.0
    %8186 = vmatprep.subr.mxu0 0.0
    %8187 = vmatpush2.msra.mxu0 0.0
    %8188 = vmatprep.subr.mxu0 0.0
    %8189 = vmatpush2.msra.mxu0 0.0
    %8190 = vmatprep.mubr.f32.mxu0 0.0
    %8191 = vmatmul.mubr.f32.gmra.mxu0 %v8124
    %v8192 = vpop.f32.mrf.mxu0
    %v8193 = vadd.f32 0.0, %v8192
    %v8194 = vpop.f32.mrf.mxu0
    %8195 = vdwg.mxu0
    %8196 = vmatprep.subr.mxu0 0.0
    %8197 = vmatpush1.msra.mxu0 0.0
    %8198 = vmatprep.subr.mxu0 0.0
    %8199 = vmatpush1.msra.mxu0 0.0
    %8200 = vmatprep.subr.mxu0 0.0
    %8201 = vmatpush1.msra.mxu0 0.0
    %8202 = vmatprep.subr.mxu0 0.0
    %8203 = vmatpush1.msra.mxu0 0.0
    %8204 = vmatprep.subr.mxu0 0.0
    %8205 = vmatpush1.msra.mxu0 0.0
    %8206 = vmatprep.subr.mxu0 0.0
    %8207 = vmatpush1.msra.mxu0 0.0
    %8208 = vmatprep.subr.mxu0 0.0
    %8209 = vmatpush1.msra.mxu0 0.0
    %8210 = vmatprep.subr.mxu0 0.0
    %8211 = vmatpush1.msra.mxu0 0.0
    %8212 = vmatprep.subr.mxu0 0.0
    %8213 = vmatpush1.msra.mxu0 0.0
    %8214 = vmatprep.subr.mxu0 0.0
    %8215 = vmatpush1.msra.mxu0 0.0
    %8216 = vmatprep.subr.mxu0 0.0
    %8217 = vmatpush1.msra.mxu0 0.0
    %8218 = vmatprep.subr.mxu0 0.0
    %8219 = vmatpush1.msra.mxu0 0.0
    %8220 = vmatprep.subr.mxu0 0.0
    %8221 = vmatpush1.msra.mxu0 %v6450
    %8222 = vmatprep.subr.mxu0 0.0
    %8223 = vmatpush1.msra.mxu0 %v6449
    %8224 = vmatprep.subr.mxu0 0.0
    %8225 = vmatpush1.msra.mxu0 %v6448
    %8226 = vmatprep.subr.mxu0 0.0
    %8227 = vmatpush1.msra.mxu0 %v6447
    %8228 = vmatprep.subr.mxu0 0.0
    %8229 = vmatpush2.msra.mxu0 0.0
    %8230 = vmatprep.subr.mxu0 0.0
    %8231 = vmatpush2.msra.mxu0 0.0
    %8232 = vmatprep.subr.mxu0 0.0
    %8233 = vmatpush2.msra.mxu0 0.0
    %8234 = vmatprep.subr.mxu0 0.0
    %8235 = vmatpush2.msra.mxu0 0.0
    %8236 = vmatprep.subr.mxu0 0.0
    %8237 = vmatpush2.msra.mxu0 0.0
    %8238 = vmatprep.subr.mxu0 0.0
    %8239 = vmatpush2.msra.mxu0 0.0
    %8240 = vmatprep.subr.mxu0 0.0
    %8241 = vmatpush2.msra.mxu0 0.0
    %8242 = vmatprep.subr.mxu0 0.0
    %8243 = vmatpush2.msra.mxu0 0.0
    %8244 = vmatprep.subr.mxu0 0.0
    %8245 = vmatpush2.msra.mxu0 0.0
    %8246 = vmatprep.subr.mxu0 0.0
    %8247 = vmatpush2.msra.mxu0 0.0
    %8248 = vmatprep.subr.mxu0 0.0
    %8249 = vmatpush2.msra.mxu0 0.0
    %8250 = vmatprep.subr.mxu0 0.0
    %8251 = vmatpush2.msra.mxu0 0.0
    %8252 = vmatprep.subr.mxu0 0.0
    %8253 = vmatpush2.msra.mxu0 0.0
    %8254 = vmatprep.subr.mxu0 0.0
    %8255 = vmatpush2.msra.mxu0 0.0
    %8256 = vmatprep.subr.mxu0 0.0
    %8257 = vmatpush2.msra.mxu0 0.0
    %8258 = vmatprep.subr.mxu0 0.0
    %8259 = vmatpush2.msra.mxu0 0.0
    %8260 = vmatprep.mubr.f32.mxu0 0.0
    %8261 = vmatmul.mubr.f32.gmra.mxu0 %v8041
    %v8262 = vpop.f32.mrf.mxu0
    %v8263 = vadd.f32 0.0, %v8262
    %v8264 = vpop.f32.mrf.mxu0
    %8265 = vdwg.mxu0
    %v8267 = vsel %vm6621, %v8193, 0
    %8269 = vmatprep.subr.mxu0 0.0
    %8270 = vmatpush1.msra.mxu0 0.0
    %8271 = vmatprep.subr.mxu0 0.0
    %8272 = vmatpush1.msra.mxu0 0.0
    %8273 = vmatprep.subr.mxu0 0.0
    %8274 = vmatpush1.msra.mxu0 0.0
    %8275 = vmatprep.subr.mxu0 0.0
    %8276 = vmatpush1.msra.mxu0 0.0
    %8277 = vmatprep.subr.mxu0 0.0
    %8278 = vmatpush1.msra.mxu0 0.0
    %8279 = vmatprep.subr.mxu0 0.0
    %8280 = vmatpush1.msra.mxu0 0.0
    %8281 = vmatprep.subr.mxu0 0.0
    %8282 = vmatpush1.msra.mxu0 0.0
    %8283 = vmatprep.subr.mxu0 0.0
    %8284 = vmatpush1.msra.mxu0 0.0
    %8285 = vmatprep.subr.mxu0 0.0
    %8286 = vmatpush1.msra.mxu0 0.0
    %8287 = vmatprep.subr.mxu0 0.0
    %8288 = vmatpush1.msra.mxu0 0.0
    %8289 = vmatprep.subr.mxu0 0.0
    %8290 = vmatpush1.msra.mxu0 0.0
    %8291 = vmatprep.subr.mxu0 0.0
    %8292 = vmatpush1.msra.mxu0 0.0
    %8293 = vmatprep.subr.mxu0 0.0
    %8294 = vmatpush1.msra.mxu0 0.0
    %8295 = vmatprep.subr.mxu0 0.0
    %8296 = vmatpush1.msra.mxu0 0.0
    %8297 = vmatprep.subr.mxu0 0.0
    %8298 = vmatpush1.msra.mxu0 %v6446
    %8299 = vmatprep.subr.mxu0 0.0
    %8300 = vmatpush1.msra.mxu0 %v6445
    %8301 = vmatprep.subr.mxu0 0.0
    %8302 = vmatpush2.msra.mxu0 0.0
    %8303 = vmatprep.subr.mxu0 0.0
    %8304 = vmatpush2.msra.mxu0 0.0
    %8305 = vmatprep.subr.mxu0 0.0
    %8306 = vmatpush2.msra.mxu0 0.0
    %8307 = vmatprep.subr.mxu0 0.0
    %8308 = vmatpush2.msra.mxu0 0.0
    %8309 = vmatprep.subr.mxu0 0.0
    %8310 = vmatpush2.msra.mxu0 0.0
    %8311 = vmatprep.subr.mxu0 0.0
    %8312 = vmatpush2.msra.mxu0 0.0
    %8313 = vmatprep.subr.mxu0 0.0
    %8314 = vmatpush2.msra.mxu0 0.0
    %8315 = vmatprep.subr.mxu0 0.0
    %8316 = vmatpush2.msra.mxu0 0.0
    %8317 = vmatprep.subr.mxu0 0.0
    %8318 = vmatpush2.msra.mxu0 0.0
    %8319 = vmatprep.subr.mxu0 0.0
    %8320 = vmatpush2.msra.mxu0 0.0
    %8321 = vmatprep.subr.mxu0 0.0
    %8322 = vmatpush2.msra.mxu0 0.0
    %8323 = vmatprep.subr.mxu0 0.0
    %8324 = vmatpush2.msra.mxu0 0.0
    %8325 = vmatprep.subr.mxu0 0.0
    %8326 = vmatpush2.msra.mxu0 0.0
    %8327 = vmatprep.subr.mxu0 0.0
    %8328 = vmatpush2.msra.mxu0 0.0
    %8329 = vmatprep.subr.mxu0 0.0
    %8330 = vmatpush2.msra.mxu0 0.0
    %8331 = vmatprep.subr.mxu0 0.0
    %8332 = vmatpush2.msra.mxu0 0.0
    %8333 = vmatprep.mubr.f32.mxu0 0.0
    %8334 = vmatmul.mubr.f32.gmra.mxu0 %v8267
    %v8335 = vpop.f32.mrf.mxu0
    %v8336 = vadd.f32 %v8263, %v8335
    %v8337 = vpop.f32.mrf.mxu0
    %8338 = vdwg.mxu0
    %v8339 = vadd.f32 %v8336, %v6699
    %v8340 = vxor.u32 %v8339, 2147483648
    %v8341 = vmul.f32 %v8340, 1.442695
    %v8342 = vpow.pop %v8341
    %v8343 = vadd.f32 %v8342, 1.0
    %v8344 = vrcp.pop %v8343
    %v8345 = vmul.f32 1.0, %v8344
    %v8346 = vtanh.pop %v8339
    %v8347 = vmul.f32 %v8345, %v8031
    %8349 = vrot.lane.b32.xlu0 %v8346, 64
    %v8350 = vpop.permute.xlu0 %8349
    %v8352 = vmul.f32 %v8345, %v8350
    %8354 = vrot.lane.b32.xlu0 %v8352, 32
    %v8355 = vpop.permute.xlu0 %8354
    %v8357 = vadd.f32 %v8347, %v8355
    %v8358 = vtanh.pop %v8357
    %8360 = vrot.lane.b32.xlu0 %v8358, 64
    %v8361 = vpop.permute.xlu0 %8360
    %v8363 = vmul.f32 %v8345, %v8361
    %8365 = vrot.lane.b32.xlu0 %v8363, 32
    %v8366 = vpop.permute.xlu0 %8365
    %v8367 = vsel %vm255, %v8366, 0
    %8369 = vmatprep.subr.mxu0 0.0
    %8370 = vmatpush1.msra.mxu0 0.0
    %8371 = vmatprep.subr.mxu0 0.0
    %8372 = vmatpush1.msra.mxu0 0.0
    %8373 = vmatprep.subr.mxu0 0.0
    %8374 = vmatpush1.msra.mxu0 0.0
    %8375 = vmatprep.subr.mxu0 0.0
    %8376 = vmatpush1.msra.mxu0 0.0
    %8377 = vmatprep.subr.mxu0 0.0
    %8378 = vmatpush1.msra.mxu0 0.0
    %8379 = vmatprep.subr.mxu0 0.0
    %8380 = vmatpush1.msra.mxu0 0.0
    %8381 = vmatprep.subr.mxu0 0.0
    %8382 = vmatpush1.msra.mxu0 0.0
    %8383 = vmatprep.subr.mxu0 0.0
    %8384 = vmatpush1.msra.mxu0 0.0
    %8385 = vmatprep.subr.mxu0 0.0
    %8386 = vmatpush1.msra.mxu0 0.0
    %8387 = vmatprep.subr.mxu0 0.0
    %8388 = vmatpush1.msra.mxu0 0.0
    %8389 = vmatprep.subr.mxu0 0.0
    %8390 = vmatpush1.msra.mxu0 0.0
    %8391 = vmatprep.subr.mxu0 0.0
    %8392 = vmatpush1.msra.mxu0 0.0
    %8393 = vmatprep.subr.mxu0 0.0
    %8394 = vmatpush1.msra.mxu0 %v6463
    %8395 = vmatprep.subr.mxu0 0.0
    %8396 = vmatpush1.msra.mxu0 %v6462
    %8397 = vmatprep.subr.mxu0 0.0
    %8398 = vmatpush1.msra.mxu0 %v6461
    %8399 = vmatprep.subr.mxu0 0.0
    %8400 = vmatpush1.msra.mxu0 %v6460
    %8401 = vmatprep.subr.mxu0 0.0
    %8402 = vmatpush2.msra.mxu0 0.0
    %8403 = vmatprep.subr.mxu0 0.0
    %8404 = vmatpush2.msra.mxu0 0.0
    %8405 = vmatprep.subr.mxu0 0.0
    %8406 = vmatpush2.msra.mxu0 0.0
    %8407 = vmatprep.subr.mxu0 0.0
    %8408 = vmatpush2.msra.mxu0 0.0
    %8409 = vmatprep.subr.mxu0 0.0
    %8410 = vmatpush2.msra.mxu0 0.0
    %8411 = vmatprep.subr.mxu0 0.0
    %8412 = vmatpush2.msra.mxu0 0.0
    %8413 = vmatprep.subr.mxu0 0.0
    %8414 = vmatpush2.msra.mxu0 0.0
    %8415 = vmatprep.subr.mxu0 0.0
    %8416 = vmatpush2.msra.mxu0 0.0
    %8417 = vmatprep.subr.mxu0 0.0
    %8418 = vmatpush2.msra.mxu0 0.0
    %8419 = vmatprep.subr.mxu0 0.0
    %8420 = vmatpush2.msra.mxu0 0.0
    %8421 = vmatprep.subr.mxu0 0.0
    %8422 = vmatpush2.msra.mxu0 0.0
    %8423 = vmatprep.subr.mxu0 0.0
    %8424 = vmatpush2.msra.mxu0 0.0
    %8425 = vmatprep.subr.mxu0 0.0
    %8426 = vmatpush2.msra.mxu0 0.0
    %8427 = vmatprep.subr.mxu0 0.0
    %8428 = vmatpush2.msra.mxu0 0.0
    %8429 = vmatprep.subr.mxu0 0.0
    %8430 = vmatpush2.msra.mxu0 0.0
    %8431 = vmatprep.subr.mxu0 0.0
    %8432 = vmatpush2.msra.mxu0 0.0
    %8433 = vmatprep.mubr.f32.mxu0 0.0
    %8434 = vmatmul.mubr.f32.gmra.mxu0 %v8367
    %v8435 = vpop.f32.mrf.mxu0
    %v8436 = vadd.f32 %v6733, %v8435
    %v8437 = vpop.f32.mrf.mxu0
    %8438 = vdwg.mxu0
    %s8439 = scalar_lea.vmem %s22, 20
    %8440 = vst [vmem:[%s8439] sm:$0xf] %v8436
    %s8441 = scalar_lea.vmem %s1, 24
    %v8442 = vld [vmem:[%s8441] sm:$0xf]
    %8443 = vset.pattern.permute.xlu0 0
    %8444 = vperm.xlu0 %8443, %v8442
    %v8445 = vpop.permute.xlu0 %8444
    %vm8446 = vcmp.eq.s32.totalorder %v8445, %v6466
    %v8447 = vsel %vm8446, 1, 0
    %v8448 = vcvt.s32.f32 %v8447
    %v8450 = vsel %vm6474, %v8448, 0
    %8452 = vmatprep.subr.mxu0 0.0
    %8453 = vmatpush1.msra.mxu0 0.0
    %8454 = vmatprep.subr.mxu0 0.0
    %8455 = vmatpush1.msra.mxu0 0.0
    %8456 = vmatprep.subr.mxu0 0.0
    %8457 = vmatpush1.msra.mxu0 0.0
    %8458 = vmatprep.subr.mxu0 0.0
    %8459 = vmatpush1.msra.mxu0 0.0
    %8460 = vmatprep.subr.mxu0 0.0
    %8461 = vmatpush1.msra.mxu0 0.0
    %8462 = vmatprep.subr.mxu0 0.0
    %8463 = vmatpush1.msra.mxu0 0.0
    %8464 = vmatprep.subr.mxu0 0.0
    %8465 = vmatpush1.msra.mxu0 0.0
    %8466 = vmatprep.subr.mxu0 0.0
    %8467 = vmatpush1.msra.mxu0 0.0
    %8468 = vmatprep.subr.mxu0 0.0
    %8469 = vmatpush1.msra.mxu0 %v6459
    %8470 = vmatprep.subr.mxu0 0.0
    %8471 = vmatpush1.msra.mxu0 %v6458
    %8472 = vmatprep.subr.mxu0 0.0
    %8473 = vmatpush1.msra.mxu0 %v6457
    %8474 = vmatprep.subr.mxu0 0.0
    %8475 = vmatpush1.msra.mxu0 %v6456
    %8476 = vmatprep.subr.mxu0 0.0
    %8477 = vmatpush1.msra.mxu0 %v6455
    %8478 = vmatprep.subr.mxu0 0.0
    %8479 = vmatpush1.msra.mxu0 %v6454
    %8480 = vmatprep.subr.mxu0 0.0
    %8481 = vmatpush1.msra.mxu0 %v6453
    %8482 = vmatprep.subr.mxu0 0.0
    %8483 = vmatpush1.msra.mxu0 %v6452
    %8484 = vmatprep.subr.mxu0 0.0
    %8485 = vmatpush2.msra.mxu0 0.0
    %8486 = vmatprep.subr.mxu0 0.0
    %8487 = vmatpush2.msra.mxu0 0.0
    %8488 = vmatprep.subr.mxu0 0.0
    %8489 = vmatpush2.msra.mxu0 0.0
    %8490 = vmatprep.subr.mxu0 0.0
    %8491 = vmatpush2.msra.mxu0 0.0
    %8492 = vmatprep.subr.mxu0 0.0
    %8493 = vmatpush2.msra.mxu0 0.0
    %8494 = vmatprep.subr.mxu0 0.0
    %8495 = vmatpush2.msra.mxu0 0.0
    %8496 = vmatprep.subr.mxu0 0.0
    %8497 = vmatpush2.msra.mxu0 0.0
    %8498 = vmatprep.subr.mxu0 0.0
    %8499 = vmatpush2.msra.mxu0 0.0
    %8500 = vmatprep.subr.mxu0 0.0
    %8501 = vmatpush2.msra.mxu0 0.0
    %8502 = vmatprep.subr.mxu0 0.0
    %8503 = vmatpush2.msra.mxu0 0.0
    %8504 = vmatprep.subr.mxu0 0.0
    %8505 = vmatpush2.msra.mxu0 0.0
    %8506 = vmatprep.subr.mxu0 0.0
    %8507 = vmatpush2.msra.mxu0 0.0
    %8508 = vmatprep.subr.mxu0 0.0
    %8509 = vmatpush2.msra.mxu0 0.0
    %8510 = vmatprep.subr.mxu0 0.0
    %8511 = vmatpush2.msra.mxu0 0.0
    %8512 = vmatprep.subr.mxu0 0.0
    %8513 = vmatpush2.msra.mxu0 0.0
    %8514 = vmatprep.subr.mxu0 0.0
    %8515 = vmatpush2.msra.mxu0 0.0
    %8516 = vmatprep.mubr.f32.mxu0 0.0
    %8517 = vmatmul.mubr.f32.gmra.mxu0 %v8450
    %v8518 = vpop.f32.mrf.mxu0
    %v8519 = vadd.f32 0.0, %v8518
    %v8520 = vpop.f32.mrf.mxu0
    %8521 = vdwg.mxu0
    %8522 = vmatprep.subr.mxu0 0.0
    %8523 = vmatpush1.msra.mxu0 0.0
    %8524 = vmatprep.subr.mxu0 0.0
    %8525 = vmatpush1.msra.mxu0 0.0
    %8526 = vmatprep.subr.mxu0 0.0
    %8527 = vmatpush1.msra.mxu0 0.0
    %8528 = vmatprep.subr.mxu0 0.0
    %8529 = vmatpush1.msra.mxu0 0.0
    %8530 = vmatprep.subr.mxu0 0.0
    %8531 = vmatpush1.msra.mxu0 0.0
    %8532 = vmatprep.subr.mxu0 0.0
    %8533 = vmatpush1.msra.mxu0 0.0
    %8534 = vmatprep.subr.mxu0 0.0
    %8535 = vmatpush1.msra.mxu0 0.0
    %8536 = vmatprep.subr.mxu0 0.0
    %8537 = vmatpush1.msra.mxu0 0.0
    %8538 = vmatprep.subr.mxu0 0.0
    %8539 = vmatpush1.msra.mxu0 0.0
    %8540 = vmatprep.subr.mxu0 0.0
    %8541 = vmatpush1.msra.mxu0 0.0
    %8542 = vmatprep.subr.mxu0 0.0
    %8543 = vmatpush1.msra.mxu0 0.0
    %8544 = vmatprep.subr.mxu0 0.0
    %8545 = vmatpush1.msra.mxu0 0.0
    %8546 = vmatprep.subr.mxu0 0.0
    %8547 = vmatpush1.msra.mxu0 %v6450
    %8548 = vmatprep.subr.mxu0 0.0
    %8549 = vmatpush1.msra.mxu0 %v6449
    %8550 = vmatprep.subr.mxu0 0.0
    %8551 = vmatpush1.msra.mxu0 %v6448
    %8552 = vmatprep.subr.mxu0 0.0
    %8553 = vmatpush1.msra.mxu0 %v6447
    %8554 = vmatprep.subr.mxu0 0.0
    %8555 = vmatpush2.msra.mxu0 0.0
    %8556 = vmatprep.subr.mxu0 0.0
    %8557 = vmatpush2.msra.mxu0 0.0
    %8558 = vmatprep.subr.mxu0 0.0
    %8559 = vmatpush2.msra.mxu0 0.0
    %8560 = vmatprep.subr.mxu0 0.0
    %8561 = vmatpush2.msra.mxu0 0.0
    %8562 = vmatprep.subr.mxu0 0.0
    %8563 = vmatpush2.msra.mxu0 0.0
    %8564 = vmatprep.subr.mxu0 0.0
    %8565 = vmatpush2.msra.mxu0 0.0
    %8566 = vmatprep.subr.mxu0 0.0
    %8567 = vmatpush2.msra.mxu0 0.0
    %8568 = vmatprep.subr.mxu0 0.0
    %8569 = vmatpush2.msra.mxu0 0.0
    %8570 = vmatprep.subr.mxu0 0.0
    %8571 = vmatpush2.msra.mxu0 0.0
    %8572 = vmatprep.subr.mxu0 0.0
    %8573 = vmatpush2.msra.mxu0 0.0
    %8574 = vmatprep.subr.mxu0 0.0
    %8575 = vmatpush2.msra.mxu0 0.0
    %8576 = vmatprep.subr.mxu0 0.0
    %8577 = vmatpush2.msra.mxu0 0.0
    %8578 = vmatprep.subr.mxu0 0.0
    %8579 = vmatpush2.msra.mxu0 0.0
    %8580 = vmatprep.subr.mxu0 0.0
    %8581 = vmatpush2.msra.mxu0 0.0
    %8582 = vmatprep.subr.mxu0 0.0
    %8583 = vmatpush2.msra.mxu0 0.0
    %8584 = vmatprep.subr.mxu0 0.0
    %8585 = vmatpush2.msra.mxu0 0.0
    %8586 = vmatprep.mubr.f32.mxu0 0.0
    %8587 = vmatmul.mubr.f32.gmra.mxu0 %v8367
    %v8588 = vpop.f32.mrf.mxu0
    %v8589 = vadd.f32 0.0, %v8588
    %v8590 = vpop.f32.mrf.mxu0
    %8591 = vdwg.mxu0
    %v8593 = vsel %vm6621, %v8519, 0
    %8595 = vmatprep.subr.mxu0 0.0
    %8596 = vmatpush1.msra.mxu0 0.0
    %8597 = vmatprep.subr.mxu0 0.0
    %8598 = vmatpush1.msra.mxu0 0.0
    %8599 = vmatprep.subr.mxu0 0.0
    %8600 = vmatpush1.msra.mxu0 0.0
    %8601 = vmatprep.subr.mxu0 0.0
    %8602 = vmatpush1.msra.mxu0 0.0
    %8603 = vmatprep.subr.mxu0 0.0
    %8604 = vmatpush1.msra.mxu0 0.0
    %8605 = vmatprep.subr.mxu0 0.0
    %8606 = vmatpush1.msra.mxu0 0.0
    %8607 = vmatprep.subr.mxu0 0.0
    %8608 = vmatpush1.msra.mxu0 0.0
    %8609 = vmatprep.subr.mxu0 0.0
    %8610 = vmatpush1.msra.mxu0 0.0
    %8611 = vmatprep.subr.mxu0 0.0
    %8612 = vmatpush1.msra.mxu0 0.0
    %8613 = vmatprep.subr.mxu0 0.0
    %8614 = vmatpush1.msra.mxu0 0.0
    %8615 = vmatprep.subr.mxu0 0.0
    %8616 = vmatpush1.msra.mxu0 0.0
    %8617 = vmatprep.subr.mxu0 0.0
    %8618 = vmatpush1.msra.mxu0 0.0
    %8619 = vmatprep.subr.mxu0 0.0
    %8620 = vmatpush1.msra.mxu0 0.0
    %8621 = vmatprep.subr.mxu0 0.0
    %8622 = vmatpush1.msra.mxu0 0.0
    %8623 = vmatprep.subr.mxu0 0.0
    %8624 = vmatpush1.msra.mxu0 %v6446
    %8625 = vmatprep.subr.mxu0 0.0
    %8626 = vmatpush1.msra.mxu0 %v6445
    %8627 = vmatprep.subr.mxu0 0.0
    %8628 = vmatpush2.msra.mxu0 0.0
    %8629 = vmatprep.subr.mxu0 0.0
    %8630 = vmatpush2.msra.mxu0 0.0
    %8631 = vmatprep.subr.mxu0 0.0
    %8632 = vmatpush2.msra.mxu0 0.0
    %8633 = vmatprep.subr.mxu0 0.0
    %8634 = vmatpush2.msra.mxu0 0.0
    %8635 = vmatprep.subr.mxu0 0.0
    %8636 = vmatpush2.msra.mxu0 0.0
    %8637 = vmatprep.subr.mxu0 0.0
    %8638 = vmatpush2.msra.mxu0 0.0
    %8639 = vmatprep.subr.mxu0 0.0
    %8640 = vmatpush2.msra.mxu0 0.0
    %8641 = vmatprep.subr.mxu0 0.0
    %8642 = vmatpush2.msra.mxu0 0.0
    %8643 = vmatprep.subr.mxu0 0.0
    %8644 = vmatpush2.msra.mxu0 0.0
    %8645 = vmatprep.subr.mxu0 0.0
    %8646 = vmatpush2.msra.mxu0 0.0
    %8647 = vmatprep.subr.mxu0 0.0
    %8648 = vmatpush2.msra.mxu0 0.0
    %8649 = vmatprep.subr.mxu0 0.0
    %8650 = vmatpush2.msra.mxu0 0.0
    %8651 = vmatprep.subr.mxu0 0.0
    %8652 = vmatpush2.msra.mxu0 0.0
    %8653 = vmatprep.subr.mxu0 0.0
    %8654 = vmatpush2.msra.mxu0 0.0
    %8655 = vmatprep.subr.mxu0 0.0
    %8656 = vmatpush2.msra.mxu0 0.0
    %8657 = vmatprep.subr.mxu0 0.0
    %8658 = vmatpush2.msra.mxu0 0.0
    %8659 = vmatprep.mubr.f32.mxu0 0.0
    %8660 = vmatmul.mubr.f32.gmra.mxu0 %v8593
    %v8661 = vpop.f32.mrf.mxu0
    %v8662 = vadd.f32 %v8589, %v8661
    %v8663 = vpop.f32.mrf.mxu0
    %8664 = vdwg.mxu0
    %v8665 = vadd.f32 %v8662, %v6699
    %v8666 = vxor.u32 %v8665, 2147483648
    %v8667 = vmul.f32 %v8666, 1.442695
    %v8668 = vpow.pop %v8667
    %v8669 = vadd.f32 %v8668, 1.0
    %v8670 = vrcp.pop %v8669
    %v8671 = vmul.f32 1.0, %v8670
    %v8672 = vtanh.pop %v8665
    %v8673 = vmul.f32 %v8671, %v8357
    %8675 = vrot.lane.b32.xlu0 %v8672, 64
    %v8676 = vpop.permute.xlu0 %8675
    %v8678 = vmul.f32 %v8671, %v8676
    %8680 = vrot.lane.b32.xlu0 %v8678, 32
    %v8681 = vpop.permute.xlu0 %8680
    %v8683 = vadd.f32 %v8673, %v8681
    %v8684 = vtanh.pop %v8683
    %8686 = vrot.lane.b32.xlu0 %v8684, 64
    %v8687 = vpop.permute.xlu0 %8686
    %v8689 = vmul.f32 %v8671, %v8687
    %8691 = vrot.lane.b32.xlu0 %v8689, 32
    %v8692 = vpop.permute.xlu0 %8691
    %v8693 = vsel %vm255, %v8692, 0
    %8695 = vmatprep.subr.mxu0 0.0
    %8696 = vmatpush1.msra.mxu0 0.0
    %8697 = vmatprep.subr.mxu0 0.0
    %8698 = vmatpush1.msra.mxu0 0.0
    %8699 = vmatprep.subr.mxu0 0.0
    %8700 = vmatpush1.msra.mxu0 0.0
    %8701 = vmatprep.subr.mxu0 0.0
    %8702 = vmatpush1.msra.mxu0 0.0
    %8703 = vmatprep.subr.mxu0 0.0
    %8704 = vmatpush1.msra.mxu0 0.0
    %8705 = vmatprep.subr.mxu0 0.0
    %8706 = vmatpush1.msra.mxu0 0.0
    %8707 = vmatprep.subr.mxu0 0.0
    %8708 = vmatpush1.msra.mxu0 0.0
    %8709 = vmatprep.subr.mxu0 0.0
    %8710 = vmatpush1.msra.mxu0 0.0
    %8711 = vmatprep.subr.mxu0 0.0
    %8712 = vmatpush1.msra.mxu0 0.0
    %8713 = vmatprep.subr.mxu0 0.0
    %8714 = vmatpush1.msra.mxu0 0.0
    %8715 = vmatprep.subr.mxu0 0.0
    %8716 = vmatpush1.msra.mxu0 0.0
    %8717 = vmatprep.subr.mxu0 0.0
    %8718 = vmatpush1.msra.mxu0 0.0
    %8719 = vmatprep.subr.mxu0 0.0
    %8720 = vmatpush1.msra.mxu0 %v6463
    %8721 = vmatprep.subr.mxu0 0.0
    %8722 = vmatpush1.msra.mxu0 %v6462
    %8723 = vmatprep.subr.mxu0 0.0
    %8724 = vmatpush1.msra.mxu0 %v6461
    %8725 = vmatprep.subr.mxu0 0.0
    %8726 = vmatpush1.msra.mxu0 %v6460
    %8727 = vmatprep.subr.mxu0 0.0
    %8728 = vmatpush2.msra.mxu0 0.0
    %8729 = vmatprep.subr.mxu0 0.0
    %8730 = vmatpush2.msra.mxu0 0.0
    %8731 = vmatprep.subr.mxu0 0.0
    %8732 = vmatpush2.msra.mxu0 0.0
    %8733 = vmatprep.subr.mxu0 0.0
    %8734 = vmatpush2.msra.mxu0 0.0
    %8735 = vmatprep.subr.mxu0 0.0
    %8736 = vmatpush2.msra.mxu0 0.0
    %8737 = vmatprep.subr.mxu0 0.0
    %8738 = vmatpush2.msra.mxu0 0.0
    %8739 = vmatprep.subr.mxu0 0.0
    %8740 = vmatpush2.msra.mxu0 0.0
    %8741 = vmatprep.subr.mxu0 0.0
    %8742 = vmatpush2.msra.mxu0 0.0
    %8743 = vmatprep.subr.mxu0 0.0
    %8744 = vmatpush2.msra.mxu0 0.0
    %8745 = vmatprep.subr.mxu0 0.0
    %8746 = vmatpush2.msra.mxu0 0.0
    %8747 = vmatprep.subr.mxu0 0.0
    %8748 = vmatpush2.msra.mxu0 0.0
    %8749 = vmatprep.subr.mxu0 0.0
    %8750 = vmatpush2.msra.mxu0 0.0
    %8751 = vmatprep.subr.mxu0 0.0
    %8752 = vmatpush2.msra.mxu0 0.0
    %8753 = vmatprep.subr.mxu0 0.0
    %8754 = vmatpush2.msra.mxu0 0.0
    %8755 = vmatprep.subr.mxu0 0.0
    %8756 = vmatpush2.msra.mxu0 0.0
    %8757 = vmatprep.subr.mxu0 0.0
    %8758 = vmatpush2.msra.mxu0 0.0
    %8759 = vmatprep.mubr.f32.mxu0 0.0
    %8760 = vmatmul.mubr.f32.gmra.mxu0 %v8693
    %v8761 = vpop.f32.mrf.mxu0
    %v8762 = vadd.f32 %v6733, %v8761
    %v8763 = vpop.f32.mrf.mxu0
    %8764 = vdwg.mxu0
    %s8765 = scalar_lea.vmem %s22, 24
    %8766 = vst [vmem:[%s8765] sm:$0xf] %v8762
    %s8767 = scalar_lea.vmem %s1, 28
    %v8768 = vld [vmem:[%s8767] sm:$0xf]
    %8769 = vset.pattern.permute.xlu0 0
    %8770 = vperm.xlu0 %8769, %v8768
    %v8771 = vpop.permute.xlu0 %8770
    %vm8772 = vcmp.eq.s32.totalorder %v8771, %v6466
    %v8773 = vsel %vm8772, 1, 0
    %v8774 = vcvt.s32.f32 %v8773
    %v8776 = vsel %vm6474, %v8774, 0
    %8778 = vmatprep.subr.mxu0 0.0
    %8779 = vmatpush1.msra.mxu0 0.0
    %8780 = vmatprep.subr.mxu0 0.0
    %8781 = vmatpush1.msra.mxu0 0.0
    %8782 = vmatprep.subr.mxu0 0.0
    %8783 = vmatpush1.msra.mxu0 0.0
    %8784 = vmatprep.subr.mxu0 0.0
    %8785 = vmatpush1.msra.mxu0 0.0
    %8786 = vmatprep.subr.mxu0 0.0
    %8787 = vmatpush1.msra.mxu0 0.0
    %8788 = vmatprep.subr.mxu0 0.0
    %8789 = vmatpush1.msra.mxu0 0.0
    %8790 = vmatprep.subr.mxu0 0.0
    %8791 = vmatpush1.msra.mxu0 0.0
    %8792 = vmatprep.subr.mxu0 0.0
    %8793 = vmatpush1.msra.mxu0 0.0
    %8794 = vmatprep.subr.mxu0 0.0
    %8795 = vmatpush1.msra.mxu0 %v6459
    %8796 = vmatprep.subr.mxu0 0.0
    %8797 = vmatpush1.msra.mxu0 %v6458
    %8798 = vmatprep.subr.mxu0 0.0
    %8799 = vmatpush1.msra.mxu0 %v6457
    %8800 = vmatprep.subr.mxu0 0.0
    %8801 = vmatpush1.msra.mxu0 %v6456
    %8802 = vmatprep.subr.mxu0 0.0
    %8803 = vmatpush1.msra.mxu0 %v6455
    %8804 = vmatprep.subr.mxu0 0.0
    %8805 = vmatpush1.msra.mxu0 %v6454
    %8806 = vmatprep.subr.mxu0 0.0
    %8807 = vmatpush1.msra.mxu0 %v6453
    %8808 = vmatprep.subr.mxu0 0.0
    %8809 = vmatpush1.msra.mxu0 %v6452
    %8810 = vmatprep.subr.mxu0 0.0
    %8811 = vmatpush2.msra.mxu0 0.0
    %8812 = vmatprep.subr.mxu0 0.0
    %8813 = vmatpush2.msra.mxu0 0.0
    %8814 = vmatprep.subr.mxu0 0.0
    %8815 = vmatpush2.msra.mxu0 0.0
    %8816 = vmatprep.subr.mxu0 0.0
    %8817 = vmatpush2.msra.mxu0 0.0
    %8818 = vmatprep.subr.mxu0 0.0
    %8819 = vmatpush2.msra.mxu0 0.0
    %8820 = vmatprep.subr.mxu0 0.0
    %8821 = vmatpush2.msra.mxu0 0.0
    %8822 = vmatprep.subr.mxu0 0.0
    %8823 = vmatpush2.msra.mxu0 0.0
    %8824 = vmatprep.subr.mxu0 0.0
    %8825 = vmatpush2.msra.mxu0 0.0
    %8826 = vmatprep.subr.mxu0 0.0
    %8827 = vmatpush2.msra.mxu0 0.0
    %8828 = vmatprep.subr.mxu0 0.0
    %8829 = vmatpush2.msra.mxu0 0.0
    %8830 = vmatprep.subr.mxu0 0.0
    %8831 = vmatpush2.msra.mxu0 0.0
    %8832 = vmatprep.subr.mxu0 0.0
    %8833 = vmatpush2.msra.mxu0 0.0
    %8834 = vmatprep.subr.mxu0 0.0
    %8835 = vmatpush2.msra.mxu0 0.0
    %8836 = vmatprep.subr.mxu0 0.0
    %8837 = vmatpush2.msra.mxu0 0.0
    %8838 = vmatprep.subr.mxu0 0.0
    %8839 = vmatpush2.msra.mxu0 0.0
    %8840 = vmatprep.subr.mxu0 0.0
    %8841 = vmatpush2.msra.mxu0 0.0
    %8842 = vmatprep.mubr.f32.mxu0 0.0
    %8843 = vmatmul.mubr.f32.gmra.mxu0 %v8776
    %v8844 = vpop.f32.mrf.mxu0
    %v8845 = vadd.f32 0.0, %v8844
    %v8846 = vpop.f32.mrf.mxu0
    %8847 = vdwg.mxu0
    %8848 = vmatprep.subr.mxu0 0.0
    %8849 = vmatpush1.msra.mxu0 0.0
    %8850 = vmatprep.subr.mxu0 0.0
    %8851 = vmatpush1.msra.mxu0 0.0
    %8852 = vmatprep.subr.mxu0 0.0
    %8853 = vmatpush1.msra.mxu0 0.0
    %8854 = vmatprep.subr.mxu0 0.0
    %8855 = vmatpush1.msra.mxu0 0.0
    %8856 = vmatprep.subr.mxu0 0.0
    %8857 = vmatpush1.msra.mxu0 0.0
    %8858 = vmatprep.subr.mxu0 0.0
    %8859 = vmatpush1.msra.mxu0 0.0
    %8860 = vmatprep.subr.mxu0 0.0
    %8861 = vmatpush1.msra.mxu0 0.0
    %8862 = vmatprep.subr.mxu0 0.0
    %8863 = vmatpush1.msra.mxu0 0.0
    %8864 = vmatprep.subr.mxu0 0.0
    %8865 = vmatpush1.msra.mxu0 0.0
    %8866 = vmatprep.subr.mxu0 0.0
    %8867 = vmatpush1.msra.mxu0 0.0
    %8868 = vmatprep.subr.mxu0 0.0
    %8869 = vmatpush1.msra.mxu0 0.0
    %8870 = vmatprep.subr.mxu0 0.0
    %8871 = vmatpush1.msra.mxu0 0.0
    %8872 = vmatprep.subr.mxu0 0.0
    %8873 = vmatpush1.msra.mxu0 %v6450
    %8874 = vmatprep.subr.mxu0 0.0
    %8875 = vmatpush1.msra.mxu0 %v6449
    %8876 = vmatprep.subr.mxu0 0.0
    %8877 = vmatpush1.msra.mxu0 %v6448
    %8878 = vmatprep.subr.mxu0 0.0
    %8879 = vmatpush1.msra.mxu0 %v6447
    %8880 = vmatprep.subr.mxu0 0.0
    %8881 = vmatpush2.msra.mxu0 0.0
    %8882 = vmatprep.subr.mxu0 0.0
    %8883 = vmatpush2.msra.mxu0 0.0
    %8884 = vmatprep.subr.mxu0 0.0
    %8885 = vmatpush2.msra.mxu0 0.0
    %8886 = vmatprep.subr.mxu0 0.0
    %8887 = vmatpush2.msra.mxu0 0.0
    %8888 = vmatprep.subr.mxu0 0.0
    %8889 = vmatpush2.msra.mxu0 0.0
    %8890 = vmatprep.subr.mxu0 0.0
    %8891 = vmatpush2.msra.mxu0 0.0
    %8892 = vmatprep.subr.mxu0 0.0
    %8893 = vmatpush2.msra.mxu0 0.0
    %8894 = vmatprep.subr.mxu0 0.0
    %8895 = vmatpush2.msra.mxu0 0.0
    %8896 = vmatprep.subr.mxu0 0.0
    %8897 = vmatpush2.msra.mxu0 0.0
    %8898 = vmatprep.subr.mxu0 0.0
    %8899 = vmatpush2.msra.mxu0 0.0
    %8900 = vmatprep.subr.mxu0 0.0
    %8901 = vmatpush2.msra.mxu0 0.0
    %8902 = vmatprep.subr.mxu0 0.0
    %8903 = vmatpush2.msra.mxu0 0.0
    %8904 = vmatprep.subr.mxu0 0.0
    %8905 = vmatpush2.msra.mxu0 0.0
    %8906 = vmatprep.subr.mxu0 0.0
    %8907 = vmatpush2.msra.mxu0 0.0
    %8908 = vmatprep.subr.mxu0 0.0
    %8909 = vmatpush2.msra.mxu0 0.0
    %8910 = vmatprep.subr.mxu0 0.0
    %8911 = vmatpush2.msra.mxu0 0.0
    %8912 = vmatprep.mubr.f32.mxu0 0.0
    %8913 = vmatmul.mubr.f32.gmra.mxu0 %v8693
    %v8914 = vpop.f32.mrf.mxu0
    %v8915 = vadd.f32 0.0, %v8914
    %v8916 = vpop.f32.mrf.mxu0
    %8917 = vdwg.mxu0
    %v8919 = vsel %vm6621, %v8845, 0
    %8921 = vmatprep.subr.mxu0 0.0
    %8922 = vmatpush1.msra.mxu0 0.0
    %8923 = vmatprep.subr.mxu0 0.0
    %8924 = vmatpush1.msra.mxu0 0.0
    %8925 = vmatprep.subr.mxu0 0.0
    %8926 = vmatpush1.msra.mxu0 0.0
    %8927 = vmatprep.subr.mxu0 0.0
    %8928 = vmatpush1.msra.mxu0 0.0
    %8929 = vmatprep.subr.mxu0 0.0
    %8930 = vmatpush1.msra.mxu0 0.0
    %8931 = vmatprep.subr.mxu0 0.0
    %8932 = vmatpush1.msra.mxu0 0.0
    %8933 = vmatprep.subr.mxu0 0.0
    %8934 = vmatpush1.msra.mxu0 0.0
    %8935 = vmatprep.subr.mxu0 0.0
    %8936 = vmatpush1.msra.mxu0 0.0
    %8937 = vmatprep.subr.mxu0 0.0
    %8938 = vmatpush1.msra.mxu0 0.0
    %8939 = vmatprep.subr.mxu0 0.0
    %8940 = vmatpush1.msra.mxu0 0.0
    %8941 = vmatprep.subr.mxu0 0.0
    %8942 = vmatpush1.msra.mxu0 0.0
    %8943 = vmatprep.subr.mxu0 0.0
    %8944 = vmatpush1.msra.mxu0 0.0
    %8945 = vmatprep.subr.mxu0 0.0
    %8946 = vmatpush1.msra.mxu0 0.0
    %8947 = vmatprep.subr.mxu0 0.0
    %8948 = vmatpush1.msra.mxu0 0.0
    %8949 = vmatprep.subr.mxu0 0.0
    %8950 = vmatpush1.msra.mxu0 %v6446
    %8951 = vmatprep.subr.mxu0 0.0
    %8952 = vmatpush1.msra.mxu0 %v6445
    %8953 = vmatprep.subr.mxu0 0.0
    %8954 = vmatpush2.msra.mxu0 0.0
    %8955 = vmatprep.subr.mxu0 0.0
    %8956 = vmatpush2.msra.mxu0 0.0
    %8957 = vmatprep.subr.mxu0 0.0
    %8958 = vmatpush2.msra.mxu0 0.0
    %8959 = vmatprep.subr.mxu0 0.0
    %8960 = vmatpush2.msra.mxu0 0.0
    %8961 = vmatprep.subr.mxu0 0.0
    %8962 = vmatpush2.msra.mxu0 0.0
    %8963 = vmatprep.subr.mxu0 0.0
    %8964 = vmatpush2.msra.mxu0 0.0
    %8965 = vmatprep.subr.mxu0 0.0
    %8966 = vmatpush2.msra.mxu0 0.0
    %8967 = vmatprep.subr.mxu0 0.0
    %8968 = vmatpush2.msra.mxu0 0.0
    %8969 = vmatprep.subr.mxu0 0.0
    %8970 = vmatpush2.msra.mxu0 0.0
    %8971 = vmatprep.subr.mxu0 0.0
    %8972 = vmatpush2.msra.mxu0 0.0
    %8973 = vmatprep.subr.mxu0 0.0
    %8974 = vmatpush2.msra.mxu0 0.0
    %8975 = vmatprep.subr.mxu0 0.0
    %8976 = vmatpush2.msra.mxu0 0.0
    %8977 = vmatprep.subr.mxu0 0.0
    %8978 = vmatpush2.msra.mxu0 0.0
    %8979 = vmatprep.subr.mxu0 0.0
    %8980 = vmatpush2.msra.mxu0 0.0
    %8981 = vmatprep.subr.mxu0 0.0
    %8982 = vmatpush2.msra.mxu0 0.0
    %8983 = vmatprep.subr.mxu0 0.0
    %8984 = vmatpush2.msra.mxu0 0.0
    %8985 = vmatprep.mubr.f32.mxu0 0.0
    %8986 = vmatmul.mubr.f32.gmra.mxu0 %v8919
    %v8987 = vpop.f32.mrf.mxu0
    %v8988 = vadd.f32 %v8915, %v8987
    %v8989 = vpop.f32.mrf.mxu0
    %8990 = vdwg.mxu0
    %v8991 = vadd.f32 %v8988, %v6699
    %v8992 = vxor.u32 %v8991, 2147483648
    %v8993 = vmul.f32 %v8992, 1.442695
    %v8994 = vpow.pop %v8993
    %v8995 = vadd.f32 %v8994, 1.0
    %v8996 = vrcp.pop %v8995
    %v8997 = vmul.f32 1.0, %v8996
    %v8998 = vtanh.pop %v8991
    %v8999 = vmul.f32 %v8997, %v8683
    %9001 = vrot.lane.b32.xlu0 %v8998, 64
    %v9002 = vpop.permute.xlu0 %9001
    %v9004 = vmul.f32 %v8997, %v9002
    %9006 = vrot.lane.b32.xlu0 %v9004, 32
    %v9007 = vpop.permute.xlu0 %9006
    %v9009 = vadd.f32 %v8999, %v9007
    %v9010 = vtanh.pop %v9009
    %9012 = vrot.lane.b32.xlu0 %v9010, 64
    %v9013 = vpop.permute.xlu0 %9012
    %v9015 = vmul.f32 %v8997, %v9013
    %9017 = vrot.lane.b32.xlu0 %v9015, 32
    %v9018 = vpop.permute.xlu0 %9017
    %v9019 = vsel %vm255, %v9018, 0
    %9021 = vmatprep.subr.mxu0 0.0
    %9022 = vmatpush1.msra.mxu0 0.0
    %9023 = vmatprep.subr.mxu0 0.0
    %9024 = vmatpush1.msra.mxu0 0.0
    %9025 = vmatprep.subr.mxu0 0.0
    %9026 = vmatpush1.msra.mxu0 0.0
    %9027 = vmatprep.subr.mxu0 0.0
    %9028 = vmatpush1.msra.mxu0 0.0
    %9029 = vmatprep.subr.mxu0 0.0
    %9030 = vmatpush1.msra.mxu0 0.0
    %9031 = vmatprep.subr.mxu0 0.0
    %9032 = vmatpush1.msra.mxu0 0.0
    %9033 = vmatprep.subr.mxu0 0.0
    %9034 = vmatpush1.msra.mxu0 0.0
    %9035 = vmatprep.subr.mxu0 0.0
    %9036 = vmatpush1.msra.mxu0 0.0
    %9037 = vmatprep.subr.mxu0 0.0
    %9038 = vmatpush1.msra.mxu0 0.0
    %9039 = vmatprep.subr.mxu0 0.0
    %9040 = vmatpush1.msra.mxu0 0.0
    %9041 = vmatprep.subr.mxu0 0.0
    %9042 = vmatpush1.msra.mxu0 0.0
    %9043 = vmatprep.subr.mxu0 0.0
    %9044 = vmatpush1.msra.mxu0 0.0
    %9045 = vmatprep.subr.mxu0 0.0
    %9046 = vmatpush1.msra.mxu0 %v6463
    %9047 = vmatprep.subr.mxu0 0.0
    %9048 = vmatpush1.msra.mxu0 %v6462
    %9049 = vmatprep.subr.mxu0 0.0
    %9050 = vmatpush1.msra.mxu0 %v6461
    %9051 = vmatprep.subr.mxu0 0.0
    %9052 = vmatpush1.msra.mxu0 %v6460
    %9053 = vmatprep.subr.mxu0 0.0
    %9054 = vmatpush2.msra.mxu0 0.0
    %9055 = vmatprep.subr.mxu0 0.0
    %9056 = vmatpush2.msra.mxu0 0.0
    %9057 = vmatprep.subr.mxu0 0.0
    %9058 = vmatpush2.msra.mxu0 0.0
    %9059 = vmatprep.subr.mxu0 0.0
    %9060 = vmatpush2.msra.mxu0 0.0
    %9061 = vmatprep.subr.mxu0 0.0
    %9062 = vmatpush2.msra.mxu0 0.0
    %9063 = vmatprep.subr.mxu0 0.0
    %9064 = vmatpush2.msra.mxu0 0.0
    %9065 = vmatprep.subr.mxu0 0.0
    %9066 = vmatpush2.msra.mxu0 0.0
    %9067 = vmatprep.subr.mxu0 0.0
    %9068 = vmatpush2.msra.mxu0 0.0
    %9069 = vmatprep.subr.mxu0 0.0
    %9070 = vmatpush2.msra.mxu0 0.0
    %9071 = vmatprep.subr.mxu0 0.0
    %9072 = vmatpush2.msra.mxu0 0.0
    %9073 = vmatprep.subr.mxu0 0.0
    %9074 = vmatpush2.msra.mxu0 0.0
    %9075 = vmatprep.subr.mxu0 0.0
    %9076 = vmatpush2.msra.mxu0 0.0
    %9077 = vmatprep.subr.mxu0 0.0
    %9078 = vmatpush2.msra.mxu0 0.0
    %9079 = vmatprep.subr.mxu0 0.0
    %9080 = vmatpush2.msra.mxu0 0.0
    %9081 = vmatprep.subr.mxu0 0.0
    %9082 = vmatpush2.msra.mxu0 0.0
    %9083 = vmatprep.subr.mxu0 0.0
    %9084 = vmatpush2.msra.mxu0 0.0
    %9085 = vmatprep.mubr.f32.mxu0 0.0
    %9086 = vmatmul.mubr.f32.gmra.mxu0 %v9019
    %v9087 = vpop.f32.mrf.mxu0
    %v9088 = vadd.f32 %v6733, %v9087
    %v9089 = vpop.f32.mrf.mxu0
    %9090 = vdwg.mxu0
    %s9091 = scalar_lea.vmem %s22, 28
    %9092 = vst [vmem:[%s9091] sm:$0xf] %v9088
    // Predicated region
    $region142: #{forward.1} parent=1 // pred_check
      _
    $region143: #{forward.1} parent=1 // pred_check_branch
      %9094 = sbr.rel (0) target = $region145
    $region144: #{forward.1} parent=1 // pred_region
      _
    $region145: #{forward.1} parent=1 // pred_fallthru
      _
    // Predicated region
    $region146: #{forward.1} parent=1 // pred_check
      _
    $region147: #{forward.1} parent=1 // pred_check_branch
      %9096 = sbr.rel (0) target = $region149
    $region148: #{forward.1} parent=1 // pred_region
      _
    $region149: #{forward.1} parent=1 // pred_fallthru
      _
    %9097 = vsyncpa [#allocation3], 1
    %9098 = vsyncpa [#allocation5], 1
    %9099 = vsyncpa [#allocation8], 1
    %9100 = vsyncpa [#allocation11], 1
    %9101 = vsyncpa [#allocation14], 1
    %9102 = vsyncpa [#allocation17], 1
    %9103 = vsyncpa [#allocation20], 1

</llo_original>
